<compile_context>
chip_gen: v7x
topology: tpu7x:2x2x1
jax: 0.10.0
libtpu: 0.0.40
codegen_flags: <defaults>
</compile_context>

<pallas_src>
import functools

import jax
import jax.numpy as jnp
import numpy as np
from jax import lax
from jax.experimental import pallas as pl
from jax.experimental.pallas import tpu as pltpu

# ----------------------------- model config (small) -------------------------
VOCAB = 64
D_MODEL = 32
N_HEADS = 4
D_KV = 8                      # inner dim = N_HEADS * D_KV = D_MODEL
D_FF = 64
N_LAYERS = 2
SEQ = 8
BATCH = 2
NUM_BUCKETS = 32
MAX_DISTANCE = 128
EPS = 1e-6
N_STREAMS = 6                 # q, a0, a1, a2, a3, t
NEG_INF = -1e9                # additive mask for cross-stream attention positions


# ----------------------------- fused Pallas kernel ---------------------------
def fused_t5_encoder_kernel(tok_ref, emb_ref, bias_ref, ln_ref,
                            wqkv_ref, wo_ref, wi_ref, wff_ref, out_ref,
                            *, n_layers, n_heads, d_kv, n_seq, seq, d_model, vocab):
    """Embedding + all T5 encoder layers + final RMSNorm + last-position select."""
    M = n_seq * seq
    H = n_heads

    # --- embedding lookup as a one-hot matmul (rides the otherwise-idle MXU) ---
    tok = tok_ref[...]                                              # (M, 1) int32
    onehot = (tok == lax.broadcasted_iota(jnp.int32, (M, vocab), 1)
              ).astype(jnp.bfloat16)
    x = jnp.dot(onehot, emb_ref[...],
                preferred_element_type=jnp.float32)                 # (M, D) f32

    for l in range(n_layers):                                       # static unroll
        # ---------------- self-attention block (pre-norm T5 RMSNorm) ----------------
        var = jnp.mean(x * x, axis=-1, keepdims=True)
        xn = (x * lax.rsqrt(var + EPS) * ln_ref[2 * l]).astype(jnp.bfloat16)
        xb = jnp.broadcast_to(xn[None], (H, M, d_model))            # head-batched view

        # fused Q/K/V: one head-batched matmul, then static lane splits
        qkv = jnp.einsum('hmd,hde->hme', xb, wqkv_ref[l],
                         preferred_element_type=jnp.float32)        # (H, M, 3*d_kv)
        q = qkv[..., :d_kv].astype(jnp.bfloat16)
        k = qkv[..., d_kv:2 * d_kv].astype(jnp.bfloat16)
        v = qkv[..., 2 * d_kv:].astype(jnp.bfloat16)

        # full (M x M) attention per head; bias already contains the relative-position
        # values on the per-stream diagonal blocks and -1e9 everywhere else, so the
        # softmax reproduces independent per-stream attention exactly.
        # T5 has NO 1/sqrt(d_kv) scaling.
        s = jnp.einsum('hqd,hkd->hqk', q, k,
                       preferred_element_type=jnp.float32) + bias_ref[...]   # (H, M, M)
        m = jnp.max(s, axis=-1, keepdims=True)
        p = jnp.exp(s - m)
        denom = jnp.sum(p, axis=-1, keepdims=True)
        p = (p / denom).astype(jnp.bfloat16)                        # exact softmax

        ctx = jnp.einsum('hqk,hkd->hqd', p, v,
                         preferred_element_type=jnp.float32).astype(jnp.bfloat16)
        attn_h = jnp.einsum('hmd,hde->hme', ctx, wo_ref[l],
                            preferred_element_type=jnp.float32)     # (H, M, D)
        x = x + jnp.sum(attn_h, axis=0)                             # residual

        # ---------------- feed-forward block (pre-norm, ReLU) ----------------
        var2 = jnp.mean(x * x, axis=-1, keepdims=True)
        xn2 = (x * lax.rsqrt(var2 + EPS) * ln_ref[2 * l + 1]).astype(jnp.bfloat16)
        hidden = jnp.maximum(
            jnp.dot(xn2, wi_ref[l], preferred_element_type=jnp.float32), 0.0)
        x = x + jnp.dot(hidden.astype(jnp.bfloat16), wff_ref[l],
                        preferred_element_type=jnp.float32)

    # --- final RMSNorm, applied only to the last sequence position of each stream ---
    last = x.reshape(n_seq, seq, d_model)[:, seq - 1, :]            # (n_seq, D)
    var_f = jnp.mean(last * last, axis=-1, keepdims=True)
    out_ref[...] = last * lax.rsqrt(var_f + EPS) * ln_ref[2 * n_layers]


# ----------------------------- pallas_call wrapper ----------------------------
def _vmem_spec():
    # whole array resident in VMEM; no grid, no block machinery, no double-buffering
    return pl.BlockSpec(memory_space=pltpu.MemorySpace.VMEM)


def run_fused_encoder(tok_flat, prepped):
    n_seq = tok_flat.shape[0] // SEQ
    assert prepped['bias'].shape == (N_HEADS, n_seq * SEQ, n_seq * SEQ)
    args = (tok_flat, prepped['emb'], prepped['bias'], prepped['ln'],
            prepped['wqkv'], prepped['wo'], prepped['wi'], prepped['wff'])
    kernel = functools.partial(
        fused_t5_encoder_kernel,
        n_layers=N_LAYERS, n_heads=N_HEADS, d_kv=D_KV,
        n_seq=n_seq, seq=SEQ, d_model=D_MODEL, vocab=VOCAB)
    return pl.pallas_call(
        kernel,
        in_specs=[_vmem_spec() for _ in args],
        out_specs=_vmem_spec(),
        out_shape=jax.ShapeDtypeStruct((n_seq, D_MODEL), jnp.float32),
        compiler_params=pltpu.CompilerParams(vmem_limit_bytes=32 * 1024 * 1024),
    )(*args)


# ----------------------------- position bias (precomputed once) ---------------
def compute_position_bias(rel_emb, seq_len):
    """T5 bidirectional relative-position bias -> (H, S, S)."""
    ctx = jnp.arange(seq_len)[:, None]
    mem = jnp.arange(seq_len)[None, :]
    rel = mem - ctx                                             # (S, S)
    nb = NUM_BUCKETS // 2
    buckets = (rel > 0).astype(jnp.int32) * nb
    rp = jnp.abs(rel)
    max_exact = nb // 2
    is_small = rp < max_exact
    rp_large = max_exact + (
        jnp.log(jnp.maximum(rp, 1).astype(jnp.float32) / max_exact)
        / np.log(MAX_DISTANCE / max_exact) * (nb - max_exact)
    ).astype(jnp.int32)
    rp_large = jnp.minimum(rp_large, nb - 1)
    buckets = buckets + jnp.where(is_small, rp, rp_large)       # (S, S)
    values = rel_emb[buckets]                                   # (S, S, H)
    return jnp.transpose(values, (2, 0, 1))                     # (H, S, S)


def compute_full_bias(rel_emb, seq_len, n_seq):
    """(H, M, M) = per-stream relative-position bias on the block diagonal, -1e9 off it."""
    bias = compute_position_bias(rel_emb, seq_len)              # (H, S, S)
    tiled = jnp.tile(bias, (1, n_seq, n_seq))                   # (H, M, M): b[h,i%S,j%S]
    blk = jnp.arange(n_seq * seq_len) // seq_len
    same = blk[:, None] == blk[None, :]                         # (M, M) block-diagonal
    return jnp.where(same[None, :, :], tiled, NEG_INF).astype(jnp.float32)


# ----------------------------- parameter init / prep --------------------------
def init_params(key):
    def nrm(k, shape, scale=0.05):
        return (scale * jax.random.normal(k, shape)).astype(jnp.float32)

    keys = jax.random.split(key, 3 + 6 * N_LAYERS)
    it = iter(keys)
    params = {
        'emb': nrm(next(it), (VOCAB, D_MODEL), 1.0),
        'rel_bias': nrm(next(it), (NUM_BUCKETS, N_HEADS), 0.5),
        'ln_f': (1.0 + 0.01 * jax.random.normal(next(it), (1, D_MODEL))).astype(jnp.float32),
        'layers': [],
    }
    inner = N_HEADS * D_KV
    for _l in range(N_LAYERS):
        params['layers'].append({
            'ln1': jnp.ones((1, D_MODEL), jnp.float32),
            'wq': nrm(next(it), (D_MODEL, inner)),
            'wk': nrm(next(it), (D_MODEL, inner)),
            'wv': nrm(next(it), (D_MODEL, inner)),
            'wo': nrm(next(it), (inner, D_MODEL)),
            'ln2': jnp.ones((1, D_MODEL), jnp.float32),
            'wi': nrm(next(it), (D_MODEL, D_FF)),
            'wo_ff': nrm(next(it), (D_FF, D_MODEL)),
        })
    return params


def prepare_params(params, n_seq=N_STREAMS * BATCH):
    """Pack weights for the fused kernel.

    * wq/wk/wv columns [h*d_kv:(h+1)*d_kv] become head h; the three are concatenated
      along the last axis into one (L, H, D, 3*d_kv) operand (fused QKV).
    * wo rows [h*d_kv:(h+1)*d_kv] become head h of (L, H, d_kv, D), so summing the
      per-head output projections reproduces concat(heads) @ wo exactly.
    * All LN vectors are packed into one (2L+1, D) slab: rows 2l / 2l+1 / 2L are
      ln1[l], ln2[l], ln_f.
    * Relative-position bias is pre-tiled + block-masked to (H, M, M).
    * Matmul weights are stored in bfloat16 (MXU-native); LN / bias stay f32.
    """
    def stack(name):
        return jnp.stack([lp[name] for lp in params['layers']])

    L = N_LAYERS

    def per_head_cols(w):                                        # (L, D, inner) -> (L, H, D, d_kv)
        return w.reshape(L, D_MODEL, N_HEADS, D_KV).transpose(0, 2, 1, 3)

    wqkv = jnp.concatenate(
        [per_head_cols(stack('wq')),
         per_head_cols(stack('wk')),
         per_head_cols(stack('wv'))], axis=-1)                   # (L, H, D, 3*d_kv)
    wo = stack('wo').reshape(L, N_HEADS, D_KV, D_MODEL)          # (L, H, d_kv, D)

    ln_rows = []
    for lp in params['layers']:
        ln_rows.append(lp['ln1'].reshape(-1))
        ln_rows.append(lp['ln2'].reshape(-1))
    ln_rows.append(params['ln_f'].reshape(-1))
    ln_all = jnp.stack(ln_rows)                                  # (2L+1, D) f32

    bf16 = lambda a: a.astype(jnp.bfloat16)
    return {
        'emb': bf16(params['emb']),                              # (V, D)       bf16
        'bias': compute_full_bias(params['rel_bias'], SEQ, n_seq),  # (H, M, M) f32
        'ln': ln_all,                                            # (2L+1, D)    f32
        'wqkv': bf16(wqkv),                                      # (L,H,D,3dkv) bf16
        'wo': bf16(wo),                                          # (L,H,dkv,D)  bf16
        'wi': bf16(stack('wi')),                                 # (L, D, D_FF) bf16
        'wff': bf16(stack('wo_ff')),                             # (L, D_FF, D) bf16
    }


# ----------------------------- forward (module semantics) --------------------
@jax.jit
def t5_encoder_text_only_forward(prepped, q, a0, a1, a2, a3, t):
    # Same shared T5 encoder applied to each input; stack -> one fused pass -> split.
    toks = jnp.concatenate([q, a0, a1, a2, a3, t], axis=0)       # (6*B, S)
    tok_flat = toks.reshape(-1, 1).astype(jnp.int32)             # (6*B*S, 1)
    enc = run_fused_encoder(tok_flat, prepped)                   # (6*B, D)
    B = q.shape[0]
    return tuple(enc[i * B:(i + 1) * B] for i in range(N_STREAMS))


if __name__ == "__main__":
    key = jax.random.PRNGKey(0)
    pkey, dkey = jax.random.split(key)
    params = init_params(pkey)
    prepped = prepare_params(params)

    tkeys = jax.random.split(dkey, 6)
    q, a0, a1, a2, a3, t = (
        jax.random.randint(k, (BATCH, SEQ), 0, VOCAB, dtype=jnp.int32) for k in tkeys
    )

    outs = t5_encoder_text_only_forward(prepped, q, a0, a1, a2, a3, t)
    outs = jax.block_until_ready(outs)

    assert len(outs) == 6
    for o in outs:
        assert o.shape == (BATCH, D_MODEL) and o.dtype == jnp.float32
        assert bool(jnp.all(jnp.isfinite(o)))
    print("KERNEL_OK")
</pallas_src>

<mosaic_0001>
module attributes {stable_mosaic.version = 11 : i64} {
  func.func @fused_t5_encoder_kernel(%arg0: memref<96x1xi32, #tpu.memory_space<vmem>>, %arg1: memref<64x32xbf16, #tpu.memory_space<vmem>>, %arg2: memref<4x96x96xf32, #tpu.memory_space<vmem>>, %arg3: memref<5x32xf32, #tpu.memory_space<vmem>>, %arg4: memref<2x4x32x24xbf16, #tpu.memory_space<vmem>>, %arg5: memref<2x4x8x32xbf16, #tpu.memory_space<vmem>>, %arg6: memref<2x32x64xbf16, #tpu.memory_space<vmem>>, %arg7: memref<2x64x32xbf16, #tpu.memory_space<vmem>>, %arg8: memref<12x32xf32, #tpu.memory_space<vmem>>) attributes {dimension_semantics = [], scalar_prefetch = 0 : i64, scratch_operands = 0 : i64, tpu.core_type = #tpu.core_type<tc>} {
    %c0 = arith.constant 0 : index
    %c0_0 = arith.constant 0 : index
    %0 = vector.load %arg0[%c0, %c0_0] : memref<96x1xi32, #tpu.memory_space<vmem>>, vector<96x1xi32>
    %1 = tpu.iota {dimensions = array<i32: 1>} : vector<96x64xi32>
    %2 = vector.broadcast %0 : vector<96x1xi32> to vector<96x64xi32>
    %3 = arith.cmpi eq, %2, %1 : vector<96x64xi32>
    %4 = arith.extui %3 : vector<96x64xi1> to vector<96x64xi32>
    %5 = arith.sitofp %4 : vector<96x64xi32> to vector<96x64xf32>
    %6 = arith.truncf %5 : vector<96x64xf32> to vector<96x64xbf16>
    %c0_1 = arith.constant 0 : index
    %c0_2 = arith.constant 0 : index
    %7 = vector.load %arg1[%c0_1, %c0_2] : memref<64x32xbf16, #tpu.memory_space<vmem>>, vector<64x32xbf16>
    %cst = arith.constant dense<0.000000e+00> : vector<96x32xf32>
    %8 = tpu.matmul %6, %7, %cst {dimension_numbers = #tpu.dot_dimension_numbers<[1], [0], [0], [1], [0, 0, 1, 1], [], []>} : vector<96x64xbf16>, vector<64x32xbf16>, vector<96x32xf32> -> vector<96x32xf32>
    %9 = arith.mulf %8, %8 : vector<96x32xf32>
    %cst_3 = arith.constant dense<0.000000e+00> : vector<96xf32>
    %10 = vector.multi_reduction <add>, %9, %cst_3 [1] : vector<96x32xf32> to vector<96xf32>
    %11 = vector.shape_cast %10 : vector<96xf32> to vector<96x1xf32>
    %cst_4 = arith.constant 3.200000e+01 : f32
    %12 = vector.broadcast %cst_4 : f32 to vector<96x1xf32>
    %13 = arith.divf %11, %12 : vector<96x1xf32>
    %cst_5 = arith.constant 9.99999997E-7 : f32
    %14 = vector.broadcast %cst_5 : f32 to vector<96x1xf32>
    %15 = arith.addf %13, %14 : vector<96x1xf32>
    %16 = math.rsqrt %15 : vector<96x1xf32>
    %17 = vector.broadcast %16 : vector<96x1xf32> to vector<96x32xf32>
    %18 = arith.mulf %8, %17 : vector<96x32xf32>
    %c0_6 = arith.constant 0 : index
    %c0_7 = arith.constant 0 : index
    %19 = vector.load %arg3[%c0_6, %c0_7] : memref<5x32xf32, #tpu.memory_space<vmem>>, vector<1x32xf32>
    %20 = vector.shape_cast %19 : vector<1x32xf32> to vector<32xf32>
    %21 = vector.shape_cast %20 : vector<32xf32> to vector<1x32xf32>
    %22 = vector.broadcast %21 : vector<1x32xf32> to vector<96x32xf32>
    %23 = arith.mulf %18, %22 : vector<96x32xf32>
    %24 = arith.truncf %23 : vector<96x32xf32> to vector<96x32xbf16>
    %25 = vector.shape_cast %24 : vector<96x32xbf16> to vector<1x96x32xbf16>
    %26 = vector.shape_cast %25 : vector<1x96x32xbf16> to vector<1x96x32xbf16>
    %27 = vector.broadcast %26 : vector<1x96x32xbf16> to vector<4x96x32xbf16>
    %c0_8 = arith.constant 0 : index
    %c0_9 = arith.constant 0 : index
    %c0_10 = arith.constant 0 : index
    %c0_11 = arith.constant 0 : index
    %28 = vector.load %arg4[%c0_8, %c0_9, %c0_10, %c0_11] : memref<2x4x32x24xbf16, #tpu.memory_space<vmem>>, vector<1x4x32x24xbf16>
    %29 = vector.shape_cast %28 : vector<1x4x32x24xbf16> to vector<4x32x24xbf16>
    "tpu.trace_start"() <{level = 10 : i32, message = "hmd,hde->hme"}> : () -> ()
    %cst_12 = arith.constant dense<0.000000e+00> : vector<4x96x24xf32>
    %30 = tpu.matmul %27, %29, %cst_12 {dimension_numbers = #tpu.dot_dimension_numbers<[2], [1], [1], [2], [0, 0, 0, 1, 1, 2], [0], [0]>} : vector<4x96x32xbf16>, vector<4x32x24xbf16>, vector<4x96x24xf32> -> vector<4x96x24xf32>
    "tpu.trace_stop"() : () -> ()
    %31 = vector.extract_strided_slice %30 {offsets = [0, 0, 0], sizes = [4, 96, 8], strides = [1, 1, 1]} : vector<4x96x24xf32> to vector<4x96x8xf32>
    %32 = arith.truncf %31 : vector<4x96x8xf32> to vector<4x96x8xbf16>
    %33 = vector.extract_strided_slice %30 {offsets = [0, 0, 8], sizes = [4, 96, 8], strides = [1, 1, 1]} : vector<4x96x24xf32> to vector<4x96x8xf32>
    %34 = arith.truncf %33 : vector<4x96x8xf32> to vector<4x96x8xbf16>
    %35 = vector.extract_strided_slice %30 {offsets = [0, 0, 16], sizes = [4, 96, 8], strides = [1, 1, 1]} : vector<4x96x24xf32> to vector<4x96x8xf32>
    %36 = arith.truncf %35 : vector<4x96x8xf32> to vector<4x96x8xbf16>
    "tpu.trace_start"() <{level = 10 : i32, message = "hqd,hkd->hqk"}> : () -> ()
    %cst_13 = arith.constant dense<0.000000e+00> : vector<4x96x96xf32>
    %37 = tpu.matmul %32, %34, %cst_13 {dimension_numbers = #tpu.dot_dimension_numbers<[2], [2], [1], [1], [0, 0, 0, 1, 1, 1], [0], [0]>} : vector<4x96x8xbf16>, vector<4x96x8xbf16>, vector<4x96x96xf32> -> vector<4x96x96xf32>
    "tpu.trace_stop"() : () -> ()
    %c0_14 = arith.constant 0 : index
    %c0_15 = arith.constant 0 : index
    %c0_16 = arith.constant 0 : index
    %38 = vector.load %arg2[%c0_14, %c0_15, %c0_16] : memref<4x96x96xf32, #tpu.memory_space<vmem>>, vector<4x96x96xf32>
    %39 = arith.addf %37, %38 : vector<4x96x96xf32>
    %cst_17 = arith.constant dense<0xFF800000> : vector<4x96xf32>
    %40 = vector.multi_reduction <maximumf>, %39, %cst_17 [2] : vector<4x96x96xf32> to vector<4x96xf32>
    %41 = vector.shape_cast %40 : vector<4x96xf32> to vector<4x96x1xf32>
    %42 = vector.broadcast %41 : vector<4x96x1xf32> to vector<4x96x96xf32>
    %43 = arith.subf %39, %42 : vector<4x96x96xf32>
    %44 = math.exp %43 : vector<4x96x96xf32>
    %cst_18 = arith.constant dense<0.000000e+00> : vector<4x96xf32>
    %45 = vector.multi_reduction <add>, %44, %cst_18 [2] : vector<4x96x96xf32> to vector<4x96xf32>
    %46 = vector.shape_cast %45 : vector<4x96xf32> to vector<4x96x1xf32>
    %47 = vector.broadcast %46 : vector<4x96x1xf32> to vector<4x96x96xf32>
    %48 = arith.divf %44, %47 : vector<4x96x96xf32>
    %49 = arith.truncf %48 : vector<4x96x96xf32> to vector<4x96x96xbf16>
    "tpu.trace_start"() <{level = 10 : i32, message = "hqk,hkd->hqd"}> : () -> ()
    %cst_19 = arith.constant dense<0.000000e+00> : vector<4x96x8xf32>
    %50 = tpu.matmul %49, %36, %cst_19 {dimension_numbers = #tpu.dot_dimension_numbers<[2], [1], [1], [2], [0, 0, 0, 1, 1, 2], [0], [0]>} : vector<4x96x96xbf16>, vector<4x96x8xbf16>, vector<4x96x8xf32> -> vector<4x96x8xf32>
    "tpu.trace_stop"() : () -> ()
    %51 = arith.truncf %50 : vector<4x96x8xf32> to vector<4x96x8xbf16>
    %c0_20 = arith.constant 0 : index
    %c0_21 = arith.constant 0 : index
    %c0_22 = arith.constant 0 : index
    %c0_23 = arith.constant 0 : index
    %52 = vector.load %arg5[%c0_20, %c0_21, %c0_22, %c0_23] : memref<2x4x8x32xbf16, #tpu.memory_space<vmem>>, vector<1x4x8x32xbf16>
    %53 = vector.shape_cast %52 : vector<1x4x8x32xbf16> to vector<4x8x32xbf16>
    "tpu.trace_start"() <{level = 10 : i32, message = "hmd,hde->hme"}> : () -> ()
    %cst_24 = arith.constant dense<0.000000e+00> : vector<4x96x32xf32>
    %54 = tpu.matmul %51, %53, %cst_24 {dimension_numbers = #tpu.dot_dimension_numbers<[2], [1], [1], [2], [0, 0, 0, 1, 1, 2], [0], [0]>} : vector<4x96x8xbf16>, vector<4x8x32xbf16>, vector<4x96x32xf32> -> vector<4x96x32xf32>
    "tpu.trace_stop"() : () -> ()
    %cst_25 = arith.constant dense<0.000000e+00> : vector<96x32xf32>
    %55 = vector.multi_reduction <add>, %54, %cst_25 [0] : vector<4x96x32xf32> to vector<96x32xf32>
    %56 = arith.addf %8, %55 : vector<96x32xf32>
    %57 = arith.mulf %56, %56 : vector<96x32xf32>
    %cst_26 = arith.constant dense<0.000000e+00> : vector<96xf32>
    %58 = vector.multi_reduction <add>, %57, %cst_26 [1] : vector<96x32xf32> to vector<96xf32>
    %59 = vector.shape_cast %58 : vector<96xf32> to vector<96x1xf32>
    %cst_27 = arith.constant 3.200000e+01 : f32
    %60 = vector.broadcast %cst_27 : f32 to vector<96x1xf32>
    %61 = arith.divf %59, %60 : vector<96x1xf32>
    %cst_28 = arith.constant 9.99999997E-7 : f32
    %62 = vector.broadcast %cst_28 : f32 to vector<96x1xf32>
    %63 = arith.addf %61, %62 : vector<96x1xf32>
    %64 = math.rsqrt %63 : vector<96x1xf32>
    %65 = vector.broadcast %64 : vector<96x1xf32> to vector<96x32xf32>
    %66 = arith.mulf %56, %65 : vector<96x32xf32>
    %c1 = arith.constant 1 : index
    %c0_29 = arith.constant 0 : index
    %67 = vector.load %arg3[%c1, %c0_29] : memref<5x32xf32, #tpu.memory_space<vmem>>, vector<1x32xf32>
    %68 = vector.shape_cast %67 : vector<1x32xf32> to vector<32xf32>
    %69 = vector.shape_cast %68 : vector<32xf32> to vector<1x32xf32>
    %70 = vector.broadcast %69 : vector<1x32xf32> to vector<96x32xf32>
    %71 = arith.mulf %66, %70 : vector<96x32xf32>
    %72 = arith.truncf %71 : vector<96x32xf32> to vector<96x32xbf16>
    %c0_30 = arith.constant 0 : index
    %c0_31 = arith.constant 0 : index
    %c0_32 = arith.constant 0 : index
    %73 = vector.load %arg6[%c0_30, %c0_31, %c0_32] : memref<2x32x64xbf16, #tpu.memory_space<vmem>>, vector<1x32x64xbf16>
    %74 = vector.shape_cast %73 : vector<1x32x64xbf16> to vector<32x64xbf16>
    %cst_33 = arith.constant dense<0.000000e+00> : vector<96x64xf32>
    %75 = tpu.matmul %72, %74, %cst_33 {dimension_numbers = #tpu.dot_dimension_numbers<[1], [0], [0], [1], [0, 0, 1, 1], [], []>} : vector<96x32xbf16>, vector<32x64xbf16>, vector<96x64xf32> -> vector<96x64xf32>
    %cst_34 = arith.constant 0.000000e+00 : f32
    %76 = vector.broadcast %cst_34 : f32 to vector<96x64xf32>
    %77 = arith.maximumf %75, %76 : vector<96x64xf32>
    %78 = arith.truncf %77 : vector<96x64xf32> to vector<96x64xbf16>
    %c0_35 = arith.constant 0 : index
    %c0_36 = arith.constant 0 : index
    %c0_37 = arith.constant 0 : index
    %79 = vector.load %arg7[%c0_35, %c0_36, %c0_37] : memref<2x64x32xbf16, #tpu.memory_space<vmem>>, vector<1x64x32xbf16>
    %80 = vector.shape_cast %79 : vector<1x64x32xbf16> to vector<64x32xbf16>
    %cst_38 = arith.constant dense<0.000000e+00> : vector<96x32xf32>
    %81 = tpu.matmul %78, %80, %cst_38 {dimension_numbers = #tpu.dot_dimension_numbers<[1], [0], [0], [1], [0, 0, 1, 1], [], []>} : vector<96x64xbf16>, vector<64x32xbf16>, vector<96x32xf32> -> vector<96x32xf32>
    %82 = arith.addf %56, %81 : vector<96x32xf32>
    %83 = arith.mulf %82, %82 : vector<96x32xf32>
    %cst_39 = arith.constant dense<0.000000e+00> : vector<96xf32>
    %84 = vector.multi_reduction <add>, %83, %cst_39 [1] : vector<96x32xf32> to vector<96xf32>
    %85 = vector.shape_cast %84 : vector<96xf32> to vector<96x1xf32>
    %cst_40 = arith.constant 3.200000e+01 : f32
    %86 = vector.broadcast %cst_40 : f32 to vector<96x1xf32>
    %87 = arith.divf %85, %86 : vector<96x1xf32>
    %cst_41 = arith.constant 9.99999997E-7 : f32
    %88 = vector.broadcast %cst_41 : f32 to vector<96x1xf32>
    %89 = arith.addf %87, %88 : vector<96x1xf32>
    %90 = math.rsqrt %89 : vector<96x1xf32>
    %91 = vector.broadcast %90 : vector<96x1xf32> to vector<96x32xf32>
    %92 = arith.mulf %82, %91 : vector<96x32xf32>
    %c2 = arith.constant 2 : index
    %c0_42 = arith.constant 0 : index
    %93 = vector.load %arg3[%c2, %c0_42] : memref<5x32xf32, #tpu.memory_space<vmem>>, vector<1x32xf32>
    %94 = vector.shape_cast %93 : vector<1x32xf32> to vector<32xf32>
    %95 = vector.shape_cast %94 : vector<32xf32> to vector<1x32xf32>
    %96 = vector.broadcast %95 : vector<1x32xf32> to vector<96x32xf32>
    %97 = arith.mulf %92, %96 : vector<96x32xf32>
    %98 = arith.truncf %97 : vector<96x32xf32> to vector<96x32xbf16>
    %99 = vector.shape_cast %98 : vector<96x32xbf16> to vector<1x96x32xbf16>
    %100 = vector.shape_cast %99 : vector<1x96x32xbf16> to vector<1x96x32xbf16>
    %101 = vector.broadcast %100 : vector<1x96x32xbf16> to vector<4x96x32xbf16>
    %c1_43 = arith.constant 1 : index
    %c0_44 = arith.constant 0 : index
    %c0_45 = arith.constant 0 : index
    %c0_46 = arith.constant 0 : index
    %102 = vector.load %arg4[%c1_43, %c0_44, %c0_45, %c0_46] : memref<2x4x32x24xbf16, #tpu.memory_space<vmem>>, vector<1x4x32x24xbf16>
    %103 = vector.shape_cast %102 : vector<1x4x32x24xbf16> to vector<4x32x24xbf16>
    "tpu.trace_start"() <{level = 10 : i32, message = "hmd,hde->hme"}> : () -> ()
    %cst_47 = arith.constant dense<0.000000e+00> : vector<4x96x24xf32>
    %104 = tpu.matmul %101, %103, %cst_47 {dimension_numbers = #tpu.dot_dimension_numbers<[2], [1], [1], [2], [0, 0, 0, 1, 1, 2], [0], [0]>} : vector<4x96x32xbf16>, vector<4x32x24xbf16>, vector<4x96x24xf32> -> vector<4x96x24xf32>
    "tpu.trace_stop"() : () -> ()
    %105 = vector.extract_strided_slice %104 {offsets = [0, 0, 0], sizes = [4, 96, 8], strides = [1, 1, 1]} : vector<4x96x24xf32> to vector<4x96x8xf32>
    %106 = arith.truncf %105 : vector<4x96x8xf32> to vector<4x96x8xbf16>
    %107 = vector.extract_strided_slice %104 {offsets = [0, 0, 8], sizes = [4, 96, 8], strides = [1, 1, 1]} : vector<4x96x24xf32> to vector<4x96x8xf32>
    %108 = arith.truncf %107 : vector<4x96x8xf32> to vector<4x96x8xbf16>
    %109 = vector.extract_strided_slice %104 {offsets = [0, 0, 16], sizes = [4, 96, 8], strides = [1, 1, 1]} : vector<4x96x24xf32> to vector<4x96x8xf32>
    %110 = arith.truncf %109 : vector<4x96x8xf32> to vector<4x96x8xbf16>
    "tpu.trace_start"() <{level = 10 : i32, message = "hqd,hkd->hqk"}> : () -> ()
    %cst_48 = arith.constant dense<0.000000e+00> : vector<4x96x96xf32>
    %111 = tpu.matmul %106, %108, %cst_48 {dimension_numbers = #tpu.dot_dimension_numbers<[2], [2], [1], [1], [0, 0, 0, 1, 1, 1], [0], [0]>} : vector<4x96x8xbf16>, vector<4x96x8xbf16>, vector<4x96x96xf32> -> vector<4x96x96xf32>
    "tpu.trace_stop"() : () -> ()
    %c0_49 = arith.constant 0 : index
    %c0_50 = arith.constant 0 : index
    %c0_51 = arith.constant 0 : index
    %112 = vector.load %arg2[%c0_49, %c0_50, %c0_51] : memref<4x96x96xf32, #tpu.memory_space<vmem>>, vector<4x96x96xf32>
    %113 = arith.addf %111, %112 : vector<4x96x96xf32>
    %cst_52 = arith.constant dense<0xFF800000> : vector<4x96xf32>
    %114 = vector.multi_reduction <maximumf>, %113, %cst_52 [2] : vector<4x96x96xf32> to vector<4x96xf32>
    %115 = vector.shape_cast %114 : vector<4x96xf32> to vector<4x96x1xf32>
    %116 = vector.broadcast %115 : vector<4x96x1xf32> to vector<4x96x96xf32>
    %117 = arith.subf %113, %116 : vector<4x96x96xf32>
    %118 = math.exp %117 : vector<4x96x96xf32>
    %cst_53 = arith.constant dense<0.000000e+00> : vector<4x96xf32>
    %119 = vector.multi_reduction <add>, %118, %cst_53 [2] : vector<4x96x96xf32> to vector<4x96xf32>
    %120 = vector.shape_cast %119 : vector<4x96xf32> to vector<4x96x1xf32>
    %121 = vector.broadcast %120 : vector<4x96x1xf32> to vector<4x96x96xf32>
    %122 = arith.divf %118, %121 : vector<4x96x96xf32>
    %123 = arith.truncf %122 : vector<4x96x96xf32> to vector<4x96x96xbf16>
    "tpu.trace_start"() <{level = 10 : i32, message = "hqk,hkd->hqd"}> : () -> ()
    %cst_54 = arith.constant dense<0.000000e+00> : vector<4x96x8xf32>
    %124 = tpu.matmul %123, %110, %cst_54 {dimension_numbers = #tpu.dot_dimension_numbers<[2], [1], [1], [2], [0, 0, 0, 1, 1, 2], [0], [0]>} : vector<4x96x96xbf16>, vector<4x96x8xbf16>, vector<4x96x8xf32> -> vector<4x96x8xf32>
    "tpu.trace_stop"() : () -> ()
    %125 = arith.truncf %124 : vector<4x96x8xf32> to vector<4x96x8xbf16>
    %c1_55 = arith.constant 1 : index
    %c0_56 = arith.constant 0 : index
    %c0_57 = arith.constant 0 : index
    %c0_58 = arith.constant 0 : index
    %126 = vector.load %arg5[%c1_55, %c0_56, %c0_57, %c0_58] : memref<2x4x8x32xbf16, #tpu.memory_space<vmem>>, vector<1x4x8x32xbf16>
    %127 = vector.shape_cast %126 : vector<1x4x8x32xbf16> to vector<4x8x32xbf16>
    "tpu.trace_start"() <{level = 10 : i32, message = "hmd,hde->hme"}> : () -> ()
    %cst_59 = arith.constant dense<0.000000e+00> : vector<4x96x32xf32>
    %128 = tpu.matmul %125, %127, %cst_59 {dimension_numbers = #tpu.dot_dimension_numbers<[2], [1], [1], [2], [0, 0, 0, 1, 1, 2], [0], [0]>} : vector<4x96x8xbf16>, vector<4x8x32xbf16>, vector<4x96x32xf32> -> vector<4x96x32xf32>
    "tpu.trace_stop"() : () -> ()
    %cst_60 = arith.constant dense<0.000000e+00> : vector<96x32xf32>
    %129 = vector.multi_reduction <add>, %128, %cst_60 [0] : vector<4x96x32xf32> to vector<96x32xf32>
    %130 = arith.addf %82, %129 : vector<96x32xf32>
    %131 = arith.mulf %130, %130 : vector<96x32xf32>
    %cst_61 = arith.constant dense<0.000000e+00> : vector<96xf32>
    %132 = vector.multi_reduction <add>, %131, %cst_61 [1] : vector<96x32xf32> to vector<96xf32>
    %133 = vector.shape_cast %132 : vector<96xf32> to vector<96x1xf32>
    %cst_62 = arith.constant 3.200000e+01 : f32
    %134 = vector.broadcast %cst_62 : f32 to vector<96x1xf32>
    %135 = arith.divf %133, %134 : vector<96x1xf32>
    %cst_63 = arith.constant 9.99999997E-7 : f32
    %136 = vector.broadcast %cst_63 : f32 to vector<96x1xf32>
    %137 = arith.addf %135, %136 : vector<96x1xf32>
    %138 = math.rsqrt %137 : vector<96x1xf32>
    %139 = vector.broadcast %138 : vector<96x1xf32> to vector<96x32xf32>
    %140 = arith.mulf %130, %139 : vector<96x32xf32>
    %c3 = arith.constant 3 : index
    %c0_64 = arith.constant 0 : index
    %141 = vector.load %arg3[%c3, %c0_64] : memref<5x32xf32, #tpu.memory_space<vmem>>, vector<1x32xf32>
    %142 = vector.shape_cast %141 : vector<1x32xf32> to vector<32xf32>
    %143 = vector.shape_cast %142 : vector<32xf32> to vector<1x32xf32>
    %144 = vector.broadcast %143 : vector<1x32xf32> to vector<96x32xf32>
    %145 = arith.mulf %140, %144 : vector<96x32xf32>
    %146 = arith.truncf %145 : vector<96x32xf32> to vector<96x32xbf16>
    %c1_65 = arith.constant 1 : index
    %c0_66 = arith.constant 0 : index
    %c0_67 = arith.constant 0 : index
    %147 = vector.load %arg6[%c1_65, %c0_66, %c0_67] : memref<2x32x64xbf16, #tpu.memory_space<vmem>>, vector<1x32x64xbf16>
    %148 = vector.shape_cast %147 : vector<1x32x64xbf16> to vector<32x64xbf16>
    %cst_68 = arith.constant dense<0.000000e+00> : vector<96x64xf32>
    %149 = tpu.matmul %146, %148, %cst_68 {dimension_numbers = #tpu.dot_dimension_numbers<[1], [0], [0], [1], [0, 0, 1, 1], [], []>} : vector<96x32xbf16>, vector<32x64xbf16>, vector<96x64xf32> -> vector<96x64xf32>
    %cst_69 = arith.constant 0.000000e+00 : f32
    %150 = vector.broadcast %cst_69 : f32 to vector<96x64xf32>
    %151 = arith.maximumf %149, %150 : vector<96x64xf32>
    %152 = arith.truncf %151 : vector<96x64xf32> to vector<96x64xbf16>
    %c1_70 = arith.constant 1 : index
    %c0_71 = arith.constant 0 : index
    %c0_72 = arith.constant 0 : index
    %153 = vector.load %arg7[%c1_70, %c0_71, %c0_72] : memref<2x64x32xbf16, #tpu.memory_space<vmem>>, vector<1x64x32xbf16>
    %154 = vector.shape_cast %153 : vector<1x64x32xbf16> to vector<64x32xbf16>
    %cst_73 = arith.constant dense<0.000000e+00> : vector<96x32xf32>
    %155 = tpu.matmul %152, %154, %cst_73 {dimension_numbers = #tpu.dot_dimension_numbers<[1], [0], [0], [1], [0, 0, 1, 1], [], []>} : vector<96x64xbf16>, vector<64x32xbf16>, vector<96x32xf32> -> vector<96x32xf32>
    %156 = arith.addf %130, %155 : vector<96x32xf32>
    %157 = vector.shape_cast %156 : vector<96x32xf32> to vector<12x8x32xf32>
    %158 = vector.extract_strided_slice %157 {offsets = [0, 7, 0], sizes = [12, 1, 32], strides = [1, 1, 1]} : vector<12x8x32xf32> to vector<12x1x32xf32>
    %159 = vector.shape_cast %158 : vector<12x1x32xf32> to vector<12x32xf32>
    %160 = arith.mulf %159, %159 : vector<12x32xf32>
    %cst_74 = arith.constant dense<0.000000e+00> : vector<12xf32>
    %161 = vector.multi_reduction <add>, %160, %cst_74 [1] : vector<12x32xf32> to vector<12xf32>
    %162 = vector.shape_cast %161 : vector<12xf32> to vector<12x1xf32>
    %cst_75 = arith.constant 3.200000e+01 : f32
    %163 = vector.broadcast %cst_75 : f32 to vector<12x1xf32>
    %164 = arith.divf %162, %163 : vector<12x1xf32>
    %cst_76 = arith.constant 9.99999997E-7 : f32
    %165 = vector.broadcast %cst_76 : f32 to vector<12x1xf32>
    %166 = arith.addf %164, %165 : vector<12x1xf32>
    %167 = math.rsqrt %166 : vector<12x1xf32>
    %168 = vector.broadcast %167 : vector<12x1xf32> to vector<12x32xf32>
    %169 = arith.mulf %159, %168 : vector<12x32xf32>
    %c4 = arith.constant 4 : index
    %c0_77 = arith.constant 0 : index
    %170 = vector.load %arg3[%c4, %c0_77] : memref<5x32xf32, #tpu.memory_space<vmem>>, vector<1x32xf32>
    %171 = vector.shape_cast %170 : vector<1x32xf32> to vector<32xf32>
    %172 = vector.shape_cast %171 : vector<32xf32> to vector<1x32xf32>
    %173 = vector.broadcast %172 : vector<1x32xf32> to vector<12x32xf32>
    %174 = arith.mulf %169, %173 : vector<12x32xf32>
    %c0_78 = arith.constant 0 : index
    %c0_79 = arith.constant 0 : index
    %175 = vector.load %arg8[%c0_78, %c0_79] : memref<12x32xf32, #tpu.memory_space<vmem>>, vector<12x32xf32>
    tpu.vector_store %arg8[%c0_78, %c0_79], %174 {strides = array<i32>} : memref<12x32xf32, #tpu.memory_space<vmem>>, vector<12x32xf32>,
    return
  }
}

</mosaic_0001>

<llo_original>
// kernel: t5_encoder_text_only_forward.1
$region0: #{t5_encoder_text_only_forward.1}
  #allocation0 [shape = 'u32[]', space=smem, size = 0x4, offset = 0x4, fixed_abs, tag = 'smem constant byte address 0x4 - core index']
  #allocation1 [shape = 'u32[144,128]{1,0:T(1,128)}', space=vmem, size = 0x12000, scoped, tag = 'internal scratch']
  %s0 = inlined_call_operand.vmem [shape: s32[96,1], index: 0, kind: input, shape index: {}]
  %s1 = inlined_call_operand.vmem [shape: bf16[64,32], index: 1, kind: input, shape index: {}]
  %s2 = inlined_call_operand.vmem [shape: f32[4,96,96], index: 2, kind: input, shape index: {}]
  %s3 = inlined_call_operand.hbm [shape: f32[5,32], index: 3, kind: input, shape index: {}]
  %s4 = inlined_call_operand.vmem [shape: bf16[2,4,32,24], index: 4, kind: input, shape index: {}]
  %s5 = inlined_call_operand.hbm [shape: bf16[2,4,8,32], index: 5, kind: input, shape index: {}]
  %s6 = inlined_call_operand.hbm [shape: bf16[2,32,64], index: 6, kind: input, shape index: {}]
  %s7 = inlined_call_operand.vmem [shape: bf16[2,64,32], index: 7, kind: input, shape index: {}]
  %s8 = inlined_call_operand.vmem [shape: f32[12,32], index: 8, kind: output, shape index: {}]
  %s9 = sld [smem:[#allocation0]]
  $region54: #{t5_encoder_text_only_forward.1} parent=0
    _
  %s11 = ssub.s32 1, %s9
  %s12 = scalar_select 0, %s11, %s9
  $region1: #{t5_encoder_text_only_forward.1} parent=0
    #allocation2 [shape = 'u8[4096]{0}', space=vmem, size = 0x1000, scoped, tag = 'input window, operand 3, single buffered']
    #allocation3 [shape = 's32[1]{0}', space=sflag, size = 0x4, scoped, tag = 'scoped memory for t5_encoder_text_only_forward.1']
    #allocation4 [shape = 'u8[16384]{0}', space=vmem, size = 0x4000, scoped, tag = 'input window, operand 5, single buffered']
    #allocation5 [shape = 's32[1]{0}', space=sflag, size = 0x4, scoped, tag = 'scoped memory for t5_encoder_text_only_forward.1']
    #allocation6 [shape = 'u8[16384]{0}', space=vmem, size = 0x4000, scoped, tag = 'input window, operand 6, single buffered']
    %13 = vsyncpa [#allocation3], 0
    %14 = vsyncpa [#allocation5], 0
    // Predicated region
    $region2: #{t5_encoder_text_only_forward.1} parent=1 // pred_check
      _
    $region3: #{t5_encoder_text_only_forward.1} parent=1 // pred_check_branch
      %16 = sbr.rel (0) target = $region5
    $region4: #{t5_encoder_text_only_forward.1} parent=1 // pred_region
      _
    $region5: #{t5_encoder_text_only_forward.1} parent=1 // pred_fallthru
      _
    // Predicated region
    $region6: #{t5_encoder_text_only_forward.1} parent=1 // pred_check
      _
    $region7: #{t5_encoder_text_only_forward.1} parent=1 // pred_check_branch
      %18 = sbr.rel (0) target = $region9
    $region8: #{t5_encoder_text_only_forward.1} parent=1 // pred_region
      _
    $region9: #{t5_encoder_text_only_forward.1} parent=1 // pred_fallthru
      _
    // Predicated region
    $region10: #{t5_encoder_text_only_forward.1} parent=1 // pred_check
      _
    $region11: #{t5_encoder_text_only_forward.1} parent=1 // pred_check_branch
      %20 = sbr.rel (0) target = $region13
    $region12: #{t5_encoder_text_only_forward.1} parent=1 // pred_region
      _
    $region13: #{t5_encoder_text_only_forward.1} parent=1 // pred_fallthru
      _
    // Predicated region
    $region14: #{t5_encoder_text_only_forward.1} parent=1 // pred_check
      _
    $region15: #{t5_encoder_text_only_forward.1} parent=1 // pred_check_branch
      %22 = sbr.rel (0) target = $region17
    $region16: #{t5_encoder_text_only_forward.1} parent=1 // pred_region
      %s24 = ssub.s32 128, 128
      %25 = vsyncadd [#allocation3], %s24
      %s27 = sshll.u32 [#allocation2], 4
      %s28 = int_to_ptr.vmem [resolvable:$true] %s27
      %30 = dma.hbm_to_vmem [thread:$0]  %s3, 128, %s28, [#allocation3]
    $region17: #{t5_encoder_text_only_forward.1} parent=1 // pred_fallthru
      _
    // Predicated region
    $region18: #{t5_encoder_text_only_forward.1} parent=1 // pred_check
      _
    $region19: #{t5_encoder_text_only_forward.1} parent=1 // pred_check_branch
      %32 = sbr.rel (0) target = $region21
    $region20: #{t5_encoder_text_only_forward.1} parent=1 // pred_region
      _
    $region21: #{t5_encoder_text_only_forward.1} parent=1 // pred_fallthru
      _
    // Predicated region
    $region22: #{t5_encoder_text_only_forward.1} parent=1 // pred_check
      _
    $region23: #{t5_encoder_text_only_forward.1} parent=1 // pred_check_branch
      %34 = sbr.rel (0) target = $region25
    $region24: #{t5_encoder_text_only_forward.1} parent=1 // pred_region
      %s36 = ssub.s32 512, 512
      %37 = vsyncadd [#allocation5], %s36
      %s38 = sshll.u32 [#allocation4], 4
      %s39 = int_to_ptr.vmem [resolvable:$true] %s38
      %44 = dma.hbm_to_vmem [thread:$0]  %s5, 512, %s39, [#allocation5], 64, 64, 4
    $region25: #{t5_encoder_text_only_forward.1} parent=1 // pred_fallthru
      _
    // Predicated region
    $region26: #{t5_encoder_text_only_forward.1} parent=1 // pred_check
      _
    $region27: #{t5_encoder_text_only_forward.1} parent=1 // pred_check_branch
      %46 = sbr.rel (0) target = $region29
    $region28: #{t5_encoder_text_only_forward.1} parent=1 // pred_region
      %s48 = ssub.s32 512, 512
      %49 = vsyncadd [#allocation5], %s48
      %s50 = sshll.u32 [#allocation6], 4
      %s51 = int_to_ptr.vmem [resolvable:$true] %s50
      %56 = dma.hbm_to_vmem [thread:$0]  %s6, 512, %s51, [#allocation5], 64, 64, 4
    $region29: #{t5_encoder_text_only_forward.1} parent=1 // pred_fallthru
      _
    // Predicated region
    $region30: #{t5_encoder_text_only_forward.1} parent=1 // pred_check
      _
    $region31: #{t5_encoder_text_only_forward.1} parent=1 // pred_check_branch
      %58 = sbr.rel (0) target = $region33
    $region32: #{t5_encoder_text_only_forward.1} parent=1 // pred_region
      _
    $region33: #{t5_encoder_text_only_forward.1} parent=1 // pred_fallthru
      _
    // Predicated region
    $region34: #{t5_encoder_text_only_forward.1} parent=1 // pred_check
      _
    $region35: #{t5_encoder_text_only_forward.1} parent=1 // pred_check_branch
      %60 = sbr.rel (0) target = $region37
    $region36: #{t5_encoder_text_only_forward.1} parent=1 // pred_region
      %61 = dma.done [#allocation3], 128
    $region37: #{t5_encoder_text_only_forward.1} parent=1 // pred_fallthru
      _
    // Predicated region
    $region38: #{t5_encoder_text_only_forward.1} parent=1 // pred_check
      _
    $region39: #{t5_encoder_text_only_forward.1} parent=1 // pred_check_branch
      %63 = sbr.rel (0) target = $region41
    $region40: #{t5_encoder_text_only_forward.1} parent=1 // pred_region
      %64 = dma.done [#allocation5], 512
    $region41: #{t5_encoder_text_only_forward.1} parent=1 // pred_fallthru
      _
    // Predicated region
    $region42: #{t5_encoder_text_only_forward.1} parent=1 // pred_check
      _
    $region43: #{t5_encoder_text_only_forward.1} parent=1 // pred_check_branch
      %66 = sbr.rel (0) target = $region45
    $region44: #{t5_encoder_text_only_forward.1} parent=1 // pred_region
      %67 = dma.done [#allocation5], 512
    $region45: #{t5_encoder_text_only_forward.1} parent=1 // pred_fallthru
      _
    %v69 = vld [vmem:[%s0] sm:$0xff]
    %v70 = vld [vmem:[%s0 + $0x8] sm:$0xff]
    %v71 = vld [vmem:[%s0 + $0x10] sm:$0xff]
    %v72 = vld [vmem:[%s0 + $0x18] sm:$0xff]
    %v73 = vld [vmem:[%s0 + $0x20] sm:$0xff]
    %v74 = vld [vmem:[%s0 + $0x28] sm:$0xff]
    %v75 = vld [vmem:[%s0 + $0x30] sm:$0xff]
    %v76 = vld [vmem:[%s0 + $0x38] sm:$0xff]
    %v77 = vld [vmem:[%s0 + $0x40] sm:$0xff]
    %v78 = vld [vmem:[%s0 + $0x48] sm:$0xff]
    %v79 = vld [vmem:[%s0 + $0x50] sm:$0xff]
    %v80 = vld [vmem:[%s0 + $0x58] sm:$0xff]
    %v81 = vlaneseq
    %v82 = vand.u32 %v81, 127
    %83 = vset.pattern.permute.xlu0 0
    %84 = vperm.xlu0 %83, %v69
    %v85 = vpop.permute.xlu0 %84
    %86 = vset.pattern.permute.xlu0 0
    %87 = vperm.xlu0 %86, %v70
    %v88 = vpop.permute.xlu0 %87
    %89 = vset.pattern.permute.xlu0 0
    %90 = vperm.xlu0 %89, %v71
    %v91 = vpop.permute.xlu0 %90
    %92 = vset.pattern.permute.xlu0 0
    %93 = vperm.xlu0 %92, %v72
    %v94 = vpop.permute.xlu0 %93
    %95 = vset.pattern.permute.xlu0 0
    %96 = vperm.xlu0 %95, %v73
    %v97 = vpop.permute.xlu0 %96
    %98 = vset.pattern.permute.xlu0 0
    %99 = vperm.xlu0 %98, %v74
    %v100 = vpop.permute.xlu0 %99
    %101 = vset.pattern.permute.xlu0 0
    %102 = vperm.xlu0 %101, %v75
    %v103 = vpop.permute.xlu0 %102
    %104 = vset.pattern.permute.xlu0 0
    %105 = vperm.xlu0 %104, %v76
    %v106 = vpop.permute.xlu0 %105
    %107 = vset.pattern.permute.xlu0 0
    %108 = vperm.xlu0 %107, %v77
    %v109 = vpop.permute.xlu0 %108
    %110 = vset.pattern.permute.xlu0 0
    %111 = vperm.xlu0 %110, %v78
    %v112 = vpop.permute.xlu0 %111
    %113 = vset.pattern.permute.xlu0 0
    %114 = vperm.xlu0 %113, %v79
    %v115 = vpop.permute.xlu0 %114
    %116 = vset.pattern.permute.xlu0 0
    %117 = vperm.xlu0 %116, %v80
    %v118 = vpop.permute.xlu0 %117
    %vm119 = vcmp.eq.s32.totalorder %v85, %v82
    %vm120 = vcmp.eq.s32.totalorder %v88, %v82
    %vm121 = vcmp.eq.s32.totalorder %v91, %v82
    %vm122 = vcmp.eq.s32.totalorder %v94, %v82
    %vm123 = vcmp.eq.s32.totalorder %v97, %v82
    %vm124 = vcmp.eq.s32.totalorder %v100, %v82
    %vm125 = vcmp.eq.s32.totalorder %v103, %v82
    %vm126 = vcmp.eq.s32.totalorder %v106, %v82
    %vm127 = vcmp.eq.s32.totalorder %v109, %v82
    %vm128 = vcmp.eq.s32.totalorder %v112, %v82
    %vm129 = vcmp.eq.s32.totalorder %v115, %v82
    %vm130 = vcmp.eq.s32.totalorder %v118, %v82
    %v131 = vsel %vm119, 1, 0
    %v132 = vsel %vm120, 1, 0
    %v133 = vsel %vm121, 1, 0
    %v134 = vsel %vm122, 1, 0
    %v135 = vsel %vm123, 1, 0
    %v136 = vsel %vm124, 1, 0
    %v137 = vsel %vm125, 1, 0
    %v138 = vsel %vm126, 1, 0
    %v139 = vsel %vm127, 1, 0
    %v140 = vsel %vm128, 1, 0
    %v141 = vsel %vm129, 1, 0
    %v142 = vsel %vm130, 1, 0
    %v143 = vcvt.s32.f32 %v131
    %v144 = vcvt.s32.f32 %v132
    %v145 = vcvt.s32.f32 %v133
    %v146 = vcvt.s32.f32 %v134
    %v147 = vcvt.s32.f32 %v135
    %v148 = vcvt.s32.f32 %v136
    %v149 = vcvt.s32.f32 %v137
    %v150 = vcvt.s32.f32 %v138
    %v151 = vcvt.s32.f32 %v139
    %v152 = vcvt.s32.f32 %v140
    %v153 = vcvt.s32.f32 %v141
    %v154 = vcvt.s32.f32 %v142
    %v155 = vpack.c.bf16 %v144, %v143
    %v156 = vpack.c.bf16 %v146, %v145
    %v157 = vpack.c.bf16 %v148, %v147
    %v158 = vpack.c.bf16 %v150, %v149
    %v159 = vpack.c.bf16 %v152, %v151
    %v160 = vpack.c.bf16 %v154, %v153
    %v161 = vld [vmem:[%s1] sm:$0xf]
    %v162 = vld [vmem:[%s1 + $0x4] sm:$0xf]
    %v163 = vld [vmem:[%s1 + $0x8] sm:$0xf]
    %v164 = vld [vmem:[%s1 + $0xc] sm:$0xf]
    %v165 = vld [vmem:[%s1 + $0x10] sm:$0xf]
    %v166 = vld [vmem:[%s1 + $0x14] sm:$0xf]
    %v167 = vld [vmem:[%s1 + $0x18] sm:$0xf]
    %v168 = vld [vmem:[%s1 + $0x1c] sm:$0xf]
    %v177 = vunpack.c.l.b16 %v161
    %v178 = vunpack.c.l.b16 %v162
    %v179 = vunpack.c.l.b16 %v163
    %v180 = vunpack.c.l.b16 %v164
    %v181 = vunpack.c.l.b16 %v165
    %v182 = vunpack.c.l.b16 %v166
    %v183 = vunpack.c.l.b16 %v167
    %v184 = vunpack.c.l.b16 %v168
    %v185 = vpack.c.b16 %v178, %v177
    %v186 = vpack.c.b16 %v180, %v179
    %v187 = vpack.c.b16 %v182, %v181
    %v188 = vpack.c.b16 %v184, %v183
    %vm193 = vcmask 523264
    %v195 = vsel %vm193, %v155, 0
    %v198 = vsel %vm193, %v156, 0
    %v201 = vsel %vm193, %v157, 0
    %v204 = vsel %vm193, %v158, 0
    %v207 = vsel %vm193, %v159, 0
    %v210 = vsel %vm193, %v160, 0
    %212 = vmatprep.subr.bf16.mxu0 0
    %213 = vmatpush1.bf16.msra.mxu0 %v185
    %214 = vmatprep.subr.bf16.mxu0 0
    %215 = vmatpush1.bf16.msra.mxu0 %v186
    %216 = vmatprep.subr.bf16.mxu0 0
    %217 = vmatpush1.bf16.msra.mxu0 %v187
    %218 = vmatprep.subr.bf16.mxu0 0
    %219 = vmatpush1.bf16.msra.mxu0 %v188
    %220 = vmatprep.subr.bf16.mxu0 0
    %221 = vmatpush1.bf16.msra.mxu0 0
    %222 = vmatprep.subr.bf16.mxu0 0
    %223 = vmatpush1.bf16.msra.mxu0 0
    %224 = vmatprep.subr.bf16.mxu0 0
    %225 = vmatpush1.bf16.msra.mxu0 0
    %226 = vmatprep.subr.bf16.mxu0 0
    %227 = vmatpush1.bf16.msra.mxu0 0
    %228 = vmatprep.subr.bf16.mxu0 0
    %229 = vmatpush1.bf16.msra.mxu0 0
    %230 = vmatprep.subr.bf16.mxu0 0
    %231 = vmatpush1.bf16.msra.mxu0 0
    %232 = vmatprep.subr.bf16.mxu0 0
    %233 = vmatpush1.bf16.msra.mxu0 0
    %234 = vmatprep.subr.bf16.mxu0 0
    %235 = vmatpush1.bf16.msra.mxu0 0
    %236 = vmatprep.subr.bf16.mxu0 0
    %237 = vmatpush1.bf16.msra.mxu0 0
    %238 = vmatprep.subr.bf16.mxu0 0
    %239 = vmatpush1.bf16.msra.mxu0 0
    %240 = vmatprep.subr.bf16.mxu0 0
    %241 = vmatpush1.bf16.msra.mxu0 0
    %242 = vmatprep.subr.bf16.mxu0 0
    %243 = vmatpush1.bf16.msra.mxu0 0
    %244 = vmatprep.mubr.bf16.mxu0 0
    %245 = vmatmul.mubr.bf16.gmra.mrb[0].mxu0 %v195
    %v246 = vpop.f32.mrb[0].mxu0
    %v247 = vadd.f32 0.0, %v246
    %v248 = vpop.f32.mrb[0].mxu0
    %v249 = vpop.f32.mrb[0].mxu0
    %v250 = vadd.f32 0.0, %v249
    %v251 = vpop.f32.mrb[0].mxu0
    %252 = vmatprep.mubr.bf16.mxu0 0
    %253 = vmatmul.mubr.bf16.gmra.mrb[0].mxu0 %v198
    %v254 = vpop.f32.mrb[0].mxu0
    %v255 = vadd.f32 0.0, %v254
    %v256 = vpop.f32.mrb[0].mxu0
    %v257 = vpop.f32.mrb[0].mxu0
    %v258 = vadd.f32 0.0, %v257
    %v259 = vpop.f32.mrb[0].mxu0
    %260 = vmatprep.mubr.bf16.mxu0 0
    %261 = vmatmul.mubr.bf16.gmra.mrb[0].mxu0 %v201
    %v262 = vpop.f32.mrb[0].mxu0
    %v263 = vadd.f32 0.0, %v262
    %v264 = vpop.f32.mrb[0].mxu0
    %v265 = vpop.f32.mrb[0].mxu0
    %v266 = vadd.f32 0.0, %v265
    %v267 = vpop.f32.mrb[0].mxu0
    %268 = vmatprep.mubr.bf16.mxu0 0
    %269 = vmatmul.mubr.bf16.gmra.mrb[0].mxu0 %v204
    %v270 = vpop.f32.mrb[0].mxu0
    %v271 = vadd.f32 0.0, %v270
    %v272 = vpop.f32.mrb[0].mxu0
    %v273 = vpop.f32.mrb[0].mxu0
    %v274 = vadd.f32 0.0, %v273
    %v275 = vpop.f32.mrb[0].mxu0
    %276 = vmatprep.mubr.bf16.mxu0 0
    %277 = vmatmul.mubr.bf16.gmra.mrb[0].mxu0 %v207
    %v278 = vpop.f32.mrb[0].mxu0
    %v279 = vadd.f32 0.0, %v278
    %v280 = vpop.f32.mrb[0].mxu0
    %v281 = vpop.f32.mrb[0].mxu0
    %v282 = vadd.f32 0.0, %v281
    %v283 = vpop.f32.mrb[0].mxu0
    %284 = vmatprep.mubr.bf16.mxu0 0
    %285 = vmatmul.mubr.bf16.gmra.mrb[0].mxu0 %v210
    %v286 = vpop.f32.mrb[0].mxu0
    %v287 = vadd.f32 0.0, %v286
    %v288 = vpop.f32.mrb[0].mxu0
    %v289 = vpop.f32.mrb[0].mxu0
    %v290 = vadd.f32 0.0, %v289
    %v291 = vpop.f32.mrb[0].mxu0
    %292 = vdwg.mxu0
    %v293 = vmul.f32 %v247, %v247
    %v294 = vmul.f32 %v250, %v250
    %v295 = vmul.f32 %v255, %v255
    %v296 = vmul.f32 %v258, %v258
    %v297 = vmul.f32 %v263, %v263
    %v298 = vmul.f32 %v266, %v266
    %v299 = vmul.f32 %v271, %v271
    %v300 = vmul.f32 %v274, %v274
    %v301 = vmul.f32 %v279, %v279
    %v302 = vmul.f32 %v282, %v282
    %v303 = vmul.f32 %v287, %v287
    %v304 = vmul.f32 %v290, %v290
    %vm305 = vcmask 261120
    %v306 = vsel %vm305, %v293, 0.0
    %307 = vadd.xlane.f32.xlu0 %v306
    %v308 = vpop.xlane.xlu0 %307
    %v309 = vsel %vm305, %v294, 0.0
    %310 = vadd.xlane.f32.xlu0 %v309
    %v311 = vpop.xlane.xlu0 %310
    %v312 = vsel %vm305, %v295, 0.0
    %313 = vadd.xlane.f32.xlu0 %v312
    %v314 = vpop.xlane.xlu0 %313
    %v315 = vsel %vm305, %v296, 0.0
    %316 = vadd.xlane.f32.xlu0 %v315
    %v317 = vpop.xlane.xlu0 %316
    %v318 = vsel %vm305, %v297, 0.0
    %319 = vadd.xlane.f32.xlu0 %v318
    %v320 = vpop.xlane.xlu0 %319
    %v321 = vsel %vm305, %v298, 0.0
    %322 = vadd.xlane.f32.xlu0 %v321
    %v323 = vpop.xlane.xlu0 %322
    %v324 = vsel %vm305, %v299, 0.0
    %325 = vadd.xlane.f32.xlu0 %v324
    %v326 = vpop.xlane.xlu0 %325
    %v327 = vsel %vm305, %v300, 0.0
    %328 = vadd.xlane.f32.xlu0 %v327
    %v329 = vpop.xlane.xlu0 %328
    %v330 = vsel %vm305, %v301, 0.0
    %331 = vadd.xlane.f32.xlu0 %v330
    %v332 = vpop.xlane.xlu0 %331
    %v333 = vsel %vm305, %v302, 0.0
    %334 = vadd.xlane.f32.xlu0 %v333
    %v335 = vpop.xlane.xlu0 %334
    %v336 = vsel %vm305, %v303, 0.0
    %337 = vadd.xlane.f32.xlu0 %v336
    %v338 = vpop.xlane.xlu0 %337
    %v339 = vsel %vm305, %v304, 0.0
    %340 = vadd.xlane.f32.xlu0 %v339
    %v341 = vpop.xlane.xlu0 %340
    %v342 = vrcp.pop 32.0
    %v343 = vmul.f32 %v308, %v342
    %v344 = vmul.f32 %v311, %v342
    %v345 = vmul.f32 %v314, %v342
    %v346 = vmul.f32 %v317, %v342
    %v347 = vmul.f32 %v320, %v342
    %v348 = vmul.f32 %v323, %v342
    %v349 = vmul.f32 %v326, %v342
    %v350 = vmul.f32 %v329, %v342
    %v351 = vmul.f32 %v332, %v342
    %v352 = vmul.f32 %v335, %v342
    %v353 = vmul.f32 %v338, %v342
    %v354 = vmul.f32 %v341, %v342
    %v355 = vadd.f32 %v343, 1e-06
    %v356 = vadd.f32 %v344, 1e-06
    %v357 = vadd.f32 %v345, 1e-06
    %v358 = vadd.f32 %v346, 1e-06
    %v359 = vadd.f32 %v347, 1e-06
    %v360 = vadd.f32 %v348, 1e-06
    %v361 = vadd.f32 %v349, 1e-06
    %v362 = vadd.f32 %v350, 1e-06
    %v363 = vadd.f32 %v351, 1e-06
    %v364 = vadd.f32 %v352, 1e-06
    %v365 = vadd.f32 %v353, 1e-06
    %v366 = vadd.f32 %v354, 1e-06
    %v367 = vrsqrt.pop %v355
    %v368 = vrsqrt.pop %v356
    %v369 = vrsqrt.pop %v357
    %v370 = vrsqrt.pop %v358
    %v371 = vrsqrt.pop %v359
    %v372 = vrsqrt.pop %v360
    %v373 = vrsqrt.pop %v361
    %v374 = vrsqrt.pop %v362
    %v375 = vrsqrt.pop %v363
    %v376 = vrsqrt.pop %v364
    %v377 = vrsqrt.pop %v365
    %v378 = vrsqrt.pop %v366
    %v379 = vmul.f32 %v247, %v367
    %v380 = vmul.f32 %v250, %v368
    %v381 = vmul.f32 %v255, %v369
    %v382 = vmul.f32 %v258, %v370
    %v383 = vmul.f32 %v263, %v371
    %v384 = vmul.f32 %v266, %v372
    %v385 = vmul.f32 %v271, %v373
    %v386 = vmul.f32 %v274, %v374
    %v387 = vmul.f32 %v279, %v375
    %v388 = vmul.f32 %v282, %v376
    %v389 = vmul.f32 %v287, %v377
    %v390 = vmul.f32 %v290, %v378
    %v391 = vld [vmem:[#allocation2] sm:$0x1]
    %v392 = vlaneseq
    %v393 = vshrl.u32 %v392, 7
    %v394 = vsub.s32 0, %v393
    %v395 = vrot.slane %v391, %v394
    %v396 = vmul.f32 %v379, %v395
    %v397 = vmul.f32 %v380, %v395
    %v398 = vmul.f32 %v381, %v395
    %v399 = vmul.f32 %v382, %v395
    %v400 = vmul.f32 %v383, %v395
    %v401 = vmul.f32 %v384, %v395
    %v402 = vmul.f32 %v385, %v395
    %v403 = vmul.f32 %v386, %v395
    %v404 = vmul.f32 %v387, %v395
    %v405 = vmul.f32 %v388, %v395
    %v406 = vmul.f32 %v389, %v395
    %v407 = vmul.f32 %v390, %v395
    %v408 = vpack.c.bf16 %v397, %v396
    %v409 = vpack.c.bf16 %v399, %v398
    %v410 = vpack.c.bf16 %v401, %v400
    %v411 = vpack.c.bf16 %v403, %v402
    %v412 = vpack.c.bf16 %v405, %v404
    %v413 = vpack.c.bf16 %v407, %v406
    %v414 = vld [vmem:[%s4] sm:$0xf]
    %v415 = vld [vmem:[%s4 + $0x4] sm:$0xf]
    %v416 = vld [vmem:[%s4 + $0x8] sm:$0xf]
    %v417 = vld [vmem:[%s4 + $0xc] sm:$0xf]
    %v418 = vld [vmem:[%s4 + $0x10] sm:$0xf]
    %v419 = vld [vmem:[%s4 + $0x14] sm:$0xf]
    %v420 = vld [vmem:[%s4 + $0x18] sm:$0xf]
    %v421 = vld [vmem:[%s4 + $0x1c] sm:$0xf]
    %v422 = vld [vmem:[%s4 + $0x20] sm:$0xf]
    %v423 = vld [vmem:[%s4 + $0x24] sm:$0xf]
    %v424 = vld [vmem:[%s4 + $0x28] sm:$0xf]
    %v425 = vld [vmem:[%s4 + $0x2c] sm:$0xf]
    %v426 = vld [vmem:[%s4 + $0x30] sm:$0xf]
    %v427 = vld [vmem:[%s4 + $0x34] sm:$0xf]
    %v428 = vld [vmem:[%s4 + $0x38] sm:$0xf]
    %v429 = vld [vmem:[%s4 + $0x3c] sm:$0xf]
    %v434 = vunpack.c.l.b16 %v414
    %v435 = vunpack.c.l.b16 %v415
    %v436 = vunpack.c.l.b16 %v416
    %v437 = vunpack.c.l.b16 %v417
    %v438 = vpack.c.b16 %v435, %v434
    %v439 = vpack.c.b16 %v437, %v436
    %v443 = vsel %vm305, %v408, 0
    %v446 = vsel %vm305, %v409, 0
    %v449 = vsel %vm305, %v410, 0
    %v452 = vsel %vm305, %v411, 0
    %v455 = vsel %vm305, %v412, 0
    %v458 = vsel %vm305, %v413, 0
    %460 = vmatprep.subr.bf16.mxu0 0
    %461 = vmatpush1.bf16.msra.mxu0 %v438
    %462 = vmatprep.subr.bf16.mxu0 0
    %463 = vmatpush1.bf16.msra.mxu0 %v439
    %464 = vmatprep.subr.bf16.mxu0 0
    %465 = vmatpush1.bf16.msra.mxu0 0
    %466 = vmatprep.subr.bf16.mxu0 0
    %467 = vmatpush1.bf16.msra.mxu0 0
    %468 = vmatprep.subr.bf16.mxu0 0
    %469 = vmatpush1.bf16.msra.mxu0 0
    %470 = vmatprep.subr.bf16.mxu0 0
    %471 = vmatpush1.bf16.msra.mxu0 0
    %472 = vmatprep.subr.bf16.mxu0 0
    %473 = vmatpush1.bf16.msra.mxu0 0
    %474 = vmatprep.subr.bf16.mxu0 0
    %475 = vmatpush1.bf16.msra.mxu0 0
    %476 = vmatprep.subr.bf16.mxu0 0
    %477 = vmatpush1.bf16.msra.mxu0 0
    %478 = vmatprep.subr.bf16.mxu0 0
    %479 = vmatpush1.bf16.msra.mxu0 0
    %480 = vmatprep.subr.bf16.mxu0 0
    %481 = vmatpush1.bf16.msra.mxu0 0
    %482 = vmatprep.subr.bf16.mxu0 0
    %483 = vmatpush1.bf16.msra.mxu0 0
    %484 = vmatprep.subr.bf16.mxu0 0
    %485 = vmatpush1.bf16.msra.mxu0 0
    %486 = vmatprep.subr.bf16.mxu0 0
    %487 = vmatpush1.bf16.msra.mxu0 0
    %488 = vmatprep.subr.bf16.mxu0 0
    %489 = vmatpush1.bf16.msra.mxu0 0
    %490 = vmatprep.subr.bf16.mxu0 0
    %491 = vmatpush1.bf16.msra.mxu0 0
    %492 = vmatprep.mubr.bf16.mxu0 0
    %493 = vmatmul.mubr.bf16.gmra.mrb[0].mxu0 %v443
    %v494 = vpop.f32.mrb[0].mxu0
    %v495 = vadd.f32 0.0, %v494
    %v496 = vpop.f32.mrb[0].mxu0
    %v497 = vpop.f32.mrb[0].mxu0
    %v498 = vadd.f32 0.0, %v497
    %v499 = vpop.f32.mrb[0].mxu0
    %500 = vmatprep.mubr.bf16.mxu0 0
    %501 = vmatmul.mubr.bf16.gmra.mrb[0].mxu0 %v446
    %v502 = vpop.f32.mrb[0].mxu0
    %v503 = vadd.f32 0.0, %v502
    %v504 = vpop.f32.mrb[0].mxu0
    %v505 = vpop.f32.mrb[0].mxu0
    %v506 = vadd.f32 0.0, %v505
    %v507 = vpop.f32.mrb[0].mxu0
    %508 = vmatprep.mubr.bf16.mxu0 0
    %509 = vmatmul.mubr.bf16.gmra.mrb[0].mxu0 %v449
    %v510 = vpop.f32.mrb[0].mxu0
    %v511 = vadd.f32 0.0, %v510
    %v512 = vpop.f32.mrb[0].mxu0
    %v513 = vpop.f32.mrb[0].mxu0
    %v514 = vadd.f32 0.0, %v513
    %v515 = vpop.f32.mrb[0].mxu0
    %516 = vmatprep.mubr.bf16.mxu0 0
    %517 = vmatmul.mubr.bf16.gmra.mrb[0].mxu0 %v452
    %v518 = vpop.f32.mrb[0].mxu0
    %v519 = vadd.f32 0.0, %v518
    %v520 = vpop.f32.mrb[0].mxu0
    %v521 = vpop.f32.mrb[0].mxu0
    %v522 = vadd.f32 0.0, %v521
    %v523 = vpop.f32.mrb[0].mxu0
    %524 = vmatprep.mubr.bf16.mxu0 0
    %525 = vmatmul.mubr.bf16.gmra.mrb[0].mxu0 %v455
    %v526 = vpop.f32.mrb[0].mxu0
    %v527 = vadd.f32 0.0, %v526
    %v528 = vpop.f32.mrb[0].mxu0
    %v529 = vpop.f32.mrb[0].mxu0
    %v530 = vadd.f32 0.0, %v529
    %v531 = vpop.f32.mrb[0].mxu0
    %532 = vmatprep.mubr.bf16.mxu0 0
    %533 = vmatmul.mubr.bf16.gmra.mrb[0].mxu0 %v458
    %v534 = vpop.f32.mrb[0].mxu0
    %v535 = vadd.f32 0.0, %v534
    %v536 = vpop.f32.mrb[0].mxu0
    %v537 = vpop.f32.mrb[0].mxu0
    %v538 = vadd.f32 0.0, %v537
    %v539 = vpop.f32.mrb[0].mxu0
    %540 = vdwg.mxu0
    %v545 = vunpack.c.l.b16 %v418
    %v546 = vunpack.c.l.b16 %v419
    %v547 = vunpack.c.l.b16 %v420
    %v548 = vunpack.c.l.b16 %v421
    %v549 = vpack.c.b16 %v546, %v545
    %v550 = vpack.c.b16 %v548, %v547
    %553 = vmatprep.subr.bf16.mxu0 0
    %554 = vmatpush1.bf16.msra.mxu0 %v549
    %555 = vmatprep.subr.bf16.mxu0 0
    %556 = vmatpush1.bf16.msra.mxu0 %v550
    %557 = vmatprep.subr.bf16.mxu0 0
    %558 = vmatpush1.bf16.msra.mxu0 0
    %559 = vmatprep.subr.bf16.mxu0 0
    %560 = vmatpush1.bf16.msra.mxu0 0
    %561 = vmatprep.subr.bf16.mxu0 0
    %562 = vmatpush1.bf16.msra.mxu0 0
    %563 = vmatprep.subr.bf16.mxu0 0
    %564 = vmatpush1.bf16.msra.mxu0 0
    %565 = vmatprep.subr.bf16.mxu0 0
    %566 = vmatpush1.bf16.msra.mxu0 0
    %567 = vmatprep.subr.bf16.mxu0 0
    %568 = vmatpush1.bf16.msra.mxu0 0
    %569 = vmatprep.subr.bf16.mxu0 0
    %570 = vmatpush1.bf16.msra.mxu0 0
    %571 = vmatprep.subr.bf16.mxu0 0
    %572 = vmatpush1.bf16.msra.mxu0 0
    %573 = vmatprep.subr.bf16.mxu0 0
    %574 = vmatpush1.bf16.msra.mxu0 0
    %575 = vmatprep.subr.bf16.mxu0 0
    %576 = vmatpush1.bf16.msra.mxu0 0
    %577 = vmatprep.subr.bf16.mxu0 0
    %578 = vmatpush1.bf16.msra.mxu0 0
    %579 = vmatprep.subr.bf16.mxu0 0
    %580 = vmatpush1.bf16.msra.mxu0 0
    %581 = vmatprep.subr.bf16.mxu0 0
    %582 = vmatpush1.bf16.msra.mxu0 0
    %583 = vmatprep.subr.bf16.mxu0 0
    %584 = vmatpush1.bf16.msra.mxu0 0
    %585 = vmatprep.mubr.bf16.mxu0 0
    %586 = vmatmul.mubr.bf16.gmra.mrb[0].mxu0 %v443
    %v587 = vpop.f32.mrb[0].mxu0
    %v588 = vadd.f32 0.0, %v587
    %v589 = vpop.f32.mrb[0].mxu0
    %v590 = vpop.f32.mrb[0].mxu0
    %v591 = vadd.f32 0.0, %v590
    %v592 = vpop.f32.mrb[0].mxu0
    %593 = vmatprep.mubr.bf16.mxu0 0
    %594 = vmatmul.mubr.bf16.gmra.mrb[0].mxu0 %v446
    %v595 = vpop.f32.mrb[0].mxu0
    %v596 = vadd.f32 0.0, %v595
    %v597 = vpop.f32.mrb[0].mxu0
    %v598 = vpop.f32.mrb[0].mxu0
    %v599 = vadd.f32 0.0, %v598
    %v600 = vpop.f32.mrb[0].mxu0
    %601 = vmatprep.mubr.bf16.mxu0 0
    %602 = vmatmul.mubr.bf16.gmra.mrb[0].mxu0 %v449
    %v603 = vpop.f32.mrb[0].mxu0
    %v604 = vadd.f32 0.0, %v603
    %v605 = vpop.f32.mrb[0].mxu0
    %v606 = vpop.f32.mrb[0].mxu0
    %v607 = vadd.f32 0.0, %v606
    %v608 = vpop.f32.mrb[0].mxu0
    %609 = vmatprep.mubr.bf16.mxu0 0
    %610 = vmatmul.mubr.bf16.gmra.mrb[0].mxu0 %v452
    %v611 = vpop.f32.mrb[0].mxu0
    %v612 = vadd.f32 0.0, %v611
    %v613 = vpop.f32.mrb[0].mxu0
    %v614 = vpop.f32.mrb[0].mxu0
    %v615 = vadd.f32 0.0, %v614
    %v616 = vpop.f32.mrb[0].mxu0
    %617 = vmatprep.mubr.bf16.mxu0 0
    %618 = vmatmul.mubr.bf16.gmra.mrb[0].mxu0 %v455
    %v619 = vpop.f32.mrb[0].mxu0
    %v620 = vadd.f32 0.0, %v619
    %v621 = vpop.f32.mrb[0].mxu0
    %v622 = vpop.f32.mrb[0].mxu0
    %v623 = vadd.f32 0.0, %v622
    %v624 = vpop.f32.mrb[0].mxu0
    %625 = vmatprep.mubr.bf16.mxu0 0
    %626 = vmatmul.mubr.bf16.gmra.mrb[0].mxu0 %v458
    %v627 = vpop.f32.mrb[0].mxu0
    %v628 = vadd.f32 0.0, %v627
    %v629 = vpop.f32.mrb[0].mxu0
    %v630 = vpop.f32.mrb[0].mxu0
    %v631 = vadd.f32 0.0, %v630
    %v632 = vpop.f32.mrb[0].mxu0
    %633 = vdwg.mxu0
    %v638 = vunpack.c.l.b16 %v422
    %v639 = vunpack.c.l.b16 %v423
    %v640 = vunpack.c.l.b16 %v424
    %v641 = vunpack.c.l.b16 %v425
    %v642 = vpack.c.b16 %v639, %v638
    %v643 = vpack.c.b16 %v641, %v640
    %646 = vmatprep.subr.bf16.mxu0 0
    %647 = vmatpush1.bf16.msra.mxu0 %v642
    %648 = vmatprep.subr.bf16.mxu0 0
    %649 = vmatpush1.bf16.msra.mxu0 %v643
    %650 = vmatprep.subr.bf16.mxu0 0
    %651 = vmatpush1.bf16.msra.mxu0 0
    %652 = vmatprep.subr.bf16.mxu0 0
    %653 = vmatpush1.bf16.msra.mxu0 0
    %654 = vmatprep.subr.bf16.mxu0 0
    %655 = vmatpush1.bf16.msra.mxu0 0
    %656 = vmatprep.subr.bf16.mxu0 0
    %657 = vmatpush1.bf16.msra.mxu0 0
    %658 = vmatprep.subr.bf16.mxu0 0
    %659 = vmatpush1.bf16.msra.mxu0 0
    %660 = vmatprep.subr.bf16.mxu0 0
    %661 = vmatpush1.bf16.msra.mxu0 0
    %662 = vmatprep.subr.bf16.mxu0 0
    %663 = vmatpush1.bf16.msra.mxu0 0
    %664 = vmatprep.subr.bf16.mxu0 0
    %665 = vmatpush1.bf16.msra.mxu0 0
    %666 = vmatprep.subr.bf16.mxu0 0
    %667 = vmatpush1.bf16.msra.mxu0 0
    %668 = vmatprep.subr.bf16.mxu0 0
    %669 = vmatpush1.bf16.msra.mxu0 0
    %670 = vmatprep.subr.bf16.mxu0 0
    %671 = vmatpush1.bf16.msra.mxu0 0
    %672 = vmatprep.subr.bf16.mxu0 0
    %673 = vmatpush1.bf16.msra.mxu0 0
    %674 = vmatprep.subr.bf16.mxu0 0
    %675 = vmatpush1.bf16.msra.mxu0 0
    %676 = vmatprep.subr.bf16.mxu0 0
    %677 = vmatpush1.bf16.msra.mxu0 0
    %678 = vmatprep.mubr.bf16.mxu0 0
    %679 = vmatmul.mubr.bf16.gmra.mrb[0].mxu0 %v443
    %v680 = vpop.f32.mrb[0].mxu0
    %v681 = vadd.f32 0.0, %v680
    %v682 = vpop.f32.mrb[0].mxu0
    %v683 = vpop.f32.mrb[0].mxu0
    %v684 = vadd.f32 0.0, %v683
    %v685 = vpop.f32.mrb[0].mxu0
    %686 = vmatprep.mubr.bf16.mxu0 0
    %687 = vmatmul.mubr.bf16.gmra.mrb[0].mxu0 %v446
    %v688 = vpop.f32.mrb[0].mxu0
    %v689 = vadd.f32 0.0, %v688
    %v690 = vpop.f32.mrb[0].mxu0
    %v691 = vpop.f32.mrb[0].mxu0
    %v692 = vadd.f32 0.0, %v691
    %v693 = vpop.f32.mrb[0].mxu0
    %694 = vmatprep.mubr.bf16.mxu0 0
    %695 = vmatmul.mubr.bf16.gmra.mrb[0].mxu0 %v449
    %v696 = vpop.f32.mrb[0].mxu0
    %v697 = vadd.f32 0.0, %v696
    %v698 = vpop.f32.mrb[0].mxu0
    %v699 = vpop.f32.mrb[0].mxu0
    %v700 = vadd.f32 0.0, %v699
    %v701 = vpop.f32.mrb[0].mxu0
    %702 = vmatprep.mubr.bf16.mxu0 0
    %703 = vmatmul.mubr.bf16.gmra.mrb[0].mxu0 %v452
    %v704 = vpop.f32.mrb[0].mxu0
    %v705 = vadd.f32 0.0, %v704
    %v706 = vpop.f32.mrb[0].mxu0
    %v707 = vpop.f32.mrb[0].mxu0
    %v708 = vadd.f32 0.0, %v707
    %v709 = vpop.f32.mrb[0].mxu0
    %710 = vmatprep.mubr.bf16.mxu0 0
    %711 = vmatmul.mubr.bf16.gmra.mrb[0].mxu0 %v455
    %v712 = vpop.f32.mrb[0].mxu0
    %v713 = vadd.f32 0.0, %v712
    %v714 = vpop.f32.mrb[0].mxu0
    %v715 = vpop.f32.mrb[0].mxu0
    %v716 = vadd.f32 0.0, %v715
    %v717 = vpop.f32.mrb[0].mxu0
    %718 = vmatprep.mubr.bf16.mxu0 0
    %719 = vmatmul.mubr.bf16.gmra.mrb[0].mxu0 %v458
    %v720 = vpop.f32.mrb[0].mxu0
    %v721 = vadd.f32 0.0, %v720
    %v722 = vpop.f32.mrb[0].mxu0
    %v723 = vpop.f32.mrb[0].mxu0
    %v724 = vadd.f32 0.0, %v723
    %v725 = vpop.f32.mrb[0].mxu0
    %726 = vdwg.mxu0
    %v731 = vunpack.c.l.b16 %v426
    %v732 = vunpack.c.l.b16 %v427
    %v733 = vunpack.c.l.b16 %v428
    %v734 = vunpack.c.l.b16 %v429
    %v735 = vpack.c.b16 %v732, %v731
    %v736 = vpack.c.b16 %v734, %v733
    %739 = vmatprep.subr.bf16.mxu0 0
    %740 = vmatpush1.bf16.msra.mxu0 %v735
    %741 = vmatprep.subr.bf16.mxu0 0
    %742 = vmatpush1.bf16.msra.mxu0 %v736
    %743 = vmatprep.subr.bf16.mxu0 0
    %744 = vmatpush1.bf16.msra.mxu0 0
    %745 = vmatprep.subr.bf16.mxu0 0
    %746 = vmatpush1.bf16.msra.mxu0 0
    %747 = vmatprep.subr.bf16.mxu0 0
    %748 = vmatpush1.bf16.msra.mxu0 0
    %749 = vmatprep.subr.bf16.mxu0 0
    %750 = vmatpush1.bf16.msra.mxu0 0
    %751 = vmatprep.subr.bf16.mxu0 0
    %752 = vmatpush1.bf16.msra.mxu0 0
    %753 = vmatprep.subr.bf16.mxu0 0
    %754 = vmatpush1.bf16.msra.mxu0 0
    %755 = vmatprep.subr.bf16.mxu0 0
    %756 = vmatpush1.bf16.msra.mxu0 0
    %757 = vmatprep.subr.bf16.mxu0 0
    %758 = vmatpush1.bf16.msra.mxu0 0
    %759 = vmatprep.subr.bf16.mxu0 0
    %760 = vmatpush1.bf16.msra.mxu0 0
    %761 = vmatprep.subr.bf16.mxu0 0
    %762 = vmatpush1.bf16.msra.mxu0 0
    %763 = vmatprep.subr.bf16.mxu0 0
    %764 = vmatpush1.bf16.msra.mxu0 0
    %765 = vmatprep.subr.bf16.mxu0 0
    %766 = vmatpush1.bf16.msra.mxu0 0
    %767 = vmatprep.subr.bf16.mxu0 0
    %768 = vmatpush1.bf16.msra.mxu0 0
    %769 = vmatprep.subr.bf16.mxu0 0
    %770 = vmatpush1.bf16.msra.mxu0 0
    %771 = vmatprep.mubr.bf16.mxu0 0
    %772 = vmatmul.mubr.bf16.gmra.mrb[0].mxu0 %v443
    %v773 = vpop.f32.mrb[0].mxu0
    %v774 = vadd.f32 0.0, %v773
    %v775 = vpop.f32.mrb[0].mxu0
    %v776 = vpop.f32.mrb[0].mxu0
    %v777 = vadd.f32 0.0, %v776
    %v778 = vpop.f32.mrb[0].mxu0
    %779 = vmatprep.mubr.bf16.mxu0 0
    %780 = vmatmul.mubr.bf16.gmra.mrb[0].mxu0 %v446
    %v781 = vpop.f32.mrb[0].mxu0
    %v782 = vadd.f32 0.0, %v781
    %v783 = vpop.f32.mrb[0].mxu0
    %v784 = vpop.f32.mrb[0].mxu0
    %v785 = vadd.f32 0.0, %v784
    %v786 = vpop.f32.mrb[0].mxu0
    %787 = vmatprep.mubr.bf16.mxu0 0
    %788 = vmatmul.mubr.bf16.gmra.mrb[0].mxu0 %v449
    %v789 = vpop.f32.mrb[0].mxu0
    %v790 = vadd.f32 0.0, %v789
    %v791 = vpop.f32.mrb[0].mxu0
    %v792 = vpop.f32.mrb[0].mxu0
    %v793 = vadd.f32 0.0, %v792
    %v794 = vpop.f32.mrb[0].mxu0
    %795 = vmatprep.mubr.bf16.mxu0 0
    %796 = vmatmul.mubr.bf16.gmra.mrb[0].mxu0 %v452
    %v797 = vpop.f32.mrb[0].mxu0
    %v798 = vadd.f32 0.0, %v797
    %v799 = vpop.f32.mrb[0].mxu0
    %v800 = vpop.f32.mrb[0].mxu0
    %v801 = vadd.f32 0.0, %v800
    %v802 = vpop.f32.mrb[0].mxu0
    %803 = vmatprep.mubr.bf16.mxu0 0
    %804 = vmatmul.mubr.bf16.gmra.mrb[0].mxu0 %v455
    %v805 = vpop.f32.mrb[0].mxu0
    %v806 = vadd.f32 0.0, %v805
    %v807 = vpop.f32.mrb[0].mxu0
    %v808 = vpop.f32.mrb[0].mxu0
    %v809 = vadd.f32 0.0, %v808
    %v810 = vpop.f32.mrb[0].mxu0
    %811 = vmatprep.mubr.bf16.mxu0 0
    %812 = vmatmul.mubr.bf16.gmra.mrb[0].mxu0 %v458
    %v813 = vpop.f32.mrb[0].mxu0
    %v814 = vadd.f32 0.0, %v813
    %v815 = vpop.f32.mrb[0].mxu0
    %v816 = vpop.f32.mrb[0].mxu0
    %v817 = vadd.f32 0.0, %v816
    %v818 = vpop.f32.mrb[0].mxu0
    %819 = vdwg.mxu0
    %v820 = vpack.c.bf16 %v498, %v495
    %v821 = vpack.c.bf16 %v506, %v503
    %v822 = vpack.c.bf16 %v514, %v511
    %v823 = vpack.c.bf16 %v522, %v519
    %v824 = vpack.c.bf16 %v530, %v527
    %v825 = vpack.c.bf16 %v538, %v535
    %v826 = vpack.c.bf16 %v591, %v588
    %v827 = vpack.c.bf16 %v599, %v596
    %v828 = vpack.c.bf16 %v607, %v604
    %v829 = vpack.c.bf16 %v615, %v612
    %v830 = vpack.c.bf16 %v623, %v620
    %v831 = vpack.c.bf16 %v631, %v628
    %v832 = vpack.c.bf16 %v684, %v681
    %v833 = vpack.c.bf16 %v692, %v689
    %v834 = vpack.c.bf16 %v700, %v697
    %v835 = vpack.c.bf16 %v708, %v705
    %v836 = vpack.c.bf16 %v716, %v713
    %v837 = vpack.c.bf16 %v724, %v721
    %v838 = vpack.c.bf16 %v777, %v774
    %v839 = vpack.c.bf16 %v785, %v782
    %v840 = vpack.c.bf16 %v793, %v790
    %v841 = vpack.c.bf16 %v801, %v798
    %v842 = vpack.c.bf16 %v809, %v806
    %v843 = vpack.c.bf16 %v817, %v814
    %v844 = vld [vmem:[%s2] sm:$0xff]
    %v845 = vld [vmem:[%s2 + $0x8] sm:$0xff]
    %v846 = vld [vmem:[%s2 + $0x10] sm:$0xff]
    %v847 = vld [vmem:[%s2 + $0x18] sm:$0xff]
    %v848 = vld [vmem:[%s2 + $0x20] sm:$0xff]
    %v849 = vld [vmem:[%s2 + $0x28] sm:$0xff]
    %v850 = vld [vmem:[%s2 + $0x30] sm:$0xff]
    %v851 = vld [vmem:[%s2 + $0x38] sm:$0xff]
    %v852 = vld [vmem:[%s2 + $0x40] sm:$0xff]
    %v853 = vld [vmem:[%s2 + $0x48] sm:$0xff]
    %v854 = vld [vmem:[%s2 + $0x50] sm:$0xff]
    %v855 = vld [vmem:[%s2 + $0x58] sm:$0xff]
    %v856 = vld [vmem:[%s2 + $0x60] sm:$0xff]
    %v857 = vld [vmem:[%s2 + $0x68] sm:$0xff]
    %v858 = vld [vmem:[%s2 + $0x70] sm:$0xff]
    %v859 = vld [vmem:[%s2 + $0x78] sm:$0xff]
    %v860 = vld [vmem:[%s2 + $0x80] sm:$0xff]
    %v861 = vld [vmem:[%s2 + $0x88] sm:$0xff]
    %v862 = vld [vmem:[%s2 + $0x90] sm:$0xff]
    %v863 = vld [vmem:[%s2 + $0x98] sm:$0xff]
    %v864 = vld [vmem:[%s2 + $0xa0] sm:$0xff]
    %v865 = vld [vmem:[%s2 + $0xa8] sm:$0xff]
    %v866 = vld [vmem:[%s2 + $0xb0] sm:$0xff]
    %v867 = vld [vmem:[%s2 + $0xb8] sm:$0xff]
    %v868 = vld [vmem:[%s2 + $0xc0] sm:$0xff]
    %v869 = vld [vmem:[%s2 + $0xc8] sm:$0xff]
    %v870 = vld [vmem:[%s2 + $0xd0] sm:$0xff]
    %v871 = vld [vmem:[%s2 + $0xd8] sm:$0xff]
    %v872 = vld [vmem:[%s2 + $0xe0] sm:$0xff]
    %v873 = vld [vmem:[%s2 + $0xe8] sm:$0xff]
    %v874 = vld [vmem:[%s2 + $0xf0] sm:$0xff]
    %v875 = vld [vmem:[%s2 + $0xf8] sm:$0xff]
    %v876 = vld [vmem:[%s2 + $0x100] sm:$0xff]
    %v877 = vld [vmem:[%s2 + $0x108] sm:$0xff]
    %v878 = vld [vmem:[%s2 + $0x110] sm:$0xff]
    %v879 = vld [vmem:[%s2 + $0x118] sm:$0xff]
    %v880 = vld [vmem:[%s2 + $0x120] sm:$0xff]
    %v881 = vld [vmem:[%s2 + $0x128] sm:$0xff]
    %v882 = vld [vmem:[%s2 + $0x130] sm:$0xff]
    %v883 = vld [vmem:[%s2 + $0x138] sm:$0xff]
    %v884 = vld [vmem:[%s2 + $0x140] sm:$0xff]
    %v885 = vld [vmem:[%s2 + $0x148] sm:$0xff]
    %v886 = vld [vmem:[%s2 + $0x150] sm:$0xff]
    %v887 = vld [vmem:[%s2 + $0x158] sm:$0xff]
    %v888 = vld [vmem:[%s2 + $0x160] sm:$0xff]
    %v889 = vld [vmem:[%s2 + $0x168] sm:$0xff]
    %v890 = vld [vmem:[%s2 + $0x170] sm:$0xff]
    %v891 = vld [vmem:[%s2 + $0x178] sm:$0xff]
    %898 = vrot.lane.b32.xlu0 %v820, 120
    %v899 = vpop.permute.xlu0 %898
    %900 = vrot.lane.b32.xlu0 %v821, 120
    %v901 = vpop.permute.xlu0 %900
    %902 = vrot.lane.b32.xlu0 %v822, 120
    %v903 = vpop.permute.xlu0 %902
    %904 = vrot.lane.b32.xlu0 %v823, 120
    %v905 = vpop.permute.xlu0 %904
    %906 = vrot.lane.b32.xlu0 %v824, 120
    %v907 = vpop.permute.xlu0 %906
    %908 = vrot.lane.b32.xlu0 %v825, 120
    %v909 = vpop.permute.xlu0 %908
    %vm910 = vcmask 64512
    %v912 = vsel %vm910, %v820, 0
    %v915 = vsel %vm910, %v821, 0
    %v918 = vsel %vm910, %v822, 0
    %v921 = vsel %vm910, %v823, 0
    %v924 = vsel %vm910, %v824, 0
    %v927 = vsel %vm910, %v825, 0
    %v930 = vsel %vm910, %v899, 0
    %v933 = vsel %vm910, %v901, 0
    %v936 = vsel %vm910, %v903, 0
    %v939 = vsel %vm910, %v905, 0
    %v942 = vsel %vm910, %v907, 0
    %v945 = vsel %vm910, %v909, 0
    %947 = vmatprep.subr.bf16.mxu0 0
    %948 = vmatpush1.bf16.xpose.msra.mxu0 %v930
    %949 = vmatprep.subr.bf16.mxu0 0
    %950 = vmatpush1.bf16.xpose.msra.mxu0 %v933
    %951 = vmatprep.subr.bf16.mxu0 0
    %952 = vmatpush1.bf16.xpose.msra.mxu0 %v936
    %953 = vmatprep.subr.bf16.mxu0 0
    %954 = vmatpush1.bf16.xpose.msra.mxu0 %v939
    %955 = vmatprep.subr.bf16.mxu0 0
    %956 = vmatpush1.bf16.xpose.msra.mxu0 %v942
    %957 = vmatprep.subr.bf16.mxu0 0
    %958 = vmatpush1.bf16.xpose.msra.mxu0 %v945
    %959 = vmatprep.subr.bf16.mxu0 0
    %960 = vmatpush1.bf16.xpose.msra.mxu0 0
    %961 = vmatprep.subr.bf16.mxu0 0
    %962 = vmatpush1.bf16.xpose.msra.mxu0 0
    %963 = vmatprep.subr.bf16.mxu0 0
    %964 = vmatpush1.bf16.xpose.msra.mxu0 0
    %965 = vmatprep.subr.bf16.mxu0 0
    %966 = vmatpush1.bf16.xpose.msra.mxu0 0
    %967 = vmatprep.subr.bf16.mxu0 0
    %968 = vmatpush1.bf16.xpose.msra.mxu0 0
    %969 = vmatprep.subr.bf16.mxu0 0
    %970 = vmatpush1.bf16.xpose.msra.mxu0 0
    %971 = vmatprep.subr.bf16.mxu0 0
    %972 = vmatpush1.bf16.xpose.msra.mxu0 0
    %973 = vmatprep.subr.bf16.mxu0 0
    %974 = vmatpush1.bf16.xpose.msra.mxu0 0
    %975 = vmatprep.subr.bf16.mxu0 0
    %976 = vmatpush1.bf16.xpose.msra.mxu0 0
    %977 = vmatprep.subr.bf16.mxu0 0
    %978 = vmatpush1.bf16.xpose.msra.mxu0 0
    %979 = vmatprep.mubr.bf16.mxu0 0
    %980 = vmatmul.mubr.bf16.gmra.mrb[0].mxu0 %v912
    %v981 = vpop.f32.mrb[0].mxu0
    %v982 = vadd.f32 %v844, %v981
    %v983 = vpop.f32.mrb[0].mxu0
    %v984 = vpop.f32.mrb[0].mxu0
    %v985 = vadd.f32 %v845, %v984
    %v986 = vpop.f32.mrb[0].mxu0
    %987 = vmatprep.mubr.bf16.mxu0 0
    %988 = vmatmul.mubr.bf16.gmra.mrb[0].mxu0 %v915
    %v989 = vpop.f32.mrb[0].mxu0
    %v990 = vadd.f32 %v846, %v989
    %v991 = vpop.f32.mrb[0].mxu0
    %v992 = vpop.f32.mrb[0].mxu0
    %v993 = vadd.f32 %v847, %v992
    %v994 = vpop.f32.mrb[0].mxu0
    %995 = vmatprep.mubr.bf16.mxu0 0
    %996 = vmatmul.mubr.bf16.gmra.mrb[0].mxu0 %v918
    %v997 = vpop.f32.mrb[0].mxu0
    %v998 = vadd.f32 %v848, %v997
    %v999 = vpop.f32.mrb[0].mxu0
    %v1000 = vpop.f32.mrb[0].mxu0
    %v1001 = vadd.f32 %v849, %v1000
    %v1002 = vpop.f32.mrb[0].mxu0
    %1003 = vmatprep.mubr.bf16.mxu0 0
    %1004 = vmatmul.mubr.bf16.gmra.mrb[0].mxu0 %v921
    %v1005 = vpop.f32.mrb[0].mxu0
    %v1006 = vadd.f32 %v850, %v1005
    %v1007 = vpop.f32.mrb[0].mxu0
    %v1008 = vpop.f32.mrb[0].mxu0
    %v1009 = vadd.f32 %v851, %v1008
    %v1010 = vpop.f32.mrb[0].mxu0
    %1011 = vmatprep.mubr.bf16.mxu0 0
    %1012 = vmatmul.mubr.bf16.gmra.mrb[0].mxu0 %v924
    %v1013 = vpop.f32.mrb[0].mxu0
    %v1014 = vadd.f32 %v852, %v1013
    %v1015 = vpop.f32.mrb[0].mxu0
    %v1016 = vpop.f32.mrb[0].mxu0
    %v1017 = vadd.f32 %v853, %v1016
    %v1018 = vpop.f32.mrb[0].mxu0
    %1019 = vmatprep.mubr.bf16.mxu0 0
    %1020 = vmatmul.mubr.bf16.gmra.mrb[0].mxu0 %v927
    %v1021 = vpop.f32.mrb[0].mxu0
    %v1022 = vadd.f32 %v854, %v1021
    %v1023 = vpop.f32.mrb[0].mxu0
    %v1024 = vpop.f32.mrb[0].mxu0
    %v1025 = vadd.f32 %v855, %v1024
    %v1026 = vpop.f32.mrb[0].mxu0
    %1027 = vdwg.mxu0
    %1034 = vrot.lane.b32.xlu0 %v826, 120
    %v1035 = vpop.permute.xlu0 %1034
    %1036 = vrot.lane.b32.xlu0 %v827, 120
    %v1037 = vpop.permute.xlu0 %1036
    %1038 = vrot.lane.b32.xlu0 %v828, 120
    %v1039 = vpop.permute.xlu0 %1038
    %1040 = vrot.lane.b32.xlu0 %v829, 120
    %v1041 = vpop.permute.xlu0 %1040
    %1042 = vrot.lane.b32.xlu0 %v830, 120
    %v1043 = vpop.permute.xlu0 %1042
    %1044 = vrot.lane.b32.xlu0 %v831, 120
    %v1045 = vpop.permute.xlu0 %1044
    %v1047 = vsel %vm910, %v826, 0
    %v1050 = vsel %vm910, %v827, 0
    %v1053 = vsel %vm910, %v828, 0
    %v1056 = vsel %vm910, %v829, 0
    %v1059 = vsel %vm910, %v830, 0
    %v1062 = vsel %vm910, %v831, 0
    %v1065 = vsel %vm910, %v1035, 0
    %v1068 = vsel %vm910, %v1037, 0
    %v1071 = vsel %vm910, %v1039, 0
    %v1074 = vsel %vm910, %v1041, 0
    %v1077 = vsel %vm910, %v1043, 0
    %v1080 = vsel %vm910, %v1045, 0
    %1082 = vmatprep.subr.bf16.mxu0 0
    %1083 = vmatpush1.bf16.xpose.msra.mxu0 %v1065
    %1084 = vmatprep.subr.bf16.mxu0 0
    %1085 = vmatpush1.bf16.xpose.msra.mxu0 %v1068
    %1086 = vmatprep.subr.bf16.mxu0 0
    %1087 = vmatpush1.bf16.xpose.msra.mxu0 %v1071
    %1088 = vmatprep.subr.bf16.mxu0 0
    %1089 = vmatpush1.bf16.xpose.msra.mxu0 %v1074
    %1090 = vmatprep.subr.bf16.mxu0 0
    %1091 = vmatpush1.bf16.xpose.msra.mxu0 %v1077
    %1092 = vmatprep.subr.bf16.mxu0 0
    %1093 = vmatpush1.bf16.xpose.msra.mxu0 %v1080
    %1094 = vmatprep.subr.bf16.mxu0 0
    %1095 = vmatpush1.bf16.xpose.msra.mxu0 0
    %1096 = vmatprep.subr.bf16.mxu0 0
    %1097 = vmatpush1.bf16.xpose.msra.mxu0 0
    %1098 = vmatprep.subr.bf16.mxu0 0
    %1099 = vmatpush1.bf16.xpose.msra.mxu0 0
    %1100 = vmatprep.subr.bf16.mxu0 0
    %1101 = vmatpush1.bf16.xpose.msra.mxu0 0
    %1102 = vmatprep.subr.bf16.mxu0 0
    %1103 = vmatpush1.bf16.xpose.msra.mxu0 0
    %1104 = vmatprep.subr.bf16.mxu0 0
    %1105 = vmatpush1.bf16.xpose.msra.mxu0 0
    %1106 = vmatprep.subr.bf16.mxu0 0
    %1107 = vmatpush1.bf16.xpose.msra.mxu0 0
    %1108 = vmatprep.subr.bf16.mxu0 0
    %1109 = vmatpush1.bf16.xpose.msra.mxu0 0
    %1110 = vmatprep.subr.bf16.mxu0 0
    %1111 = vmatpush1.bf16.xpose.msra.mxu0 0
    %1112 = vmatprep.subr.bf16.mxu0 0
    %1113 = vmatpush1.bf16.xpose.msra.mxu0 0
    %1114 = vmatprep.mubr.bf16.mxu0 0
    %1115 = vmatmul.mubr.bf16.gmra.mrb[0].mxu0 %v1047
    %v1116 = vpop.f32.mrb[0].mxu0
    %v1117 = vadd.f32 %v856, %v1116
    %v1118 = vpop.f32.mrb[0].mxu0
    %v1119 = vpop.f32.mrb[0].mxu0
    %v1120 = vadd.f32 %v857, %v1119
    %v1121 = vpop.f32.mrb[0].mxu0
    %1122 = vmatprep.mubr.bf16.mxu0 0
    %1123 = vmatmul.mubr.bf16.gmra.mrb[0].mxu0 %v1050
    %v1124 = vpop.f32.mrb[0].mxu0
    %v1125 = vadd.f32 %v858, %v1124
    %v1126 = vpop.f32.mrb[0].mxu0
    %v1127 = vpop.f32.mrb[0].mxu0
    %v1128 = vadd.f32 %v859, %v1127
    %v1129 = vpop.f32.mrb[0].mxu0
    %1130 = vmatprep.mubr.bf16.mxu0 0
    %1131 = vmatmul.mubr.bf16.gmra.mrb[0].mxu0 %v1053
    %v1132 = vpop.f32.mrb[0].mxu0
    %v1133 = vadd.f32 %v860, %v1132
    %v1134 = vpop.f32.mrb[0].mxu0
    %v1135 = vpop.f32.mrb[0].mxu0
    %v1136 = vadd.f32 %v861, %v1135
    %v1137 = vpop.f32.mrb[0].mxu0
    %1138 = vmatprep.mubr.bf16.mxu0 0
    %1139 = vmatmul.mubr.bf16.gmra.mrb[0].mxu0 %v1056
    %v1140 = vpop.f32.mrb[0].mxu0
    %v1141 = vadd.f32 %v862, %v1140
    %v1142 = vpop.f32.mrb[0].mxu0
    %v1143 = vpop.f32.mrb[0].mxu0
    %v1144 = vadd.f32 %v863, %v1143
    %v1145 = vpop.f32.mrb[0].mxu0
    %1146 = vmatprep.mubr.bf16.mxu0 0
    %1147 = vmatmul.mubr.bf16.gmra.mrb[0].mxu0 %v1059
    %v1148 = vpop.f32.mrb[0].mxu0
    %v1149 = vadd.f32 %v864, %v1148
    %v1150 = vpop.f32.mrb[0].mxu0
    %v1151 = vpop.f32.mrb[0].mxu0
    %v1152 = vadd.f32 %v865, %v1151
    %v1153 = vpop.f32.mrb[0].mxu0
    %1154 = vmatprep.mubr.bf16.mxu0 0
    %1155 = vmatmul.mubr.bf16.gmra.mrb[0].mxu0 %v1062
    %v1156 = vpop.f32.mrb[0].mxu0
    %v1157 = vadd.f32 %v866, %v1156
    %v1158 = vpop.f32.mrb[0].mxu0
    %v1159 = vpop.f32.mrb[0].mxu0
    %v1160 = vadd.f32 %v867, %v1159
    %v1161 = vpop.f32.mrb[0].mxu0
    %1162 = vdwg.mxu0
    %1169 = vrot.lane.b32.xlu0 %v832, 120
    %v1170 = vpop.permute.xlu0 %1169
    %1171 = vrot.lane.b32.xlu0 %v833, 120
    %v1172 = vpop.permute.xlu0 %1171
    %1173 = vrot.lane.b32.xlu0 %v834, 120
    %v1174 = vpop.permute.xlu0 %1173
    %1175 = vrot.lane.b32.xlu0 %v835, 120
    %v1176 = vpop.permute.xlu0 %1175
    %1177 = vrot.lane.b32.xlu0 %v836, 120
    %v1178 = vpop.permute.xlu0 %1177
    %1179 = vrot.lane.b32.xlu0 %v837, 120
    %v1180 = vpop.permute.xlu0 %1179
    %v1182 = vsel %vm910, %v832, 0
    %v1185 = vsel %vm910, %v833, 0
    %v1188 = vsel %vm910, %v834, 0
    %v1191 = vsel %vm910, %v835, 0
    %v1194 = vsel %vm910, %v836, 0
    %v1197 = vsel %vm910, %v837, 0
    %v1200 = vsel %vm910, %v1170, 0
    %v1203 = vsel %vm910, %v1172, 0
    %v1206 = vsel %vm910, %v1174, 0
    %v1209 = vsel %vm910, %v1176, 0
    %v1212 = vsel %vm910, %v1178, 0
    %v1215 = vsel %vm910, %v1180, 0
    %1217 = vmatprep.subr.bf16.mxu0 0
    %1218 = vmatpush1.bf16.xpose.msra.mxu0 %v1200
    %1219 = vmatprep.subr.bf16.mxu0 0
    %1220 = vmatpush1.bf16.xpose.msra.mxu0 %v1203
    %1221 = vmatprep.subr.bf16.mxu0 0
    %1222 = vmatpush1.bf16.xpose.msra.mxu0 %v1206
    %1223 = vmatprep.subr.bf16.mxu0 0
    %1224 = vmatpush1.bf16.xpose.msra.mxu0 %v1209
    %1225 = vmatprep.subr.bf16.mxu0 0
    %1226 = vmatpush1.bf16.xpose.msra.mxu0 %v1212
    %1227 = vmatprep.subr.bf16.mxu0 0
    %1228 = vmatpush1.bf16.xpose.msra.mxu0 %v1215
    %1229 = vmatprep.subr.bf16.mxu0 0
    %1230 = vmatpush1.bf16.xpose.msra.mxu0 0
    %1231 = vmatprep.subr.bf16.mxu0 0
    %1232 = vmatpush1.bf16.xpose.msra.mxu0 0
    %1233 = vmatprep.subr.bf16.mxu0 0
    %1234 = vmatpush1.bf16.xpose.msra.mxu0 0
    %1235 = vmatprep.subr.bf16.mxu0 0
    %1236 = vmatpush1.bf16.xpose.msra.mxu0 0
    %1237 = vmatprep.subr.bf16.mxu0 0
    %1238 = vmatpush1.bf16.xpose.msra.mxu0 0
    %1239 = vmatprep.subr.bf16.mxu0 0
    %1240 = vmatpush1.bf16.xpose.msra.mxu0 0
    %1241 = vmatprep.subr.bf16.mxu0 0
    %1242 = vmatpush1.bf16.xpose.msra.mxu0 0
    %1243 = vmatprep.subr.bf16.mxu0 0
    %1244 = vmatpush1.bf16.xpose.msra.mxu0 0
    %1245 = vmatprep.subr.bf16.mxu0 0
    %1246 = vmatpush1.bf16.xpose.msra.mxu0 0
    %1247 = vmatprep.subr.bf16.mxu0 0
    %1248 = vmatpush1.bf16.xpose.msra.mxu0 0
    %1249 = vmatprep.mubr.bf16.mxu0 0
    %1250 = vmatmul.mubr.bf16.gmra.mrb[0].mxu0 %v1182
    %v1251 = vpop.f32.mrb[0].mxu0
    %v1252 = vadd.f32 %v868, %v1251
    %v1253 = vpop.f32.mrb[0].mxu0
    %v1254 = vpop.f32.mrb[0].mxu0
    %v1255 = vadd.f32 %v869, %v1254
    %v1256 = vpop.f32.mrb[0].mxu0
    %1257 = vmatprep.mubr.bf16.mxu0 0
    %1258 = vmatmul.mubr.bf16.gmra.mrb[0].mxu0 %v1185
    %v1259 = vpop.f32.mrb[0].mxu0
    %v1260 = vadd.f32 %v870, %v1259
    %v1261 = vpop.f32.mrb[0].mxu0
    %v1262 = vpop.f32.mrb[0].mxu0
    %v1263 = vadd.f32 %v871, %v1262
    %v1264 = vpop.f32.mrb[0].mxu0
    %1265 = vmatprep.mubr.bf16.mxu0 0
    %1266 = vmatmul.mubr.bf16.gmra.mrb[0].mxu0 %v1188
    %v1267 = vpop.f32.mrb[0].mxu0
    %v1268 = vadd.f32 %v872, %v1267
    %v1269 = vpop.f32.mrb[0].mxu0
    %v1270 = vpop.f32.mrb[0].mxu0
    %v1271 = vadd.f32 %v873, %v1270
    %v1272 = vpop.f32.mrb[0].mxu0
    %1273 = vmatprep.mubr.bf16.mxu0 0
    %1274 = vmatmul.mubr.bf16.gmra.mrb[0].mxu0 %v1191
    %v1275 = vpop.f32.mrb[0].mxu0
    %v1276 = vadd.f32 %v874, %v1275
    %v1277 = vpop.f32.mrb[0].mxu0
    %v1278 = vpop.f32.mrb[0].mxu0
    %v1279 = vadd.f32 %v875, %v1278
    %v1280 = vpop.f32.mrb[0].mxu0
    %1281 = vmatprep.mubr.bf16.mxu0 0
    %1282 = vmatmul.mubr.bf16.gmra.mrb[0].mxu0 %v1194
    %v1283 = vpop.f32.mrb[0].mxu0
    %v1284 = vadd.f32 %v876, %v1283
    %v1285 = vpop.f32.mrb[0].mxu0
    %v1286 = vpop.f32.mrb[0].mxu0
    %v1287 = vadd.f32 %v877, %v1286
    %v1288 = vpop.f32.mrb[0].mxu0
    %1289 = vmatprep.mubr.bf16.mxu0 0
    %1290 = vmatmul.mubr.bf16.gmra.mrb[0].mxu0 %v1197
    %v1291 = vpop.f32.mrb[0].mxu0
    %v1292 = vadd.f32 %v878, %v1291
    %v1293 = vpop.f32.mrb[0].mxu0
    %v1294 = vpop.f32.mrb[0].mxu0
    %v1295 = vadd.f32 %v879, %v1294
    %v1296 = vpop.f32.mrb[0].mxu0
    %1297 = vdwg.mxu0
    %1304 = vrot.lane.b32.xlu0 %v838, 120
    %v1305 = vpop.permute.xlu0 %1304
    %1306 = vrot.lane.b32.xlu0 %v839, 120
    %v1307 = vpop.permute.xlu0 %1306
    %1308 = vrot.lane.b32.xlu0 %v840, 120
    %v1309 = vpop.permute.xlu0 %1308
    %1310 = vrot.lane.b32.xlu0 %v841, 120
    %v1311 = vpop.permute.xlu0 %1310
    %1312 = vrot.lane.b32.xlu0 %v842, 120
    %v1313 = vpop.permute.xlu0 %1312
    %1314 = vrot.lane.b32.xlu0 %v843, 120
    %v1315 = vpop.permute.xlu0 %1314
    %v1317 = vsel %vm910, %v838, 0
    %v1320 = vsel %vm910, %v839, 0
    %v1323 = vsel %vm910, %v840, 0
    %v1326 = vsel %vm910, %v841, 0
    %v1329 = vsel %vm910, %v842, 0
    %v1332 = vsel %vm910, %v843, 0
    %v1335 = vsel %vm910, %v1305, 0
    %v1338 = vsel %vm910, %v1307, 0
    %v1341 = vsel %vm910, %v1309, 0
    %v1344 = vsel %vm910, %v1311, 0
    %v1347 = vsel %vm910, %v1313, 0
    %v1350 = vsel %vm910, %v1315, 0
    %1352 = vmatprep.subr.bf16.mxu0 0
    %1353 = vmatpush1.bf16.xpose.msra.mxu0 %v1335
    %1354 = vmatprep.subr.bf16.mxu0 0
    %1355 = vmatpush1.bf16.xpose.msra.mxu0 %v1338
    %1356 = vmatprep.subr.bf16.mxu0 0
    %1357 = vmatpush1.bf16.xpose.msra.mxu0 %v1341
    %1358 = vmatprep.subr.bf16.mxu0 0
    %1359 = vmatpush1.bf16.xpose.msra.mxu0 %v1344
    %1360 = vmatprep.subr.bf16.mxu0 0
    %1361 = vmatpush1.bf16.xpose.msra.mxu0 %v1347
    %1362 = vmatprep.subr.bf16.mxu0 0
    %1363 = vmatpush1.bf16.xpose.msra.mxu0 %v1350
    %1364 = vmatprep.subr.bf16.mxu0 0
    %1365 = vmatpush1.bf16.xpose.msra.mxu0 0
    %1366 = vmatprep.subr.bf16.mxu0 0
    %1367 = vmatpush1.bf16.xpose.msra.mxu0 0
    %1368 = vmatprep.subr.bf16.mxu0 0
    %1369 = vmatpush1.bf16.xpose.msra.mxu0 0
    %1370 = vmatprep.subr.bf16.mxu0 0
    %1371 = vmatpush1.bf16.xpose.msra.mxu0 0
    %1372 = vmatprep.subr.bf16.mxu0 0
    %1373 = vmatpush1.bf16.xpose.msra.mxu0 0
    %1374 = vmatprep.subr.bf16.mxu0 0
    %1375 = vmatpush1.bf16.xpose.msra.mxu0 0
    %1376 = vmatprep.subr.bf16.mxu0 0
    %1377 = vmatpush1.bf16.xpose.msra.mxu0 0
    %1378 = vmatprep.subr.bf16.mxu0 0
    %1379 = vmatpush1.bf16.xpose.msra.mxu0 0
    %1380 = vmatprep.subr.bf16.mxu0 0
    %1381 = vmatpush1.bf16.xpose.msra.mxu0 0
    %1382 = vmatprep.subr.bf16.mxu0 0
    %1383 = vmatpush1.bf16.xpose.msra.mxu0 0
    %1384 = vmatprep.mubr.bf16.mxu0 0
    %1385 = vmatmul.mubr.bf16.gmra.mrb[0].mxu0 %v1317
    %v1386 = vpop.f32.mrb[0].mxu0
    %v1387 = vadd.f32 %v880, %v1386
    %v1388 = vpop.f32.mrb[0].mxu0
    %v1389 = vpop.f32.mrb[0].mxu0
    %v1390 = vadd.f32 %v881, %v1389
    %v1391 = vpop.f32.mrb[0].mxu0
    %1392 = vmatprep.mubr.bf16.mxu0 0
    %1393 = vmatmul.mubr.bf16.gmra.mrb[0].mxu0 %v1320
    %v1394 = vpop.f32.mrb[0].mxu0
    %v1395 = vadd.f32 %v882, %v1394
    %v1396 = vpop.f32.mrb[0].mxu0
    %v1397 = vpop.f32.mrb[0].mxu0
    %v1398 = vadd.f32 %v883, %v1397
    %v1399 = vpop.f32.mrb[0].mxu0
    %1400 = vmatprep.mubr.bf16.mxu0 0
    %1401 = vmatmul.mubr.bf16.gmra.mrb[0].mxu0 %v1323
    %v1402 = vpop.f32.mrb[0].mxu0
    %v1403 = vadd.f32 %v884, %v1402
    %v1404 = vpop.f32.mrb[0].mxu0
    %v1405 = vpop.f32.mrb[0].mxu0
    %v1406 = vadd.f32 %v885, %v1405
    %v1407 = vpop.f32.mrb[0].mxu0
    %1408 = vmatprep.mubr.bf16.mxu0 0
    %1409 = vmatmul.mubr.bf16.gmra.mrb[0].mxu0 %v1326
    %v1410 = vpop.f32.mrb[0].mxu0
    %v1411 = vadd.f32 %v886, %v1410
    %v1412 = vpop.f32.mrb[0].mxu0
    %v1413 = vpop.f32.mrb[0].mxu0
    %v1414 = vadd.f32 %v887, %v1413
    %v1415 = vpop.f32.mrb[0].mxu0
    %1416 = vmatprep.mubr.bf16.mxu0 0
    %1417 = vmatmul.mubr.bf16.gmra.mrb[0].mxu0 %v1329
    %v1418 = vpop.f32.mrb[0].mxu0
    %v1419 = vadd.f32 %v888, %v1418
    %v1420 = vpop.f32.mrb[0].mxu0
    %v1421 = vpop.f32.mrb[0].mxu0
    %v1422 = vadd.f32 %v889, %v1421
    %v1423 = vpop.f32.mrb[0].mxu0
    %1424 = vmatprep.mubr.bf16.mxu0 0
    %1425 = vmatmul.mubr.bf16.gmra.mrb[0].mxu0 %v1332
    %v1426 = vpop.f32.mrb[0].mxu0
    %v1427 = vadd.f32 %v890, %v1426
    %v1428 = vpop.f32.mrb[0].mxu0
    %v1429 = vpop.f32.mrb[0].mxu0
    %v1430 = vadd.f32 %v891, %v1429
    %v1431 = vpop.f32.mrb[0].mxu0
    %1432 = vdwg.mxu0
    %vm1433 = vcmask 785408
    %v1434 = vsel %vm1433, %v982, -inf
    %1435 = vmax.xlane.f32.xlu0 %v1434
    %v1436 = vpop.xlane.xlu0 %1435
    %v1437 = vsel %vm1433, %v985, -inf
    %1438 = vmax.xlane.f32.xlu0 %v1437
    %v1439 = vpop.xlane.xlu0 %1438
    %v1440 = vsel %vm1433, %v990, -inf
    %1441 = vmax.xlane.f32.xlu0 %v1440
    %v1442 = vpop.xlane.xlu0 %1441
    %v1443 = vsel %vm1433, %v993, -inf
    %1444 = vmax.xlane.f32.xlu0 %v1443
    %v1445 = vpop.xlane.xlu0 %1444
    %v1446 = vsel %vm1433, %v998, -inf
    %1447 = vmax.xlane.f32.xlu0 %v1446
    %v1448 = vpop.xlane.xlu0 %1447
    %v1449 = vsel %vm1433, %v1001, -inf
    %1450 = vmax.xlane.f32.xlu0 %v1449
    %v1451 = vpop.xlane.xlu0 %1450
    %v1452 = vsel %vm1433, %v1006, -inf
    %1453 = vmax.xlane.f32.xlu0 %v1452
    %v1454 = vpop.xlane.xlu0 %1453
    %v1455 = vsel %vm1433, %v1009, -inf
    %1456 = vmax.xlane.f32.xlu0 %v1455
    %v1457 = vpop.xlane.xlu0 %1456
    %v1458 = vsel %vm1433, %v1014, -inf
    %1459 = vmax.xlane.f32.xlu0 %v1458
    %v1460 = vpop.xlane.xlu0 %1459
    %v1461 = vsel %vm1433, %v1017, -inf
    %1462 = vmax.xlane.f32.xlu0 %v1461
    %v1463 = vpop.xlane.xlu0 %1462
    %v1464 = vsel %vm1433, %v1022, -inf
    %1465 = vmax.xlane.f32.xlu0 %v1464
    %v1466 = vpop.xlane.xlu0 %1465
    %v1467 = vsel %vm1433, %v1025, -inf
    %1468 = vmax.xlane.f32.xlu0 %v1467
    %v1469 = vpop.xlane.xlu0 %1468
    %v1470 = vsel %vm1433, %v1117, -inf
    %1471 = vmax.xlane.f32.xlu0 %v1470
    %v1472 = vpop.xlane.xlu0 %1471
    %v1473 = vsel %vm1433, %v1120, -inf
    %1474 = vmax.xlane.f32.xlu0 %v1473
    %v1475 = vpop.xlane.xlu0 %1474
    %v1476 = vsel %vm1433, %v1125, -inf
    %1477 = vmax.xlane.f32.xlu0 %v1476
    %v1478 = vpop.xlane.xlu0 %1477
    %v1479 = vsel %vm1433, %v1128, -inf
    %1480 = vmax.xlane.f32.xlu0 %v1479
    %v1481 = vpop.xlane.xlu0 %1480
    %v1482 = vsel %vm1433, %v1133, -inf
    %1483 = vmax.xlane.f32.xlu0 %v1482
    %v1484 = vpop.xlane.xlu0 %1483
    %v1485 = vsel %vm1433, %v1136, -inf
    %1486 = vmax.xlane.f32.xlu0 %v1485
    %v1487 = vpop.xlane.xlu0 %1486
    %v1488 = vsel %vm1433, %v1141, -inf
    %1489 = vmax.xlane.f32.xlu0 %v1488
    %v1490 = vpop.xlane.xlu0 %1489
    %v1491 = vsel %vm1433, %v1144, -inf
    %1492 = vmax.xlane.f32.xlu0 %v1491
    %v1493 = vpop.xlane.xlu0 %1492
    %v1494 = vsel %vm1433, %v1149, -inf
    %1495 = vmax.xlane.f32.xlu0 %v1494
    %v1496 = vpop.xlane.xlu0 %1495
    %v1497 = vsel %vm1433, %v1152, -inf
    %1498 = vmax.xlane.f32.xlu0 %v1497
    %v1499 = vpop.xlane.xlu0 %1498
    %v1500 = vsel %vm1433, %v1157, -inf
    %1501 = vmax.xlane.f32.xlu0 %v1500
    %v1502 = vpop.xlane.xlu0 %1501
    %v1503 = vsel %vm1433, %v1160, -inf
    %1504 = vmax.xlane.f32.xlu0 %v1503
    %v1505 = vpop.xlane.xlu0 %1504
    %v1506 = vsel %vm1433, %v1252, -inf
    %1507 = vmax.xlane.f32.xlu0 %v1506
    %v1508 = vpop.xlane.xlu0 %1507
    %v1509 = vsel %vm1433, %v1255, -inf
    %1510 = vmax.xlane.f32.xlu0 %v1509
    %v1511 = vpop.xlane.xlu0 %1510
    %v1512 = vsel %vm1433, %v1260, -inf
    %1513 = vmax.xlane.f32.xlu0 %v1512
    %v1514 = vpop.xlane.xlu0 %1513
    %v1515 = vsel %vm1433, %v1263, -inf
    %1516 = vmax.xlane.f32.xlu0 %v1515
    %v1517 = vpop.xlane.xlu0 %1516
    %v1518 = vsel %vm1433, %v1268, -inf
    %1519 = vmax.xlane.f32.xlu0 %v1518
    %v1520 = vpop.xlane.xlu0 %1519
    %v1521 = vsel %vm1433, %v1271, -inf
    %1522 = vmax.xlane.f32.xlu0 %v1521
    %v1523 = vpop.xlane.xlu0 %1522
    %v1524 = vsel %vm1433, %v1276, -inf
    %1525 = vmax.xlane.f32.xlu0 %v1524
    %v1526 = vpop.xlane.xlu0 %1525
    %v1527 = vsel %vm1433, %v1279, -inf
    %1528 = vmax.xlane.f32.xlu0 %v1527
    %v1529 = vpop.xlane.xlu0 %1528
    %v1530 = vsel %vm1433, %v1284, -inf
    %1531 = vmax.xlane.f32.xlu0 %v1530
    %v1532 = vpop.xlane.xlu0 %1531
    %v1533 = vsel %vm1433, %v1287, -inf
    %1534 = vmax.xlane.f32.xlu0 %v1533
    %v1535 = vpop.xlane.xlu0 %1534
    %v1536 = vsel %vm1433, %v1292, -inf
    %1537 = vmax.xlane.f32.xlu0 %v1536
    %v1538 = vpop.xlane.xlu0 %1537
    %v1539 = vsel %vm1433, %v1295, -inf
    %1540 = vmax.xlane.f32.xlu0 %v1539
    %v1541 = vpop.xlane.xlu0 %1540
    %v1542 = vsel %vm1433, %v1387, -inf
    %1543 = vmax.xlane.f32.xlu0 %v1542
    %v1544 = vpop.xlane.xlu0 %1543
    %v1545 = vsel %vm1433, %v1390, -inf
    %1546 = vmax.xlane.f32.xlu0 %v1545
    %v1547 = vpop.xlane.xlu0 %1546
    %v1548 = vsel %vm1433, %v1395, -inf
    %1549 = vmax.xlane.f32.xlu0 %v1548
    %v1550 = vpop.xlane.xlu0 %1549
    %v1551 = vsel %vm1433, %v1398, -inf
    %1552 = vmax.xlane.f32.xlu0 %v1551
    %v1553 = vpop.xlane.xlu0 %1552
    %v1554 = vsel %vm1433, %v1403, -inf
    %1555 = vmax.xlane.f32.xlu0 %v1554
    %v1556 = vpop.xlane.xlu0 %1555
    %v1557 = vsel %vm1433, %v1406, -inf
    %1558 = vmax.xlane.f32.xlu0 %v1557
    %v1559 = vpop.xlane.xlu0 %1558
    %v1560 = vsel %vm1433, %v1411, -inf
    %1561 = vmax.xlane.f32.xlu0 %v1560
    %v1562 = vpop.xlane.xlu0 %1561
    %v1563 = vsel %vm1433, %v1414, -inf
    %1564 = vmax.xlane.f32.xlu0 %v1563
    %v1565 = vpop.xlane.xlu0 %1564
    %v1566 = vsel %vm1433, %v1419, -inf
    %1567 = vmax.xlane.f32.xlu0 %v1566
    %v1568 = vpop.xlane.xlu0 %1567
    %v1569 = vsel %vm1433, %v1422, -inf
    %1570 = vmax.xlane.f32.xlu0 %v1569
    %v1571 = vpop.xlane.xlu0 %1570
    %v1572 = vsel %vm1433, %v1427, -inf
    %1573 = vmax.xlane.f32.xlu0 %v1572
    %v1574 = vpop.xlane.xlu0 %1573
    %v1575 = vsel %vm1433, %v1430, -inf
    %1576 = vmax.xlane.f32.xlu0 %v1575
    %v1577 = vpop.xlane.xlu0 %1576
    %v1578 = vsub.f32 %v982, %v1436
    %v1579 = vsub.f32 %v985, %v1439
    %v1580 = vsub.f32 %v990, %v1442
    %v1581 = vsub.f32 %v993, %v1445
    %v1582 = vsub.f32 %v998, %v1448
    %v1583 = vsub.f32 %v1001, %v1451
    %v1584 = vsub.f32 %v1006, %v1454
    %v1585 = vsub.f32 %v1009, %v1457
    %v1586 = vsub.f32 %v1014, %v1460
    %v1587 = vsub.f32 %v1017, %v1463
    %v1588 = vsub.f32 %v1022, %v1466
    %v1589 = vsub.f32 %v1025, %v1469
    %v1590 = vsub.f32 %v1117, %v1472
    %v1591 = vsub.f32 %v1120, %v1475
    %v1592 = vsub.f32 %v1125, %v1478
    %v1593 = vsub.f32 %v1128, %v1481
    %v1594 = vsub.f32 %v1133, %v1484
    %v1595 = vsub.f32 %v1136, %v1487
    %v1596 = vsub.f32 %v1141, %v1490
    %v1597 = vsub.f32 %v1144, %v1493
    %v1598 = vsub.f32 %v1149, %v1496
    %v1599 = vsub.f32 %v1152, %v1499
    %v1600 = vsub.f32 %v1157, %v1502
    %v1601 = vsub.f32 %v1160, %v1505
    %v1602 = vsub.f32 %v1252, %v1508
    %v1603 = vsub.f32 %v1255, %v1511
    %v1604 = vsub.f32 %v1260, %v1514
    %v1605 = vsub.f32 %v1263, %v1517
    %v1606 = vsub.f32 %v1268, %v1520
    %v1607 = vsub.f32 %v1271, %v1523
    %v1608 = vsub.f32 %v1276, %v1526
    %v1609 = vsub.f32 %v1279, %v1529
    %v1610 = vsub.f32 %v1284, %v1532
    %v1611 = vsub.f32 %v1287, %v1535
    %v1612 = vsub.f32 %v1292, %v1538
    %v1613 = vsub.f32 %v1295, %v1541
    %v1614 = vsub.f32 %v1387, %v1544
    %v1615 = vsub.f32 %v1390, %v1547
    %v1616 = vsub.f32 %v1395, %v1550
    %v1617 = vsub.f32 %v1398, %v1553
    %v1618 = vsub.f32 %v1403, %v1556
    %v1619 = vsub.f32 %v1406, %v1559
    %v1620 = vsub.f32 %v1411, %v1562
    %v1621 = vsub.f32 %v1414, %v1565
    %v1622 = vsub.f32 %v1419, %v1568
    %v1623 = vsub.f32 %v1422, %v1571
    %v1624 = vsub.f32 %v1427, %v1574
    %v1625 = vsub.f32 %v1430, %v1577
    %v1626 = vmul.f32 %v1578, 1.442695
    %v1627 = vpow.pop %v1626
    %v1628 = vmul.f32 %v1579, 1.442695
    %v1629 = vpow.pop %v1628
    %v1630 = vmul.f32 %v1580, 1.442695
    %v1631 = vpow.pop %v1630
    %v1632 = vmul.f32 %v1581, 1.442695
    %v1633 = vpow.pop %v1632
    %v1634 = vmul.f32 %v1582, 1.442695
    %v1635 = vpow.pop %v1634
    %v1636 = vmul.f32 %v1583, 1.442695
    %v1637 = vpow.pop %v1636
    %v1638 = vmul.f32 %v1584, 1.442695
    %v1639 = vpow.pop %v1638
    %v1640 = vmul.f32 %v1585, 1.442695
    %v1641 = vpow.pop %v1640
    %v1642 = vmul.f32 %v1586, 1.442695
    %v1643 = vpow.pop %v1642
    %v1644 = vmul.f32 %v1587, 1.442695
    %v1645 = vpow.pop %v1644
    %v1646 = vmul.f32 %v1588, 1.442695
    %v1647 = vpow.pop %v1646
    %v1648 = vmul.f32 %v1589, 1.442695
    %v1649 = vpow.pop %v1648
    %v1650 = vmul.f32 %v1590, 1.442695
    %v1651 = vpow.pop %v1650
    %v1652 = vmul.f32 %v1591, 1.442695
    %v1653 = vpow.pop %v1652
    %v1654 = vmul.f32 %v1592, 1.442695
    %v1655 = vpow.pop %v1654
    %v1656 = vmul.f32 %v1593, 1.442695
    %v1657 = vpow.pop %v1656
    %v1658 = vmul.f32 %v1594, 1.442695
    %v1659 = vpow.pop %v1658
    %v1660 = vmul.f32 %v1595, 1.442695
    %v1661 = vpow.pop %v1660
    %v1662 = vmul.f32 %v1596, 1.442695
    %v1663 = vpow.pop %v1662
    %v1664 = vmul.f32 %v1597, 1.442695
    %v1665 = vpow.pop %v1664
    %v1666 = vmul.f32 %v1598, 1.442695
    %v1667 = vpow.pop %v1666
    %v1668 = vmul.f32 %v1599, 1.442695
    %v1669 = vpow.pop %v1668
    %v1670 = vmul.f32 %v1600, 1.442695
    %v1671 = vpow.pop %v1670
    %v1672 = vmul.f32 %v1601, 1.442695
    %v1673 = vpow.pop %v1672
    %v1674 = vmul.f32 %v1602, 1.442695
    %v1675 = vpow.pop %v1674
    %v1676 = vmul.f32 %v1603, 1.442695
    %v1677 = vpow.pop %v1676
    %v1678 = vmul.f32 %v1604, 1.442695
    %v1679 = vpow.pop %v1678
    %v1680 = vmul.f32 %v1605, 1.442695
    %v1681 = vpow.pop %v1680
    %v1682 = vmul.f32 %v1606, 1.442695
    %v1683 = vpow.pop %v1682
    %v1684 = vmul.f32 %v1607, 1.442695
    %v1685 = vpow.pop %v1684
    %v1686 = vmul.f32 %v1608, 1.442695
    %v1687 = vpow.pop %v1686
    %v1688 = vmul.f32 %v1609, 1.442695
    %v1689 = vpow.pop %v1688
    %v1690 = vmul.f32 %v1610, 1.442695
    %v1691 = vpow.pop %v1690
    %v1692 = vmul.f32 %v1611, 1.442695
    %v1693 = vpow.pop %v1692
    %v1694 = vmul.f32 %v1612, 1.442695
    %v1695 = vpow.pop %v1694
    %v1696 = vmul.f32 %v1613, 1.442695
    %v1697 = vpow.pop %v1696
    %v1698 = vmul.f32 %v1614, 1.442695
    %v1699 = vpow.pop %v1698
    %v1700 = vmul.f32 %v1615, 1.442695
    %v1701 = vpow.pop %v1700
    %v1702 = vmul.f32 %v1616, 1.442695
    %v1703 = vpow.pop %v1702
    %v1704 = vmul.f32 %v1617, 1.442695
    %v1705 = vpow.pop %v1704
    %v1706 = vmul.f32 %v1618, 1.442695
    %v1707 = vpow.pop %v1706
    %v1708 = vmul.f32 %v1619, 1.442695
    %v1709 = vpow.pop %v1708
    %v1710 = vmul.f32 %v1620, 1.442695
    %v1711 = vpow.pop %v1710
    %v1712 = vmul.f32 %v1621, 1.442695
    %v1713 = vpow.pop %v1712
    %v1714 = vmul.f32 %v1622, 1.442695
    %v1715 = vpow.pop %v1714
    %v1716 = vmul.f32 %v1623, 1.442695
    %v1717 = vpow.pop %v1716
    %v1718 = vmul.f32 %v1624, 1.442695
    %v1719 = vpow.pop %v1718
    %v1720 = vmul.f32 %v1625, 1.442695
    %v1721 = vpow.pop %v1720
    %v1722 = vsel %vm1433, %v1627, 0.0
    %1723 = vadd.xlane.f32.xlu0 %v1722
    %v1724 = vpop.xlane.xlu0 %1723
    %v1725 = vsel %vm1433, %v1629, 0.0
    %1726 = vadd.xlane.f32.xlu0 %v1725
    %v1727 = vpop.xlane.xlu0 %1726
    %v1728 = vsel %vm1433, %v1631, 0.0
    %1729 = vadd.xlane.f32.xlu0 %v1728
    %v1730 = vpop.xlane.xlu0 %1729
    %v1731 = vsel %vm1433, %v1633, 0.0
    %1732 = vadd.xlane.f32.xlu0 %v1731
    %v1733 = vpop.xlane.xlu0 %1732
    %v1734 = vsel %vm1433, %v1635, 0.0
    %1735 = vadd.xlane.f32.xlu0 %v1734
    %v1736 = vpop.xlane.xlu0 %1735
    %v1737 = vsel %vm1433, %v1637, 0.0
    %1738 = vadd.xlane.f32.xlu0 %v1737
    %v1739 = vpop.xlane.xlu0 %1738
    %v1740 = vsel %vm1433, %v1639, 0.0
    %1741 = vadd.xlane.f32.xlu0 %v1740
    %v1742 = vpop.xlane.xlu0 %1741
    %v1743 = vsel %vm1433, %v1641, 0.0
    %1744 = vadd.xlane.f32.xlu0 %v1743
    %v1745 = vpop.xlane.xlu0 %1744
    %v1746 = vsel %vm1433, %v1643, 0.0
    %1747 = vadd.xlane.f32.xlu0 %v1746
    %v1748 = vpop.xlane.xlu0 %1747
    %v1749 = vsel %vm1433, %v1645, 0.0
    %1750 = vadd.xlane.f32.xlu0 %v1749
    %v1751 = vpop.xlane.xlu0 %1750
    %v1752 = vsel %vm1433, %v1647, 0.0
    %1753 = vadd.xlane.f32.xlu0 %v1752
    %v1754 = vpop.xlane.xlu0 %1753
    %v1755 = vsel %vm1433, %v1649, 0.0
    %1756 = vadd.xlane.f32.xlu0 %v1755
    %v1757 = vpop.xlane.xlu0 %1756
    %v1758 = vsel %vm1433, %v1651, 0.0
    %1759 = vadd.xlane.f32.xlu0 %v1758
    %v1760 = vpop.xlane.xlu0 %1759
    %v1761 = vsel %vm1433, %v1653, 0.0
    %1762 = vadd.xlane.f32.xlu0 %v1761
    %v1763 = vpop.xlane.xlu0 %1762
    %v1764 = vsel %vm1433, %v1655, 0.0
    %1765 = vadd.xlane.f32.xlu0 %v1764
    %v1766 = vpop.xlane.xlu0 %1765
    %v1767 = vsel %vm1433, %v1657, 0.0
    %1768 = vadd.xlane.f32.xlu0 %v1767
    %v1769 = vpop.xlane.xlu0 %1768
    %v1770 = vsel %vm1433, %v1659, 0.0
    %1771 = vadd.xlane.f32.xlu0 %v1770
    %v1772 = vpop.xlane.xlu0 %1771
    %v1773 = vsel %vm1433, %v1661, 0.0
    %1774 = vadd.xlane.f32.xlu0 %v1773
    %v1775 = vpop.xlane.xlu0 %1774
    %v1776 = vsel %vm1433, %v1663, 0.0
    %1777 = vadd.xlane.f32.xlu0 %v1776
    %v1778 = vpop.xlane.xlu0 %1777
    %v1779 = vsel %vm1433, %v1665, 0.0
    %1780 = vadd.xlane.f32.xlu0 %v1779
    %v1781 = vpop.xlane.xlu0 %1780
    %v1782 = vsel %vm1433, %v1667, 0.0
    %1783 = vadd.xlane.f32.xlu0 %v1782
    %v1784 = vpop.xlane.xlu0 %1783
    %v1785 = vsel %vm1433, %v1669, 0.0
    %1786 = vadd.xlane.f32.xlu0 %v1785
    %v1787 = vpop.xlane.xlu0 %1786
    %v1788 = vsel %vm1433, %v1671, 0.0
    %1789 = vadd.xlane.f32.xlu0 %v1788
    %v1790 = vpop.xlane.xlu0 %1789
    %v1791 = vsel %vm1433, %v1673, 0.0
    %1792 = vadd.xlane.f32.xlu0 %v1791
    %v1793 = vpop.xlane.xlu0 %1792
    %v1794 = vsel %vm1433, %v1675, 0.0
    %1795 = vadd.xlane.f32.xlu0 %v1794
    %v1796 = vpop.xlane.xlu0 %1795
    %v1797 = vsel %vm1433, %v1677, 0.0
    %1798 = vadd.xlane.f32.xlu0 %v1797
    %v1799 = vpop.xlane.xlu0 %1798
    %v1800 = vsel %vm1433, %v1679, 0.0
    %1801 = vadd.xlane.f32.xlu0 %v1800
    %v1802 = vpop.xlane.xlu0 %1801
    %v1803 = vsel %vm1433, %v1681, 0.0
    %1804 = vadd.xlane.f32.xlu0 %v1803
    %v1805 = vpop.xlane.xlu0 %1804
    %v1806 = vsel %vm1433, %v1683, 0.0
    %1807 = vadd.xlane.f32.xlu0 %v1806
    %v1808 = vpop.xlane.xlu0 %1807
    %v1809 = vsel %vm1433, %v1685, 0.0
    %1810 = vadd.xlane.f32.xlu0 %v1809
    %v1811 = vpop.xlane.xlu0 %1810
    %v1812 = vsel %vm1433, %v1687, 0.0
    %1813 = vadd.xlane.f32.xlu0 %v1812
    %v1814 = vpop.xlane.xlu0 %1813
    %v1815 = vsel %vm1433, %v1689, 0.0
    %1816 = vadd.xlane.f32.xlu0 %v1815
    %v1817 = vpop.xlane.xlu0 %1816
    %v1818 = vsel %vm1433, %v1691, 0.0
    %1819 = vadd.xlane.f32.xlu0 %v1818
    %v1820 = vpop.xlane.xlu0 %1819
    %v1821 = vsel %vm1433, %v1693, 0.0
    %1822 = vadd.xlane.f32.xlu0 %v1821
    %v1823 = vpop.xlane.xlu0 %1822
    %v1824 = vsel %vm1433, %v1695, 0.0
    %1825 = vadd.xlane.f32.xlu0 %v1824
    %v1826 = vpop.xlane.xlu0 %1825
    %v1827 = vsel %vm1433, %v1697, 0.0
    %1828 = vadd.xlane.f32.xlu0 %v1827
    %v1829 = vpop.xlane.xlu0 %1828
    %v1830 = vsel %vm1433, %v1699, 0.0
    %1831 = vadd.xlane.f32.xlu0 %v1830
    %v1832 = vpop.xlane.xlu0 %1831
    %v1833 = vsel %vm1433, %v1701, 0.0
    %1834 = vadd.xlane.f32.xlu0 %v1833
    %v1835 = vpop.xlane.xlu0 %1834
    %v1836 = vsel %vm1433, %v1703, 0.0
    %1837 = vadd.xlane.f32.xlu0 %v1836
    %v1838 = vpop.xlane.xlu0 %1837
    %v1839 = vsel %vm1433, %v1705, 0.0
    %1840 = vadd.xlane.f32.xlu0 %v1839
    %v1841 = vpop.xlane.xlu0 %1840
    %v1842 = vsel %vm1433, %v1707, 0.0
    %1843 = vadd.xlane.f32.xlu0 %v1842
    %v1844 = vpop.xlane.xlu0 %1843
    %v1845 = vsel %vm1433, %v1709, 0.0
    %1846 = vadd.xlane.f32.xlu0 %v1845
    %v1847 = vpop.xlane.xlu0 %1846
    %v1848 = vsel %vm1433, %v1711, 0.0
    %1849 = vadd.xlane.f32.xlu0 %v1848
    %v1850 = vpop.xlane.xlu0 %1849
    %v1851 = vsel %vm1433, %v1713, 0.0
    %1852 = vadd.xlane.f32.xlu0 %v1851
    %v1853 = vpop.xlane.xlu0 %1852
    %v1854 = vsel %vm1433, %v1715, 0.0
    %1855 = vadd.xlane.f32.xlu0 %v1854
    %v1856 = vpop.xlane.xlu0 %1855
    %v1857 = vsel %vm1433, %v1717, 0.0
    %1858 = vadd.xlane.f32.xlu0 %v1857
    %v1859 = vpop.xlane.xlu0 %1858
    %v1860 = vsel %vm1433, %v1719, 0.0
    %1861 = vadd.xlane.f32.xlu0 %v1860
    %v1862 = vpop.xlane.xlu0 %1861
    %v1863 = vsel %vm1433, %v1721, 0.0
    %1864 = vadd.xlane.f32.xlu0 %v1863
    %v1865 = vpop.xlane.xlu0 %1864
    %v1866 = vrcp.pop %v1724
    %v1867 = vmul.f32 %v1627, %v1866
    %v1868 = vrcp.pop %v1727
    %v1869 = vmul.f32 %v1629, %v1868
    %v1870 = vrcp.pop %v1730
    %v1871 = vmul.f32 %v1631, %v1870
    %v1872 = vrcp.pop %v1733
    %v1873 = vmul.f32 %v1633, %v1872
    %v1874 = vrcp.pop %v1736
    %v1875 = vmul.f32 %v1635, %v1874
    %v1876 = vrcp.pop %v1739
    %v1877 = vmul.f32 %v1637, %v1876
    %v1878 = vrcp.pop %v1742
    %v1879 = vmul.f32 %v1639, %v1878
    %v1880 = vrcp.pop %v1745
    %v1881 = vmul.f32 %v1641, %v1880
    %v1882 = vrcp.pop %v1748
    %v1883 = vmul.f32 %v1643, %v1882
    %v1884 = vrcp.pop %v1751
    %v1885 = vmul.f32 %v1645, %v1884
    %v1886 = vrcp.pop %v1754
    %v1887 = vmul.f32 %v1647, %v1886
    %v1888 = vrcp.pop %v1757
    %v1889 = vmul.f32 %v1649, %v1888
    %v1890 = vrcp.pop %v1760
    %v1891 = vmul.f32 %v1651, %v1890
    %v1892 = vrcp.pop %v1763
    %v1893 = vmul.f32 %v1653, %v1892
    %v1894 = vrcp.pop %v1766
    %v1895 = vmul.f32 %v1655, %v1894
    %v1896 = vrcp.pop %v1769
    %v1897 = vmul.f32 %v1657, %v1896
    %v1898 = vrcp.pop %v1772
    %v1899 = vmul.f32 %v1659, %v1898
    %v1900 = vrcp.pop %v1775
    %v1901 = vmul.f32 %v1661, %v1900
    %v1902 = vrcp.pop %v1778
    %v1903 = vmul.f32 %v1663, %v1902
    %v1904 = vrcp.pop %v1781
    %v1905 = vmul.f32 %v1665, %v1904
    %v1906 = vrcp.pop %v1784
    %v1907 = vmul.f32 %v1667, %v1906
    %v1908 = vrcp.pop %v1787
    %v1909 = vmul.f32 %v1669, %v1908
    %v1910 = vrcp.pop %v1790
    %v1911 = vmul.f32 %v1671, %v1910
    %v1912 = vrcp.pop %v1793
    %v1913 = vmul.f32 %v1673, %v1912
    %v1914 = vrcp.pop %v1796
    %v1915 = vmul.f32 %v1675, %v1914
    %v1916 = vrcp.pop %v1799
    %v1917 = vmul.f32 %v1677, %v1916
    %v1918 = vrcp.pop %v1802
    %v1919 = vmul.f32 %v1679, %v1918
    %v1920 = vrcp.pop %v1805
    %v1921 = vmul.f32 %v1681, %v1920
    %v1922 = vrcp.pop %v1808
    %v1923 = vmul.f32 %v1683, %v1922
    %v1924 = vrcp.pop %v1811
    %v1925 = vmul.f32 %v1685, %v1924
    %v1926 = vrcp.pop %v1814
    %v1927 = vmul.f32 %v1687, %v1926
    %v1928 = vrcp.pop %v1817
    %v1929 = vmul.f32 %v1689, %v1928
    %v1930 = vrcp.pop %v1820
    %v1931 = vmul.f32 %v1691, %v1930
    %v1932 = vrcp.pop %v1823
    %v1933 = vmul.f32 %v1693, %v1932
    %v1934 = vrcp.pop %v1826
    %v1935 = vmul.f32 %v1695, %v1934
    %v1936 = vrcp.pop %v1829
    %v1937 = vmul.f32 %v1697, %v1936
    %v1938 = vrcp.pop %v1832
    %v1939 = vmul.f32 %v1699, %v1938
    %v1940 = vrcp.pop %v1835
    %v1941 = vmul.f32 %v1701, %v1940
    %v1942 = vrcp.pop %v1838
    %v1943 = vmul.f32 %v1703, %v1942
    %v1944 = vrcp.pop %v1841
    %v1945 = vmul.f32 %v1705, %v1944
    %v1946 = vrcp.pop %v1844
    %v1947 = vmul.f32 %v1707, %v1946
    %v1948 = vrcp.pop %v1847
    %v1949 = vmul.f32 %v1709, %v1948
    %v1950 = vrcp.pop %v1850
    %v1951 = vmul.f32 %v1711, %v1950
    %v1952 = vrcp.pop %v1853
    %v1953 = vmul.f32 %v1713, %v1952
    %v1954 = vrcp.pop %v1856
    %v1955 = vmul.f32 %v1715, %v1954
    %v1956 = vrcp.pop %v1859
    %v1957 = vmul.f32 %v1717, %v1956
    %v1958 = vrcp.pop %v1862
    %v1959 = vmul.f32 %v1719, %v1958
    %v1960 = vrcp.pop %v1865
    %v1961 = vmul.f32 %v1721, %v1960
    %v1962 = vpack.c.bf16 %v1869, %v1867
    %v1963 = vpack.c.bf16 %v1873, %v1871
    %v1964 = vpack.c.bf16 %v1877, %v1875
    %v1965 = vpack.c.bf16 %v1881, %v1879
    %v1966 = vpack.c.bf16 %v1885, %v1883
    %v1967 = vpack.c.bf16 %v1889, %v1887
    %v1968 = vpack.c.bf16 %v1893, %v1891
    %v1969 = vpack.c.bf16 %v1897, %v1895
    %v1970 = vpack.c.bf16 %v1901, %v1899
    %v1971 = vpack.c.bf16 %v1905, %v1903
    %v1972 = vpack.c.bf16 %v1909, %v1907
    %v1973 = vpack.c.bf16 %v1913, %v1911
    %v1974 = vpack.c.bf16 %v1917, %v1915
    %v1975 = vpack.c.bf16 %v1921, %v1919
    %v1976 = vpack.c.bf16 %v1925, %v1923
    %v1977 = vpack.c.bf16 %v1929, %v1927
    %v1978 = vpack.c.bf16 %v1933, %v1931
    %v1979 = vpack.c.bf16 %v1937, %v1935
    %v1980 = vpack.c.bf16 %v1941, %v1939
    %v1981 = vpack.c.bf16 %v1945, %v1943
    %v1982 = vpack.c.bf16 %v1949, %v1947
    %v1983 = vpack.c.bf16 %v1953, %v1951
    %v1984 = vpack.c.bf16 %v1957, %v1955
    %v1985 = vpack.c.bf16 %v1961, %v1959
    %1986 = vrot.lane.b32.xlu0 %v820, 112
    %v1987 = vpop.permute.xlu0 %1986
    %1988 = vrot.lane.b32.xlu0 %v821, 112
    %v1989 = vpop.permute.xlu0 %1988
    %1990 = vrot.lane.b32.xlu0 %v822, 112
    %v1991 = vpop.permute.xlu0 %1990
    %1992 = vrot.lane.b32.xlu0 %v823, 112
    %v1993 = vpop.permute.xlu0 %1992
    %1994 = vrot.lane.b32.xlu0 %v824, 112
    %v1995 = vpop.permute.xlu0 %1994
    %1996 = vrot.lane.b32.xlu0 %v825, 112
    %v1997 = vpop.permute.xlu0 %1996
    %v2005 = vsel %vm1433, %v1962, 0
    %v2008 = vsel %vm1433, %v1963, 0
    %v2011 = vsel %vm1433, %v1964, 0
    %v2014 = vsel %vm1433, %v1965, 0
    %v2017 = vsel %vm1433, %v1966, 0
    %v2020 = vsel %vm1433, %v1967, 0
    %2022 = vmatprep.subr.bf16.mxu0 0
    %2023 = vmatpush1.bf16.msra.mxu0 %v1987
    %2024 = vmatprep.subr.bf16.mxu0 0
    %2025 = vmatpush1.bf16.msra.mxu0 %v1989
    %2026 = vmatprep.subr.bf16.mxu0 0
    %2027 = vmatpush1.bf16.msra.mxu0 %v1991
    %2028 = vmatprep.subr.bf16.mxu0 0
    %2029 = vmatpush1.bf16.msra.mxu0 %v1993
    %2030 = vmatprep.subr.bf16.mxu0 0
    %2031 = vmatpush1.bf16.msra.mxu0 %v1995
    %2032 = vmatprep.subr.bf16.mxu0 0
    %2033 = vmatpush1.bf16.msra.mxu0 %v1997
    %2034 = vmatprep.subr.bf16.mxu0 0
    %2035 = vmatpush1.bf16.msra.mxu0 0
    %2036 = vmatprep.subr.bf16.mxu0 0
    %2037 = vmatpush1.bf16.msra.mxu0 0
    %2038 = vmatprep.subr.bf16.mxu0 0
    %2039 = vmatpush1.bf16.msra.mxu0 0
    %2040 = vmatprep.subr.bf16.mxu0 0
    %2041 = vmatpush1.bf16.msra.mxu0 0
    %2042 = vmatprep.subr.bf16.mxu0 0
    %2043 = vmatpush1.bf16.msra.mxu0 0
    %2044 = vmatprep.subr.bf16.mxu0 0
    %2045 = vmatpush1.bf16.msra.mxu0 0
    %2046 = vmatprep.subr.bf16.mxu0 0
    %2047 = vmatpush1.bf16.msra.mxu0 0
    %2048 = vmatprep.subr.bf16.mxu0 0
    %2049 = vmatpush1.bf16.msra.mxu0 0
    %2050 = vmatprep.subr.bf16.mxu0 0
    %2051 = vmatpush1.bf16.msra.mxu0 0
    %2052 = vmatprep.subr.bf16.mxu0 0
    %2053 = vmatpush1.bf16.msra.mxu0 0
    %2054 = vmatprep.mubr.bf16.mxu0 0
    %2055 = vmatmul.mubr.bf16.gmra.mrb[0].mxu0 %v2005
    %v2056 = vpop.f32.mrb[0].mxu0
    %v2057 = vadd.f32 0.0, %v2056
    %v2058 = vpop.f32.mrb[0].mxu0
    %v2059 = vpop.f32.mrb[0].mxu0
    %v2060 = vadd.f32 0.0, %v2059
    %v2061 = vpop.f32.mrb[0].mxu0
    %2062 = vmatprep.mubr.bf16.mxu0 0
    %2063 = vmatmul.mubr.bf16.gmra.mrb[0].mxu0 %v2008
    %v2064 = vpop.f32.mrb[0].mxu0
    %v2065 = vadd.f32 0.0, %v2064
    %v2066 = vpop.f32.mrb[0].mxu0
    %v2067 = vpop.f32.mrb[0].mxu0
    %v2068 = vadd.f32 0.0, %v2067
    %v2069 = vpop.f32.mrb[0].mxu0
    %2070 = vmatprep.mubr.bf16.mxu0 0
    %2071 = vmatmul.mubr.bf16.gmra.mrb[0].mxu0 %v2011
    %v2072 = vpop.f32.mrb[0].mxu0
    %v2073 = vadd.f32 0.0, %v2072
    %v2074 = vpop.f32.mrb[0].mxu0
    %v2075 = vpop.f32.mrb[0].mxu0
    %v2076 = vadd.f32 0.0, %v2075
    %v2077 = vpop.f32.mrb[0].mxu0
    %2078 = vmatprep.mubr.bf16.mxu0 0
    %2079 = vmatmul.mubr.bf16.gmra.mrb[0].mxu0 %v2014
    %v2080 = vpop.f32.mrb[0].mxu0
    %v2081 = vadd.f32 0.0, %v2080
    %v2082 = vpop.f32.mrb[0].mxu0
    %v2083 = vpop.f32.mrb[0].mxu0
    %v2084 = vadd.f32 0.0, %v2083
    %v2085 = vpop.f32.mrb[0].mxu0
    %2086 = vmatprep.mubr.bf16.mxu0 0
    %2087 = vmatmul.mubr.bf16.gmra.mrb[0].mxu0 %v2017
    %v2088 = vpop.f32.mrb[0].mxu0
    %v2089 = vadd.f32 0.0, %v2088
    %v2090 = vpop.f32.mrb[0].mxu0
    %v2091 = vpop.f32.mrb[0].mxu0
    %v2092 = vadd.f32 0.0, %v2091
    %v2093 = vpop.f32.mrb[0].mxu0
    %2094 = vmatprep.mubr.bf16.mxu0 0
    %2095 = vmatmul.mubr.bf16.gmra.mrb[0].mxu0 %v2020
    %v2096 = vpop.f32.mrb[0].mxu0
    %v2097 = vadd.f32 0.0, %v2096
    %v2098 = vpop.f32.mrb[0].mxu0
    %v2099 = vpop.f32.mrb[0].mxu0
    %v2100 = vadd.f32 0.0, %v2099
    %v2101 = vpop.f32.mrb[0].mxu0
    %2102 = vdwg.mxu0
    %2103 = vrot.lane.b32.xlu0 %v826, 112
    %v2104 = vpop.permute.xlu0 %2103
    %2105 = vrot.lane.b32.xlu0 %v827, 112
    %v2106 = vpop.permute.xlu0 %2105
    %2107 = vrot.lane.b32.xlu0 %v828, 112
    %v2108 = vpop.permute.xlu0 %2107
    %2109 = vrot.lane.b32.xlu0 %v829, 112
    %v2110 = vpop.permute.xlu0 %2109
    %2111 = vrot.lane.b32.xlu0 %v830, 112
    %v2112 = vpop.permute.xlu0 %2111
    %2113 = vrot.lane.b32.xlu0 %v831, 112
    %v2114 = vpop.permute.xlu0 %2113
    %v2122 = vsel %vm1433, %v1968, 0
    %v2125 = vsel %vm1433, %v1969, 0
    %v2128 = vsel %vm1433, %v1970, 0
    %v2131 = vsel %vm1433, %v1971, 0
    %v2134 = vsel %vm1433, %v1972, 0
    %v2137 = vsel %vm1433, %v1973, 0
    %2139 = vmatprep.subr.bf16.mxu0 0
    %2140 = vmatpush1.bf16.msra.mxu0 %v2104
    %2141 = vmatprep.subr.bf16.mxu0 0
    %2142 = vmatpush1.bf16.msra.mxu0 %v2106
    %2143 = vmatprep.subr.bf16.mxu0 0
    %2144 = vmatpush1.bf16.msra.mxu0 %v2108
    %2145 = vmatprep.subr.bf16.mxu0 0
    %2146 = vmatpush1.bf16.msra.mxu0 %v2110
    %2147 = vmatprep.subr.bf16.mxu0 0
    %2148 = vmatpush1.bf16.msra.mxu0 %v2112
    %2149 = vmatprep.subr.bf16.mxu0 0
    %2150 = vmatpush1.bf16.msra.mxu0 %v2114
    %2151 = vmatprep.subr.bf16.mxu0 0
    %2152 = vmatpush1.bf16.msra.mxu0 0
    %2153 = vmatprep.subr.bf16.mxu0 0
    %2154 = vmatpush1.bf16.msra.mxu0 0
    %2155 = vmatprep.subr.bf16.mxu0 0
    %2156 = vmatpush1.bf16.msra.mxu0 0
    %2157 = vmatprep.subr.bf16.mxu0 0
    %2158 = vmatpush1.bf16.msra.mxu0 0
    %2159 = vmatprep.subr.bf16.mxu0 0
    %2160 = vmatpush1.bf16.msra.mxu0 0
    %2161 = vmatprep.subr.bf16.mxu0 0
    %2162 = vmatpush1.bf16.msra.mxu0 0
    %2163 = vmatprep.subr.bf16.mxu0 0
    %2164 = vmatpush1.bf16.msra.mxu0 0
    %2165 = vmatprep.subr.bf16.mxu0 0
    %2166 = vmatpush1.bf16.msra.mxu0 0
    %2167 = vmatprep.subr.bf16.mxu0 0
    %2168 = vmatpush1.bf16.msra.mxu0 0
    %2169 = vmatprep.subr.bf16.mxu0 0
    %2170 = vmatpush1.bf16.msra.mxu0 0
    %2171 = vmatprep.mubr.bf16.mxu0 0
    %2172 = vmatmul.mubr.bf16.gmra.mrb[0].mxu0 %v2122
    %v2173 = vpop.f32.mrb[0].mxu0
    %v2174 = vadd.f32 0.0, %v2173
    %v2175 = vpop.f32.mrb[0].mxu0
    %v2176 = vpop.f32.mrb[0].mxu0
    %v2177 = vadd.f32 0.0, %v2176
    %v2178 = vpop.f32.mrb[0].mxu0
    %2179 = vmatprep.mubr.bf16.mxu0 0
    %2180 = vmatmul.mubr.bf16.gmra.mrb[0].mxu0 %v2125
    %v2181 = vpop.f32.mrb[0].mxu0
    %v2182 = vadd.f32 0.0, %v2181
    %v2183 = vpop.f32.mrb[0].mxu0
    %v2184 = vpop.f32.mrb[0].mxu0
    %v2185 = vadd.f32 0.0, %v2184
    %v2186 = vpop.f32.mrb[0].mxu0
    %2187 = vmatprep.mubr.bf16.mxu0 0
    %2188 = vmatmul.mubr.bf16.gmra.mrb[0].mxu0 %v2128
    %v2189 = vpop.f32.mrb[0].mxu0
    %v2190 = vadd.f32 0.0, %v2189
    %v2191 = vpop.f32.mrb[0].mxu0
    %v2192 = vpop.f32.mrb[0].mxu0
    %v2193 = vadd.f32 0.0, %v2192
    %v2194 = vpop.f32.mrb[0].mxu0
    %2195 = vmatprep.mubr.bf16.mxu0 0
    %2196 = vmatmul.mubr.bf16.gmra.mrb[0].mxu0 %v2131
    %v2197 = vpop.f32.mrb[0].mxu0
    %v2198 = vadd.f32 0.0, %v2197
    %v2199 = vpop.f32.mrb[0].mxu0
    %v2200 = vpop.f32.mrb[0].mxu0
    %v2201 = vadd.f32 0.0, %v2200
    %v2202 = vpop.f32.mrb[0].mxu0
    %2203 = vmatprep.mubr.bf16.mxu0 0
    %2204 = vmatmul.mubr.bf16.gmra.mrb[0].mxu0 %v2134
    %v2205 = vpop.f32.mrb[0].mxu0
    %v2206 = vadd.f32 0.0, %v2205
    %v2207 = vpop.f32.mrb[0].mxu0
    %v2208 = vpop.f32.mrb[0].mxu0
    %v2209 = vadd.f32 0.0, %v2208
    %v2210 = vpop.f32.mrb[0].mxu0
    %2211 = vmatprep.mubr.bf16.mxu0 0
    %2212 = vmatmul.mubr.bf16.gmra.mrb[0].mxu0 %v2137
    %v2213 = vpop.f32.mrb[0].mxu0
    %v2214 = vadd.f32 0.0, %v2213
    %v2215 = vpop.f32.mrb[0].mxu0
    %v2216 = vpop.f32.mrb[0].mxu0
    %v2217 = vadd.f32 0.0, %v2216
    %v2218 = vpop.f32.mrb[0].mxu0
    %2219 = vdwg.mxu0
    %2220 = vrot.lane.b32.xlu0 %v832, 112
    %v2221 = vpop.permute.xlu0 %2220
    %2222 = vrot.lane.b32.xlu0 %v833, 112
    %v2223 = vpop.permute.xlu0 %2222
    %2224 = vrot.lane.b32.xlu0 %v834, 112
    %v2225 = vpop.permute.xlu0 %2224
    %2226 = vrot.lane.b32.xlu0 %v835, 112
    %v2227 = vpop.permute.xlu0 %2226
    %2228 = vrot.lane.b32.xlu0 %v836, 112
    %v2229 = vpop.permute.xlu0 %2228
    %2230 = vrot.lane.b32.xlu0 %v837, 112
    %v2231 = vpop.permute.xlu0 %2230
    %v2239 = vsel %vm1433, %v1974, 0
    %v2242 = vsel %vm1433, %v1975, 0
    %v2245 = vsel %vm1433, %v1976, 0
    %v2248 = vsel %vm1433, %v1977, 0
    %v2251 = vsel %vm1433, %v1978, 0
    %v2254 = vsel %vm1433, %v1979, 0
    %2256 = vmatprep.subr.bf16.mxu0 0
    %2257 = vmatpush1.bf16.msra.mxu0 %v2221
    %2258 = vmatprep.subr.bf16.mxu0 0
    %2259 = vmatpush1.bf16.msra.mxu0 %v2223
    %2260 = vmatprep.subr.bf16.mxu0 0
    %2261 = vmatpush1.bf16.msra.mxu0 %v2225
    %2262 = vmatprep.subr.bf16.mxu0 0
    %2263 = vmatpush1.bf16.msra.mxu0 %v2227
    %2264 = vmatprep.subr.bf16.mxu0 0
    %2265 = vmatpush1.bf16.msra.mxu0 %v2229
    %2266 = vmatprep.subr.bf16.mxu0 0
    %2267 = vmatpush1.bf16.msra.mxu0 %v2231
    %2268 = vmatprep.subr.bf16.mxu0 0
    %2269 = vmatpush1.bf16.msra.mxu0 0
    %2270 = vmatprep.subr.bf16.mxu0 0
    %2271 = vmatpush1.bf16.msra.mxu0 0
    %2272 = vmatprep.subr.bf16.mxu0 0
    %2273 = vmatpush1.bf16.msra.mxu0 0
    %2274 = vmatprep.subr.bf16.mxu0 0
    %2275 = vmatpush1.bf16.msra.mxu0 0
    %2276 = vmatprep.subr.bf16.mxu0 0
    %2277 = vmatpush1.bf16.msra.mxu0 0
    %2278 = vmatprep.subr.bf16.mxu0 0
    %2279 = vmatpush1.bf16.msra.mxu0 0
    %2280 = vmatprep.subr.bf16.mxu0 0
    %2281 = vmatpush1.bf16.msra.mxu0 0
    %2282 = vmatprep.subr.bf16.mxu0 0
    %2283 = vmatpush1.bf16.msra.mxu0 0
    %2284 = vmatprep.subr.bf16.mxu0 0
    %2285 = vmatpush1.bf16.msra.mxu0 0
    %2286 = vmatprep.subr.bf16.mxu0 0
    %2287 = vmatpush1.bf16.msra.mxu0 0
    %2288 = vmatprep.mubr.bf16.mxu0 0
    %2289 = vmatmul.mubr.bf16.gmra.mrb[0].mxu0 %v2239
    %v2290 = vpop.f32.mrb[0].mxu0
    %v2291 = vadd.f32 0.0, %v2290
    %v2292 = vpop.f32.mrb[0].mxu0
    %v2293 = vpop.f32.mrb[0].mxu0
    %v2294 = vadd.f32 0.0, %v2293
    %v2295 = vpop.f32.mrb[0].mxu0
    %2296 = vmatprep.mubr.bf16.mxu0 0
    %2297 = vmatmul.mubr.bf16.gmra.mrb[0].mxu0 %v2242
    %v2298 = vpop.f32.mrb[0].mxu0
    %v2299 = vadd.f32 0.0, %v2298
    %v2300 = vpop.f32.mrb[0].mxu0
    %v2301 = vpop.f32.mrb[0].mxu0
    %v2302 = vadd.f32 0.0, %v2301
    %v2303 = vpop.f32.mrb[0].mxu0
    %2304 = vmatprep.mubr.bf16.mxu0 0
    %2305 = vmatmul.mubr.bf16.gmra.mrb[0].mxu0 %v2245
    %v2306 = vpop.f32.mrb[0].mxu0
    %v2307 = vadd.f32 0.0, %v2306
    %v2308 = vpop.f32.mrb[0].mxu0
    %v2309 = vpop.f32.mrb[0].mxu0
    %v2310 = vadd.f32 0.0, %v2309
    %v2311 = vpop.f32.mrb[0].mxu0
    %2312 = vmatprep.mubr.bf16.mxu0 0
    %2313 = vmatmul.mubr.bf16.gmra.mrb[0].mxu0 %v2248
    %v2314 = vpop.f32.mrb[0].mxu0
    %v2315 = vadd.f32 0.0, %v2314
    %v2316 = vpop.f32.mrb[0].mxu0
    %v2317 = vpop.f32.mrb[0].mxu0
    %v2318 = vadd.f32 0.0, %v2317
    %v2319 = vpop.f32.mrb[0].mxu0
    %2320 = vmatprep.mubr.bf16.mxu0 0
    %2321 = vmatmul.mubr.bf16.gmra.mrb[0].mxu0 %v2251
    %v2322 = vpop.f32.mrb[0].mxu0
    %v2323 = vadd.f32 0.0, %v2322
    %v2324 = vpop.f32.mrb[0].mxu0
    %v2325 = vpop.f32.mrb[0].mxu0
    %v2326 = vadd.f32 0.0, %v2325
    %v2327 = vpop.f32.mrb[0].mxu0
    %2328 = vmatprep.mubr.bf16.mxu0 0
    %2329 = vmatmul.mubr.bf16.gmra.mrb[0].mxu0 %v2254
    %v2330 = vpop.f32.mrb[0].mxu0
    %v2331 = vadd.f32 0.0, %v2330
    %v2332 = vpop.f32.mrb[0].mxu0
    %v2333 = vpop.f32.mrb[0].mxu0
    %v2334 = vadd.f32 0.0, %v2333
    %v2335 = vpop.f32.mrb[0].mxu0
    %2336 = vdwg.mxu0
    %2337 = vrot.lane.b32.xlu0 %v838, 112
    %v2338 = vpop.permute.xlu0 %2337
    %2339 = vrot.lane.b32.xlu0 %v839, 112
    %v2340 = vpop.permute.xlu0 %2339
    %2341 = vrot.lane.b32.xlu0 %v840, 112
    %v2342 = vpop.permute.xlu0 %2341
    %2343 = vrot.lane.b32.xlu0 %v841, 112
    %v2344 = vpop.permute.xlu0 %2343
    %2345 = vrot.lane.b32.xlu0 %v842, 112
    %v2346 = vpop.permute.xlu0 %2345
    %2347 = vrot.lane.b32.xlu0 %v843, 112
    %v2348 = vpop.permute.xlu0 %2347
    %v2356 = vsel %vm1433, %v1980, 0
    %v2359 = vsel %vm1433, %v1981, 0
    %v2362 = vsel %vm1433, %v1982, 0
    %v2365 = vsel %vm1433, %v1983, 0
    %v2368 = vsel %vm1433, %v1984, 0
    %v2371 = vsel %vm1433, %v1985, 0
    %2373 = vmatprep.subr.bf16.mxu0 0
    %2374 = vmatpush1.bf16.msra.mxu0 %v2338
    %2375 = vmatprep.subr.bf16.mxu0 0
    %2376 = vmatpush1.bf16.msra.mxu0 %v2340
    %2377 = vmatprep.subr.bf16.mxu0 0
    %2378 = vmatpush1.bf16.msra.mxu0 %v2342
    %2379 = vmatprep.subr.bf16.mxu0 0
    %2380 = vmatpush1.bf16.msra.mxu0 %v2344
    %2381 = vmatprep.subr.bf16.mxu0 0
    %2382 = vmatpush1.bf16.msra.mxu0 %v2346
    %2383 = vmatprep.subr.bf16.mxu0 0
    %2384 = vmatpush1.bf16.msra.mxu0 %v2348
    %2385 = vmatprep.subr.bf16.mxu0 0
    %2386 = vmatpush1.bf16.msra.mxu0 0
    %2387 = vmatprep.subr.bf16.mxu0 0
    %2388 = vmatpush1.bf16.msra.mxu0 0
    %2389 = vmatprep.subr.bf16.mxu0 0
    %2390 = vmatpush1.bf16.msra.mxu0 0
    %2391 = vmatprep.subr.bf16.mxu0 0
    %2392 = vmatpush1.bf16.msra.mxu0 0
    %2393 = vmatprep.subr.bf16.mxu0 0
    %2394 = vmatpush1.bf16.msra.mxu0 0
    %2395 = vmatprep.subr.bf16.mxu0 0
    %2396 = vmatpush1.bf16.msra.mxu0 0
    %2397 = vmatprep.subr.bf16.mxu0 0
    %2398 = vmatpush1.bf16.msra.mxu0 0
    %2399 = vmatprep.subr.bf16.mxu0 0
    %2400 = vmatpush1.bf16.msra.mxu0 0
    %2401 = vmatprep.subr.bf16.mxu0 0
    %2402 = vmatpush1.bf16.msra.mxu0 0
    %2403 = vmatprep.subr.bf16.mxu0 0
    %2404 = vmatpush1.bf16.msra.mxu0 0
    %2405 = vmatprep.mubr.bf16.mxu0 0
    %2406 = vmatmul.mubr.bf16.gmra.mrb[0].mxu0 %v2356
    %v2407 = vpop.f32.mrb[0].mxu0
    %v2408 = vadd.f32 0.0, %v2407
    %v2409 = vpop.f32.mrb[0].mxu0
    %v2410 = vpop.f32.mrb[0].mxu0
    %v2411 = vadd.f32 0.0, %v2410
    %v2412 = vpop.f32.mrb[0].mxu0
    %2413 = vmatprep.mubr.bf16.mxu0 0
    %2414 = vmatmul.mubr.bf16.gmra.mrb[0].mxu0 %v2359
    %v2415 = vpop.f32.mrb[0].mxu0
    %v2416 = vadd.f32 0.0, %v2415
    %v2417 = vpop.f32.mrb[0].mxu0
    %v2418 = vpop.f32.mrb[0].mxu0
    %v2419 = vadd.f32 0.0, %v2418
    %v2420 = vpop.f32.mrb[0].mxu0
    %2421 = vmatprep.mubr.bf16.mxu0 0
    %2422 = vmatmul.mubr.bf16.gmra.mrb[0].mxu0 %v2362
    %v2423 = vpop.f32.mrb[0].mxu0
    %v2424 = vadd.f32 0.0, %v2423
    %v2425 = vpop.f32.mrb[0].mxu0
    %v2426 = vpop.f32.mrb[0].mxu0
    %v2427 = vadd.f32 0.0, %v2426
    %v2428 = vpop.f32.mrb[0].mxu0
    %2429 = vmatprep.mubr.bf16.mxu0 0
    %2430 = vmatmul.mubr.bf16.gmra.mrb[0].mxu0 %v2365
    %v2431 = vpop.f32.mrb[0].mxu0
    %v2432 = vadd.f32 0.0, %v2431
    %v2433 = vpop.f32.mrb[0].mxu0
    %v2434 = vpop.f32.mrb[0].mxu0
    %v2435 = vadd.f32 0.0, %v2434
    %v2436 = vpop.f32.mrb[0].mxu0
    %2437 = vmatprep.mubr.bf16.mxu0 0
    %2438 = vmatmul.mubr.bf16.gmra.mrb[0].mxu0 %v2368
    %v2439 = vpop.f32.mrb[0].mxu0
    %v2440 = vadd.f32 0.0, %v2439
    %v2441 = vpop.f32.mrb[0].mxu0
    %v2442 = vpop.f32.mrb[0].mxu0
    %v2443 = vadd.f32 0.0, %v2442
    %v2444 = vpop.f32.mrb[0].mxu0
    %2445 = vmatprep.mubr.bf16.mxu0 0
    %2446 = vmatmul.mubr.bf16.gmra.mrb[0].mxu0 %v2371
    %v2447 = vpop.f32.mrb[0].mxu0
    %v2448 = vadd.f32 0.0, %v2447
    %v2449 = vpop.f32.mrb[0].mxu0
    %v2450 = vpop.f32.mrb[0].mxu0
    %v2451 = vadd.f32 0.0, %v2450
    %v2452 = vpop.f32.mrb[0].mxu0
    %2453 = vdwg.mxu0
    %v2454 = vpack.c.bf16 %v2060, %v2057
    %v2455 = vpack.c.bf16 %v2068, %v2065
    %v2456 = vpack.c.bf16 %v2076, %v2073
    %v2457 = vpack.c.bf16 %v2084, %v2081
    %v2458 = vpack.c.bf16 %v2092, %v2089
    %v2459 = vpack.c.bf16 %v2100, %v2097
    %v2460 = vpack.c.bf16 %v2177, %v2174
    %v2461 = vpack.c.bf16 %v2185, %v2182
    %v2462 = vpack.c.bf16 %v2193, %v2190
    %v2463 = vpack.c.bf16 %v2201, %v2198
    %v2464 = vpack.c.bf16 %v2209, %v2206
    %v2465 = vpack.c.bf16 %v2217, %v2214
    %v2466 = vpack.c.bf16 %v2294, %v2291
    %v2467 = vpack.c.bf16 %v2302, %v2299
    %v2468 = vpack.c.bf16 %v2310, %v2307
    %v2469 = vpack.c.bf16 %v2318, %v2315
    %v2470 = vpack.c.bf16 %v2326, %v2323
    %v2471 = vpack.c.bf16 %v2334, %v2331
    %v2472 = vpack.c.bf16 %v2411, %v2408
    %v2473 = vpack.c.bf16 %v2419, %v2416
    %v2474 = vpack.c.bf16 %v2427, %v2424
    %v2475 = vpack.c.bf16 %v2435, %v2432
    %v2476 = vpack.c.bf16 %v2443, %v2440
    %v2477 = vpack.c.bf16 %v2451, %v2448
    %v2478 = vld [vmem:[#allocation4] sm:$0xf]
    %v2479 = vld [vmem:[#allocation4 + $0x4] sm:$0xf]
    %v2480 = vld [vmem:[#allocation4 + $0x8] sm:$0xf]
    %v2481 = vld [vmem:[#allocation4 + $0xc] sm:$0xf]
    %v2483 = vsel %vm910, %v2454, 0
    %v2486 = vsel %vm910, %v2455, 0
    %v2489 = vsel %vm910, %v2456, 0
    %v2492 = vsel %vm910, %v2457, 0
    %v2495 = vsel %vm910, %v2458, 0
    %v2498 = vsel %vm910, %v2459, 0
    %vm2500 = vcmask 1043456
    %v2502 = vsel %vm2500, %v2478, 0
    %2504 = vmatprep.subr.bf16.mxu0 0
    %2505 = vmatpush1.bf16.msra.mxu0 %v2502
    %2506 = vmatprep.subr.bf16.mxu0 0
    %2507 = vmatpush1.bf16.msra.mxu0 0
    %2508 = vmatprep.subr.bf16.mxu0 0
    %2509 = vmatpush1.bf16.msra.mxu0 0
    %2510 = vmatprep.subr.bf16.mxu0 0
    %2511 = vmatpush1.bf16.msra.mxu0 0
    %2512 = vmatprep.subr.bf16.mxu0 0
    %2513 = vmatpush1.bf16.msra.mxu0 0
    %2514 = vmatprep.subr.bf16.mxu0 0
    %2515 = vmatpush1.bf16.msra.mxu0 0
    %2516 = vmatprep.subr.bf16.mxu0 0
    %2517 = vmatpush1.bf16.msra.mxu0 0
    %2518 = vmatprep.subr.bf16.mxu0 0
    %2519 = vmatpush1.bf16.msra.mxu0 0
    %2520 = vmatprep.subr.bf16.mxu0 0
    %2521 = vmatpush1.bf16.msra.mxu0 0
    %2522 = vmatprep.subr.bf16.mxu0 0
    %2523 = vmatpush1.bf16.msra.mxu0 0
    %2524 = vmatprep.subr.bf16.mxu0 0
    %2525 = vmatpush1.bf16.msra.mxu0 0
    %2526 = vmatprep.subr.bf16.mxu0 0
    %2527 = vmatpush1.bf16.msra.mxu0 0
    %2528 = vmatprep.subr.bf16.mxu0 0
    %2529 = vmatpush1.bf16.msra.mxu0 0
    %2530 = vmatprep.subr.bf16.mxu0 0
    %2531 = vmatpush1.bf16.msra.mxu0 0
    %2532 = vmatprep.subr.bf16.mxu0 0
    %2533 = vmatpush1.bf16.msra.mxu0 0
    %2534 = vmatprep.subr.bf16.mxu0 0
    %2535 = vmatpush1.bf16.msra.mxu0 0
    %2536 = vmatprep.mubr.bf16.mxu0 0
    %2537 = vmatmul.mubr.bf16.gmra.mrb[0].mxu0 %v2483
    %v2538 = vpop.f32.mrb[0].mxu0
    %v2539 = vadd.f32 0.0, %v2538
    %v2540 = vpop.f32.mrb[0].mxu0
    %v2541 = vpop.f32.mrb[0].mxu0
    %v2542 = vadd.f32 0.0, %v2541
    %v2543 = vpop.f32.mrb[0].mxu0
    %2544 = vmatprep.mubr.bf16.mxu0 0
    %2545 = vmatmul.mubr.bf16.gmra.mrb[0].mxu0 %v2486
    %v2546 = vpop.f32.mrb[0].mxu0
    %v2547 = vadd.f32 0.0, %v2546
    %v2548 = vpop.f32.mrb[0].mxu0
    %v2549 = vpop.f32.mrb[0].mxu0
    %v2550 = vadd.f32 0.0, %v2549
    %v2551 = vpop.f32.mrb[0].mxu0
    %2552 = vmatprep.mubr.bf16.mxu0 0
    %2553 = vmatmul.mubr.bf16.gmra.mrb[0].mxu0 %v2489
    %v2554 = vpop.f32.mrb[0].mxu0
    %v2555 = vadd.f32 0.0, %v2554
    %v2556 = vpop.f32.mrb[0].mxu0
    %v2557 = vpop.f32.mrb[0].mxu0
    %v2558 = vadd.f32 0.0, %v2557
    %v2559 = vpop.f32.mrb[0].mxu0
    %2560 = vmatprep.mubr.bf16.mxu0 0
    %2561 = vmatmul.mubr.bf16.gmra.mrb[0].mxu0 %v2492
    %v2562 = vpop.f32.mrb[0].mxu0
    %v2563 = vadd.f32 0.0, %v2562
    %v2564 = vpop.f32.mrb[0].mxu0
    %v2565 = vpop.f32.mrb[0].mxu0
    %v2566 = vadd.f32 0.0, %v2565
    %v2567 = vpop.f32.mrb[0].mxu0
    %2568 = vmatprep.mubr.bf16.mxu0 0
    %2569 = vmatmul.mubr.bf16.gmra.mrb[0].mxu0 %v2495
    %v2570 = vpop.f32.mrb[0].mxu0
    %v2571 = vadd.f32 0.0, %v2570
    %v2572 = vpop.f32.mrb[0].mxu0
    %v2573 = vpop.f32.mrb[0].mxu0
    %v2574 = vadd.f32 0.0, %v2573
    %v2575 = vpop.f32.mrb[0].mxu0
    %2576 = vmatprep.mubr.bf16.mxu0 0
    %2577 = vmatmul.mubr.bf16.gmra.mrb[0].mxu0 %v2498
    %v2578 = vpop.f32.mrb[0].mxu0
    %v2579 = vadd.f32 0.0, %v2578
    %v2580 = vpop.f32.mrb[0].mxu0
    %v2581 = vpop.f32.mrb[0].mxu0
    %v2582 = vadd.f32 0.0, %v2581
    %v2583 = vpop.f32.mrb[0].mxu0
    %2584 = vdwg.mxu0
    %v2586 = vsel %vm910, %v2460, 0
    %v2589 = vsel %vm910, %v2461, 0
    %v2592 = vsel %vm910, %v2462, 0
    %v2595 = vsel %vm910, %v2463, 0
    %v2598 = vsel %vm910, %v2464, 0
    %v2601 = vsel %vm910, %v2465, 0
    %v2604 = vsel %vm2500, %v2479, 0
    %2606 = vmatprep.subr.bf16.mxu0 0
    %2607 = vmatpush1.bf16.msra.mxu0 %v2604
    %2608 = vmatprep.subr.bf16.mxu0 0
    %2609 = vmatpush1.bf16.msra.mxu0 0
    %2610 = vmatprep.subr.bf16.mxu0 0
    %2611 = vmatpush1.bf16.msra.mxu0 0
    %2612 = vmatprep.subr.bf16.mxu0 0
    %2613 = vmatpush1.bf16.msra.mxu0 0
    %2614 = vmatprep.subr.bf16.mxu0 0
    %2615 = vmatpush1.bf16.msra.mxu0 0
    %2616 = vmatprep.subr.bf16.mxu0 0
    %2617 = vmatpush1.bf16.msra.mxu0 0
    %2618 = vmatprep.subr.bf16.mxu0 0
    %2619 = vmatpush1.bf16.msra.mxu0 0
    %2620 = vmatprep.subr.bf16.mxu0 0
    %2621 = vmatpush1.bf16.msra.mxu0 0
    %2622 = vmatprep.subr.bf16.mxu0 0
    %2623 = vmatpush1.bf16.msra.mxu0 0
    %2624 = vmatprep.subr.bf16.mxu0 0
    %2625 = vmatpush1.bf16.msra.mxu0 0
    %2626 = vmatprep.subr.bf16.mxu0 0
    %2627 = vmatpush1.bf16.msra.mxu0 0
    %2628 = vmatprep.subr.bf16.mxu0 0
    %2629 = vmatpush1.bf16.msra.mxu0 0
    %2630 = vmatprep.subr.bf16.mxu0 0
    %2631 = vmatpush1.bf16.msra.mxu0 0
    %2632 = vmatprep.subr.bf16.mxu0 0
    %2633 = vmatpush1.bf16.msra.mxu0 0
    %2634 = vmatprep.subr.bf16.mxu0 0
    %2635 = vmatpush1.bf16.msra.mxu0 0
    %2636 = vmatprep.subr.bf16.mxu0 0
    %2637 = vmatpush1.bf16.msra.mxu0 0
    %2638 = vmatprep.mubr.bf16.mxu0 0
    %2639 = vmatmul.mubr.bf16.gmra.mrb[0].mxu0 %v2586
    %v2640 = vpop.f32.mrb[0].mxu0
    %v2641 = vadd.f32 0.0, %v2640
    %v2642 = vpop.f32.mrb[0].mxu0
    %v2643 = vpop.f32.mrb[0].mxu0
    %v2644 = vadd.f32 0.0, %v2643
    %v2645 = vpop.f32.mrb[0].mxu0
    %2646 = vmatprep.mubr.bf16.mxu0 0
    %2647 = vmatmul.mubr.bf16.gmra.mrb[0].mxu0 %v2589
    %v2648 = vpop.f32.mrb[0].mxu0
    %v2649 = vadd.f32 0.0, %v2648
    %v2650 = vpop.f32.mrb[0].mxu0
    %v2651 = vpop.f32.mrb[0].mxu0
    %v2652 = vadd.f32 0.0, %v2651
    %v2653 = vpop.f32.mrb[0].mxu0
    %2654 = vmatprep.mubr.bf16.mxu0 0
    %2655 = vmatmul.mubr.bf16.gmra.mrb[0].mxu0 %v2592
    %v2656 = vpop.f32.mrb[0].mxu0
    %v2657 = vadd.f32 0.0, %v2656
    %v2658 = vpop.f32.mrb[0].mxu0
    %v2659 = vpop.f32.mrb[0].mxu0
    %v2660 = vadd.f32 0.0, %v2659
    %v2661 = vpop.f32.mrb[0].mxu0
    %2662 = vmatprep.mubr.bf16.mxu0 0
    %2663 = vmatmul.mubr.bf16.gmra.mrb[0].mxu0 %v2595
    %v2664 = vpop.f32.mrb[0].mxu0
    %v2665 = vadd.f32 0.0, %v2664
    %v2666 = vpop.f32.mrb[0].mxu0
    %v2667 = vpop.f32.mrb[0].mxu0
    %v2668 = vadd.f32 0.0, %v2667
    %v2669 = vpop.f32.mrb[0].mxu0
    %2670 = vmatprep.mubr.bf16.mxu0 0
    %2671 = vmatmul.mubr.bf16.gmra.mrb[0].mxu0 %v2598
    %v2672 = vpop.f32.mrb[0].mxu0
    %v2673 = vadd.f32 0.0, %v2672
    %v2674 = vpop.f32.mrb[0].mxu0
    %v2675 = vpop.f32.mrb[0].mxu0
    %v2676 = vadd.f32 0.0, %v2675
    %v2677 = vpop.f32.mrb[0].mxu0
    %2678 = vmatprep.mubr.bf16.mxu0 0
    %2679 = vmatmul.mubr.bf16.gmra.mrb[0].mxu0 %v2601
    %v2680 = vpop.f32.mrb[0].mxu0
    %v2681 = vadd.f32 0.0, %v2680
    %v2682 = vpop.f32.mrb[0].mxu0
    %v2683 = vpop.f32.mrb[0].mxu0
    %v2684 = vadd.f32 0.0, %v2683
    %v2685 = vpop.f32.mrb[0].mxu0
    %2686 = vdwg.mxu0
    %v2688 = vsel %vm910, %v2466, 0
    %v2691 = vsel %vm910, %v2467, 0
    %v2694 = vsel %vm910, %v2468, 0
    %v2697 = vsel %vm910, %v2469, 0
    %v2700 = vsel %vm910, %v2470, 0
    %v2703 = vsel %vm910, %v2471, 0
    %v2706 = vsel %vm2500, %v2480, 0
    %2708 = vmatprep.subr.bf16.mxu0 0
    %2709 = vmatpush1.bf16.msra.mxu0 %v2706
    %2710 = vmatprep.subr.bf16.mxu0 0
    %2711 = vmatpush1.bf16.msra.mxu0 0
    %2712 = vmatprep.subr.bf16.mxu0 0
    %2713 = vmatpush1.bf16.msra.mxu0 0
    %2714 = vmatprep.subr.bf16.mxu0 0
    %2715 = vmatpush1.bf16.msra.mxu0 0
    %2716 = vmatprep.subr.bf16.mxu0 0
    %2717 = vmatpush1.bf16.msra.mxu0 0
    %2718 = vmatprep.subr.bf16.mxu0 0
    %2719 = vmatpush1.bf16.msra.mxu0 0
    %2720 = vmatprep.subr.bf16.mxu0 0
    %2721 = vmatpush1.bf16.msra.mxu0 0
    %2722 = vmatprep.subr.bf16.mxu0 0
    %2723 = vmatpush1.bf16.msra.mxu0 0
    %2724 = vmatprep.subr.bf16.mxu0 0
    %2725 = vmatpush1.bf16.msra.mxu0 0
    %2726 = vmatprep.subr.bf16.mxu0 0
    %2727 = vmatpush1.bf16.msra.mxu0 0
    %2728 = vmatprep.subr.bf16.mxu0 0
    %2729 = vmatpush1.bf16.msra.mxu0 0
    %2730 = vmatprep.subr.bf16.mxu0 0
    %2731 = vmatpush1.bf16.msra.mxu0 0
    %2732 = vmatprep.subr.bf16.mxu0 0
    %2733 = vmatpush1.bf16.msra.mxu0 0
    %2734 = vmatprep.subr.bf16.mxu0 0
    %2735 = vmatpush1.bf16.msra.mxu0 0
    %2736 = vmatprep.subr.bf16.mxu0 0
    %2737 = vmatpush1.bf16.msra.mxu0 0
    %2738 = vmatprep.subr.bf16.mxu0 0
    %2739 = vmatpush1.bf16.msra.mxu0 0
    %2740 = vmatprep.mubr.bf16.mxu0 0
    %2741 = vmatmul.mubr.bf16.gmra.mrb[0].mxu0 %v2688
    %v2742 = vpop.f32.mrb[0].mxu0
    %v2743 = vadd.f32 0.0, %v2742
    %v2744 = vpop.f32.mrb[0].mxu0
    %v2745 = vpop.f32.mrb[0].mxu0
    %v2746 = vadd.f32 0.0, %v2745
    %v2747 = vpop.f32.mrb[0].mxu0
    %2748 = vmatprep.mubr.bf16.mxu0 0
    %2749 = vmatmul.mubr.bf16.gmra.mrb[0].mxu0 %v2691
    %v2750 = vpop.f32.mrb[0].mxu0
    %v2751 = vadd.f32 0.0, %v2750
    %v2752 = vpop.f32.mrb[0].mxu0
    %v2753 = vpop.f32.mrb[0].mxu0
    %v2754 = vadd.f32 0.0, %v2753
    %v2755 = vpop.f32.mrb[0].mxu0
    %2756 = vmatprep.mubr.bf16.mxu0 0
    %2757 = vmatmul.mubr.bf16.gmra.mrb[0].mxu0 %v2694
    %v2758 = vpop.f32.mrb[0].mxu0
    %v2759 = vadd.f32 0.0, %v2758
    %v2760 = vpop.f32.mrb[0].mxu0
    %v2761 = vpop.f32.mrb[0].mxu0
    %v2762 = vadd.f32 0.0, %v2761
    %v2763 = vpop.f32.mrb[0].mxu0
    %2764 = vmatprep.mubr.bf16.mxu0 0
    %2765 = vmatmul.mubr.bf16.gmra.mrb[0].mxu0 %v2697
    %v2766 = vpop.f32.mrb[0].mxu0
    %v2767 = vadd.f32 0.0, %v2766
    %v2768 = vpop.f32.mrb[0].mxu0
    %v2769 = vpop.f32.mrb[0].mxu0
    %v2770 = vadd.f32 0.0, %v2769
    %v2771 = vpop.f32.mrb[0].mxu0
    %2772 = vmatprep.mubr.bf16.mxu0 0
    %2773 = vmatmul.mubr.bf16.gmra.mrb[0].mxu0 %v2700
    %v2774 = vpop.f32.mrb[0].mxu0
    %v2775 = vadd.f32 0.0, %v2774
    %v2776 = vpop.f32.mrb[0].mxu0
    %v2777 = vpop.f32.mrb[0].mxu0
    %v2778 = vadd.f32 0.0, %v2777
    %v2779 = vpop.f32.mrb[0].mxu0
    %2780 = vmatprep.mubr.bf16.mxu0 0
    %2781 = vmatmul.mubr.bf16.gmra.mrb[0].mxu0 %v2703
    %v2782 = vpop.f32.mrb[0].mxu0
    %v2783 = vadd.f32 0.0, %v2782
    %v2784 = vpop.f32.mrb[0].mxu0
    %v2785 = vpop.f32.mrb[0].mxu0
    %v2786 = vadd.f32 0.0, %v2785
    %v2787 = vpop.f32.mrb[0].mxu0
    %2788 = vdwg.mxu0
    %v2790 = vsel %vm910, %v2472, 0
    %v2793 = vsel %vm910, %v2473, 0
    %v2796 = vsel %vm910, %v2474, 0
    %v2799 = vsel %vm910, %v2475, 0
    %v2802 = vsel %vm910, %v2476, 0
    %v2805 = vsel %vm910, %v2477, 0
    %v2808 = vsel %vm2500, %v2481, 0
    %2810 = vmatprep.subr.bf16.mxu0 0
    %2811 = vmatpush1.bf16.msra.mxu0 %v2808
    %2812 = vmatprep.subr.bf16.mxu0 0
    %2813 = vmatpush1.bf16.msra.mxu0 0
    %2814 = vmatprep.subr.bf16.mxu0 0
    %2815 = vmatpush1.bf16.msra.mxu0 0
    %2816 = vmatprep.subr.bf16.mxu0 0
    %2817 = vmatpush1.bf16.msra.mxu0 0
    %2818 = vmatprep.subr.bf16.mxu0 0
    %2819 = vmatpush1.bf16.msra.mxu0 0
    %2820 = vmatprep.subr.bf16.mxu0 0
    %2821 = vmatpush1.bf16.msra.mxu0 0
    %2822 = vmatprep.subr.bf16.mxu0 0
    %2823 = vmatpush1.bf16.msra.mxu0 0
    %2824 = vmatprep.subr.bf16.mxu0 0
    %2825 = vmatpush1.bf16.msra.mxu0 0
    %2826 = vmatprep.subr.bf16.mxu0 0
    %2827 = vmatpush1.bf16.msra.mxu0 0
    %2828 = vmatprep.subr.bf16.mxu0 0
    %2829 = vmatpush1.bf16.msra.mxu0 0
    %2830 = vmatprep.subr.bf16.mxu0 0
    %2831 = vmatpush1.bf16.msra.mxu0 0
    %2832 = vmatprep.subr.bf16.mxu0 0
    %2833 = vmatpush1.bf16.msra.mxu0 0
    %2834 = vmatprep.subr.bf16.mxu0 0
    %2835 = vmatpush1.bf16.msra.mxu0 0
    %2836 = vmatprep.subr.bf16.mxu0 0
    %2837 = vmatpush1.bf16.msra.mxu0 0
    %2838 = vmatprep.subr.bf16.mxu0 0
    %2839 = vmatpush1.bf16.msra.mxu0 0
    %2840 = vmatprep.subr.bf16.mxu0 0
    %2841 = vmatpush1.bf16.msra.mxu0 0
    %2842 = vmatprep.mubr.bf16.mxu0 0
    %2843 = vmatmul.mubr.bf16.gmra.mrb[0].mxu0 %v2790
    %v2844 = vpop.f32.mrb[0].mxu0
    %v2845 = vadd.f32 0.0, %v2844
    %v2846 = vpop.f32.mrb[0].mxu0
    %v2847 = vpop.f32.mrb[0].mxu0
    %v2848 = vadd.f32 0.0, %v2847
    %v2849 = vpop.f32.mrb[0].mxu0
    %2850 = vmatprep.mubr.bf16.mxu0 0
    %2851 = vmatmul.mubr.bf16.gmra.mrb[0].mxu0 %v2793
    %v2852 = vpop.f32.mrb[0].mxu0
    %v2853 = vadd.f32 0.0, %v2852
    %v2854 = vpop.f32.mrb[0].mxu0
    %v2855 = vpop.f32.mrb[0].mxu0
    %v2856 = vadd.f32 0.0, %v2855
    %v2857 = vpop.f32.mrb[0].mxu0
    %2858 = vmatprep.mubr.bf16.mxu0 0
    %2859 = vmatmul.mubr.bf16.gmra.mrb[0].mxu0 %v2796
    %v2860 = vpop.f32.mrb[0].mxu0
    %v2861 = vadd.f32 0.0, %v2860
    %v2862 = vpop.f32.mrb[0].mxu0
    %v2863 = vpop.f32.mrb[0].mxu0
    %v2864 = vadd.f32 0.0, %v2863
    %v2865 = vpop.f32.mrb[0].mxu0
    %2866 = vmatprep.mubr.bf16.mxu0 0
    %2867 = vmatmul.mubr.bf16.gmra.mrb[0].mxu0 %v2799
    %v2868 = vpop.f32.mrb[0].mxu0
    %v2869 = vadd.f32 0.0, %v2868
    %v2870 = vpop.f32.mrb[0].mxu0
    %v2871 = vpop.f32.mrb[0].mxu0
    %v2872 = vadd.f32 0.0, %v2871
    %v2873 = vpop.f32.mrb[0].mxu0
    %2874 = vmatprep.mubr.bf16.mxu0 0
    %2875 = vmatmul.mubr.bf16.gmra.mrb[0].mxu0 %v2802
    %v2876 = vpop.f32.mrb[0].mxu0
    %v2877 = vadd.f32 0.0, %v2876
    %v2878 = vpop.f32.mrb[0].mxu0
    %v2879 = vpop.f32.mrb[0].mxu0
    %v2880 = vadd.f32 0.0, %v2879
    %v2881 = vpop.f32.mrb[0].mxu0
    %2882 = vmatprep.mubr.bf16.mxu0 0
    %2883 = vmatmul.mubr.bf16.gmra.mrb[0].mxu0 %v2805
    %v2884 = vpop.f32.mrb[0].mxu0
    %v2885 = vadd.f32 0.0, %v2884
    %v2886 = vpop.f32.mrb[0].mxu0
    %v2887 = vpop.f32.mrb[0].mxu0
    %v2888 = vadd.f32 0.0, %v2887
    %v2889 = vpop.f32.mrb[0].mxu0
    %2890 = vdwg.mxu0
    %v2891 = vsel %vm305, %v2539, 0.0
    %v2892 = vsel %vm305, %v2641, 0.0
    %v2893 = vadd.f32 %v2891, %v2892
    %v2894 = vsel %vm305, %v2743, 0.0
    %v2895 = vadd.f32 %v2893, %v2894
    %v2896 = vsel %vm305, %v2845, 0.0
    %v2897 = vadd.f32 %v2895, %v2896
    %v2898 = vsel %vm305, %v2542, 0.0
    %v2899 = vsel %vm305, %v2644, 0.0
    %v2900 = vadd.f32 %v2898, %v2899
    %v2901 = vsel %vm305, %v2746, 0.0
    %v2902 = vadd.f32 %v2900, %v2901
    %v2903 = vsel %vm305, %v2848, 0.0
    %v2904 = vadd.f32 %v2902, %v2903
    %v2905 = vsel %vm305, %v2547, 0.0
    %v2906 = vsel %vm305, %v2649, 0.0
    %v2907 = vadd.f32 %v2905, %v2906
    %v2908 = vsel %vm305, %v2751, 0.0
    %v2909 = vadd.f32 %v2907, %v2908
    %v2910 = vsel %vm305, %v2853, 0.0
    %v2911 = vadd.f32 %v2909, %v2910
    %v2912 = vsel %vm305, %v2550, 0.0
    %v2913 = vsel %vm305, %v2652, 0.0
    %v2914 = vadd.f32 %v2912, %v2913
    %v2915 = vsel %vm305, %v2754, 0.0
    %v2916 = vadd.f32 %v2914, %v2915
    %v2917 = vsel %vm305, %v2856, 0.0
    %v2918 = vadd.f32 %v2916, %v2917
    %v2919 = vsel %vm305, %v2555, 0.0
    %v2920 = vsel %vm305, %v2657, 0.0
    %v2921 = vadd.f32 %v2919, %v2920
    %v2922 = vsel %vm305, %v2759, 0.0
    %v2923 = vadd.f32 %v2921, %v2922
    %v2924 = vsel %vm305, %v2861, 0.0
    %v2925 = vadd.f32 %v2923, %v2924
    %v2926 = vsel %vm305, %v2558, 0.0
    %v2927 = vsel %vm305, %v2660, 0.0
    %v2928 = vadd.f32 %v2926, %v2927
    %v2929 = vsel %vm305, %v2762, 0.0
    %v2930 = vadd.f32 %v2928, %v2929
    %v2931 = vsel %vm305, %v2864, 0.0
    %v2932 = vadd.f32 %v2930, %v2931
    %v2933 = vsel %vm305, %v2563, 0.0
    %v2934 = vsel %vm305, %v2665, 0.0
    %v2935 = vadd.f32 %v2933, %v2934
    %v2936 = vsel %vm305, %v2767, 0.0
    %v2937 = vadd.f32 %v2935, %v2936
    %v2938 = vsel %vm305, %v2869, 0.0
    %v2939 = vadd.f32 %v2937, %v2938
    %v2940 = vsel %vm305, %v2566, 0.0
    %v2941 = vsel %vm305, %v2668, 0.0
    %v2942 = vadd.f32 %v2940, %v2941
    %v2943 = vsel %vm305, %v2770, 0.0
    %v2944 = vadd.f32 %v2942, %v2943
    %v2945 = vsel %vm305, %v2872, 0.0
    %v2946 = vadd.f32 %v2944, %v2945
    %v2947 = vsel %vm305, %v2571, 0.0
    %v2948 = vsel %vm305, %v2673, 0.0
    %v2949 = vadd.f32 %v2947, %v2948
    %v2950 = vsel %vm305, %v2775, 0.0
    %v2951 = vadd.f32 %v2949, %v2950
    %v2952 = vsel %vm305, %v2877, 0.0
    %v2953 = vadd.f32 %v2951, %v2952
    %v2954 = vsel %vm305, %v2574, 0.0
    %v2955 = vsel %vm305, %v2676, 0.0
    %v2956 = vadd.f32 %v2954, %v2955
    %v2957 = vsel %vm305, %v2778, 0.0
    %v2958 = vadd.f32 %v2956, %v2957
    %v2959 = vsel %vm305, %v2880, 0.0
    %v2960 = vadd.f32 %v2958, %v2959
    %v2961 = vsel %vm305, %v2579, 0.0
    %v2962 = vsel %vm305, %v2681, 0.0
    %v2963 = vadd.f32 %v2961, %v2962
    %v2964 = vsel %vm305, %v2783, 0.0
    %v2965 = vadd.f32 %v2963, %v2964
    %v2966 = vsel %vm305, %v2885, 0.0
    %v2967 = vadd.f32 %v2965, %v2966
    %v2968 = vsel %vm305, %v2582, 0.0
    %v2969 = vsel %vm305, %v2684, 0.0
    %v2970 = vadd.f32 %v2968, %v2969
    %v2971 = vsel %vm305, %v2786, 0.0
    %v2972 = vadd.f32 %v2970, %v2971
    %v2973 = vsel %vm305, %v2888, 0.0
    %v2974 = vadd.f32 %v2972, %v2973
    %v2975 = vadd.f32 %v247, %v2897
    %v2976 = vadd.f32 %v250, %v2904
    %v2977 = vadd.f32 %v255, %v2911
    %v2978 = vadd.f32 %v258, %v2918
    %v2979 = vadd.f32 %v263, %v2925
    %v2980 = vadd.f32 %v266, %v2932
    %v2981 = vadd.f32 %v271, %v2939
    %v2982 = vadd.f32 %v274, %v2946
    %v2983 = vadd.f32 %v279, %v2953
    %v2984 = vadd.f32 %v282, %v2960
    %v2985 = vadd.f32 %v287, %v2967
    %v2986 = vadd.f32 %v290, %v2974
    %v2987 = vmul.f32 %v2975, %v2975
    %v2988 = vmul.f32 %v2976, %v2976
    %v2989 = vmul.f32 %v2977, %v2977
    %v2990 = vmul.f32 %v2978, %v2978
    %v2991 = vmul.f32 %v2979, %v2979
    %v2992 = vmul.f32 %v2980, %v2980
    %v2993 = vmul.f32 %v2981, %v2981
    %v2994 = vmul.f32 %v2982, %v2982
    %v2995 = vmul.f32 %v2983, %v2983
    %v2996 = vmul.f32 %v2984, %v2984
    %v2997 = vmul.f32 %v2985, %v2985
    %v2998 = vmul.f32 %v2986, %v2986
    %v2999 = vsel %vm305, %v2987, 0.0
    %3000 = vadd.xlane.f32.xlu0 %v2999
    %v3001 = vpop.xlane.xlu0 %3000
    %v3002 = vsel %vm305, %v2988, 0.0
    %3003 = vadd.xlane.f32.xlu0 %v3002
    %v3004 = vpop.xlane.xlu0 %3003
    %v3005 = vsel %vm305, %v2989, 0.0
    %3006 = vadd.xlane.f32.xlu0 %v3005
    %v3007 = vpop.xlane.xlu0 %3006
    %v3008 = vsel %vm305, %v2990, 0.0
    %3009 = vadd.xlane.f32.xlu0 %v3008
    %v3010 = vpop.xlane.xlu0 %3009
    %v3011 = vsel %vm305, %v2991, 0.0
    %3012 = vadd.xlane.f32.xlu0 %v3011
    %v3013 = vpop.xlane.xlu0 %3012
    %v3014 = vsel %vm305, %v2992, 0.0
    %3015 = vadd.xlane.f32.xlu0 %v3014
    %v3016 = vpop.xlane.xlu0 %3015
    %v3017 = vsel %vm305, %v2993, 0.0
    %3018 = vadd.xlane.f32.xlu0 %v3017
    %v3019 = vpop.xlane.xlu0 %3018
    %v3020 = vsel %vm305, %v2994, 0.0
    %3021 = vadd.xlane.f32.xlu0 %v3020
    %v3022 = vpop.xlane.xlu0 %3021
    %v3023 = vsel %vm305, %v2995, 0.0
    %3024 = vadd.xlane.f32.xlu0 %v3023
    %v3025 = vpop.xlane.xlu0 %3024
    %v3026 = vsel %vm305, %v2996, 0.0
    %3027 = vadd.xlane.f32.xlu0 %v3026
    %v3028 = vpop.xlane.xlu0 %3027
    %v3029 = vsel %vm305, %v2997, 0.0
    %3030 = vadd.xlane.f32.xlu0 %v3029
    %v3031 = vpop.xlane.xlu0 %3030
    %v3032 = vsel %vm305, %v2998, 0.0
    %3033 = vadd.xlane.f32.xlu0 %v3032
    %v3034 = vpop.xlane.xlu0 %3033
    %v3035 = vmul.f32 %v3001, %v342
    %v3036 = vmul.f32 %v3004, %v342
    %v3037 = vmul.f32 %v3007, %v342
    %v3038 = vmul.f32 %v3010, %v342
    %v3039 = vmul.f32 %v3013, %v342
    %v3040 = vmul.f32 %v3016, %v342
    %v3041 = vmul.f32 %v3019, %v342
    %v3042 = vmul.f32 %v3022, %v342
    %v3043 = vmul.f32 %v3025, %v342
    %v3044 = vmul.f32 %v3028, %v342
    %v3045 = vmul.f32 %v3031, %v342
    %v3046 = vmul.f32 %v3034, %v342
    %v3047 = vadd.f32 %v3035, 1e-06
    %v3048 = vadd.f32 %v3036, 1e-06
    %v3049 = vadd.f32 %v3037, 1e-06
    %v3050 = vadd.f32 %v3038, 1e-06
    %v3051 = vadd.f32 %v3039, 1e-06
    %v3052 = vadd.f32 %v3040, 1e-06
    %v3053 = vadd.f32 %v3041, 1e-06
    %v3054 = vadd.f32 %v3042, 1e-06
    %v3055 = vadd.f32 %v3043, 1e-06
    %v3056 = vadd.f32 %v3044, 1e-06
    %v3057 = vadd.f32 %v3045, 1e-06
    %v3058 = vadd.f32 %v3046, 1e-06
    %v3059 = vrsqrt.pop %v3047
    %v3060 = vrsqrt.pop %v3048
    %v3061 = vrsqrt.pop %v3049
    %v3062 = vrsqrt.pop %v3050
    %v3063 = vrsqrt.pop %v3051
    %v3064 = vrsqrt.pop %v3052
    %v3065 = vrsqrt.pop %v3053
    %v3066 = vrsqrt.pop %v3054
    %v3067 = vrsqrt.pop %v3055
    %v3068 = vrsqrt.pop %v3056
    %v3069 = vrsqrt.pop %v3057
    %v3070 = vrsqrt.pop %v3058
    %v3071 = vmul.f32 %v2975, %v3059
    %v3072 = vmul.f32 %v2976, %v3060
    %v3073 = vmul.f32 %v2977, %v3061
    %v3074 = vmul.f32 %v2978, %v3062
    %v3075 = vmul.f32 %v2979, %v3063
    %v3076 = vmul.f32 %v2980, %v3064
    %v3077 = vmul.f32 %v2981, %v3065
    %v3078 = vmul.f32 %v2982, %v3066
    %v3079 = vmul.f32 %v2983, %v3067
    %v3080 = vmul.f32 %v2984, %v3068
    %v3081 = vmul.f32 %v2985, %v3069
    %v3082 = vmul.f32 %v2986, %v3070
    %v3083 = vld [vmem:[#allocation2 + $0x1] sm:$0x1]
    %v3084 = vlaneseq
    %v3085 = vshrl.u32 %v3084, 7
    %v3086 = vsub.s32 0, %v3085
    %v3087 = vrot.slane %v3083, %v3086
    %v3088 = vmul.f32 %v3071, %v3087
    %v3089 = vmul.f32 %v3072, %v3087
    %v3090 = vmul.f32 %v3073, %v3087
    %v3091 = vmul.f32 %v3074, %v3087
    %v3092 = vmul.f32 %v3075, %v3087
    %v3093 = vmul.f32 %v3076, %v3087
    %v3094 = vmul.f32 %v3077, %v3087
    %v3095 = vmul.f32 %v3078, %v3087
    %v3096 = vmul.f32 %v3079, %v3087
    %v3097 = vmul.f32 %v3080, %v3087
    %v3098 = vmul.f32 %v3081, %v3087
    %v3099 = vmul.f32 %v3082, %v3087
    %v3100 = vpack.c.bf16 %v3089, %v3088
    %v3101 = vpack.c.bf16 %v3091, %v3090
    %v3102 = vpack.c.bf16 %v3093, %v3092
    %v3103 = vpack.c.bf16 %v3095, %v3094
    %v3104 = vpack.c.bf16 %v3097, %v3096
    %v3105 = vpack.c.bf16 %v3099, %v3098
    %v3106 = vld [vmem:[#allocation6] sm:$0xf]
    %v3107 = vld [vmem:[#allocation6 + $0x4] sm:$0xf]
    %v3108 = vld [vmem:[#allocation6 + $0x8] sm:$0xf]
    %v3109 = vld [vmem:[#allocation6 + $0xc] sm:$0xf]
    %v3114 = vunpack.c.l.b16 %v3106
    %v3115 = vunpack.c.l.b16 %v3107
    %v3116 = vunpack.c.l.b16 %v3108
    %v3117 = vunpack.c.l.b16 %v3109
    %v3118 = vpack.c.b16 %v3115, %v3114
    %v3119 = vpack.c.b16 %v3117, %v3116
    %v3123 = vsel %vm305, %v3100, 0
    %v3126 = vsel %vm305, %v3101, 0
    %v3129 = vsel %vm305, %v3102, 0
    %v3132 = vsel %vm305, %v3103, 0
    %v3135 = vsel %vm305, %v3104, 0
    %v3138 = vsel %vm305, %v3105, 0
    %3140 = vmatprep.subr.bf16.mxu0 0
    %3141 = vmatpush1.bf16.msra.mxu0 %v3118
    %3142 = vmatprep.subr.bf16.mxu0 0
    %3143 = vmatpush1.bf16.msra.mxu0 %v3119
    %3144 = vmatprep.subr.bf16.mxu0 0
    %3145 = vmatpush1.bf16.msra.mxu0 0
    %3146 = vmatprep.subr.bf16.mxu0 0
    %3147 = vmatpush1.bf16.msra.mxu0 0
    %3148 = vmatprep.subr.bf16.mxu0 0
    %3149 = vmatpush1.bf16.msra.mxu0 0
    %3150 = vmatprep.subr.bf16.mxu0 0
    %3151 = vmatpush1.bf16.msra.mxu0 0
    %3152 = vmatprep.subr.bf16.mxu0 0
    %3153 = vmatpush1.bf16.msra.mxu0 0
    %3154 = vmatprep.subr.bf16.mxu0 0
    %3155 = vmatpush1.bf16.msra.mxu0 0
    %3156 = vmatprep.subr.bf16.mxu0 0
    %3157 = vmatpush1.bf16.msra.mxu0 0
    %3158 = vmatprep.subr.bf16.mxu0 0
    %3159 = vmatpush1.bf16.msra.mxu0 0
    %3160 = vmatprep.subr.bf16.mxu0 0
    %3161 = vmatpush1.bf16.msra.mxu0 0
    %3162 = vmatprep.subr.bf16.mxu0 0
    %3163 = vmatpush1.bf16.msra.mxu0 0
    %3164 = vmatprep.subr.bf16.mxu0 0
    %3165 = vmatpush1.bf16.msra.mxu0 0
    %3166 = vmatprep.subr.bf16.mxu0 0
    %3167 = vmatpush1.bf16.msra.mxu0 0
    %3168 = vmatprep.subr.bf16.mxu0 0
    %3169 = vmatpush1.bf16.msra.mxu0 0
    %3170 = vmatprep.subr.bf16.mxu0 0
    %3171 = vmatpush1.bf16.msra.mxu0 0
    %3172 = vmatprep.mubr.bf16.mxu0 0
    %3173 = vmatmul.mubr.bf16.gmra.mrb[0].mxu0 %v3123
    %v3174 = vpop.f32.mrb[0].mxu0
    %v3175 = vadd.f32 0.0, %v3174
    %v3176 = vpop.f32.mrb[0].mxu0
    %v3177 = vpop.f32.mrb[0].mxu0
    %v3178 = vadd.f32 0.0, %v3177
    %v3179 = vpop.f32.mrb[0].mxu0
    %3180 = vmatprep.mubr.bf16.mxu0 0
    %3181 = vmatmul.mubr.bf16.gmra.mrb[0].mxu0 %v3126
    %v3182 = vpop.f32.mrb[0].mxu0
    %v3183 = vadd.f32 0.0, %v3182
    %v3184 = vpop.f32.mrb[0].mxu0
    %v3185 = vpop.f32.mrb[0].mxu0
    %v3186 = vadd.f32 0.0, %v3185
    %v3187 = vpop.f32.mrb[0].mxu0
    %3188 = vmatprep.mubr.bf16.mxu0 0
    %3189 = vmatmul.mubr.bf16.gmra.mrb[0].mxu0 %v3129
    %v3190 = vpop.f32.mrb[0].mxu0
    %v3191 = vadd.f32 0.0, %v3190
    %v3192 = vpop.f32.mrb[0].mxu0
    %v3193 = vpop.f32.mrb[0].mxu0
    %v3194 = vadd.f32 0.0, %v3193
    %v3195 = vpop.f32.mrb[0].mxu0
    %3196 = vmatprep.mubr.bf16.mxu0 0
    %3197 = vmatmul.mubr.bf16.gmra.mrb[0].mxu0 %v3132
    %v3198 = vpop.f32.mrb[0].mxu0
    %v3199 = vadd.f32 0.0, %v3198
    %v3200 = vpop.f32.mrb[0].mxu0
    %v3201 = vpop.f32.mrb[0].mxu0
    %v3202 = vadd.f32 0.0, %v3201
    %v3203 = vpop.f32.mrb[0].mxu0
    %3204 = vmatprep.mubr.bf16.mxu0 0
    %3205 = vmatmul.mubr.bf16.gmra.mrb[0].mxu0 %v3135
    %v3206 = vpop.f32.mrb[0].mxu0
    %v3207 = vadd.f32 0.0, %v3206
    %v3208 = vpop.f32.mrb[0].mxu0
    %v3209 = vpop.f32.mrb[0].mxu0
    %v3210 = vadd.f32 0.0, %v3209
    %v3211 = vpop.f32.mrb[0].mxu0
    %3212 = vmatprep.mubr.bf16.mxu0 0
    %3213 = vmatmul.mubr.bf16.gmra.mrb[0].mxu0 %v3138
    %v3214 = vpop.f32.mrb[0].mxu0
    %v3215 = vadd.f32 0.0, %v3214
    %v3216 = vpop.f32.mrb[0].mxu0
    %v3217 = vpop.f32.mrb[0].mxu0
    %v3218 = vadd.f32 0.0, %v3217
    %v3219 = vpop.f32.mrb[0].mxu0
    %3220 = vdwg.mxu0
    %v3221 = vmax.f32 %v3175, 0.0
    %v3222 = vmax.f32 %v3178, 0.0
    %v3223 = vmax.f32 %v3183, 0.0
    %v3224 = vmax.f32 %v3186, 0.0
    %v3225 = vmax.f32 %v3191, 0.0
    %v3226 = vmax.f32 %v3194, 0.0
    %v3227 = vmax.f32 %v3199, 0.0
    %v3228 = vmax.f32 %v3202, 0.0
    %v3229 = vmax.f32 %v3207, 0.0
    %v3230 = vmax.f32 %v3210, 0.0
    %v3231 = vmax.f32 %v3215, 0.0
    %v3232 = vmax.f32 %v3218, 0.0
    %v3233 = vpack.c.bf16 %v3222, %v3221
    %v3234 = vpack.c.bf16 %v3224, %v3223
    %v3235 = vpack.c.bf16 %v3226, %v3225
    %v3236 = vpack.c.bf16 %v3228, %v3227
    %v3237 = vpack.c.bf16 %v3230, %v3229
    %v3238 = vpack.c.bf16 %v3232, %v3231
    %v3239 = vld [vmem:[%s7] sm:$0xf]
    %v3240 = vld [vmem:[%s7 + $0x4] sm:$0xf]
    %v3241 = vld [vmem:[%s7 + $0x8] sm:$0xf]
    %v3242 = vld [vmem:[%s7 + $0xc] sm:$0xf]
    %v3243 = vld [vmem:[%s7 + $0x10] sm:$0xf]
    %v3244 = vld [vmem:[%s7 + $0x14] sm:$0xf]
    %v3245 = vld [vmem:[%s7 + $0x18] sm:$0xf]
    %v3246 = vld [vmem:[%s7 + $0x1c] sm:$0xf]
    %v3255 = vunpack.c.l.b16 %v3239
    %v3256 = vunpack.c.l.b16 %v3240
    %v3257 = vunpack.c.l.b16 %v3241
    %v3258 = vunpack.c.l.b16 %v3242
    %v3259 = vunpack.c.l.b16 %v3243
    %v3260 = vunpack.c.l.b16 %v3244
    %v3261 = vunpack.c.l.b16 %v3245
    %v3262 = vunpack.c.l.b16 %v3246
    %v3263 = vpack.c.b16 %v3256, %v3255
    %v3264 = vpack.c.b16 %v3258, %v3257
    %v3265 = vpack.c.b16 %v3260, %v3259
    %v3266 = vpack.c.b16 %v3262, %v3261
    %v3272 = vsel %vm193, %v3233, 0
    %v3275 = vsel %vm193, %v3234, 0
    %v3278 = vsel %vm193, %v3235, 0
    %v3281 = vsel %vm193, %v3236, 0
    %v3284 = vsel %vm193, %v3237, 0
    %v3287 = vsel %vm193, %v3238, 0
    %3289 = vmatprep.subr.bf16.mxu0 0
    %3290 = vmatpush1.bf16.msra.mxu0 %v3263
    %3291 = vmatprep.subr.bf16.mxu0 0
    %3292 = vmatpush1.bf16.msra.mxu0 %v3264
    %3293 = vmatprep.subr.bf16.mxu0 0
    %3294 = vmatpush1.bf16.msra.mxu0 %v3265
    %3295 = vmatprep.subr.bf16.mxu0 0
    %3296 = vmatpush1.bf16.msra.mxu0 %v3266
    %3297 = vmatprep.subr.bf16.mxu0 0
    %3298 = vmatpush1.bf16.msra.mxu0 0
    %3299 = vmatprep.subr.bf16.mxu0 0
    %3300 = vmatpush1.bf16.msra.mxu0 0
    %3301 = vmatprep.subr.bf16.mxu0 0
    %3302 = vmatpush1.bf16.msra.mxu0 0
    %3303 = vmatprep.subr.bf16.mxu0 0
    %3304 = vmatpush1.bf16.msra.mxu0 0
    %3305 = vmatprep.subr.bf16.mxu0 0
    %3306 = vmatpush1.bf16.msra.mxu0 0
    %3307 = vmatprep.subr.bf16.mxu0 0
    %3308 = vmatpush1.bf16.msra.mxu0 0
    %3309 = vmatprep.subr.bf16.mxu0 0
    %3310 = vmatpush1.bf16.msra.mxu0 0
    %3311 = vmatprep.subr.bf16.mxu0 0
    %3312 = vmatpush1.bf16.msra.mxu0 0
    %3313 = vmatprep.subr.bf16.mxu0 0
    %3314 = vmatpush1.bf16.msra.mxu0 0
    %3315 = vmatprep.subr.bf16.mxu0 0
    %3316 = vmatpush1.bf16.msra.mxu0 0
    %3317 = vmatprep.subr.bf16.mxu0 0
    %3318 = vmatpush1.bf16.msra.mxu0 0
    %3319 = vmatprep.subr.bf16.mxu0 0
    %3320 = vmatpush1.bf16.msra.mxu0 0
    %3321 = vmatprep.mubr.bf16.mxu0 0
    %3322 = vmatmul.mubr.bf16.gmra.mrb[0].mxu0 %v3272
    %v3323 = vpop.f32.mrb[0].mxu0
    %v3324 = vadd.f32 0.0, %v3323
    %v3325 = vpop.f32.mrb[0].mxu0
    %v3326 = vpop.f32.mrb[0].mxu0
    %v3327 = vadd.f32 0.0, %v3326
    %v3328 = vpop.f32.mrb[0].mxu0
    %3329 = vmatprep.mubr.bf16.mxu0 0
    %3330 = vmatmul.mubr.bf16.gmra.mrb[0].mxu0 %v3275
    %v3331 = vpop.f32.mrb[0].mxu0
    %v3332 = vadd.f32 0.0, %v3331
    %v3333 = vpop.f32.mrb[0].mxu0
    %v3334 = vpop.f32.mrb[0].mxu0
    %v3335 = vadd.f32 0.0, %v3334
    %v3336 = vpop.f32.mrb[0].mxu0
    %3337 = vmatprep.mubr.bf16.mxu0 0
    %3338 = vmatmul.mubr.bf16.gmra.mrb[0].mxu0 %v3278
    %v3339 = vpop.f32.mrb[0].mxu0
    %v3340 = vadd.f32 0.0, %v3339
    %v3341 = vpop.f32.mrb[0].mxu0
    %v3342 = vpop.f32.mrb[0].mxu0
    %v3343 = vadd.f32 0.0, %v3342
    %v3344 = vpop.f32.mrb[0].mxu0
    %3345 = vmatprep.mubr.bf16.mxu0 0
    %3346 = vmatmul.mubr.bf16.gmra.mrb[0].mxu0 %v3281
    %v3347 = vpop.f32.mrb[0].mxu0
    %v3348 = vadd.f32 0.0, %v3347
    %v3349 = vpop.f32.mrb[0].mxu0
    %v3350 = vpop.f32.mrb[0].mxu0
    %v3351 = vadd.f32 0.0, %v3350
    %v3352 = vpop.f32.mrb[0].mxu0
    %3353 = vmatprep.mubr.bf16.mxu0 0
    %3354 = vmatmul.mubr.bf16.gmra.mrb[0].mxu0 %v3284
    %v3355 = vpop.f32.mrb[0].mxu0
    %v3356 = vadd.f32 0.0, %v3355
    %v3357 = vpop.f32.mrb[0].mxu0
    %v3358 = vpop.f32.mrb[0].mxu0
    %v3359 = vadd.f32 0.0, %v3358
    %v3360 = vpop.f32.mrb[0].mxu0
    %3361 = vmatprep.mubr.bf16.mxu0 0
    %3362 = vmatmul.mubr.bf16.gmra.mrb[0].mxu0 %v3287
    %v3363 = vpop.f32.mrb[0].mxu0
    %v3364 = vadd.f32 0.0, %v3363
    %v3365 = vpop.f32.mrb[0].mxu0
    %v3366 = vpop.f32.mrb[0].mxu0
    %v3367 = vadd.f32 0.0, %v3366
    %v3368 = vpop.f32.mrb[0].mxu0
    %3369 = vdwg.mxu0
    %v3370 = vadd.f32 %v2975, %v3324
    %v3371 = vadd.f32 %v2976, %v3327
    %v3372 = vadd.f32 %v2977, %v3332
    %v3373 = vadd.f32 %v2978, %v3335
    %v3374 = vadd.f32 %v2979, %v3340
    %v3375 = vadd.f32 %v2980, %v3343
    %v3376 = vadd.f32 %v2981, %v3348
    %v3377 = vadd.f32 %v2982, %v3351
    %v3378 = vadd.f32 %v2983, %v3356
    %v3379 = vadd.f32 %v2984, %v3359
    %v3380 = vadd.f32 %v2985, %v3364
    %v3381 = vadd.f32 %v2986, %v3367
    %v3382 = vmul.f32 %v3370, %v3370
    %v3383 = vmul.f32 %v3371, %v3371
    %v3384 = vmul.f32 %v3372, %v3372
    %v3385 = vmul.f32 %v3373, %v3373
    %v3386 = vmul.f32 %v3374, %v3374
    %v3387 = vmul.f32 %v3375, %v3375
    %v3388 = vmul.f32 %v3376, %v3376
    %v3389 = vmul.f32 %v3377, %v3377
    %v3390 = vmul.f32 %v3378, %v3378
    %v3391 = vmul.f32 %v3379, %v3379
    %v3392 = vmul.f32 %v3380, %v3380
    %v3393 = vmul.f32 %v3381, %v3381
    %v3394 = vsel %vm305, %v3382, 0.0
    %3395 = vadd.xlane.f32.xlu0 %v3394
    %v3396 = vpop.xlane.xlu0 %3395
    %v3397 = vsel %vm305, %v3383, 0.0
    %3398 = vadd.xlane.f32.xlu0 %v3397
    %v3399 = vpop.xlane.xlu0 %3398
    %v3400 = vsel %vm305, %v3384, 0.0
    %3401 = vadd.xlane.f32.xlu0 %v3400
    %v3402 = vpop.xlane.xlu0 %3401
    %v3403 = vsel %vm305, %v3385, 0.0
    %3404 = vadd.xlane.f32.xlu0 %v3403
    %v3405 = vpop.xlane.xlu0 %3404
    %v3406 = vsel %vm305, %v3386, 0.0
    %3407 = vadd.xlane.f32.xlu0 %v3406
    %v3408 = vpop.xlane.xlu0 %3407
    %v3409 = vsel %vm305, %v3387, 0.0
    %3410 = vadd.xlane.f32.xlu0 %v3409
    %v3411 = vpop.xlane.xlu0 %3410
    %v3412 = vsel %vm305, %v3388, 0.0
    %3413 = vadd.xlane.f32.xlu0 %v3412
    %v3414 = vpop.xlane.xlu0 %3413
    %v3415 = vsel %vm305, %v3389, 0.0
    %3416 = vadd.xlane.f32.xlu0 %v3415
    %v3417 = vpop.xlane.xlu0 %3416
    %v3418 = vsel %vm305, %v3390, 0.0
    %3419 = vadd.xlane.f32.xlu0 %v3418
    %v3420 = vpop.xlane.xlu0 %3419
    %v3421 = vsel %vm305, %v3391, 0.0
    %3422 = vadd.xlane.f32.xlu0 %v3421
    %v3423 = vpop.xlane.xlu0 %3422
    %v3424 = vsel %vm305, %v3392, 0.0
    %3425 = vadd.xlane.f32.xlu0 %v3424
    %v3426 = vpop.xlane.xlu0 %3425
    %v3427 = vsel %vm305, %v3393, 0.0
    %3428 = vadd.xlane.f32.xlu0 %v3427
    %v3429 = vpop.xlane.xlu0 %3428
    %v3430 = vmul.f32 %v3396, %v342
    %v3431 = vmul.f32 %v3399, %v342
    %v3432 = vmul.f32 %v3402, %v342
    %v3433 = vmul.f32 %v3405, %v342
    %v3434 = vmul.f32 %v3408, %v342
    %v3435 = vmul.f32 %v3411, %v342
    %v3436 = vmul.f32 %v3414, %v342
    %v3437 = vmul.f32 %v3417, %v342
    %v3438 = vmul.f32 %v3420, %v342
    %v3439 = vmul.f32 %v3423, %v342
    %v3440 = vmul.f32 %v3426, %v342
    %v3441 = vmul.f32 %v3429, %v342
    %v3442 = vadd.f32 %v3430, 1e-06
    %v3443 = vadd.f32 %v3431, 1e-06
    %v3444 = vadd.f32 %v3432, 1e-06
    %v3445 = vadd.f32 %v3433, 1e-06
    %v3446 = vadd.f32 %v3434, 1e-06
    %v3447 = vadd.f32 %v3435, 1e-06
    %v3448 = vadd.f32 %v3436, 1e-06
    %v3449 = vadd.f32 %v3437, 1e-06
    %v3450 = vadd.f32 %v3438, 1e-06
    %v3451 = vadd.f32 %v3439, 1e-06
    %v3452 = vadd.f32 %v3440, 1e-06
    %v3453 = vadd.f32 %v3441, 1e-06
    %v3454 = vrsqrt.pop %v3442
    %v3455 = vrsqrt.pop %v3443
    %v3456 = vrsqrt.pop %v3444
    %v3457 = vrsqrt.pop %v3445
    %v3458 = vrsqrt.pop %v3446
    %v3459 = vrsqrt.pop %v3447
    %v3460 = vrsqrt.pop %v3448
    %v3461 = vrsqrt.pop %v3449
    %v3462 = vrsqrt.pop %v3450
    %v3463 = vrsqrt.pop %v3451
    %v3464 = vrsqrt.pop %v3452
    %v3465 = vrsqrt.pop %v3453
    %v3466 = vmul.f32 %v3370, %v3454
    %v3467 = vmul.f32 %v3371, %v3455
    %v3468 = vmul.f32 %v3372, %v3456
    %v3469 = vmul.f32 %v3373, %v3457
    %v3470 = vmul.f32 %v3374, %v3458
    %v3471 = vmul.f32 %v3375, %v3459
    %v3472 = vmul.f32 %v3376, %v3460
    %v3473 = vmul.f32 %v3377, %v3461
    %v3474 = vmul.f32 %v3378, %v3462
    %v3475 = vmul.f32 %v3379, %v3463
    %v3476 = vmul.f32 %v3380, %v3464
    %v3477 = vmul.f32 %v3381, %v3465
    %v3478 = vld [vmem:[#allocation2 + $0x2] sm:$0x1]
    %v3479 = vlaneseq
    %v3480 = vshrl.u32 %v3479, 7
    %v3481 = vsub.s32 0, %v3480
    %v3482 = vrot.slane %v3478, %v3481
    %v3483 = vmul.f32 %v3466, %v3482
    %v3484 = vmul.f32 %v3467, %v3482
    %v3485 = vmul.f32 %v3468, %v3482
    %v3486 = vmul.f32 %v3469, %v3482
    %v3487 = vmul.f32 %v3470, %v3482
    %v3488 = vmul.f32 %v3471, %v3482
    %v3489 = vmul.f32 %v3472, %v3482
    %v3490 = vmul.f32 %v3473, %v3482
    %v3491 = vmul.f32 %v3474, %v3482
    %v3492 = vmul.f32 %v3475, %v3482
    %v3493 = vmul.f32 %v3476, %v3482
    %v3494 = vmul.f32 %v3477, %v3482
    %v3495 = vpack.c.bf16 %v3484, %v3483
    %v3496 = vpack.c.bf16 %v3486, %v3485
    %v3497 = vpack.c.bf16 %v3488, %v3487
    %v3498 = vpack.c.bf16 %v3490, %v3489
    %v3499 = vpack.c.bf16 %v3492, %v3491
    %v3500 = vpack.c.bf16 %v3494, %v3493
    %s3501 = scalar_lea.vmem %s4, 64
    %v3502 = vld [vmem:[%s3501] sm:$0xf]
    %v3503 = vld [vmem:[%s3501 + $0x4] sm:$0xf]
    %v3504 = vld [vmem:[%s3501 + $0x8] sm:$0xf]
    %v3505 = vld [vmem:[%s3501 + $0xc] sm:$0xf]
    %v3506 = vld [vmem:[%s3501 + $0x10] sm:$0xf]
    %v3507 = vld [vmem:[%s3501 + $0x14] sm:$0xf]
    %v3508 = vld [vmem:[%s3501 + $0x18] sm:$0xf]
    %v3509 = vld [vmem:[%s3501 + $0x1c] sm:$0xf]
    %v3510 = vld [vmem:[%s3501 + $0x20] sm:$0xf]
    %v3511 = vld [vmem:[%s3501 + $0x24] sm:$0xf]
    %v3512 = vld [vmem:[%s3501 + $0x28] sm:$0xf]
    %v3513 = vld [vmem:[%s3501 + $0x2c] sm:$0xf]
    %v3514 = vld [vmem:[%s3501 + $0x30] sm:$0xf]
    %v3515 = vld [vmem:[%s3501 + $0x34] sm:$0xf]
    %v3516 = vld [vmem:[%s3501 + $0x38] sm:$0xf]
    %v3517 = vld [vmem:[%s3501 + $0x3c] sm:$0xf]
    %v3522 = vunpack.c.l.b16 %v3502
    %v3523 = vunpack.c.l.b16 %v3503
    %v3524 = vunpack.c.l.b16 %v3504
    %v3525 = vunpack.c.l.b16 %v3505
    %v3526 = vpack.c.b16 %v3523, %v3522
    %v3527 = vpack.c.b16 %v3525, %v3524
    %v3531 = vsel %vm305, %v3495, 0
    %v3534 = vsel %vm305, %v3496, 0
    %v3537 = vsel %vm305, %v3497, 0
    %v3540 = vsel %vm305, %v3498, 0
    %v3543 = vsel %vm305, %v3499, 0
    %v3546 = vsel %vm305, %v3500, 0
    %3548 = vmatprep.subr.bf16.mxu0 0
    %3549 = vmatpush1.bf16.msra.mxu0 %v3526
    %3550 = vmatprep.subr.bf16.mxu0 0
    %3551 = vmatpush1.bf16.msra.mxu0 %v3527
    %3552 = vmatprep.subr.bf16.mxu0 0
    %3553 = vmatpush1.bf16.msra.mxu0 0
    %3554 = vmatprep.subr.bf16.mxu0 0
    %3555 = vmatpush1.bf16.msra.mxu0 0
    %3556 = vmatprep.subr.bf16.mxu0 0
    %3557 = vmatpush1.bf16.msra.mxu0 0
    %3558 = vmatprep.subr.bf16.mxu0 0
    %3559 = vmatpush1.bf16.msra.mxu0 0
    %3560 = vmatprep.subr.bf16.mxu0 0
    %3561 = vmatpush1.bf16.msra.mxu0 0
    %3562 = vmatprep.subr.bf16.mxu0 0
    %3563 = vmatpush1.bf16.msra.mxu0 0
    %3564 = vmatprep.subr.bf16.mxu0 0
    %3565 = vmatpush1.bf16.msra.mxu0 0
    %3566 = vmatprep.subr.bf16.mxu0 0
    %3567 = vmatpush1.bf16.msra.mxu0 0
    %3568 = vmatprep.subr.bf16.mxu0 0
    %3569 = vmatpush1.bf16.msra.mxu0 0
    %3570 = vmatprep.subr.bf16.mxu0 0
    %3571 = vmatpush1.bf16.msra.mxu0 0
    %3572 = vmatprep.subr.bf16.mxu0 0
    %3573 = vmatpush1.bf16.msra.mxu0 0
    %3574 = vmatprep.subr.bf16.mxu0 0
    %3575 = vmatpush1.bf16.msra.mxu0 0
    %3576 = vmatprep.subr.bf16.mxu0 0
    %3577 = vmatpush1.bf16.msra.mxu0 0
    %3578 = vmatprep.subr.bf16.mxu0 0
    %3579 = vmatpush1.bf16.msra.mxu0 0
    %3580 = vmatprep.mubr.bf16.mxu0 0
    %3581 = vmatmul.mubr.bf16.gmra.mrb[0].mxu0 %v3531
    %v3582 = vpop.f32.mrb[0].mxu0
    %v3583 = vadd.f32 0.0, %v3582
    %v3584 = vpop.f32.mrb[0].mxu0
    %v3585 = vpop.f32.mrb[0].mxu0
    %v3586 = vadd.f32 0.0, %v3585
    %v3587 = vpop.f32.mrb[0].mxu0
    %3588 = vmatprep.mubr.bf16.mxu0 0
    %3589 = vmatmul.mubr.bf16.gmra.mrb[0].mxu0 %v3534
    %v3590 = vpop.f32.mrb[0].mxu0
    %v3591 = vadd.f32 0.0, %v3590
    %v3592 = vpop.f32.mrb[0].mxu0
    %v3593 = vpop.f32.mrb[0].mxu0
    %v3594 = vadd.f32 0.0, %v3593
    %v3595 = vpop.f32.mrb[0].mxu0
    %3596 = vmatprep.mubr.bf16.mxu0 0
    %3597 = vmatmul.mubr.bf16.gmra.mrb[0].mxu0 %v3537
    %v3598 = vpop.f32.mrb[0].mxu0
    %v3599 = vadd.f32 0.0, %v3598
    %v3600 = vpop.f32.mrb[0].mxu0
    %v3601 = vpop.f32.mrb[0].mxu0
    %v3602 = vadd.f32 0.0, %v3601
    %v3603 = vpop.f32.mrb[0].mxu0
    %3604 = vmatprep.mubr.bf16.mxu0 0
    %3605 = vmatmul.mubr.bf16.gmra.mrb[0].mxu0 %v3540
    %v3606 = vpop.f32.mrb[0].mxu0
    %v3607 = vadd.f32 0.0, %v3606
    %v3608 = vpop.f32.mrb[0].mxu0
    %v3609 = vpop.f32.mrb[0].mxu0
    %v3610 = vadd.f32 0.0, %v3609
    %v3611 = vpop.f32.mrb[0].mxu0
    %3612 = vmatprep.mubr.bf16.mxu0 0
    %3613 = vmatmul.mubr.bf16.gmra.mrb[0].mxu0 %v3543
    %v3614 = vpop.f32.mrb[0].mxu0
    %v3615 = vadd.f32 0.0, %v3614
    %v3616 = vpop.f32.mrb[0].mxu0
    %v3617 = vpop.f32.mrb[0].mxu0
    %v3618 = vadd.f32 0.0, %v3617
    %v3619 = vpop.f32.mrb[0].mxu0
    %3620 = vmatprep.mubr.bf16.mxu0 0
    %3621 = vmatmul.mubr.bf16.gmra.mrb[0].mxu0 %v3546
    %v3622 = vpop.f32.mrb[0].mxu0
    %v3623 = vadd.f32 0.0, %v3622
    %v3624 = vpop.f32.mrb[0].mxu0
    %v3625 = vpop.f32.mrb[0].mxu0
    %v3626 = vadd.f32 0.0, %v3625
    %v3627 = vpop.f32.mrb[0].mxu0
    %3628 = vdwg.mxu0
    %v3633 = vunpack.c.l.b16 %v3506
    %v3634 = vunpack.c.l.b16 %v3507
    %v3635 = vunpack.c.l.b16 %v3508
    %v3636 = vunpack.c.l.b16 %v3509
    %v3637 = vpack.c.b16 %v3634, %v3633
    %v3638 = vpack.c.b16 %v3636, %v3635
    %3641 = vmatprep.subr.bf16.mxu0 0
    %3642 = vmatpush1.bf16.msra.mxu0 %v3637
    %3643 = vmatprep.subr.bf16.mxu0 0
    %3644 = vmatpush1.bf16.msra.mxu0 %v3638
    %3645 = vmatprep.subr.bf16.mxu0 0
    %3646 = vmatpush1.bf16.msra.mxu0 0
    %3647 = vmatprep.subr.bf16.mxu0 0
    %3648 = vmatpush1.bf16.msra.mxu0 0
    %3649 = vmatprep.subr.bf16.mxu0 0
    %3650 = vmatpush1.bf16.msra.mxu0 0
    %3651 = vmatprep.subr.bf16.mxu0 0
    %3652 = vmatpush1.bf16.msra.mxu0 0
    %3653 = vmatprep.subr.bf16.mxu0 0
    %3654 = vmatpush1.bf16.msra.mxu0 0
    %3655 = vmatprep.subr.bf16.mxu0 0
    %3656 = vmatpush1.bf16.msra.mxu0 0
    %3657 = vmatprep.subr.bf16.mxu0 0
    %3658 = vmatpush1.bf16.msra.mxu0 0
    %3659 = vmatprep.subr.bf16.mxu0 0
    %3660 = vmatpush1.bf16.msra.mxu0 0
    %3661 = vmatprep.subr.bf16.mxu0 0
    %3662 = vmatpush1.bf16.msra.mxu0 0
    %3663 = vmatprep.subr.bf16.mxu0 0
    %3664 = vmatpush1.bf16.msra.mxu0 0
    %3665 = vmatprep.subr.bf16.mxu0 0
    %3666 = vmatpush1.bf16.msra.mxu0 0
    %3667 = vmatprep.subr.bf16.mxu0 0
    %3668 = vmatpush1.bf16.msra.mxu0 0
    %3669 = vmatprep.subr.bf16.mxu0 0
    %3670 = vmatpush1.bf16.msra.mxu0 0
    %3671 = vmatprep.subr.bf16.mxu0 0
    %3672 = vmatpush1.bf16.msra.mxu0 0
    %3673 = vmatprep.mubr.bf16.mxu0 0
    %3674 = vmatmul.mubr.bf16.gmra.mrb[0].mxu0 %v3531
    %v3675 = vpop.f32.mrb[0].mxu0
    %v3676 = vadd.f32 0.0, %v3675
    %v3677 = vpop.f32.mrb[0].mxu0
    %v3678 = vpop.f32.mrb[0].mxu0
    %v3679 = vadd.f32 0.0, %v3678
    %v3680 = vpop.f32.mrb[0].mxu0
    %3681 = vmatprep.mubr.bf16.mxu0 0
    %3682 = vmatmul.mubr.bf16.gmra.mrb[0].mxu0 %v3534
    %v3683 = vpop.f32.mrb[0].mxu0
    %v3684 = vadd.f32 0.0, %v3683
    %v3685 = vpop.f32.mrb[0].mxu0
    %v3686 = vpop.f32.mrb[0].mxu0
    %v3687 = vadd.f32 0.0, %v3686
    %v3688 = vpop.f32.mrb[0].mxu0
    %3689 = vmatprep.mubr.bf16.mxu0 0
    %3690 = vmatmul.mubr.bf16.gmra.mrb[0].mxu0 %v3537
    %v3691 = vpop.f32.mrb[0].mxu0
    %v3692 = vadd.f32 0.0, %v3691
    %v3693 = vpop.f32.mrb[0].mxu0
    %v3694 = vpop.f32.mrb[0].mxu0
    %v3695 = vadd.f32 0.0, %v3694
    %v3696 = vpop.f32.mrb[0].mxu0
    %3697 = vmatprep.mubr.bf16.mxu0 0
    %3698 = vmatmul.mubr.bf16.gmra.mrb[0].mxu0 %v3540
    %v3699 = vpop.f32.mrb[0].mxu0
    %v3700 = vadd.f32 0.0, %v3699
    %v3701 = vpop.f32.mrb[0].mxu0
    %v3702 = vpop.f32.mrb[0].mxu0
    %v3703 = vadd.f32 0.0, %v3702
    %v3704 = vpop.f32.mrb[0].mxu0
    %3705 = vmatprep.mubr.bf16.mxu0 0
    %3706 = vmatmul.mubr.bf16.gmra.mrb[0].mxu0 %v3543
    %v3707 = vpop.f32.mrb[0].mxu0
    %v3708 = vadd.f32 0.0, %v3707
    %v3709 = vpop.f32.mrb[0].mxu0
    %v3710 = vpop.f32.mrb[0].mxu0
    %v3711 = vadd.f32 0.0, %v3710
    %v3712 = vpop.f32.mrb[0].mxu0
    %3713 = vmatprep.mubr.bf16.mxu0 0
    %3714 = vmatmul.mubr.bf16.gmra.mrb[0].mxu0 %v3546
    %v3715 = vpop.f32.mrb[0].mxu0
    %v3716 = vadd.f32 0.0, %v3715
    %v3717 = vpop.f32.mrb[0].mxu0
    %v3718 = vpop.f32.mrb[0].mxu0
    %v3719 = vadd.f32 0.0, %v3718
    %v3720 = vpop.f32.mrb[0].mxu0
    %3721 = vdwg.mxu0
    %v3726 = vunpack.c.l.b16 %v3510
    %v3727 = vunpack.c.l.b16 %v3511
    %v3728 = vunpack.c.l.b16 %v3512
    %v3729 = vunpack.c.l.b16 %v3513
    %v3730 = vpack.c.b16 %v3727, %v3726
    %v3731 = vpack.c.b16 %v3729, %v3728
    %3734 = vmatprep.subr.bf16.mxu0 0
    %3735 = vmatpush1.bf16.msra.mxu0 %v3730
    %3736 = vmatprep.subr.bf16.mxu0 0
    %3737 = vmatpush1.bf16.msra.mxu0 %v3731
    %3738 = vmatprep.subr.bf16.mxu0 0
    %3739 = vmatpush1.bf16.msra.mxu0 0
    %3740 = vmatprep.subr.bf16.mxu0 0
    %3741 = vmatpush1.bf16.msra.mxu0 0
    %3742 = vmatprep.subr.bf16.mxu0 0
    %3743 = vmatpush1.bf16.msra.mxu0 0
    %3744 = vmatprep.subr.bf16.mxu0 0
    %3745 = vmatpush1.bf16.msra.mxu0 0
    %3746 = vmatprep.subr.bf16.mxu0 0
    %3747 = vmatpush1.bf16.msra.mxu0 0
    %3748 = vmatprep.subr.bf16.mxu0 0
    %3749 = vmatpush1.bf16.msra.mxu0 0
    %3750 = vmatprep.subr.bf16.mxu0 0
    %3751 = vmatpush1.bf16.msra.mxu0 0
    %3752 = vmatprep.subr.bf16.mxu0 0
    %3753 = vmatpush1.bf16.msra.mxu0 0
    %3754 = vmatprep.subr.bf16.mxu0 0
    %3755 = vmatpush1.bf16.msra.mxu0 0
    %3756 = vmatprep.subr.bf16.mxu0 0
    %3757 = vmatpush1.bf16.msra.mxu0 0
    %3758 = vmatprep.subr.bf16.mxu0 0
    %3759 = vmatpush1.bf16.msra.mxu0 0
    %3760 = vmatprep.subr.bf16.mxu0 0
    %3761 = vmatpush1.bf16.msra.mxu0 0
    %3762 = vmatprep.subr.bf16.mxu0 0
    %3763 = vmatpush1.bf16.msra.mxu0 0
    %3764 = vmatprep.subr.bf16.mxu0 0
    %3765 = vmatpush1.bf16.msra.mxu0 0
    %3766 = vmatprep.mubr.bf16.mxu0 0
    %3767 = vmatmul.mubr.bf16.gmra.mrb[0].mxu0 %v3531
    %v3768 = vpop.f32.mrb[0].mxu0
    %v3769 = vadd.f32 0.0, %v3768
    %v3770 = vpop.f32.mrb[0].mxu0
    %v3771 = vpop.f32.mrb[0].mxu0
    %v3772 = vadd.f32 0.0, %v3771
    %v3773 = vpop.f32.mrb[0].mxu0
    %3774 = vmatprep.mubr.bf16.mxu0 0
    %3775 = vmatmul.mubr.bf16.gmra.mrb[0].mxu0 %v3534
    %v3776 = vpop.f32.mrb[0].mxu0
    %v3777 = vadd.f32 0.0, %v3776
    %v3778 = vpop.f32.mrb[0].mxu0
    %v3779 = vpop.f32.mrb[0].mxu0
    %v3780 = vadd.f32 0.0, %v3779
    %v3781 = vpop.f32.mrb[0].mxu0
    %3782 = vmatprep.mubr.bf16.mxu0 0
    %3783 = vmatmul.mubr.bf16.gmra.mrb[0].mxu0 %v3537
    %v3784 = vpop.f32.mrb[0].mxu0
    %v3785 = vadd.f32 0.0, %v3784
    %v3786 = vpop.f32.mrb[0].mxu0
    %v3787 = vpop.f32.mrb[0].mxu0
    %v3788 = vadd.f32 0.0, %v3787
    %v3789 = vpop.f32.mrb[0].mxu0
    %3790 = vmatprep.mubr.bf16.mxu0 0
    %3791 = vmatmul.mubr.bf16.gmra.mrb[0].mxu0 %v3540
    %v3792 = vpop.f32.mrb[0].mxu0
    %v3793 = vadd.f32 0.0, %v3792
    %v3794 = vpop.f32.mrb[0].mxu0
    %v3795 = vpop.f32.mrb[0].mxu0
    %v3796 = vadd.f32 0.0, %v3795
    %v3797 = vpop.f32.mrb[0].mxu0
    %3798 = vmatprep.mubr.bf16.mxu0 0
    %3799 = vmatmul.mubr.bf16.gmra.mrb[0].mxu0 %v3543
    %v3800 = vpop.f32.mrb[0].mxu0
    %v3801 = vadd.f32 0.0, %v3800
    %v3802 = vpop.f32.mrb[0].mxu0
    %v3803 = vpop.f32.mrb[0].mxu0
    %v3804 = vadd.f32 0.0, %v3803
    %v3805 = vpop.f32.mrb[0].mxu0
    %3806 = vmatprep.mubr.bf16.mxu0 0
    %3807 = vmatmul.mubr.bf16.gmra.mrb[0].mxu0 %v3546
    %v3808 = vpop.f32.mrb[0].mxu0
    %v3809 = vadd.f32 0.0, %v3808
    %v3810 = vpop.f32.mrb[0].mxu0
    %v3811 = vpop.f32.mrb[0].mxu0
    %v3812 = vadd.f32 0.0, %v3811
    %v3813 = vpop.f32.mrb[0].mxu0
    %3814 = vdwg.mxu0
    %v3819 = vunpack.c.l.b16 %v3514
    %v3820 = vunpack.c.l.b16 %v3515
    %v3821 = vunpack.c.l.b16 %v3516
    %v3822 = vunpack.c.l.b16 %v3517
    %v3823 = vpack.c.b16 %v3820, %v3819
    %v3824 = vpack.c.b16 %v3822, %v3821
    %3827 = vmatprep.subr.bf16.mxu0 0
    %3828 = vmatpush1.bf16.msra.mxu0 %v3823
    %3829 = vmatprep.subr.bf16.mxu0 0
    %3830 = vmatpush1.bf16.msra.mxu0 %v3824
    %3831 = vmatprep.subr.bf16.mxu0 0
    %3832 = vmatpush1.bf16.msra.mxu0 0
    %3833 = vmatprep.subr.bf16.mxu0 0
    %3834 = vmatpush1.bf16.msra.mxu0 0
    %3835 = vmatprep.subr.bf16.mxu0 0
    %3836 = vmatpush1.bf16.msra.mxu0 0
    %3837 = vmatprep.subr.bf16.mxu0 0
    %3838 = vmatpush1.bf16.msra.mxu0 0
    %3839 = vmatprep.subr.bf16.mxu0 0
    %3840 = vmatpush1.bf16.msra.mxu0 0
    %3841 = vmatprep.subr.bf16.mxu0 0
    %3842 = vmatpush1.bf16.msra.mxu0 0
    %3843 = vmatprep.subr.bf16.mxu0 0
    %3844 = vmatpush1.bf16.msra.mxu0 0
    %3845 = vmatprep.subr.bf16.mxu0 0
    %3846 = vmatpush1.bf16.msra.mxu0 0
    %3847 = vmatprep.subr.bf16.mxu0 0
    %3848 = vmatpush1.bf16.msra.mxu0 0
    %3849 = vmatprep.subr.bf16.mxu0 0
    %3850 = vmatpush1.bf16.msra.mxu0 0
    %3851 = vmatprep.subr.bf16.mxu0 0
    %3852 = vmatpush1.bf16.msra.mxu0 0
    %3853 = vmatprep.subr.bf16.mxu0 0
    %3854 = vmatpush1.bf16.msra.mxu0 0
    %3855 = vmatprep.subr.bf16.mxu0 0
    %3856 = vmatpush1.bf16.msra.mxu0 0
    %3857 = vmatprep.subr.bf16.mxu0 0
    %3858 = vmatpush1.bf16.msra.mxu0 0
    %3859 = vmatprep.mubr.bf16.mxu0 0
    %3860 = vmatmul.mubr.bf16.gmra.mrb[0].mxu0 %v3531
    %v3861 = vpop.f32.mrb[0].mxu0
    %v3862 = vadd.f32 0.0, %v3861
    %v3863 = vpop.f32.mrb[0].mxu0
    %v3864 = vpop.f32.mrb[0].mxu0
    %v3865 = vadd.f32 0.0, %v3864
    %v3866 = vpop.f32.mrb[0].mxu0
    %3867 = vmatprep.mubr.bf16.mxu0 0
    %3868 = vmatmul.mubr.bf16.gmra.mrb[0].mxu0 %v3534
    %v3869 = vpop.f32.mrb[0].mxu0
    %v3870 = vadd.f32 0.0, %v3869
    %v3871 = vpop.f32.mrb[0].mxu0
    %v3872 = vpop.f32.mrb[0].mxu0
    %v3873 = vadd.f32 0.0, %v3872
    %v3874 = vpop.f32.mrb[0].mxu0
    %3875 = vmatprep.mubr.bf16.mxu0 0
    %3876 = vmatmul.mubr.bf16.gmra.mrb[0].mxu0 %v3537
    %v3877 = vpop.f32.mrb[0].mxu0
    %v3878 = vadd.f32 0.0, %v3877
    %v3879 = vpop.f32.mrb[0].mxu0
    %v3880 = vpop.f32.mrb[0].mxu0
    %v3881 = vadd.f32 0.0, %v3880
    %v3882 = vpop.f32.mrb[0].mxu0
    %3883 = vmatprep.mubr.bf16.mxu0 0
    %3884 = vmatmul.mubr.bf16.gmra.mrb[0].mxu0 %v3540
    %v3885 = vpop.f32.mrb[0].mxu0
    %v3886 = vadd.f32 0.0, %v3885
    %v3887 = vpop.f32.mrb[0].mxu0
    %v3888 = vpop.f32.mrb[0].mxu0
    %v3889 = vadd.f32 0.0, %v3888
    %v3890 = vpop.f32.mrb[0].mxu0
    %3891 = vmatprep.mubr.bf16.mxu0 0
    %3892 = vmatmul.mubr.bf16.gmra.mrb[0].mxu0 %v3543
    %v3893 = vpop.f32.mrb[0].mxu0
    %v3894 = vadd.f32 0.0, %v3893
    %v3895 = vpop.f32.mrb[0].mxu0
    %v3896 = vpop.f32.mrb[0].mxu0
    %v3897 = vadd.f32 0.0, %v3896
    %v3898 = vpop.f32.mrb[0].mxu0
    %3899 = vmatprep.mubr.bf16.mxu0 0
    %3900 = vmatmul.mubr.bf16.gmra.mrb[0].mxu0 %v3546
    %v3901 = vpop.f32.mrb[0].mxu0
    %v3902 = vadd.f32 0.0, %v3901
    %v3903 = vpop.f32.mrb[0].mxu0
    %v3904 = vpop.f32.mrb[0].mxu0
    %v3905 = vadd.f32 0.0, %v3904
    %v3906 = vpop.f32.mrb[0].mxu0
    %3907 = vdwg.mxu0
    %v3908 = vpack.c.bf16 %v3586, %v3583
    %v3909 = vpack.c.bf16 %v3594, %v3591
    %v3910 = vpack.c.bf16 %v3602, %v3599
    %v3911 = vpack.c.bf16 %v3610, %v3607
    %v3912 = vpack.c.bf16 %v3618, %v3615
    %v3913 = vpack.c.bf16 %v3626, %v3623
    %v3914 = vpack.c.bf16 %v3679, %v3676
    %v3915 = vpack.c.bf16 %v3687, %v3684
    %v3916 = vpack.c.bf16 %v3695, %v3692
    %v3917 = vpack.c.bf16 %v3703, %v3700
    %v3918 = vpack.c.bf16 %v3711, %v3708
    %v3919 = vpack.c.bf16 %v3719, %v3716
    %v3920 = vpack.c.bf16 %v3772, %v3769
    %v3921 = vpack.c.bf16 %v3780, %v3777
    %v3922 = vpack.c.bf16 %v3788, %v3785
    %v3923 = vpack.c.bf16 %v3796, %v3793
    %v3924 = vpack.c.bf16 %v3804, %v3801
    %v3925 = vpack.c.bf16 %v3812, %v3809
    %v3926 = vpack.c.bf16 %v3865, %v3862
    %v3927 = vpack.c.bf16 %v3873, %v3870
    %v3928 = vpack.c.bf16 %v3881, %v3878
    %v3929 = vpack.c.bf16 %v3889, %v3886
    %v3930 = vpack.c.bf16 %v3897, %v3894
    %v3931 = vpack.c.bf16 %v3905, %v3902
    %v3932 = vld [vmem:[%s2] sm:$0xff]
    %v3933 = vld [vmem:[%s2 + $0x8] sm:$0xff]
    %v3934 = vld [vmem:[%s2 + $0x10] sm:$0xff]
    %v3935 = vld [vmem:[%s2 + $0x18] sm:$0xff]
    %v3936 = vld [vmem:[%s2 + $0x20] sm:$0xff]
    %v3937 = vld [vmem:[%s2 + $0x28] sm:$0xff]
    %v3938 = vld [vmem:[%s2 + $0x30] sm:$0xff]
    %v3939 = vld [vmem:[%s2 + $0x38] sm:$0xff]
    %v3940 = vld [vmem:[%s2 + $0x40] sm:$0xff]
    %v3941 = vld [vmem:[%s2 + $0x48] sm:$0xff]
    %v3942 = vld [vmem:[%s2 + $0x50] sm:$0xff]
    %v3943 = vld [vmem:[%s2 + $0x58] sm:$0xff]
    %v3944 = vld [vmem:[%s2 + $0x60] sm:$0xff]
    %v3945 = vld [vmem:[%s2 + $0x68] sm:$0xff]
    %v3946 = vld [vmem:[%s2 + $0x70] sm:$0xff]
    %v3947 = vld [vmem:[%s2 + $0x78] sm:$0xff]
    %v3948 = vld [vmem:[%s2 + $0x80] sm:$0xff]
    %v3949 = vld [vmem:[%s2 + $0x88] sm:$0xff]
    %v3950 = vld [vmem:[%s2 + $0x90] sm:$0xff]
    %v3951 = vld [vmem:[%s2 + $0x98] sm:$0xff]
    %v3952 = vld [vmem:[%s2 + $0xa0] sm:$0xff]
    %v3953 = vld [vmem:[%s2 + $0xa8] sm:$0xff]
    %v3954 = vld [vmem:[%s2 + $0xb0] sm:$0xff]
    %v3955 = vld [vmem:[%s2 + $0xb8] sm:$0xff]
    %v3956 = vld [vmem:[%s2 + $0xc0] sm:$0xff]
    %v3957 = vld [vmem:[%s2 + $0xc8] sm:$0xff]
    %v3958 = vld [vmem:[%s2 + $0xd0] sm:$0xff]
    %v3959 = vld [vmem:[%s2 + $0xd8] sm:$0xff]
    %v3960 = vld [vmem:[%s2 + $0xe0] sm:$0xff]
    %v3961 = vld [vmem:[%s2 + $0xe8] sm:$0xff]
    %v3962 = vld [vmem:[%s2 + $0xf0] sm:$0xff]
    %v3963 = vld [vmem:[%s2 + $0xf8] sm:$0xff]
    %v3964 = vld [vmem:[%s2 + $0x100] sm:$0xff]
    %v3965 = vld [vmem:[%s2 + $0x108] sm:$0xff]
    %v3966 = vld [vmem:[%s2 + $0x110] sm:$0xff]
    %v3967 = vld [vmem:[%s2 + $0x118] sm:$0xff]
    %v3968 = vld [vmem:[%s2 + $0x120] sm:$0xff]
    %v3969 = vld [vmem:[%s2 + $0x128] sm:$0xff]
    %v3970 = vld [vmem:[%s2 + $0x130] sm:$0xff]
    %v3971 = vld [vmem:[%s2 + $0x138] sm:$0xff]
    %v3972 = vld [vmem:[%s2 + $0x140] sm:$0xff]
    %v3973 = vld [vmem:[%s2 + $0x148] sm:$0xff]
    %v3974 = vld [vmem:[%s2 + $0x150] sm:$0xff]
    %v3975 = vld [vmem:[%s2 + $0x158] sm:$0xff]
    %v3976 = vld [vmem:[%s2 + $0x160] sm:$0xff]
    %v3977 = vld [vmem:[%s2 + $0x168] sm:$0xff]
    %v3978 = vld [vmem:[%s2 + $0x170] sm:$0xff]
    %v3979 = vld [vmem:[%s2 + $0x178] sm:$0xff]
    %3986 = vrot.lane.b32.xlu0 %v3908, 120
    %v3987 = vpop.permute.xlu0 %3986
    %3988 = vrot.lane.b32.xlu0 %v3909, 120
    %v3989 = vpop.permute.xlu0 %3988
    %3990 = vrot.lane.b32.xlu0 %v3910, 120
    %v3991 = vpop.permute.xlu0 %3990
    %3992 = vrot.lane.b32.xlu0 %v3911, 120
    %v3993 = vpop.permute.xlu0 %3992
    %3994 = vrot.lane.b32.xlu0 %v3912, 120
    %v3995 = vpop.permute.xlu0 %3994
    %3996 = vrot.lane.b32.xlu0 %v3913, 120
    %v3997 = vpop.permute.xlu0 %3996
    %v3999 = vsel %vm910, %v3908, 0
    %v4002 = vsel %vm910, %v3909, 0
    %v4005 = vsel %vm910, %v3910, 0
    %v4008 = vsel %vm910, %v3911, 0
    %v4011 = vsel %vm910, %v3912, 0
    %v4014 = vsel %vm910, %v3913, 0
    %v4017 = vsel %vm910, %v3987, 0
    %v4020 = vsel %vm910, %v3989, 0
    %v4023 = vsel %vm910, %v3991, 0
    %v4026 = vsel %vm910, %v3993, 0
    %v4029 = vsel %vm910, %v3995, 0
    %v4032 = vsel %vm910, %v3997, 0
    %4034 = vmatprep.subr.bf16.mxu0 0
    %4035 = vmatpush1.bf16.xpose.msra.mxu0 %v4017
    %4036 = vmatprep.subr.bf16.mxu0 0
    %4037 = vmatpush1.bf16.xpose.msra.mxu0 %v4020
    %4038 = vmatprep.subr.bf16.mxu0 0
    %4039 = vmatpush1.bf16.xpose.msra.mxu0 %v4023
    %4040 = vmatprep.subr.bf16.mxu0 0
    %4041 = vmatpush1.bf16.xpose.msra.mxu0 %v4026
    %4042 = vmatprep.subr.bf16.mxu0 0
    %4043 = vmatpush1.bf16.xpose.msra.mxu0 %v4029
    %4044 = vmatprep.subr.bf16.mxu0 0
    %4045 = vmatpush1.bf16.xpose.msra.mxu0 %v4032
    %4046 = vmatprep.subr.bf16.mxu0 0
    %4047 = vmatpush1.bf16.xpose.msra.mxu0 0
    %4048 = vmatprep.subr.bf16.mxu0 0
    %4049 = vmatpush1.bf16.xpose.msra.mxu0 0
    %4050 = vmatprep.subr.bf16.mxu0 0
    %4051 = vmatpush1.bf16.xpose.msra.mxu0 0
    %4052 = vmatprep.subr.bf16.mxu0 0
    %4053 = vmatpush1.bf16.xpose.msra.mxu0 0
    %4054 = vmatprep.subr.bf16.mxu0 0
    %4055 = vmatpush1.bf16.xpose.msra.mxu0 0
    %4056 = vmatprep.subr.bf16.mxu0 0
    %4057 = vmatpush1.bf16.xpose.msra.mxu0 0
    %4058 = vmatprep.subr.bf16.mxu0 0
    %4059 = vmatpush1.bf16.xpose.msra.mxu0 0
    %4060 = vmatprep.subr.bf16.mxu0 0
    %4061 = vmatpush1.bf16.xpose.msra.mxu0 0
    %4062 = vmatprep.subr.bf16.mxu0 0
    %4063 = vmatpush1.bf16.xpose.msra.mxu0 0
    %4064 = vmatprep.subr.bf16.mxu0 0
    %4065 = vmatpush1.bf16.xpose.msra.mxu0 0
    %4066 = vmatprep.mubr.bf16.mxu0 0
    %4067 = vmatmul.mubr.bf16.gmra.mrb[0].mxu0 %v3999
    %v4068 = vpop.f32.mrb[0].mxu0
    %v4069 = vadd.f32 %v3932, %v4068
    %v4070 = vpop.f32.mrb[0].mxu0
    %v4071 = vpop.f32.mrb[0].mxu0
    %v4072 = vadd.f32 %v3933, %v4071
    %v4073 = vpop.f32.mrb[0].mxu0
    %4074 = vmatprep.mubr.bf16.mxu0 0
    %4075 = vmatmul.mubr.bf16.gmra.mrb[0].mxu0 %v4002
    %v4076 = vpop.f32.mrb[0].mxu0
    %v4077 = vadd.f32 %v3934, %v4076
    %v4078 = vpop.f32.mrb[0].mxu0
    %v4079 = vpop.f32.mrb[0].mxu0
    %v4080 = vadd.f32 %v3935, %v4079
    %v4081 = vpop.f32.mrb[0].mxu0
    %4082 = vmatprep.mubr.bf16.mxu0 0
    %4083 = vmatmul.mubr.bf16.gmra.mrb[0].mxu0 %v4005
    %v4084 = vpop.f32.mrb[0].mxu0
    %v4085 = vadd.f32 %v3936, %v4084
    %v4086 = vpop.f32.mrb[0].mxu0
    %v4087 = vpop.f32.mrb[0].mxu0
    %v4088 = vadd.f32 %v3937, %v4087
    %v4089 = vpop.f32.mrb[0].mxu0
    %4090 = vmatprep.mubr.bf16.mxu0 0
    %4091 = vmatmul.mubr.bf16.gmra.mrb[0].mxu0 %v4008
    %v4092 = vpop.f32.mrb[0].mxu0
    %v4093 = vadd.f32 %v3938, %v4092
    %v4094 = vpop.f32.mrb[0].mxu0
    %v4095 = vpop.f32.mrb[0].mxu0
    %v4096 = vadd.f32 %v3939, %v4095
    %v4097 = vpop.f32.mrb[0].mxu0
    %4098 = vmatprep.mubr.bf16.mxu0 0
    %4099 = vmatmul.mubr.bf16.gmra.mrb[0].mxu0 %v4011
    %v4100 = vpop.f32.mrb[0].mxu0
    %v4101 = vadd.f32 %v3940, %v4100
    %v4102 = vpop.f32.mrb[0].mxu0
    %v4103 = vpop.f32.mrb[0].mxu0
    %v4104 = vadd.f32 %v3941, %v4103
    %v4105 = vpop.f32.mrb[0].mxu0
    %4106 = vmatprep.mubr.bf16.mxu0 0
    %4107 = vmatmul.mubr.bf16.gmra.mrb[0].mxu0 %v4014
    %v4108 = vpop.f32.mrb[0].mxu0
    %v4109 = vadd.f32 %v3942, %v4108
    %v4110 = vpop.f32.mrb[0].mxu0
    %v4111 = vpop.f32.mrb[0].mxu0
    %v4112 = vadd.f32 %v3943, %v4111
    %v4113 = vpop.f32.mrb[0].mxu0
    %4114 = vdwg.mxu0
    %4121 = vrot.lane.b32.xlu0 %v3914, 120
    %v4122 = vpop.permute.xlu0 %4121
    %4123 = vrot.lane.b32.xlu0 %v3915, 120
    %v4124 = vpop.permute.xlu0 %4123
    %4125 = vrot.lane.b32.xlu0 %v3916, 120
    %v4126 = vpop.permute.xlu0 %4125
    %4127 = vrot.lane.b32.xlu0 %v3917, 120
    %v4128 = vpop.permute.xlu0 %4127
    %4129 = vrot.lane.b32.xlu0 %v3918, 120
    %v4130 = vpop.permute.xlu0 %4129
    %4131 = vrot.lane.b32.xlu0 %v3919, 120
    %v4132 = vpop.permute.xlu0 %4131
    %v4134 = vsel %vm910, %v3914, 0
    %v4137 = vsel %vm910, %v3915, 0
    %v4140 = vsel %vm910, %v3916, 0
    %v4143 = vsel %vm910, %v3917, 0
    %v4146 = vsel %vm910, %v3918, 0
    %v4149 = vsel %vm910, %v3919, 0
    %v4152 = vsel %vm910, %v4122, 0
    %v4155 = vsel %vm910, %v4124, 0
    %v4158 = vsel %vm910, %v4126, 0
    %v4161 = vsel %vm910, %v4128, 0
    %v4164 = vsel %vm910, %v4130, 0
    %v4167 = vsel %vm910, %v4132, 0
    %4169 = vmatprep.subr.bf16.mxu0 0
    %4170 = vmatpush1.bf16.xpose.msra.mxu0 %v4152
    %4171 = vmatprep.subr.bf16.mxu0 0
    %4172 = vmatpush1.bf16.xpose.msra.mxu0 %v4155
    %4173 = vmatprep.subr.bf16.mxu0 0
    %4174 = vmatpush1.bf16.xpose.msra.mxu0 %v4158
    %4175 = vmatprep.subr.bf16.mxu0 0
    %4176 = vmatpush1.bf16.xpose.msra.mxu0 %v4161
    %4177 = vmatprep.subr.bf16.mxu0 0
    %4178 = vmatpush1.bf16.xpose.msra.mxu0 %v4164
    %4179 = vmatprep.subr.bf16.mxu0 0
    %4180 = vmatpush1.bf16.xpose.msra.mxu0 %v4167
    %4181 = vmatprep.subr.bf16.mxu0 0
    %4182 = vmatpush1.bf16.xpose.msra.mxu0 0
    %4183 = vmatprep.subr.bf16.mxu0 0
    %4184 = vmatpush1.bf16.xpose.msra.mxu0 0
    %4185 = vmatprep.subr.bf16.mxu0 0
    %4186 = vmatpush1.bf16.xpose.msra.mxu0 0
    %4187 = vmatprep.subr.bf16.mxu0 0
    %4188 = vmatpush1.bf16.xpose.msra.mxu0 0
    %4189 = vmatprep.subr.bf16.mxu0 0
    %4190 = vmatpush1.bf16.xpose.msra.mxu0 0
    %4191 = vmatprep.subr.bf16.mxu0 0
    %4192 = vmatpush1.bf16.xpose.msra.mxu0 0
    %4193 = vmatprep.subr.bf16.mxu0 0
    %4194 = vmatpush1.bf16.xpose.msra.mxu0 0
    %4195 = vmatprep.subr.bf16.mxu0 0
    %4196 = vmatpush1.bf16.xpose.msra.mxu0 0
    %4197 = vmatprep.subr.bf16.mxu0 0
    %4198 = vmatpush1.bf16.xpose.msra.mxu0 0
    %4199 = vmatprep.subr.bf16.mxu0 0
    %4200 = vmatpush1.bf16.xpose.msra.mxu0 0
    %4201 = vmatprep.mubr.bf16.mxu0 0
    %4202 = vmatmul.mubr.bf16.gmra.mrb[0].mxu0 %v4134
    %v4203 = vpop.f32.mrb[0].mxu0
    %v4204 = vadd.f32 %v3944, %v4203
    %v4205 = vpop.f32.mrb[0].mxu0
    %v4206 = vpop.f32.mrb[0].mxu0
    %v4207 = vadd.f32 %v3945, %v4206
    %v4208 = vpop.f32.mrb[0].mxu0
    %4209 = vmatprep.mubr.bf16.mxu0 0
    %4210 = vmatmul.mubr.bf16.gmra.mrb[0].mxu0 %v4137
    %v4211 = vpop.f32.mrb[0].mxu0
    %v4212 = vadd.f32 %v3946, %v4211
    %v4213 = vpop.f32.mrb[0].mxu0
    %v4214 = vpop.f32.mrb[0].mxu0
    %v4215 = vadd.f32 %v3947, %v4214
    %v4216 = vpop.f32.mrb[0].mxu0
    %4217 = vmatprep.mubr.bf16.mxu0 0
    %4218 = vmatmul.mubr.bf16.gmra.mrb[0].mxu0 %v4140
    %v4219 = vpop.f32.mrb[0].mxu0
    %v4220 = vadd.f32 %v3948, %v4219
    %v4221 = vpop.f32.mrb[0].mxu0
    %v4222 = vpop.f32.mrb[0].mxu0
    %v4223 = vadd.f32 %v3949, %v4222
    %v4224 = vpop.f32.mrb[0].mxu0
    %4225 = vmatprep.mubr.bf16.mxu0 0
    %4226 = vmatmul.mubr.bf16.gmra.mrb[0].mxu0 %v4143
    %v4227 = vpop.f32.mrb[0].mxu0
    %v4228 = vadd.f32 %v3950, %v4227
    %v4229 = vpop.f32.mrb[0].mxu0
    %v4230 = vpop.f32.mrb[0].mxu0
    %v4231 = vadd.f32 %v3951, %v4230
    %v4232 = vpop.f32.mrb[0].mxu0
    %4233 = vmatprep.mubr.bf16.mxu0 0
    %4234 = vmatmul.mubr.bf16.gmra.mrb[0].mxu0 %v4146
    %v4235 = vpop.f32.mrb[0].mxu0
    %v4236 = vadd.f32 %v3952, %v4235
    %v4237 = vpop.f32.mrb[0].mxu0
    %v4238 = vpop.f32.mrb[0].mxu0
    %v4239 = vadd.f32 %v3953, %v4238
    %v4240 = vpop.f32.mrb[0].mxu0
    %4241 = vmatprep.mubr.bf16.mxu0 0
    %4242 = vmatmul.mubr.bf16.gmra.mrb[0].mxu0 %v4149
    %v4243 = vpop.f32.mrb[0].mxu0
    %v4244 = vadd.f32 %v3954, %v4243
    %v4245 = vpop.f32.mrb[0].mxu0
    %v4246 = vpop.f32.mrb[0].mxu0
    %v4247 = vadd.f32 %v3955, %v4246
    %v4248 = vpop.f32.mrb[0].mxu0
    %4249 = vdwg.mxu0
    %4256 = vrot.lane.b32.xlu0 %v3920, 120
    %v4257 = vpop.permute.xlu0 %4256
    %4258 = vrot.lane.b32.xlu0 %v3921, 120
    %v4259 = vpop.permute.xlu0 %4258
    %4260 = vrot.lane.b32.xlu0 %v3922, 120
    %v4261 = vpop.permute.xlu0 %4260
    %4262 = vrot.lane.b32.xlu0 %v3923, 120
    %v4263 = vpop.permute.xlu0 %4262
    %4264 = vrot.lane.b32.xlu0 %v3924, 120
    %v4265 = vpop.permute.xlu0 %4264
    %4266 = vrot.lane.b32.xlu0 %v3925, 120
    %v4267 = vpop.permute.xlu0 %4266
    %v4269 = vsel %vm910, %v3920, 0
    %v4272 = vsel %vm910, %v3921, 0
    %v4275 = vsel %vm910, %v3922, 0
    %v4278 = vsel %vm910, %v3923, 0
    %v4281 = vsel %vm910, %v3924, 0
    %v4284 = vsel %vm910, %v3925, 0
    %v4287 = vsel %vm910, %v4257, 0
    %v4290 = vsel %vm910, %v4259, 0
    %v4293 = vsel %vm910, %v4261, 0
    %v4296 = vsel %vm910, %v4263, 0
    %v4299 = vsel %vm910, %v4265, 0
    %v4302 = vsel %vm910, %v4267, 0
    %4304 = vmatprep.subr.bf16.mxu0 0
    %4305 = vmatpush1.bf16.xpose.msra.mxu0 %v4287
    %4306 = vmatprep.subr.bf16.mxu0 0
    %4307 = vmatpush1.bf16.xpose.msra.mxu0 %v4290
    %4308 = vmatprep.subr.bf16.mxu0 0
    %4309 = vmatpush1.bf16.xpose.msra.mxu0 %v4293
    %4310 = vmatprep.subr.bf16.mxu0 0
    %4311 = vmatpush1.bf16.xpose.msra.mxu0 %v4296
    %4312 = vmatprep.subr.bf16.mxu0 0
    %4313 = vmatpush1.bf16.xpose.msra.mxu0 %v4299
    %4314 = vmatprep.subr.bf16.mxu0 0
    %4315 = vmatpush1.bf16.xpose.msra.mxu0 %v4302
    %4316 = vmatprep.subr.bf16.mxu0 0
    %4317 = vmatpush1.bf16.xpose.msra.mxu0 0
    %4318 = vmatprep.subr.bf16.mxu0 0
    %4319 = vmatpush1.bf16.xpose.msra.mxu0 0
    %4320 = vmatprep.subr.bf16.mxu0 0
    %4321 = vmatpush1.bf16.xpose.msra.mxu0 0
    %4322 = vmatprep.subr.bf16.mxu0 0
    %4323 = vmatpush1.bf16.xpose.msra.mxu0 0
    %4324 = vmatprep.subr.bf16.mxu0 0
    %4325 = vmatpush1.bf16.xpose.msra.mxu0 0
    %4326 = vmatprep.subr.bf16.mxu0 0
    %4327 = vmatpush1.bf16.xpose.msra.mxu0 0
    %4328 = vmatprep.subr.bf16.mxu0 0
    %4329 = vmatpush1.bf16.xpose.msra.mxu0 0
    %4330 = vmatprep.subr.bf16.mxu0 0
    %4331 = vmatpush1.bf16.xpose.msra.mxu0 0
    %4332 = vmatprep.subr.bf16.mxu0 0
    %4333 = vmatpush1.bf16.xpose.msra.mxu0 0
    %4334 = vmatprep.subr.bf16.mxu0 0
    %4335 = vmatpush1.bf16.xpose.msra.mxu0 0
    %4336 = vmatprep.mubr.bf16.mxu0 0
    %4337 = vmatmul.mubr.bf16.gmra.mrb[0].mxu0 %v4269
    %v4338 = vpop.f32.mrb[0].mxu0
    %v4339 = vadd.f32 %v3956, %v4338
    %v4340 = vpop.f32.mrb[0].mxu0
    %v4341 = vpop.f32.mrb[0].mxu0
    %v4342 = vadd.f32 %v3957, %v4341
    %v4343 = vpop.f32.mrb[0].mxu0
    %4344 = vmatprep.mubr.bf16.mxu0 0
    %4345 = vmatmul.mubr.bf16.gmra.mrb[0].mxu0 %v4272
    %v4346 = vpop.f32.mrb[0].mxu0
    %v4347 = vadd.f32 %v3958, %v4346
    %v4348 = vpop.f32.mrb[0].mxu0
    %v4349 = vpop.f32.mrb[0].mxu0
    %v4350 = vadd.f32 %v3959, %v4349
    %v4351 = vpop.f32.mrb[0].mxu0
    %4352 = vmatprep.mubr.bf16.mxu0 0
    %4353 = vmatmul.mubr.bf16.gmra.mrb[0].mxu0 %v4275
    %v4354 = vpop.f32.mrb[0].mxu0
    %v4355 = vadd.f32 %v3960, %v4354
    %v4356 = vpop.f32.mrb[0].mxu0
    %v4357 = vpop.f32.mrb[0].mxu0
    %v4358 = vadd.f32 %v3961, %v4357
    %v4359 = vpop.f32.mrb[0].mxu0
    %4360 = vmatprep.mubr.bf16.mxu0 0
    %4361 = vmatmul.mubr.bf16.gmra.mrb[0].mxu0 %v4278
    %v4362 = vpop.f32.mrb[0].mxu0
    %v4363 = vadd.f32 %v3962, %v4362
    %v4364 = vpop.f32.mrb[0].mxu0
    %v4365 = vpop.f32.mrb[0].mxu0
    %v4366 = vadd.f32 %v3963, %v4365
    %v4367 = vpop.f32.mrb[0].mxu0
    %4368 = vmatprep.mubr.bf16.mxu0 0
    %4369 = vmatmul.mubr.bf16.gmra.mrb[0].mxu0 %v4281
    %v4370 = vpop.f32.mrb[0].mxu0
    %v4371 = vadd.f32 %v3964, %v4370
    %v4372 = vpop.f32.mrb[0].mxu0
    %v4373 = vpop.f32.mrb[0].mxu0
    %v4374 = vadd.f32 %v3965, %v4373
    %v4375 = vpop.f32.mrb[0].mxu0
    %4376 = vmatprep.mubr.bf16.mxu0 0
    %4377 = vmatmul.mubr.bf16.gmra.mrb[0].mxu0 %v4284
    %v4378 = vpop.f32.mrb[0].mxu0
    %v4379 = vadd.f32 %v3966, %v4378
    %v4380 = vpop.f32.mrb[0].mxu0
    %v4381 = vpop.f32.mrb[0].mxu0
    %v4382 = vadd.f32 %v3967, %v4381
    %v4383 = vpop.f32.mrb[0].mxu0
    %4384 = vdwg.mxu0
    %4391 = vrot.lane.b32.xlu0 %v3926, 120
    %v4392 = vpop.permute.xlu0 %4391
    %4393 = vrot.lane.b32.xlu0 %v3927, 120
    %v4394 = vpop.permute.xlu0 %4393
    %4395 = vrot.lane.b32.xlu0 %v3928, 120
    %v4396 = vpop.permute.xlu0 %4395
    %4397 = vrot.lane.b32.xlu0 %v3929, 120
    %v4398 = vpop.permute.xlu0 %4397
    %4399 = vrot.lane.b32.xlu0 %v3930, 120
    %v4400 = vpop.permute.xlu0 %4399
    %4401 = vrot.lane.b32.xlu0 %v3931, 120
    %v4402 = vpop.permute.xlu0 %4401
    %v4404 = vsel %vm910, %v3926, 0
    %v4407 = vsel %vm910, %v3927, 0
    %v4410 = vsel %vm910, %v3928, 0
    %v4413 = vsel %vm910, %v3929, 0
    %v4416 = vsel %vm910, %v3930, 0
    %v4419 = vsel %vm910, %v3931, 0
    %v4422 = vsel %vm910, %v4392, 0
    %v4425 = vsel %vm910, %v4394, 0
    %v4428 = vsel %vm910, %v4396, 0
    %v4431 = vsel %vm910, %v4398, 0
    %v4434 = vsel %vm910, %v4400, 0
    %v4437 = vsel %vm910, %v4402, 0
    %4439 = vmatprep.subr.bf16.mxu0 0
    %4440 = vmatpush1.bf16.xpose.msra.mxu0 %v4422
    %4441 = vmatprep.subr.bf16.mxu0 0
    %4442 = vmatpush1.bf16.xpose.msra.mxu0 %v4425
    %4443 = vmatprep.subr.bf16.mxu0 0
    %4444 = vmatpush1.bf16.xpose.msra.mxu0 %v4428
    %4445 = vmatprep.subr.bf16.mxu0 0
    %4446 = vmatpush1.bf16.xpose.msra.mxu0 %v4431
    %4447 = vmatprep.subr.bf16.mxu0 0
    %4448 = vmatpush1.bf16.xpose.msra.mxu0 %v4434
    %4449 = vmatprep.subr.bf16.mxu0 0
    %4450 = vmatpush1.bf16.xpose.msra.mxu0 %v4437
    %4451 = vmatprep.subr.bf16.mxu0 0
    %4452 = vmatpush1.bf16.xpose.msra.mxu0 0
    %4453 = vmatprep.subr.bf16.mxu0 0
    %4454 = vmatpush1.bf16.xpose.msra.mxu0 0
    %4455 = vmatprep.subr.bf16.mxu0 0
    %4456 = vmatpush1.bf16.xpose.msra.mxu0 0
    %4457 = vmatprep.subr.bf16.mxu0 0
    %4458 = vmatpush1.bf16.xpose.msra.mxu0 0
    %4459 = vmatprep.subr.bf16.mxu0 0
    %4460 = vmatpush1.bf16.xpose.msra.mxu0 0
    %4461 = vmatprep.subr.bf16.mxu0 0
    %4462 = vmatpush1.bf16.xpose.msra.mxu0 0
    %4463 = vmatprep.subr.bf16.mxu0 0
    %4464 = vmatpush1.bf16.xpose.msra.mxu0 0
    %4465 = vmatprep.subr.bf16.mxu0 0
    %4466 = vmatpush1.bf16.xpose.msra.mxu0 0
    %4467 = vmatprep.subr.bf16.mxu0 0
    %4468 = vmatpush1.bf16.xpose.msra.mxu0 0
    %4469 = vmatprep.subr.bf16.mxu0 0
    %4470 = vmatpush1.bf16.xpose.msra.mxu0 0
    %4471 = vmatprep.mubr.bf16.mxu0 0
    %4472 = vmatmul.mubr.bf16.gmra.mrb[0].mxu0 %v4404
    %v4473 = vpop.f32.mrb[0].mxu0
    %v4474 = vadd.f32 %v3968, %v4473
    %v4475 = vpop.f32.mrb[0].mxu0
    %v4476 = vpop.f32.mrb[0].mxu0
    %v4477 = vadd.f32 %v3969, %v4476
    %v4478 = vpop.f32.mrb[0].mxu0
    %4479 = vmatprep.mubr.bf16.mxu0 0
    %4480 = vmatmul.mubr.bf16.gmra.mrb[0].mxu0 %v4407
    %v4481 = vpop.f32.mrb[0].mxu0
    %v4482 = vadd.f32 %v3970, %v4481
    %v4483 = vpop.f32.mrb[0].mxu0
    %v4484 = vpop.f32.mrb[0].mxu0
    %v4485 = vadd.f32 %v3971, %v4484
    %v4486 = vpop.f32.mrb[0].mxu0
    %4487 = vmatprep.mubr.bf16.mxu0 0
    %4488 = vmatmul.mubr.bf16.gmra.mrb[0].mxu0 %v4410
    %v4489 = vpop.f32.mrb[0].mxu0
    %v4490 = vadd.f32 %v3972, %v4489
    %v4491 = vpop.f32.mrb[0].mxu0
    %v4492 = vpop.f32.mrb[0].mxu0
    %v4493 = vadd.f32 %v3973, %v4492
    %v4494 = vpop.f32.mrb[0].mxu0
    %4495 = vmatprep.mubr.bf16.mxu0 0
    %4496 = vmatmul.mubr.bf16.gmra.mrb[0].mxu0 %v4413
    %v4497 = vpop.f32.mrb[0].mxu0
    %v4498 = vadd.f32 %v3974, %v4497
    %v4499 = vpop.f32.mrb[0].mxu0
    %v4500 = vpop.f32.mrb[0].mxu0
    %v4501 = vadd.f32 %v3975, %v4500
    %v4502 = vpop.f32.mrb[0].mxu0
    %4503 = vmatprep.mubr.bf16.mxu0 0
    %4504 = vmatmul.mubr.bf16.gmra.mrb[0].mxu0 %v4416
    %v4505 = vpop.f32.mrb[0].mxu0
    %v4506 = vadd.f32 %v3976, %v4505
    %v4507 = vpop.f32.mrb[0].mxu0
    %v4508 = vpop.f32.mrb[0].mxu0
    %v4509 = vadd.f32 %v3977, %v4508
    %v4510 = vpop.f32.mrb[0].mxu0
    %4511 = vmatprep.mubr.bf16.mxu0 0
    %4512 = vmatmul.mubr.bf16.gmra.mrb[0].mxu0 %v4419
    %v4513 = vpop.f32.mrb[0].mxu0
    %v4514 = vadd.f32 %v3978, %v4513
    %v4515 = vpop.f32.mrb[0].mxu0
    %v4516 = vpop.f32.mrb[0].mxu0
    %v4517 = vadd.f32 %v3979, %v4516
    %v4518 = vpop.f32.mrb[0].mxu0
    %4519 = vdwg.mxu0
    %v4520 = vsel %vm1433, %v4069, -inf
    %4521 = vmax.xlane.f32.xlu0 %v4520
    %v4522 = vpop.xlane.xlu0 %4521
    %v4523 = vsel %vm1433, %v4072, -inf
    %4524 = vmax.xlane.f32.xlu0 %v4523
    %v4525 = vpop.xlane.xlu0 %4524
    %v4526 = vsel %vm1433, %v4077, -inf
    %4527 = vmax.xlane.f32.xlu0 %v4526
    %v4528 = vpop.xlane.xlu0 %4527
    %v4529 = vsel %vm1433, %v4080, -inf
    %4530 = vmax.xlane.f32.xlu0 %v4529
    %v4531 = vpop.xlane.xlu0 %4530
    %v4532 = vsel %vm1433, %v4085, -inf
    %4533 = vmax.xlane.f32.xlu0 %v4532
    %v4534 = vpop.xlane.xlu0 %4533
    %v4535 = vsel %vm1433, %v4088, -inf
    %4536 = vmax.xlane.f32.xlu0 %v4535
    %v4537 = vpop.xlane.xlu0 %4536
    %v4538 = vsel %vm1433, %v4093, -inf
    %4539 = vmax.xlane.f32.xlu0 %v4538
    %v4540 = vpop.xlane.xlu0 %4539
    %v4541 = vsel %vm1433, %v4096, -inf
    %4542 = vmax.xlane.f32.xlu0 %v4541
    %v4543 = vpop.xlane.xlu0 %4542
    %v4544 = vsel %vm1433, %v4101, -inf
    %4545 = vmax.xlane.f32.xlu0 %v4544
    %v4546 = vpop.xlane.xlu0 %4545
    %v4547 = vsel %vm1433, %v4104, -inf
    %4548 = vmax.xlane.f32.xlu0 %v4547
    %v4549 = vpop.xlane.xlu0 %4548
    %v4550 = vsel %vm1433, %v4109, -inf
    %4551 = vmax.xlane.f32.xlu0 %v4550
    %v4552 = vpop.xlane.xlu0 %4551
    %v4553 = vsel %vm1433, %v4112, -inf
    %4554 = vmax.xlane.f32.xlu0 %v4553
    %v4555 = vpop.xlane.xlu0 %4554
    %v4556 = vsel %vm1433, %v4204, -inf
    %4557 = vmax.xlane.f32.xlu0 %v4556
    %v4558 = vpop.xlane.xlu0 %4557
    %v4559 = vsel %vm1433, %v4207, -inf
    %4560 = vmax.xlane.f32.xlu0 %v4559
    %v4561 = vpop.xlane.xlu0 %4560
    %v4562 = vsel %vm1433, %v4212, -inf
    %4563 = vmax.xlane.f32.xlu0 %v4562
    %v4564 = vpop.xlane.xlu0 %4563
    %v4565 = vsel %vm1433, %v4215, -inf
    %4566 = vmax.xlane.f32.xlu0 %v4565
    %v4567 = vpop.xlane.xlu0 %4566
    %v4568 = vsel %vm1433, %v4220, -inf
    %4569 = vmax.xlane.f32.xlu0 %v4568
    %v4570 = vpop.xlane.xlu0 %4569
    %v4571 = vsel %vm1433, %v4223, -inf
    %4572 = vmax.xlane.f32.xlu0 %v4571
    %v4573 = vpop.xlane.xlu0 %4572
    %v4574 = vsel %vm1433, %v4228, -inf
    %4575 = vmax.xlane.f32.xlu0 %v4574
    %v4576 = vpop.xlane.xlu0 %4575
    %v4577 = vsel %vm1433, %v4231, -inf
    %4578 = vmax.xlane.f32.xlu0 %v4577
    %v4579 = vpop.xlane.xlu0 %4578
    %v4580 = vsel %vm1433, %v4236, -inf
    %4581 = vmax.xlane.f32.xlu0 %v4580
    %v4582 = vpop.xlane.xlu0 %4581
    %v4583 = vsel %vm1433, %v4239, -inf
    %4584 = vmax.xlane.f32.xlu0 %v4583
    %v4585 = vpop.xlane.xlu0 %4584
    %v4586 = vsel %vm1433, %v4244, -inf
    %4587 = vmax.xlane.f32.xlu0 %v4586
    %v4588 = vpop.xlane.xlu0 %4587
    %v4589 = vsel %vm1433, %v4247, -inf
    %4590 = vmax.xlane.f32.xlu0 %v4589
    %v4591 = vpop.xlane.xlu0 %4590
    %v4592 = vsel %vm1433, %v4339, -inf
    %4593 = vmax.xlane.f32.xlu0 %v4592
    %v4594 = vpop.xlane.xlu0 %4593
    %v4595 = vsel %vm1433, %v4342, -inf
    %4596 = vmax.xlane.f32.xlu0 %v4595
    %v4597 = vpop.xlane.xlu0 %4596
    %v4598 = vsel %vm1433, %v4347, -inf
    %4599 = vmax.xlane.f32.xlu0 %v4598
    %v4600 = vpop.xlane.xlu0 %4599
    %v4601 = vsel %vm1433, %v4350, -inf
    %4602 = vmax.xlane.f32.xlu0 %v4601
    %v4603 = vpop.xlane.xlu0 %4602
    %v4604 = vsel %vm1433, %v4355, -inf
    %4605 = vmax.xlane.f32.xlu0 %v4604
    %v4606 = vpop.xlane.xlu0 %4605
    %v4607 = vsel %vm1433, %v4358, -inf
    %4608 = vmax.xlane.f32.xlu0 %v4607
    %v4609 = vpop.xlane.xlu0 %4608
    %v4610 = vsel %vm1433, %v4363, -inf
    %4611 = vmax.xlane.f32.xlu0 %v4610
    %v4612 = vpop.xlane.xlu0 %4611
    %v4613 = vsel %vm1433, %v4366, -inf
    %4614 = vmax.xlane.f32.xlu0 %v4613
    %v4615 = vpop.xlane.xlu0 %4614
    %v4616 = vsel %vm1433, %v4371, -inf
    %4617 = vmax.xlane.f32.xlu0 %v4616
    %v4618 = vpop.xlane.xlu0 %4617
    %v4619 = vsel %vm1433, %v4374, -inf
    %4620 = vmax.xlane.f32.xlu0 %v4619
    %v4621 = vpop.xlane.xlu0 %4620
    %v4622 = vsel %vm1433, %v4379, -inf
    %4623 = vmax.xlane.f32.xlu0 %v4622
    %v4624 = vpop.xlane.xlu0 %4623
    %v4625 = vsel %vm1433, %v4382, -inf
    %4626 = vmax.xlane.f32.xlu0 %v4625
    %v4627 = vpop.xlane.xlu0 %4626
    %v4628 = vsel %vm1433, %v4474, -inf
    %4629 = vmax.xlane.f32.xlu0 %v4628
    %v4630 = vpop.xlane.xlu0 %4629
    %v4631 = vsel %vm1433, %v4477, -inf
    %4632 = vmax.xlane.f32.xlu0 %v4631
    %v4633 = vpop.xlane.xlu0 %4632
    %v4634 = vsel %vm1433, %v4482, -inf
    %4635 = vmax.xlane.f32.xlu0 %v4634
    %v4636 = vpop.xlane.xlu0 %4635
    %v4637 = vsel %vm1433, %v4485, -inf
    %4638 = vmax.xlane.f32.xlu0 %v4637
    %v4639 = vpop.xlane.xlu0 %4638
    %v4640 = vsel %vm1433, %v4490, -inf
    %4641 = vmax.xlane.f32.xlu0 %v4640
    %v4642 = vpop.xlane.xlu0 %4641
    %v4643 = vsel %vm1433, %v4493, -inf
    %4644 = vmax.xlane.f32.xlu0 %v4643
    %v4645 = vpop.xlane.xlu0 %4644
    %v4646 = vsel %vm1433, %v4498, -inf
    %4647 = vmax.xlane.f32.xlu0 %v4646
    %v4648 = vpop.xlane.xlu0 %4647
    %v4649 = vsel %vm1433, %v4501, -inf
    %4650 = vmax.xlane.f32.xlu0 %v4649
    %v4651 = vpop.xlane.xlu0 %4650
    %v4652 = vsel %vm1433, %v4506, -inf
    %4653 = vmax.xlane.f32.xlu0 %v4652
    %v4654 = vpop.xlane.xlu0 %4653
    %v4655 = vsel %vm1433, %v4509, -inf
    %4656 = vmax.xlane.f32.xlu0 %v4655
    %v4657 = vpop.xlane.xlu0 %4656
    %v4658 = vsel %vm1433, %v4514, -inf
    %4659 = vmax.xlane.f32.xlu0 %v4658
    %v4660 = vpop.xlane.xlu0 %4659
    %v4661 = vsel %vm1433, %v4517, -inf
    %4662 = vmax.xlane.f32.xlu0 %v4661
    %v4663 = vpop.xlane.xlu0 %4662
    %v4664 = vsub.f32 %v4069, %v4522
    %v4665 = vsub.f32 %v4072, %v4525
    %v4666 = vsub.f32 %v4077, %v4528
    %v4667 = vsub.f32 %v4080, %v4531
    %v4668 = vsub.f32 %v4085, %v4534
    %v4669 = vsub.f32 %v4088, %v4537
    %v4670 = vsub.f32 %v4093, %v4540
    %v4671 = vsub.f32 %v4096, %v4543
    %v4672 = vsub.f32 %v4101, %v4546
    %v4673 = vsub.f32 %v4104, %v4549
    %v4674 = vsub.f32 %v4109, %v4552
    %v4675 = vsub.f32 %v4112, %v4555
    %v4676 = vsub.f32 %v4204, %v4558
    %v4677 = vsub.f32 %v4207, %v4561
    %v4678 = vsub.f32 %v4212, %v4564
    %v4679 = vsub.f32 %v4215, %v4567
    %v4680 = vsub.f32 %v4220, %v4570
    %v4681 = vsub.f32 %v4223, %v4573
    %v4682 = vsub.f32 %v4228, %v4576
    %v4683 = vsub.f32 %v4231, %v4579
    %v4684 = vsub.f32 %v4236, %v4582
    %v4685 = vsub.f32 %v4239, %v4585
    %v4686 = vsub.f32 %v4244, %v4588
    %v4687 = vsub.f32 %v4247, %v4591
    %v4688 = vsub.f32 %v4339, %v4594
    %v4689 = vsub.f32 %v4342, %v4597
    %v4690 = vsub.f32 %v4347, %v4600
    %v4691 = vsub.f32 %v4350, %v4603
    %v4692 = vsub.f32 %v4355, %v4606
    %v4693 = vsub.f32 %v4358, %v4609
    %v4694 = vsub.f32 %v4363, %v4612
    %v4695 = vsub.f32 %v4366, %v4615
    %v4696 = vsub.f32 %v4371, %v4618
    %v4697 = vsub.f32 %v4374, %v4621
    %v4698 = vsub.f32 %v4379, %v4624
    %v4699 = vsub.f32 %v4382, %v4627
    %v4700 = vsub.f32 %v4474, %v4630
    %v4701 = vsub.f32 %v4477, %v4633
    %v4702 = vsub.f32 %v4482, %v4636
    %v4703 = vsub.f32 %v4485, %v4639
    %v4704 = vsub.f32 %v4490, %v4642
    %v4705 = vsub.f32 %v4493, %v4645
    %v4706 = vsub.f32 %v4498, %v4648
    %v4707 = vsub.f32 %v4501, %v4651
    %v4708 = vsub.f32 %v4506, %v4654
    %v4709 = vsub.f32 %v4509, %v4657
    %v4710 = vsub.f32 %v4514, %v4660
    %v4711 = vsub.f32 %v4517, %v4663
    %v4712 = vmul.f32 %v4664, 1.442695
    %v4713 = vpow.pop %v4712
    %v4714 = vmul.f32 %v4665, 1.442695
    %v4715 = vpow.pop %v4714
    %v4716 = vmul.f32 %v4666, 1.442695
    %v4717 = vpow.pop %v4716
    %v4718 = vmul.f32 %v4667, 1.442695
    %v4719 = vpow.pop %v4718
    %v4720 = vmul.f32 %v4668, 1.442695
    %v4721 = vpow.pop %v4720
    %v4722 = vmul.f32 %v4669, 1.442695
    %v4723 = vpow.pop %v4722
    %v4724 = vmul.f32 %v4670, 1.442695
    %v4725 = vpow.pop %v4724
    %v4726 = vmul.f32 %v4671, 1.442695
    %v4727 = vpow.pop %v4726
    %v4728 = vmul.f32 %v4672, 1.442695
    %v4729 = vpow.pop %v4728
    %v4730 = vmul.f32 %v4673, 1.442695
    %v4731 = vpow.pop %v4730
    %v4732 = vmul.f32 %v4674, 1.442695
    %v4733 = vpow.pop %v4732
    %v4734 = vmul.f32 %v4675, 1.442695
    %v4735 = vpow.pop %v4734
    %v4736 = vmul.f32 %v4676, 1.442695
    %v4737 = vpow.pop %v4736
    %v4738 = vmul.f32 %v4677, 1.442695
    %v4739 = vpow.pop %v4738
    %v4740 = vmul.f32 %v4678, 1.442695
    %v4741 = vpow.pop %v4740
    %v4742 = vmul.f32 %v4679, 1.442695
    %v4743 = vpow.pop %v4742
    %v4744 = vmul.f32 %v4680, 1.442695
    %v4745 = vpow.pop %v4744
    %v4746 = vmul.f32 %v4681, 1.442695
    %v4747 = vpow.pop %v4746
    %v4748 = vmul.f32 %v4682, 1.442695
    %v4749 = vpow.pop %v4748
    %v4750 = vmul.f32 %v4683, 1.442695
    %v4751 = vpow.pop %v4750
    %v4752 = vmul.f32 %v4684, 1.442695
    %v4753 = vpow.pop %v4752
    %v4754 = vmul.f32 %v4685, 1.442695
    %v4755 = vpow.pop %v4754
    %v4756 = vmul.f32 %v4686, 1.442695
    %v4757 = vpow.pop %v4756
    %v4758 = vmul.f32 %v4687, 1.442695
    %v4759 = vpow.pop %v4758
    %v4760 = vmul.f32 %v4688, 1.442695
    %v4761 = vpow.pop %v4760
    %v4762 = vmul.f32 %v4689, 1.442695
    %v4763 = vpow.pop %v4762
    %v4764 = vmul.f32 %v4690, 1.442695
    %v4765 = vpow.pop %v4764
    %v4766 = vmul.f32 %v4691, 1.442695
    %v4767 = vpow.pop %v4766
    %v4768 = vmul.f32 %v4692, 1.442695
    %v4769 = vpow.pop %v4768
    %v4770 = vmul.f32 %v4693, 1.442695
    %v4771 = vpow.pop %v4770
    %v4772 = vmul.f32 %v4694, 1.442695
    %v4773 = vpow.pop %v4772
    %v4774 = vmul.f32 %v4695, 1.442695
    %v4775 = vpow.pop %v4774
    %v4776 = vmul.f32 %v4696, 1.442695
    %v4777 = vpow.pop %v4776
    %v4778 = vmul.f32 %v4697, 1.442695
    %v4779 = vpow.pop %v4778
    %v4780 = vmul.f32 %v4698, 1.442695
    %v4781 = vpow.pop %v4780
    %v4782 = vmul.f32 %v4699, 1.442695
    %v4783 = vpow.pop %v4782
    %v4784 = vmul.f32 %v4700, 1.442695
    %v4785 = vpow.pop %v4784
    %v4786 = vmul.f32 %v4701, 1.442695
    %v4787 = vpow.pop %v4786
    %v4788 = vmul.f32 %v4702, 1.442695
    %v4789 = vpow.pop %v4788
    %v4790 = vmul.f32 %v4703, 1.442695
    %v4791 = vpow.pop %v4790
    %v4792 = vmul.f32 %v4704, 1.442695
    %v4793 = vpow.pop %v4792
    %v4794 = vmul.f32 %v4705, 1.442695
    %v4795 = vpow.pop %v4794
    %v4796 = vmul.f32 %v4706, 1.442695
    %v4797 = vpow.pop %v4796
    %v4798 = vmul.f32 %v4707, 1.442695
    %v4799 = vpow.pop %v4798
    %v4800 = vmul.f32 %v4708, 1.442695
    %v4801 = vpow.pop %v4800
    %v4802 = vmul.f32 %v4709, 1.442695
    %v4803 = vpow.pop %v4802
    %v4804 = vmul.f32 %v4710, 1.442695
    %v4805 = vpow.pop %v4804
    %v4806 = vmul.f32 %v4711, 1.442695
    %v4807 = vpow.pop %v4806
    %v4808 = vsel %vm1433, %v4713, 0.0
    %4809 = vadd.xlane.f32.xlu0 %v4808
    %v4810 = vpop.xlane.xlu0 %4809
    %v4811 = vsel %vm1433, %v4715, 0.0
    %4812 = vadd.xlane.f32.xlu0 %v4811
    %v4813 = vpop.xlane.xlu0 %4812
    %v4814 = vsel %vm1433, %v4717, 0.0
    %4815 = vadd.xlane.f32.xlu0 %v4814
    %v4816 = vpop.xlane.xlu0 %4815
    %v4817 = vsel %vm1433, %v4719, 0.0
    %4818 = vadd.xlane.f32.xlu0 %v4817
    %v4819 = vpop.xlane.xlu0 %4818
    %v4820 = vsel %vm1433, %v4721, 0.0
    %4821 = vadd.xlane.f32.xlu0 %v4820
    %v4822 = vpop.xlane.xlu0 %4821
    %v4823 = vsel %vm1433, %v4723, 0.0
    %4824 = vadd.xlane.f32.xlu0 %v4823
    %v4825 = vpop.xlane.xlu0 %4824
    %v4826 = vsel %vm1433, %v4725, 0.0
    %4827 = vadd.xlane.f32.xlu0 %v4826
    %v4828 = vpop.xlane.xlu0 %4827
    %v4829 = vsel %vm1433, %v4727, 0.0
    %4830 = vadd.xlane.f32.xlu0 %v4829
    %v4831 = vpop.xlane.xlu0 %4830
    %v4832 = vsel %vm1433, %v4729, 0.0
    %4833 = vadd.xlane.f32.xlu0 %v4832
    %v4834 = vpop.xlane.xlu0 %4833
    %v4835 = vsel %vm1433, %v4731, 0.0
    %4836 = vadd.xlane.f32.xlu0 %v4835
    %v4837 = vpop.xlane.xlu0 %4836
    %v4838 = vsel %vm1433, %v4733, 0.0
    %4839 = vadd.xlane.f32.xlu0 %v4838
    %v4840 = vpop.xlane.xlu0 %4839
    %v4841 = vsel %vm1433, %v4735, 0.0
    %4842 = vadd.xlane.f32.xlu0 %v4841
    %v4843 = vpop.xlane.xlu0 %4842
    %v4844 = vsel %vm1433, %v4737, 0.0
    %4845 = vadd.xlane.f32.xlu0 %v4844
    %v4846 = vpop.xlane.xlu0 %4845
    %v4847 = vsel %vm1433, %v4739, 0.0
    %4848 = vadd.xlane.f32.xlu0 %v4847
    %v4849 = vpop.xlane.xlu0 %4848
    %v4850 = vsel %vm1433, %v4741, 0.0
    %4851 = vadd.xlane.f32.xlu0 %v4850
    %v4852 = vpop.xlane.xlu0 %4851
    %v4853 = vsel %vm1433, %v4743, 0.0
    %4854 = vadd.xlane.f32.xlu0 %v4853
    %v4855 = vpop.xlane.xlu0 %4854
    %v4856 = vsel %vm1433, %v4745, 0.0
    %4857 = vadd.xlane.f32.xlu0 %v4856
    %v4858 = vpop.xlane.xlu0 %4857
    %v4859 = vsel %vm1433, %v4747, 0.0
    %4860 = vadd.xlane.f32.xlu0 %v4859
    %v4861 = vpop.xlane.xlu0 %4860
    %v4862 = vsel %vm1433, %v4749, 0.0
    %4863 = vadd.xlane.f32.xlu0 %v4862
    %v4864 = vpop.xlane.xlu0 %4863
    %v4865 = vsel %vm1433, %v4751, 0.0
    %4866 = vadd.xlane.f32.xlu0 %v4865
    %v4867 = vpop.xlane.xlu0 %4866
    %v4868 = vsel %vm1433, %v4753, 0.0
    %4869 = vadd.xlane.f32.xlu0 %v4868
    %v4870 = vpop.xlane.xlu0 %4869
    %v4871 = vsel %vm1433, %v4755, 0.0
    %4872 = vadd.xlane.f32.xlu0 %v4871
    %v4873 = vpop.xlane.xlu0 %4872
    %v4874 = vsel %vm1433, %v4757, 0.0
    %4875 = vadd.xlane.f32.xlu0 %v4874
    %v4876 = vpop.xlane.xlu0 %4875
    %v4877 = vsel %vm1433, %v4759, 0.0
    %4878 = vadd.xlane.f32.xlu0 %v4877
    %v4879 = vpop.xlane.xlu0 %4878
    %v4880 = vsel %vm1433, %v4761, 0.0
    %4881 = vadd.xlane.f32.xlu0 %v4880
    %v4882 = vpop.xlane.xlu0 %4881
    %v4883 = vsel %vm1433, %v4763, 0.0
    %4884 = vadd.xlane.f32.xlu0 %v4883
    %v4885 = vpop.xlane.xlu0 %4884
    %v4886 = vsel %vm1433, %v4765, 0.0
    %4887 = vadd.xlane.f32.xlu0 %v4886
    %v4888 = vpop.xlane.xlu0 %4887
    %v4889 = vsel %vm1433, %v4767, 0.0
    %4890 = vadd.xlane.f32.xlu0 %v4889
    %v4891 = vpop.xlane.xlu0 %4890
    %v4892 = vsel %vm1433, %v4769, 0.0
    %4893 = vadd.xlane.f32.xlu0 %v4892
    %v4894 = vpop.xlane.xlu0 %4893
    %v4895 = vsel %vm1433, %v4771, 0.0
    %4896 = vadd.xlane.f32.xlu0 %v4895
    %v4897 = vpop.xlane.xlu0 %4896
    %v4898 = vsel %vm1433, %v4773, 0.0
    %4899 = vadd.xlane.f32.xlu0 %v4898
    %v4900 = vpop.xlane.xlu0 %4899
    %v4901 = vsel %vm1433, %v4775, 0.0
    %4902 = vadd.xlane.f32.xlu0 %v4901
    %v4903 = vpop.xlane.xlu0 %4902
    %v4904 = vsel %vm1433, %v4777, 0.0
    %4905 = vadd.xlane.f32.xlu0 %v4904
    %v4906 = vpop.xlane.xlu0 %4905
    %v4907 = vsel %vm1433, %v4779, 0.0
    %4908 = vadd.xlane.f32.xlu0 %v4907
    %v4909 = vpop.xlane.xlu0 %4908
    %v4910 = vsel %vm1433, %v4781, 0.0
    %4911 = vadd.xlane.f32.xlu0 %v4910
    %v4912 = vpop.xlane.xlu0 %4911
    %v4913 = vsel %vm1433, %v4783, 0.0
    %4914 = vadd.xlane.f32.xlu0 %v4913
    %v4915 = vpop.xlane.xlu0 %4914
    %v4916 = vsel %vm1433, %v4785, 0.0
    %4917 = vadd.xlane.f32.xlu0 %v4916
    %v4918 = vpop.xlane.xlu0 %4917
    %v4919 = vsel %vm1433, %v4787, 0.0
    %4920 = vadd.xlane.f32.xlu0 %v4919
    %v4921 = vpop.xlane.xlu0 %4920
    %v4922 = vsel %vm1433, %v4789, 0.0
    %4923 = vadd.xlane.f32.xlu0 %v4922
    %v4924 = vpop.xlane.xlu0 %4923
    %v4925 = vsel %vm1433, %v4791, 0.0
    %4926 = vadd.xlane.f32.xlu0 %v4925
    %v4927 = vpop.xlane.xlu0 %4926
    %v4928 = vsel %vm1433, %v4793, 0.0
    %4929 = vadd.xlane.f32.xlu0 %v4928
    %v4930 = vpop.xlane.xlu0 %4929
    %v4931 = vsel %vm1433, %v4795, 0.0
    %4932 = vadd.xlane.f32.xlu0 %v4931
    %v4933 = vpop.xlane.xlu0 %4932
    %v4934 = vsel %vm1433, %v4797, 0.0
    %4935 = vadd.xlane.f32.xlu0 %v4934
    %v4936 = vpop.xlane.xlu0 %4935
    %v4937 = vsel %vm1433, %v4799, 0.0
    %4938 = vadd.xlane.f32.xlu0 %v4937
    %v4939 = vpop.xlane.xlu0 %4938
    %v4940 = vsel %vm1433, %v4801, 0.0
    %4941 = vadd.xlane.f32.xlu0 %v4940
    %v4942 = vpop.xlane.xlu0 %4941
    %v4943 = vsel %vm1433, %v4803, 0.0
    %4944 = vadd.xlane.f32.xlu0 %v4943
    %v4945 = vpop.xlane.xlu0 %4944
    %v4946 = vsel %vm1433, %v4805, 0.0
    %4947 = vadd.xlane.f32.xlu0 %v4946
    %v4948 = vpop.xlane.xlu0 %4947
    %v4949 = vsel %vm1433, %v4807, 0.0
    %4950 = vadd.xlane.f32.xlu0 %v4949
    %v4951 = vpop.xlane.xlu0 %4950
    %v4952 = vrcp.pop %v4810
    %v4953 = vmul.f32 %v4713, %v4952
    %v4954 = vrcp.pop %v4813
    %v4955 = vmul.f32 %v4715, %v4954
    %v4956 = vrcp.pop %v4816
    %v4957 = vmul.f32 %v4717, %v4956
    %v4958 = vrcp.pop %v4819
    %v4959 = vmul.f32 %v4719, %v4958
    %v4960 = vrcp.pop %v4822
    %v4961 = vmul.f32 %v4721, %v4960
    %v4962 = vrcp.pop %v4825
    %v4963 = vmul.f32 %v4723, %v4962
    %v4964 = vrcp.pop %v4828
    %v4965 = vmul.f32 %v4725, %v4964
    %v4966 = vrcp.pop %v4831
    %v4967 = vmul.f32 %v4727, %v4966
    %v4968 = vrcp.pop %v4834
    %v4969 = vmul.f32 %v4729, %v4968
    %v4970 = vrcp.pop %v4837
    %v4971 = vmul.f32 %v4731, %v4970
    %v4972 = vrcp.pop %v4840
    %v4973 = vmul.f32 %v4733, %v4972
    %v4974 = vrcp.pop %v4843
    %v4975 = vmul.f32 %v4735, %v4974
    %v4976 = vrcp.pop %v4846
    %v4977 = vmul.f32 %v4737, %v4976
    %v4978 = vrcp.pop %v4849
    %v4979 = vmul.f32 %v4739, %v4978
    %v4980 = vrcp.pop %v4852
    %v4981 = vmul.f32 %v4741, %v4980
    %v4982 = vrcp.pop %v4855
    %v4983 = vmul.f32 %v4743, %v4982
    %v4984 = vrcp.pop %v4858
    %v4985 = vmul.f32 %v4745, %v4984
    %v4986 = vrcp.pop %v4861
    %v4987 = vmul.f32 %v4747, %v4986
    %v4988 = vrcp.pop %v4864
    %v4989 = vmul.f32 %v4749, %v4988
    %v4990 = vrcp.pop %v4867
    %v4991 = vmul.f32 %v4751, %v4990
    %v4992 = vrcp.pop %v4870
    %v4993 = vmul.f32 %v4753, %v4992
    %v4994 = vrcp.pop %v4873
    %v4995 = vmul.f32 %v4755, %v4994
    %v4996 = vrcp.pop %v4876
    %v4997 = vmul.f32 %v4757, %v4996
    %v4998 = vrcp.pop %v4879
    %v4999 = vmul.f32 %v4759, %v4998
    %v5000 = vrcp.pop %v4882
    %v5001 = vmul.f32 %v4761, %v5000
    %v5002 = vrcp.pop %v4885
    %v5003 = vmul.f32 %v4763, %v5002
    %v5004 = vrcp.pop %v4888
    %v5005 = vmul.f32 %v4765, %v5004
    %v5006 = vrcp.pop %v4891
    %v5007 = vmul.f32 %v4767, %v5006
    %v5008 = vrcp.pop %v4894
    %v5009 = vmul.f32 %v4769, %v5008
    %v5010 = vrcp.pop %v4897
    %v5011 = vmul.f32 %v4771, %v5010
    %v5012 = vrcp.pop %v4900
    %v5013 = vmul.f32 %v4773, %v5012
    %v5014 = vrcp.pop %v4903
    %v5015 = vmul.f32 %v4775, %v5014
    %v5016 = vrcp.pop %v4906
    %v5017 = vmul.f32 %v4777, %v5016
    %v5018 = vrcp.pop %v4909
    %v5019 = vmul.f32 %v4779, %v5018
    %v5020 = vrcp.pop %v4912
    %v5021 = vmul.f32 %v4781, %v5020
    %v5022 = vrcp.pop %v4915
    %v5023 = vmul.f32 %v4783, %v5022
    %v5024 = vrcp.pop %v4918
    %v5025 = vmul.f32 %v4785, %v5024
    %v5026 = vrcp.pop %v4921
    %v5027 = vmul.f32 %v4787, %v5026
    %v5028 = vrcp.pop %v4924
    %v5029 = vmul.f32 %v4789, %v5028
    %v5030 = vrcp.pop %v4927
    %v5031 = vmul.f32 %v4791, %v5030
    %v5032 = vrcp.pop %v4930
    %v5033 = vmul.f32 %v4793, %v5032
    %v5034 = vrcp.pop %v4933
    %v5035 = vmul.f32 %v4795, %v5034
    %v5036 = vrcp.pop %v4936
    %v5037 = vmul.f32 %v4797, %v5036
    %v5038 = vrcp.pop %v4939
    %v5039 = vmul.f32 %v4799, %v5038
    %v5040 = vrcp.pop %v4942
    %v5041 = vmul.f32 %v4801, %v5040
    %v5042 = vrcp.pop %v4945
    %v5043 = vmul.f32 %v4803, %v5042
    %v5044 = vrcp.pop %v4948
    %v5045 = vmul.f32 %v4805, %v5044
    %v5046 = vrcp.pop %v4951
    %v5047 = vmul.f32 %v4807, %v5046
    %v5048 = vpack.c.bf16 %v4955, %v4953
    %v5049 = vpack.c.bf16 %v4959, %v4957
    %v5050 = vpack.c.bf16 %v4963, %v4961
    %v5051 = vpack.c.bf16 %v4967, %v4965
    %v5052 = vpack.c.bf16 %v4971, %v4969
    %v5053 = vpack.c.bf16 %v4975, %v4973
    %v5054 = vpack.c.bf16 %v4979, %v4977
    %v5055 = vpack.c.bf16 %v4983, %v4981
    %v5056 = vpack.c.bf16 %v4987, %v4985
    %v5057 = vpack.c.bf16 %v4991, %v4989
    %v5058 = vpack.c.bf16 %v4995, %v4993
    %v5059 = vpack.c.bf16 %v4999, %v4997
    %v5060 = vpack.c.bf16 %v5003, %v5001
    %v5061 = vpack.c.bf16 %v5007, %v5005
    %v5062 = vpack.c.bf16 %v5011, %v5009
    %v5063 = vpack.c.bf16 %v5015, %v5013
    %v5064 = vpack.c.bf16 %v5019, %v5017
    %v5065 = vpack.c.bf16 %v5023, %v5021
    %v5066 = vpack.c.bf16 %v5027, %v5025
    %v5067 = vpack.c.bf16 %v5031, %v5029
    %v5068 = vpack.c.bf16 %v5035, %v5033
    %v5069 = vpack.c.bf16 %v5039, %v5037
    %v5070 = vpack.c.bf16 %v5043, %v5041
    %v5071 = vpack.c.bf16 %v5047, %v5045
    %5072 = vrot.lane.b32.xlu0 %v3908, 112
    %v5073 = vpop.permute.xlu0 %5072
    %5074 = vrot.lane.b32.xlu0 %v3909, 112
    %v5075 = vpop.permute.xlu0 %5074
    %5076 = vrot.lane.b32.xlu0 %v3910, 112
    %v5077 = vpop.permute.xlu0 %5076
    %5078 = vrot.lane.b32.xlu0 %v3911, 112
    %v5079 = vpop.permute.xlu0 %5078
    %5080 = vrot.lane.b32.xlu0 %v3912, 112
    %v5081 = vpop.permute.xlu0 %5080
    %5082 = vrot.lane.b32.xlu0 %v3913, 112
    %v5083 = vpop.permute.xlu0 %5082
    %v5091 = vsel %vm1433, %v5048, 0
    %v5094 = vsel %vm1433, %v5049, 0
    %v5097 = vsel %vm1433, %v5050, 0
    %v5100 = vsel %vm1433, %v5051, 0
    %v5103 = vsel %vm1433, %v5052, 0
    %v5106 = vsel %vm1433, %v5053, 0
    %5108 = vmatprep.subr.bf16.mxu0 0
    %5109 = vmatpush1.bf16.msra.mxu0 %v5073
    %5110 = vmatprep.subr.bf16.mxu0 0
    %5111 = vmatpush1.bf16.msra.mxu0 %v5075
    %5112 = vmatprep.subr.bf16.mxu0 0
    %5113 = vmatpush1.bf16.msra.mxu0 %v5077
    %5114 = vmatprep.subr.bf16.mxu0 0
    %5115 = vmatpush1.bf16.msra.mxu0 %v5079
    %5116 = vmatprep.subr.bf16.mxu0 0
    %5117 = vmatpush1.bf16.msra.mxu0 %v5081
    %5118 = vmatprep.subr.bf16.mxu0 0
    %5119 = vmatpush1.bf16.msra.mxu0 %v5083
    %5120 = vmatprep.subr.bf16.mxu0 0
    %5121 = vmatpush1.bf16.msra.mxu0 0
    %5122 = vmatprep.subr.bf16.mxu0 0
    %5123 = vmatpush1.bf16.msra.mxu0 0
    %5124 = vmatprep.subr.bf16.mxu0 0
    %5125 = vmatpush1.bf16.msra.mxu0 0
    %5126 = vmatprep.subr.bf16.mxu0 0
    %5127 = vmatpush1.bf16.msra.mxu0 0
    %5128 = vmatprep.subr.bf16.mxu0 0
    %5129 = vmatpush1.bf16.msra.mxu0 0
    %5130 = vmatprep.subr.bf16.mxu0 0
    %5131 = vmatpush1.bf16.msra.mxu0 0
    %5132 = vmatprep.subr.bf16.mxu0 0
    %5133 = vmatpush1.bf16.msra.mxu0 0
    %5134 = vmatprep.subr.bf16.mxu0 0
    %5135 = vmatpush1.bf16.msra.mxu0 0
    %5136 = vmatprep.subr.bf16.mxu0 0
    %5137 = vmatpush1.bf16.msra.mxu0 0
    %5138 = vmatprep.subr.bf16.mxu0 0
    %5139 = vmatpush1.bf16.msra.mxu0 0
    %5140 = vmatprep.mubr.bf16.mxu0 0
    %5141 = vmatmul.mubr.bf16.gmra.mrb[0].mxu0 %v5091
    %v5142 = vpop.f32.mrb[0].mxu0
    %v5143 = vadd.f32 0.0, %v5142
    %v5144 = vpop.f32.mrb[0].mxu0
    %v5145 = vpop.f32.mrb[0].mxu0
    %v5146 = vadd.f32 0.0, %v5145
    %v5147 = vpop.f32.mrb[0].mxu0
    %5148 = vmatprep.mubr.bf16.mxu0 0
    %5149 = vmatmul.mubr.bf16.gmra.mrb[0].mxu0 %v5094
    %v5150 = vpop.f32.mrb[0].mxu0
    %v5151 = vadd.f32 0.0, %v5150
    %v5152 = vpop.f32.mrb[0].mxu0
    %v5153 = vpop.f32.mrb[0].mxu0
    %v5154 = vadd.f32 0.0, %v5153
    %v5155 = vpop.f32.mrb[0].mxu0
    %5156 = vmatprep.mubr.bf16.mxu0 0
    %5157 = vmatmul.mubr.bf16.gmra.mrb[0].mxu0 %v5097
    %v5158 = vpop.f32.mrb[0].mxu0
    %v5159 = vadd.f32 0.0, %v5158
    %v5160 = vpop.f32.mrb[0].mxu0
    %v5161 = vpop.f32.mrb[0].mxu0
    %v5162 = vadd.f32 0.0, %v5161
    %v5163 = vpop.f32.mrb[0].mxu0
    %5164 = vmatprep.mubr.bf16.mxu0 0
    %5165 = vmatmul.mubr.bf16.gmra.mrb[0].mxu0 %v5100
    %v5166 = vpop.f32.mrb[0].mxu0
    %v5167 = vadd.f32 0.0, %v5166
    %v5168 = vpop.f32.mrb[0].mxu0
    %v5169 = vpop.f32.mrb[0].mxu0
    %v5170 = vadd.f32 0.0, %v5169
    %v5171 = vpop.f32.mrb[0].mxu0
    %5172 = vmatprep.mubr.bf16.mxu0 0
    %5173 = vmatmul.mubr.bf16.gmra.mrb[0].mxu0 %v5103
    %v5174 = vpop.f32.mrb[0].mxu0
    %v5175 = vadd.f32 0.0, %v5174
    %v5176 = vpop.f32.mrb[0].mxu0
    %v5177 = vpop.f32.mrb[0].mxu0
    %v5178 = vadd.f32 0.0, %v5177
    %v5179 = vpop.f32.mrb[0].mxu0
    %5180 = vmatprep.mubr.bf16.mxu0 0
    %5181 = vmatmul.mubr.bf16.gmra.mrb[0].mxu0 %v5106
    %v5182 = vpop.f32.mrb[0].mxu0
    %v5183 = vadd.f32 0.0, %v5182
    %v5184 = vpop.f32.mrb[0].mxu0
    %v5185 = vpop.f32.mrb[0].mxu0
    %v5186 = vadd.f32 0.0, %v5185
    %v5187 = vpop.f32.mrb[0].mxu0
    %5188 = vdwg.mxu0
    %5189 = vrot.lane.b32.xlu0 %v3914, 112
    %v5190 = vpop.permute.xlu0 %5189
    %5191 = vrot.lane.b32.xlu0 %v3915, 112
    %v5192 = vpop.permute.xlu0 %5191
    %5193 = vrot.lane.b32.xlu0 %v3916, 112
    %v5194 = vpop.permute.xlu0 %5193
    %5195 = vrot.lane.b32.xlu0 %v3917, 112
    %v5196 = vpop.permute.xlu0 %5195
    %5197 = vrot.lane.b32.xlu0 %v3918, 112
    %v5198 = vpop.permute.xlu0 %5197
    %5199 = vrot.lane.b32.xlu0 %v3919, 112
    %v5200 = vpop.permute.xlu0 %5199
    %v5208 = vsel %vm1433, %v5054, 0
    %v5211 = vsel %vm1433, %v5055, 0
    %v5214 = vsel %vm1433, %v5056, 0
    %v5217 = vsel %vm1433, %v5057, 0
    %v5220 = vsel %vm1433, %v5058, 0
    %v5223 = vsel %vm1433, %v5059, 0
    %5225 = vmatprep.subr.bf16.mxu0 0
    %5226 = vmatpush1.bf16.msra.mxu0 %v5190
    %5227 = vmatprep.subr.bf16.mxu0 0
    %5228 = vmatpush1.bf16.msra.mxu0 %v5192
    %5229 = vmatprep.subr.bf16.mxu0 0
    %5230 = vmatpush1.bf16.msra.mxu0 %v5194
    %5231 = vmatprep.subr.bf16.mxu0 0
    %5232 = vmatpush1.bf16.msra.mxu0 %v5196
    %5233 = vmatprep.subr.bf16.mxu0 0
    %5234 = vmatpush1.bf16.msra.mxu0 %v5198
    %5235 = vmatprep.subr.bf16.mxu0 0
    %5236 = vmatpush1.bf16.msra.mxu0 %v5200
    %5237 = vmatprep.subr.bf16.mxu0 0
    %5238 = vmatpush1.bf16.msra.mxu0 0
    %5239 = vmatprep.subr.bf16.mxu0 0
    %5240 = vmatpush1.bf16.msra.mxu0 0
    %5241 = vmatprep.subr.bf16.mxu0 0
    %5242 = vmatpush1.bf16.msra.mxu0 0
    %5243 = vmatprep.subr.bf16.mxu0 0
    %5244 = vmatpush1.bf16.msra.mxu0 0
    %5245 = vmatprep.subr.bf16.mxu0 0
    %5246 = vmatpush1.bf16.msra.mxu0 0
    %5247 = vmatprep.subr.bf16.mxu0 0
    %5248 = vmatpush1.bf16.msra.mxu0 0
    %5249 = vmatprep.subr.bf16.mxu0 0
    %5250 = vmatpush1.bf16.msra.mxu0 0
    %5251 = vmatprep.subr.bf16.mxu0 0
    %5252 = vmatpush1.bf16.msra.mxu0 0
    %5253 = vmatprep.subr.bf16.mxu0 0
    %5254 = vmatpush1.bf16.msra.mxu0 0
    %5255 = vmatprep.subr.bf16.mxu0 0
    %5256 = vmatpush1.bf16.msra.mxu0 0
    %5257 = vmatprep.mubr.bf16.mxu0 0
    %5258 = vmatmul.mubr.bf16.gmra.mrb[0].mxu0 %v5208
    %v5259 = vpop.f32.mrb[0].mxu0
    %v5260 = vadd.f32 0.0, %v5259
    %v5261 = vpop.f32.mrb[0].mxu0
    %v5262 = vpop.f32.mrb[0].mxu0
    %v5263 = vadd.f32 0.0, %v5262
    %v5264 = vpop.f32.mrb[0].mxu0
    %5265 = vmatprep.mubr.bf16.mxu0 0
    %5266 = vmatmul.mubr.bf16.gmra.mrb[0].mxu0 %v5211
    %v5267 = vpop.f32.mrb[0].mxu0
    %v5268 = vadd.f32 0.0, %v5267
    %v5269 = vpop.f32.mrb[0].mxu0
    %v5270 = vpop.f32.mrb[0].mxu0
    %v5271 = vadd.f32 0.0, %v5270
    %v5272 = vpop.f32.mrb[0].mxu0
    %5273 = vmatprep.mubr.bf16.mxu0 0
    %5274 = vmatmul.mubr.bf16.gmra.mrb[0].mxu0 %v5214
    %v5275 = vpop.f32.mrb[0].mxu0
    %v5276 = vadd.f32 0.0, %v5275
    %v5277 = vpop.f32.mrb[0].mxu0
    %v5278 = vpop.f32.mrb[0].mxu0
    %v5279 = vadd.f32 0.0, %v5278
    %v5280 = vpop.f32.mrb[0].mxu0
    %5281 = vmatprep.mubr.bf16.mxu0 0
    %5282 = vmatmul.mubr.bf16.gmra.mrb[0].mxu0 %v5217
    %v5283 = vpop.f32.mrb[0].mxu0
    %v5284 = vadd.f32 0.0, %v5283
    %v5285 = vpop.f32.mrb[0].mxu0
    %v5286 = vpop.f32.mrb[0].mxu0
    %v5287 = vadd.f32 0.0, %v5286
    %v5288 = vpop.f32.mrb[0].mxu0
    %5289 = vmatprep.mubr.bf16.mxu0 0
    %5290 = vmatmul.mubr.bf16.gmra.mrb[0].mxu0 %v5220
    %v5291 = vpop.f32.mrb[0].mxu0
    %v5292 = vadd.f32 0.0, %v5291
    %v5293 = vpop.f32.mrb[0].mxu0
    %v5294 = vpop.f32.mrb[0].mxu0
    %v5295 = vadd.f32 0.0, %v5294
    %v5296 = vpop.f32.mrb[0].mxu0
    %5297 = vmatprep.mubr.bf16.mxu0 0
    %5298 = vmatmul.mubr.bf16.gmra.mrb[0].mxu0 %v5223
    %v5299 = vpop.f32.mrb[0].mxu0
    %v5300 = vadd.f32 0.0, %v5299
    %v5301 = vpop.f32.mrb[0].mxu0
    %v5302 = vpop.f32.mrb[0].mxu0
    %v5303 = vadd.f32 0.0, %v5302
    %v5304 = vpop.f32.mrb[0].mxu0
    %5305 = vdwg.mxu0
    %5306 = vrot.lane.b32.xlu0 %v3920, 112
    %v5307 = vpop.permute.xlu0 %5306
    %5308 = vrot.lane.b32.xlu0 %v3921, 112
    %v5309 = vpop.permute.xlu0 %5308
    %5310 = vrot.lane.b32.xlu0 %v3922, 112
    %v5311 = vpop.permute.xlu0 %5310
    %5312 = vrot.lane.b32.xlu0 %v3923, 112
    %v5313 = vpop.permute.xlu0 %5312
    %5314 = vrot.lane.b32.xlu0 %v3924, 112
    %v5315 = vpop.permute.xlu0 %5314
    %5316 = vrot.lane.b32.xlu0 %v3925, 112
    %v5317 = vpop.permute.xlu0 %5316
    %v5325 = vsel %vm1433, %v5060, 0
    %v5328 = vsel %vm1433, %v5061, 0
    %v5331 = vsel %vm1433, %v5062, 0
    %v5334 = vsel %vm1433, %v5063, 0
    %v5337 = vsel %vm1433, %v5064, 0
    %v5340 = vsel %vm1433, %v5065, 0
    %5342 = vmatprep.subr.bf16.mxu0 0
    %5343 = vmatpush1.bf16.msra.mxu0 %v5307
    %5344 = vmatprep.subr.bf16.mxu0 0
    %5345 = vmatpush1.bf16.msra.mxu0 %v5309
    %5346 = vmatprep.subr.bf16.mxu0 0
    %5347 = vmatpush1.bf16.msra.mxu0 %v5311
    %5348 = vmatprep.subr.bf16.mxu0 0
    %5349 = vmatpush1.bf16.msra.mxu0 %v5313
    %5350 = vmatprep.subr.bf16.mxu0 0
    %5351 = vmatpush1.bf16.msra.mxu0 %v5315
    %5352 = vmatprep.subr.bf16.mxu0 0
    %5353 = vmatpush1.bf16.msra.mxu0 %v5317
    %5354 = vmatprep.subr.bf16.mxu0 0
    %5355 = vmatpush1.bf16.msra.mxu0 0
    %5356 = vmatprep.subr.bf16.mxu0 0
    %5357 = vmatpush1.bf16.msra.mxu0 0
    %5358 = vmatprep.subr.bf16.mxu0 0
    %5359 = vmatpush1.bf16.msra.mxu0 0
    %5360 = vmatprep.subr.bf16.mxu0 0
    %5361 = vmatpush1.bf16.msra.mxu0 0
    %5362 = vmatprep.subr.bf16.mxu0 0
    %5363 = vmatpush1.bf16.msra.mxu0 0
    %5364 = vmatprep.subr.bf16.mxu0 0
    %5365 = vmatpush1.bf16.msra.mxu0 0
    %5366 = vmatprep.subr.bf16.mxu0 0
    %5367 = vmatpush1.bf16.msra.mxu0 0
    %5368 = vmatprep.subr.bf16.mxu0 0
    %5369 = vmatpush1.bf16.msra.mxu0 0
    %5370 = vmatprep.subr.bf16.mxu0 0
    %5371 = vmatpush1.bf16.msra.mxu0 0
    %5372 = vmatprep.subr.bf16.mxu0 0
    %5373 = vmatpush1.bf16.msra.mxu0 0
    %5374 = vmatprep.mubr.bf16.mxu0 0
    %5375 = vmatmul.mubr.bf16.gmra.mrb[0].mxu0 %v5325
    %v5376 = vpop.f32.mrb[0].mxu0
    %v5377 = vadd.f32 0.0, %v5376
    %v5378 = vpop.f32.mrb[0].mxu0
    %v5379 = vpop.f32.mrb[0].mxu0
    %v5380 = vadd.f32 0.0, %v5379
    %v5381 = vpop.f32.mrb[0].mxu0
    %5382 = vmatprep.mubr.bf16.mxu0 0
    %5383 = vmatmul.mubr.bf16.gmra.mrb[0].mxu0 %v5328
    %v5384 = vpop.f32.mrb[0].mxu0
    %v5385 = vadd.f32 0.0, %v5384
    %v5386 = vpop.f32.mrb[0].mxu0
    %v5387 = vpop.f32.mrb[0].mxu0
    %v5388 = vadd.f32 0.0, %v5387
    %v5389 = vpop.f32.mrb[0].mxu0
    %5390 = vmatprep.mubr.bf16.mxu0 0
    %5391 = vmatmul.mubr.bf16.gmra.mrb[0].mxu0 %v5331
    %v5392 = vpop.f32.mrb[0].mxu0
    %v5393 = vadd.f32 0.0, %v5392
    %v5394 = vpop.f32.mrb[0].mxu0
    %v5395 = vpop.f32.mrb[0].mxu0
    %v5396 = vadd.f32 0.0, %v5395
    %v5397 = vpop.f32.mrb[0].mxu0
    %5398 = vmatprep.mubr.bf16.mxu0 0
    %5399 = vmatmul.mubr.bf16.gmra.mrb[0].mxu0 %v5334
    %v5400 = vpop.f32.mrb[0].mxu0
    %v5401 = vadd.f32 0.0, %v5400
    %v5402 = vpop.f32.mrb[0].mxu0
    %v5403 = vpop.f32.mrb[0].mxu0
    %v5404 = vadd.f32 0.0, %v5403
    %v5405 = vpop.f32.mrb[0].mxu0
    %5406 = vmatprep.mubr.bf16.mxu0 0
    %5407 = vmatmul.mubr.bf16.gmra.mrb[0].mxu0 %v5337
    %v5408 = vpop.f32.mrb[0].mxu0
    %v5409 = vadd.f32 0.0, %v5408
    %v5410 = vpop.f32.mrb[0].mxu0
    %v5411 = vpop.f32.mrb[0].mxu0
    %v5412 = vadd.f32 0.0, %v5411
    %v5413 = vpop.f32.mrb[0].mxu0
    %5414 = vmatprep.mubr.bf16.mxu0 0
    %5415 = vmatmul.mubr.bf16.gmra.mrb[0].mxu0 %v5340
    %v5416 = vpop.f32.mrb[0].mxu0
    %v5417 = vadd.f32 0.0, %v5416
    %v5418 = vpop.f32.mrb[0].mxu0
    %v5419 = vpop.f32.mrb[0].mxu0
    %v5420 = vadd.f32 0.0, %v5419
    %v5421 = vpop.f32.mrb[0].mxu0
    %5422 = vdwg.mxu0
    %5423 = vrot.lane.b32.xlu0 %v3926, 112
    %v5424 = vpop.permute.xlu0 %5423
    %5425 = vrot.lane.b32.xlu0 %v3927, 112
    %v5426 = vpop.permute.xlu0 %5425
    %5427 = vrot.lane.b32.xlu0 %v3928, 112
    %v5428 = vpop.permute.xlu0 %5427
    %5429 = vrot.lane.b32.xlu0 %v3929, 112
    %v5430 = vpop.permute.xlu0 %5429
    %5431 = vrot.lane.b32.xlu0 %v3930, 112
    %v5432 = vpop.permute.xlu0 %5431
    %5433 = vrot.lane.b32.xlu0 %v3931, 112
    %v5434 = vpop.permute.xlu0 %5433
    %v5442 = vsel %vm1433, %v5066, 0
    %v5445 = vsel %vm1433, %v5067, 0
    %v5448 = vsel %vm1433, %v5068, 0
    %v5451 = vsel %vm1433, %v5069, 0
    %v5454 = vsel %vm1433, %v5070, 0
    %v5457 = vsel %vm1433, %v5071, 0
    %5459 = vmatprep.subr.bf16.mxu0 0
    %5460 = vmatpush1.bf16.msra.mxu0 %v5424
    %5461 = vmatprep.subr.bf16.mxu0 0
    %5462 = vmatpush1.bf16.msra.mxu0 %v5426
    %5463 = vmatprep.subr.bf16.mxu0 0
    %5464 = vmatpush1.bf16.msra.mxu0 %v5428
    %5465 = vmatprep.subr.bf16.mxu0 0
    %5466 = vmatpush1.bf16.msra.mxu0 %v5430
    %5467 = vmatprep.subr.bf16.mxu0 0
    %5468 = vmatpush1.bf16.msra.mxu0 %v5432
    %5469 = vmatprep.subr.bf16.mxu0 0
    %5470 = vmatpush1.bf16.msra.mxu0 %v5434
    %5471 = vmatprep.subr.bf16.mxu0 0
    %5472 = vmatpush1.bf16.msra.mxu0 0
    %5473 = vmatprep.subr.bf16.mxu0 0
    %5474 = vmatpush1.bf16.msra.mxu0 0
    %5475 = vmatprep.subr.bf16.mxu0 0
    %5476 = vmatpush1.bf16.msra.mxu0 0
    %5477 = vmatprep.subr.bf16.mxu0 0
    %5478 = vmatpush1.bf16.msra.mxu0 0
    %5479 = vmatprep.subr.bf16.mxu0 0
    %5480 = vmatpush1.bf16.msra.mxu0 0
    %5481 = vmatprep.subr.bf16.mxu0 0
    %5482 = vmatpush1.bf16.msra.mxu0 0
    %5483 = vmatprep.subr.bf16.mxu0 0
    %5484 = vmatpush1.bf16.msra.mxu0 0
    %5485 = vmatprep.subr.bf16.mxu0 0
    %5486 = vmatpush1.bf16.msra.mxu0 0
    %5487 = vmatprep.subr.bf16.mxu0 0
    %5488 = vmatpush1.bf16.msra.mxu0 0
    %5489 = vmatprep.subr.bf16.mxu0 0
    %5490 = vmatpush1.bf16.msra.mxu0 0
    %5491 = vmatprep.mubr.bf16.mxu0 0
    %5492 = vmatmul.mubr.bf16.gmra.mrb[0].mxu0 %v5442
    %v5493 = vpop.f32.mrb[0].mxu0
    %v5494 = vadd.f32 0.0, %v5493
    %v5495 = vpop.f32.mrb[0].mxu0
    %v5496 = vpop.f32.mrb[0].mxu0
    %v5497 = vadd.f32 0.0, %v5496
    %v5498 = vpop.f32.mrb[0].mxu0
    %5499 = vmatprep.mubr.bf16.mxu0 0
    %5500 = vmatmul.mubr.bf16.gmra.mrb[0].mxu0 %v5445
    %v5501 = vpop.f32.mrb[0].mxu0
    %v5502 = vadd.f32 0.0, %v5501
    %v5503 = vpop.f32.mrb[0].mxu0
    %v5504 = vpop.f32.mrb[0].mxu0
    %v5505 = vadd.f32 0.0, %v5504
    %v5506 = vpop.f32.mrb[0].mxu0
    %5507 = vmatprep.mubr.bf16.mxu0 0
    %5508 = vmatmul.mubr.bf16.gmra.mrb[0].mxu0 %v5448
    %v5509 = vpop.f32.mrb[0].mxu0
    %v5510 = vadd.f32 0.0, %v5509
    %v5511 = vpop.f32.mrb[0].mxu0
    %v5512 = vpop.f32.mrb[0].mxu0
    %v5513 = vadd.f32 0.0, %v5512
    %v5514 = vpop.f32.mrb[0].mxu0
    %5515 = vmatprep.mubr.bf16.mxu0 0
    %5516 = vmatmul.mubr.bf16.gmra.mrb[0].mxu0 %v5451
    %v5517 = vpop.f32.mrb[0].mxu0
    %v5518 = vadd.f32 0.0, %v5517
    %v5519 = vpop.f32.mrb[0].mxu0
    %v5520 = vpop.f32.mrb[0].mxu0
    %v5521 = vadd.f32 0.0, %v5520
    %v5522 = vpop.f32.mrb[0].mxu0
    %5523 = vmatprep.mubr.bf16.mxu0 0
    %5524 = vmatmul.mubr.bf16.gmra.mrb[0].mxu0 %v5454
    %v5525 = vpop.f32.mrb[0].mxu0
    %v5526 = vadd.f32 0.0, %v5525
    %v5527 = vpop.f32.mrb[0].mxu0
    %v5528 = vpop.f32.mrb[0].mxu0
    %v5529 = vadd.f32 0.0, %v5528
    %v5530 = vpop.f32.mrb[0].mxu0
    %5531 = vmatprep.mubr.bf16.mxu0 0
    %5532 = vmatmul.mubr.bf16.gmra.mrb[0].mxu0 %v5457
    %v5533 = vpop.f32.mrb[0].mxu0
    %v5534 = vadd.f32 0.0, %v5533
    %v5535 = vpop.f32.mrb[0].mxu0
    %v5536 = vpop.f32.mrb[0].mxu0
    %v5537 = vadd.f32 0.0, %v5536
    %v5538 = vpop.f32.mrb[0].mxu0
    %5539 = vdwg.mxu0
    %v5540 = vpack.c.bf16 %v5146, %v5143
    %v5541 = vpack.c.bf16 %v5154, %v5151
    %v5542 = vpack.c.bf16 %v5162, %v5159
    %v5543 = vpack.c.bf16 %v5170, %v5167
    %v5544 = vpack.c.bf16 %v5178, %v5175
    %v5545 = vpack.c.bf16 %v5186, %v5183
    %v5546 = vpack.c.bf16 %v5263, %v5260
    %v5547 = vpack.c.bf16 %v5271, %v5268
    %v5548 = vpack.c.bf16 %v5279, %v5276
    %v5549 = vpack.c.bf16 %v5287, %v5284
    %v5550 = vpack.c.bf16 %v5295, %v5292
    %v5551 = vpack.c.bf16 %v5303, %v5300
    %v5552 = vpack.c.bf16 %v5380, %v5377
    %v5553 = vpack.c.bf16 %v5388, %v5385
    %v5554 = vpack.c.bf16 %v5396, %v5393
    %v5555 = vpack.c.bf16 %v5404, %v5401
    %v5556 = vpack.c.bf16 %v5412, %v5409
    %v5557 = vpack.c.bf16 %v5420, %v5417
    %v5558 = vpack.c.bf16 %v5497, %v5494
    %v5559 = vpack.c.bf16 %v5505, %v5502
    %v5560 = vpack.c.bf16 %v5513, %v5510
    %v5561 = vpack.c.bf16 %v5521, %v5518
    %v5562 = vpack.c.bf16 %v5529, %v5526
    %v5563 = vpack.c.bf16 %v5537, %v5534
    %s5564 = scalar_lea.vmem [#allocation4], 16
    %v5565 = vld [vmem:[%s5564] sm:$0xf]
    %v5566 = vld [vmem:[%s5564 + $0x4] sm:$0xf]
    %v5567 = vld [vmem:[%s5564 + $0x8] sm:$0xf]
    %v5568 = vld [vmem:[%s5564 + $0xc] sm:$0xf]
    %v5570 = vsel %vm910, %v5540, 0
    %v5573 = vsel %vm910, %v5541, 0
    %v5576 = vsel %vm910, %v5542, 0
    %v5579 = vsel %vm910, %v5543, 0
    %v5582 = vsel %vm910, %v5544, 0
    %v5585 = vsel %vm910, %v5545, 0
    %v5588 = vsel %vm2500, %v5565, 0
    %5590 = vmatprep.subr.bf16.mxu0 0
    %5591 = vmatpush1.bf16.msra.mxu0 %v5588
    %5592 = vmatprep.subr.bf16.mxu0 0
    %5593 = vmatpush1.bf16.msra.mxu0 0
    %5594 = vmatprep.subr.bf16.mxu0 0
    %5595 = vmatpush1.bf16.msra.mxu0 0
    %5596 = vmatprep.subr.bf16.mxu0 0
    %5597 = vmatpush1.bf16.msra.mxu0 0
    %5598 = vmatprep.subr.bf16.mxu0 0
    %5599 = vmatpush1.bf16.msra.mxu0 0
    %5600 = vmatprep.subr.bf16.mxu0 0
    %5601 = vmatpush1.bf16.msra.mxu0 0
    %5602 = vmatprep.subr.bf16.mxu0 0
    %5603 = vmatpush1.bf16.msra.mxu0 0
    %5604 = vmatprep.subr.bf16.mxu0 0
    %5605 = vmatpush1.bf16.msra.mxu0 0
    %5606 = vmatprep.subr.bf16.mxu0 0
    %5607 = vmatpush1.bf16.msra.mxu0 0
    %5608 = vmatprep.subr.bf16.mxu0 0
    %5609 = vmatpush1.bf16.msra.mxu0 0
    %5610 = vmatprep.subr.bf16.mxu0 0
    %5611 = vmatpush1.bf16.msra.mxu0 0
    %5612 = vmatprep.subr.bf16.mxu0 0
    %5613 = vmatpush1.bf16.msra.mxu0 0
    %5614 = vmatprep.subr.bf16.mxu0 0
    %5615 = vmatpush1.bf16.msra.mxu0 0
    %5616 = vmatprep.subr.bf16.mxu0 0
    %5617 = vmatpush1.bf16.msra.mxu0 0
    %5618 = vmatprep.subr.bf16.mxu0 0
    %5619 = vmatpush1.bf16.msra.mxu0 0
    %5620 = vmatprep.subr.bf16.mxu0 0
    %5621 = vmatpush1.bf16.msra.mxu0 0
    %5622 = vmatprep.mubr.bf16.mxu0 0
    %5623 = vmatmul.mubr.bf16.gmra.mrb[0].mxu0 %v5570
    %v5624 = vpop.f32.mrb[0].mxu0
    %v5625 = vadd.f32 0.0, %v5624
    %v5626 = vpop.f32.mrb[0].mxu0
    %v5627 = vpop.f32.mrb[0].mxu0
    %v5628 = vadd.f32 0.0, %v5627
    %v5629 = vpop.f32.mrb[0].mxu0
    %5630 = vmatprep.mubr.bf16.mxu0 0
    %5631 = vmatmul.mubr.bf16.gmra.mrb[0].mxu0 %v5573
    %v5632 = vpop.f32.mrb[0].mxu0
    %v5633 = vadd.f32 0.0, %v5632
    %v5634 = vpop.f32.mrb[0].mxu0
    %v5635 = vpop.f32.mrb[0].mxu0
    %v5636 = vadd.f32 0.0, %v5635
    %v5637 = vpop.f32.mrb[0].mxu0
    %5638 = vmatprep.mubr.bf16.mxu0 0
    %5639 = vmatmul.mubr.bf16.gmra.mrb[0].mxu0 %v5576
    %v5640 = vpop.f32.mrb[0].mxu0
    %v5641 = vadd.f32 0.0, %v5640
    %v5642 = vpop.f32.mrb[0].mxu0
    %v5643 = vpop.f32.mrb[0].mxu0
    %v5644 = vadd.f32 0.0, %v5643
    %v5645 = vpop.f32.mrb[0].mxu0
    %5646 = vmatprep.mubr.bf16.mxu0 0
    %5647 = vmatmul.mubr.bf16.gmra.mrb[0].mxu0 %v5579
    %v5648 = vpop.f32.mrb[0].mxu0
    %v5649 = vadd.f32 0.0, %v5648
    %v5650 = vpop.f32.mrb[0].mxu0
    %v5651 = vpop.f32.mrb[0].mxu0
    %v5652 = vadd.f32 0.0, %v5651
    %v5653 = vpop.f32.mrb[0].mxu0
    %5654 = vmatprep.mubr.bf16.mxu0 0
    %5655 = vmatmul.mubr.bf16.gmra.mrb[0].mxu0 %v5582
    %v5656 = vpop.f32.mrb[0].mxu0
    %v5657 = vadd.f32 0.0, %v5656
    %v5658 = vpop.f32.mrb[0].mxu0
    %v5659 = vpop.f32.mrb[0].mxu0
    %v5660 = vadd.f32 0.0, %v5659
    %v5661 = vpop.f32.mrb[0].mxu0
    %5662 = vmatprep.mubr.bf16.mxu0 0
    %5663 = vmatmul.mubr.bf16.gmra.mrb[0].mxu0 %v5585
    %v5664 = vpop.f32.mrb[0].mxu0
    %v5665 = vadd.f32 0.0, %v5664
    %v5666 = vpop.f32.mrb[0].mxu0
    %v5667 = vpop.f32.mrb[0].mxu0
    %v5668 = vadd.f32 0.0, %v5667
    %v5669 = vpop.f32.mrb[0].mxu0
    %5670 = vdwg.mxu0
    %v5672 = vsel %vm910, %v5546, 0
    %v5675 = vsel %vm910, %v5547, 0
    %v5678 = vsel %vm910, %v5548, 0
    %v5681 = vsel %vm910, %v5549, 0
    %v5684 = vsel %vm910, %v5550, 0
    %v5687 = vsel %vm910, %v5551, 0
    %v5690 = vsel %vm2500, %v5566, 0
    %5692 = vmatprep.subr.bf16.mxu0 0
    %5693 = vmatpush1.bf16.msra.mxu0 %v5690
    %5694 = vmatprep.subr.bf16.mxu0 0
    %5695 = vmatpush1.bf16.msra.mxu0 0
    %5696 = vmatprep.subr.bf16.mxu0 0
    %5697 = vmatpush1.bf16.msra.mxu0 0
    %5698 = vmatprep.subr.bf16.mxu0 0
    %5699 = vmatpush1.bf16.msra.mxu0 0
    %5700 = vmatprep.subr.bf16.mxu0 0
    %5701 = vmatpush1.bf16.msra.mxu0 0
    %5702 = vmatprep.subr.bf16.mxu0 0
    %5703 = vmatpush1.bf16.msra.mxu0 0
    %5704 = vmatprep.subr.bf16.mxu0 0
    %5705 = vmatpush1.bf16.msra.mxu0 0
    %5706 = vmatprep.subr.bf16.mxu0 0
    %5707 = vmatpush1.bf16.msra.mxu0 0
    %5708 = vmatprep.subr.bf16.mxu0 0
    %5709 = vmatpush1.bf16.msra.mxu0 0
    %5710 = vmatprep.subr.bf16.mxu0 0
    %5711 = vmatpush1.bf16.msra.mxu0 0
    %5712 = vmatprep.subr.bf16.mxu0 0
    %5713 = vmatpush1.bf16.msra.mxu0 0
    %5714 = vmatprep.subr.bf16.mxu0 0
    %5715 = vmatpush1.bf16.msra.mxu0 0
    %5716 = vmatprep.subr.bf16.mxu0 0
    %5717 = vmatpush1.bf16.msra.mxu0 0
    %5718 = vmatprep.subr.bf16.mxu0 0
    %5719 = vmatpush1.bf16.msra.mxu0 0
    %5720 = vmatprep.subr.bf16.mxu0 0
    %5721 = vmatpush1.bf16.msra.mxu0 0
    %5722 = vmatprep.subr.bf16.mxu0 0
    %5723 = vmatpush1.bf16.msra.mxu0 0
    %5724 = vmatprep.mubr.bf16.mxu0 0
    %5725 = vmatmul.mubr.bf16.gmra.mrb[0].mxu0 %v5672
    %v5726 = vpop.f32.mrb[0].mxu0
    %v5727 = vadd.f32 0.0, %v5726
    %v5728 = vpop.f32.mrb[0].mxu0
    %v5729 = vpop.f32.mrb[0].mxu0
    %v5730 = vadd.f32 0.0, %v5729
    %v5731 = vpop.f32.mrb[0].mxu0
    %5732 = vmatprep.mubr.bf16.mxu0 0
    %5733 = vmatmul.mubr.bf16.gmra.mrb[0].mxu0 %v5675
    %v5734 = vpop.f32.mrb[0].mxu0
    %v5735 = vadd.f32 0.0, %v5734
    %v5736 = vpop.f32.mrb[0].mxu0
    %v5737 = vpop.f32.mrb[0].mxu0
    %v5738 = vadd.f32 0.0, %v5737
    %v5739 = vpop.f32.mrb[0].mxu0
    %5740 = vmatprep.mubr.bf16.mxu0 0
    %5741 = vmatmul.mubr.bf16.gmra.mrb[0].mxu0 %v5678
    %v5742 = vpop.f32.mrb[0].mxu0
    %v5743 = vadd.f32 0.0, %v5742
    %v5744 = vpop.f32.mrb[0].mxu0
    %v5745 = vpop.f32.mrb[0].mxu0
    %v5746 = vadd.f32 0.0, %v5745
    %v5747 = vpop.f32.mrb[0].mxu0
    %5748 = vmatprep.mubr.bf16.mxu0 0
    %5749 = vmatmul.mubr.bf16.gmra.mrb[0].mxu0 %v5681
    %v5750 = vpop.f32.mrb[0].mxu0
    %v5751 = vadd.f32 0.0, %v5750
    %v5752 = vpop.f32.mrb[0].mxu0
    %v5753 = vpop.f32.mrb[0].mxu0
    %v5754 = vadd.f32 0.0, %v5753
    %v5755 = vpop.f32.mrb[0].mxu0
    %5756 = vmatprep.mubr.bf16.mxu0 0
    %5757 = vmatmul.mubr.bf16.gmra.mrb[0].mxu0 %v5684
    %v5758 = vpop.f32.mrb[0].mxu0
    %v5759 = vadd.f32 0.0, %v5758
    %v5760 = vpop.f32.mrb[0].mxu0
    %v5761 = vpop.f32.mrb[0].mxu0
    %v5762 = vadd.f32 0.0, %v5761
    %v5763 = vpop.f32.mrb[0].mxu0
    %5764 = vmatprep.mubr.bf16.mxu0 0
    %5765 = vmatmul.mubr.bf16.gmra.mrb[0].mxu0 %v5687
    %v5766 = vpop.f32.mrb[0].mxu0
    %v5767 = vadd.f32 0.0, %v5766
    %v5768 = vpop.f32.mrb[0].mxu0
    %v5769 = vpop.f32.mrb[0].mxu0
    %v5770 = vadd.f32 0.0, %v5769
    %v5771 = vpop.f32.mrb[0].mxu0
    %5772 = vdwg.mxu0
    %v5774 = vsel %vm910, %v5552, 0
    %v5777 = vsel %vm910, %v5553, 0
    %v5780 = vsel %vm910, %v5554, 0
    %v5783 = vsel %vm910, %v5555, 0
    %v5786 = vsel %vm910, %v5556, 0
    %v5789 = vsel %vm910, %v5557, 0
    %v5792 = vsel %vm2500, %v5567, 0
    %5794 = vmatprep.subr.bf16.mxu0 0
    %5795 = vmatpush1.bf16.msra.mxu0 %v5792
    %5796 = vmatprep.subr.bf16.mxu0 0
    %5797 = vmatpush1.bf16.msra.mxu0 0
    %5798 = vmatprep.subr.bf16.mxu0 0
    %5799 = vmatpush1.bf16.msra.mxu0 0
    %5800 = vmatprep.subr.bf16.mxu0 0
    %5801 = vmatpush1.bf16.msra.mxu0 0
    %5802 = vmatprep.subr.bf16.mxu0 0
    %5803 = vmatpush1.bf16.msra.mxu0 0
    %5804 = vmatprep.subr.bf16.mxu0 0
    %5805 = vmatpush1.bf16.msra.mxu0 0
    %5806 = vmatprep.subr.bf16.mxu0 0
    %5807 = vmatpush1.bf16.msra.mxu0 0
    %5808 = vmatprep.subr.bf16.mxu0 0
    %5809 = vmatpush1.bf16.msra.mxu0 0
    %5810 = vmatprep.subr.bf16.mxu0 0
    %5811 = vmatpush1.bf16.msra.mxu0 0
    %5812 = vmatprep.subr.bf16.mxu0 0
    %5813 = vmatpush1.bf16.msra.mxu0 0
    %5814 = vmatprep.subr.bf16.mxu0 0
    %5815 = vmatpush1.bf16.msra.mxu0 0
    %5816 = vmatprep.subr.bf16.mxu0 0
    %5817 = vmatpush1.bf16.msra.mxu0 0
    %5818 = vmatprep.subr.bf16.mxu0 0
    %5819 = vmatpush1.bf16.msra.mxu0 0
    %5820 = vmatprep.subr.bf16.mxu0 0
    %5821 = vmatpush1.bf16.msra.mxu0 0
    %5822 = vmatprep.subr.bf16.mxu0 0
    %5823 = vmatpush1.bf16.msra.mxu0 0
    %5824 = vmatprep.subr.bf16.mxu0 0
    %5825 = vmatpush1.bf16.msra.mxu0 0
    %5826 = vmatprep.mubr.bf16.mxu0 0
    %5827 = vmatmul.mubr.bf16.gmra.mrb[0].mxu0 %v5774
    %v5828 = vpop.f32.mrb[0].mxu0
    %v5829 = vadd.f32 0.0, %v5828
    %v5830 = vpop.f32.mrb[0].mxu0
    %v5831 = vpop.f32.mrb[0].mxu0
    %v5832 = vadd.f32 0.0, %v5831
    %v5833 = vpop.f32.mrb[0].mxu0
    %5834 = vmatprep.mubr.bf16.mxu0 0
    %5835 = vmatmul.mubr.bf16.gmra.mrb[0].mxu0 %v5777
    %v5836 = vpop.f32.mrb[0].mxu0
    %v5837 = vadd.f32 0.0, %v5836
    %v5838 = vpop.f32.mrb[0].mxu0
    %v5839 = vpop.f32.mrb[0].mxu0
    %v5840 = vadd.f32 0.0, %v5839
    %v5841 = vpop.f32.mrb[0].mxu0
    %5842 = vmatprep.mubr.bf16.mxu0 0
    %5843 = vmatmul.mubr.bf16.gmra.mrb[0].mxu0 %v5780
    %v5844 = vpop.f32.mrb[0].mxu0
    %v5845 = vadd.f32 0.0, %v5844
    %v5846 = vpop.f32.mrb[0].mxu0
    %v5847 = vpop.f32.mrb[0].mxu0
    %v5848 = vadd.f32 0.0, %v5847
    %v5849 = vpop.f32.mrb[0].mxu0
    %5850 = vmatprep.mubr.bf16.mxu0 0
    %5851 = vmatmul.mubr.bf16.gmra.mrb[0].mxu0 %v5783
    %v5852 = vpop.f32.mrb[0].mxu0
    %v5853 = vadd.f32 0.0, %v5852
    %v5854 = vpop.f32.mrb[0].mxu0
    %v5855 = vpop.f32.mrb[0].mxu0
    %v5856 = vadd.f32 0.0, %v5855
    %v5857 = vpop.f32.mrb[0].mxu0
    %5858 = vmatprep.mubr.bf16.mxu0 0
    %5859 = vmatmul.mubr.bf16.gmra.mrb[0].mxu0 %v5786
    %v5860 = vpop.f32.mrb[0].mxu0
    %v5861 = vadd.f32 0.0, %v5860
    %v5862 = vpop.f32.mrb[0].mxu0
    %v5863 = vpop.f32.mrb[0].mxu0
    %v5864 = vadd.f32 0.0, %v5863
    %v5865 = vpop.f32.mrb[0].mxu0
    %5866 = vmatprep.mubr.bf16.mxu0 0
    %5867 = vmatmul.mubr.bf16.gmra.mrb[0].mxu0 %v5789
    %v5868 = vpop.f32.mrb[0].mxu0
    %v5869 = vadd.f32 0.0, %v5868
    %v5870 = vpop.f32.mrb[0].mxu0
    %v5871 = vpop.f32.mrb[0].mxu0
    %v5872 = vadd.f32 0.0, %v5871
    %v5873 = vpop.f32.mrb[0].mxu0
    %5874 = vdwg.mxu0
    %v5876 = vsel %vm910, %v5558, 0
    %v5879 = vsel %vm910, %v5559, 0
    %v5882 = vsel %vm910, %v5560, 0
    %v5885 = vsel %vm910, %v5561, 0
    %v5888 = vsel %vm910, %v5562, 0
    %v5891 = vsel %vm910, %v5563, 0
    %v5894 = vsel %vm2500, %v5568, 0
    %5896 = vmatprep.subr.bf16.mxu0 0
    %5897 = vmatpush1.bf16.msra.mxu0 %v5894
    %5898 = vmatprep.subr.bf16.mxu0 0
    %5899 = vmatpush1.bf16.msra.mxu0 0
    %5900 = vmatprep.subr.bf16.mxu0 0
    %5901 = vmatpush1.bf16.msra.mxu0 0
    %5902 = vmatprep.subr.bf16.mxu0 0
    %5903 = vmatpush1.bf16.msra.mxu0 0
    %5904 = vmatprep.subr.bf16.mxu0 0
    %5905 = vmatpush1.bf16.msra.mxu0 0
    %5906 = vmatprep.subr.bf16.mxu0 0
    %5907 = vmatpush1.bf16.msra.mxu0 0
    %5908 = vmatprep.subr.bf16.mxu0 0
    %5909 = vmatpush1.bf16.msra.mxu0 0
    %5910 = vmatprep.subr.bf16.mxu0 0
    %5911 = vmatpush1.bf16.msra.mxu0 0
    %5912 = vmatprep.subr.bf16.mxu0 0
    %5913 = vmatpush1.bf16.msra.mxu0 0
    %5914 = vmatprep.subr.bf16.mxu0 0
    %5915 = vmatpush1.bf16.msra.mxu0 0
    %5916 = vmatprep.subr.bf16.mxu0 0
    %5917 = vmatpush1.bf16.msra.mxu0 0
    %5918 = vmatprep.subr.bf16.mxu0 0
    %5919 = vmatpush1.bf16.msra.mxu0 0
    %5920 = vmatprep.subr.bf16.mxu0 0
    %5921 = vmatpush1.bf16.msra.mxu0 0
    %5922 = vmatprep.subr.bf16.mxu0 0
    %5923 = vmatpush1.bf16.msra.mxu0 0
    %5924 = vmatprep.subr.bf16.mxu0 0
    %5925 = vmatpush1.bf16.msra.mxu0 0
    %5926 = vmatprep.subr.bf16.mxu0 0
    %5927 = vmatpush1.bf16.msra.mxu0 0
    %5928 = vmatprep.mubr.bf16.mxu0 0
    %5929 = vmatmul.mubr.bf16.gmra.mrb[0].mxu0 %v5876
    %v5930 = vpop.f32.mrb[0].mxu0
    %v5931 = vadd.f32 0.0, %v5930
    %v5932 = vpop.f32.mrb[0].mxu0
    %v5933 = vpop.f32.mrb[0].mxu0
    %v5934 = vadd.f32 0.0, %v5933
    %v5935 = vpop.f32.mrb[0].mxu0
    %5936 = vmatprep.mubr.bf16.mxu0 0
    %5937 = vmatmul.mubr.bf16.gmra.mrb[0].mxu0 %v5879
    %v5938 = vpop.f32.mrb[0].mxu0
    %v5939 = vadd.f32 0.0, %v5938
    %v5940 = vpop.f32.mrb[0].mxu0
    %v5941 = vpop.f32.mrb[0].mxu0
    %v5942 = vadd.f32 0.0, %v5941
    %v5943 = vpop.f32.mrb[0].mxu0
    %5944 = vmatprep.mubr.bf16.mxu0 0
    %5945 = vmatmul.mubr.bf16.gmra.mrb[0].mxu0 %v5882
    %v5946 = vpop.f32.mrb[0].mxu0
    %v5947 = vadd.f32 0.0, %v5946
    %v5948 = vpop.f32.mrb[0].mxu0
    %v5949 = vpop.f32.mrb[0].mxu0
    %v5950 = vadd.f32 0.0, %v5949
    %v5951 = vpop.f32.mrb[0].mxu0
    %5952 = vmatprep.mubr.bf16.mxu0 0
    %5953 = vmatmul.mubr.bf16.gmra.mrb[0].mxu0 %v5885
    %v5954 = vpop.f32.mrb[0].mxu0
    %v5955 = vadd.f32 0.0, %v5954
    %v5956 = vpop.f32.mrb[0].mxu0
    %v5957 = vpop.f32.mrb[0].mxu0
    %v5958 = vadd.f32 0.0, %v5957
    %v5959 = vpop.f32.mrb[0].mxu0
    %5960 = vmatprep.mubr.bf16.mxu0 0
    %5961 = vmatmul.mubr.bf16.gmra.mrb[0].mxu0 %v5888
    %v5962 = vpop.f32.mrb[0].mxu0
    %v5963 = vadd.f32 0.0, %v5962
    %v5964 = vpop.f32.mrb[0].mxu0
    %v5965 = vpop.f32.mrb[0].mxu0
    %v5966 = vadd.f32 0.0, %v5965
    %v5967 = vpop.f32.mrb[0].mxu0
    %5968 = vmatprep.mubr.bf16.mxu0 0
    %5969 = vmatmul.mubr.bf16.gmra.mrb[0].mxu0 %v5891
    %v5970 = vpop.f32.mrb[0].mxu0
    %v5971 = vadd.f32 0.0, %v5970
    %v5972 = vpop.f32.mrb[0].mxu0
    %v5973 = vpop.f32.mrb[0].mxu0
    %v5974 = vadd.f32 0.0, %v5973
    %v5975 = vpop.f32.mrb[0].mxu0
    %5976 = vdwg.mxu0
    %v5977 = vsel %vm305, %v5625, 0.0
    %v5978 = vsel %vm305, %v5727, 0.0
    %v5979 = vadd.f32 %v5977, %v5978
    %v5980 = vsel %vm305, %v5829, 0.0
    %v5981 = vadd.f32 %v5979, %v5980
    %v5982 = vsel %vm305, %v5931, 0.0
    %v5983 = vadd.f32 %v5981, %v5982
    %v5984 = vsel %vm305, %v5628, 0.0
    %v5985 = vsel %vm305, %v5730, 0.0
    %v5986 = vadd.f32 %v5984, %v5985
    %v5987 = vsel %vm305, %v5832, 0.0
    %v5988 = vadd.f32 %v5986, %v5987
    %v5989 = vsel %vm305, %v5934, 0.0
    %v5990 = vadd.f32 %v5988, %v5989
    %v5991 = vsel %vm305, %v5633, 0.0
    %v5992 = vsel %vm305, %v5735, 0.0
    %v5993 = vadd.f32 %v5991, %v5992
    %v5994 = vsel %vm305, %v5837, 0.0
    %v5995 = vadd.f32 %v5993, %v5994
    %v5996 = vsel %vm305, %v5939, 0.0
    %v5997 = vadd.f32 %v5995, %v5996
    %v5998 = vsel %vm305, %v5636, 0.0
    %v5999 = vsel %vm305, %v5738, 0.0
    %v6000 = vadd.f32 %v5998, %v5999
    %v6001 = vsel %vm305, %v5840, 0.0
    %v6002 = vadd.f32 %v6000, %v6001
    %v6003 = vsel %vm305, %v5942, 0.0
    %v6004 = vadd.f32 %v6002, %v6003
    %v6005 = vsel %vm305, %v5641, 0.0
    %v6006 = vsel %vm305, %v5743, 0.0
    %v6007 = vadd.f32 %v6005, %v6006
    %v6008 = vsel %vm305, %v5845, 0.0
    %v6009 = vadd.f32 %v6007, %v6008
    %v6010 = vsel %vm305, %v5947, 0.0
    %v6011 = vadd.f32 %v6009, %v6010
    %v6012 = vsel %vm305, %v5644, 0.0
    %v6013 = vsel %vm305, %v5746, 0.0
    %v6014 = vadd.f32 %v6012, %v6013
    %v6015 = vsel %vm305, %v5848, 0.0
    %v6016 = vadd.f32 %v6014, %v6015
    %v6017 = vsel %vm305, %v5950, 0.0
    %v6018 = vadd.f32 %v6016, %v6017
    %v6019 = vsel %vm305, %v5649, 0.0
    %v6020 = vsel %vm305, %v5751, 0.0
    %v6021 = vadd.f32 %v6019, %v6020
    %v6022 = vsel %vm305, %v5853, 0.0
    %v6023 = vadd.f32 %v6021, %v6022
    %v6024 = vsel %vm305, %v5955, 0.0
    %v6025 = vadd.f32 %v6023, %v6024
    %v6026 = vsel %vm305, %v5652, 0.0
    %v6027 = vsel %vm305, %v5754, 0.0
    %v6028 = vadd.f32 %v6026, %v6027
    %v6029 = vsel %vm305, %v5856, 0.0
    %v6030 = vadd.f32 %v6028, %v6029
    %v6031 = vsel %vm305, %v5958, 0.0
    %v6032 = vadd.f32 %v6030, %v6031
    %v6033 = vsel %vm305, %v5657, 0.0
    %v6034 = vsel %vm305, %v5759, 0.0
    %v6035 = vadd.f32 %v6033, %v6034
    %v6036 = vsel %vm305, %v5861, 0.0
    %v6037 = vadd.f32 %v6035, %v6036
    %v6038 = vsel %vm305, %v5963, 0.0
    %v6039 = vadd.f32 %v6037, %v6038
    %v6040 = vsel %vm305, %v5660, 0.0
    %v6041 = vsel %vm305, %v5762, 0.0
    %v6042 = vadd.f32 %v6040, %v6041
    %v6043 = vsel %vm305, %v5864, 0.0
    %v6044 = vadd.f32 %v6042, %v6043
    %v6045 = vsel %vm305, %v5966, 0.0
    %v6046 = vadd.f32 %v6044, %v6045
    %v6047 = vsel %vm305, %v5665, 0.0
    %v6048 = vsel %vm305, %v5767, 0.0
    %v6049 = vadd.f32 %v6047, %v6048
    %v6050 = vsel %vm305, %v5869, 0.0
    %v6051 = vadd.f32 %v6049, %v6050
    %v6052 = vsel %vm305, %v5971, 0.0
    %v6053 = vadd.f32 %v6051, %v6052
    %v6054 = vsel %vm305, %v5668, 0.0
    %v6055 = vsel %vm305, %v5770, 0.0
    %v6056 = vadd.f32 %v6054, %v6055
    %v6057 = vsel %vm305, %v5872, 0.0
    %v6058 = vadd.f32 %v6056, %v6057
    %v6059 = vsel %vm305, %v5974, 0.0
    %v6060 = vadd.f32 %v6058, %v6059
    %v6061 = vadd.f32 %v3370, %v5983
    %v6062 = vadd.f32 %v3371, %v5990
    %v6063 = vadd.f32 %v3372, %v5997
    %v6064 = vadd.f32 %v3373, %v6004
    %v6065 = vadd.f32 %v3374, %v6011
    %v6066 = vadd.f32 %v3375, %v6018
    %v6067 = vadd.f32 %v3376, %v6025
    %v6068 = vadd.f32 %v3377, %v6032
    %v6069 = vadd.f32 %v3378, %v6039
    %v6070 = vadd.f32 %v3379, %v6046
    %v6071 = vadd.f32 %v3380, %v6053
    %v6072 = vadd.f32 %v3381, %v6060
    %v6073 = vmul.f32 %v6061, %v6061
    %v6074 = vmul.f32 %v6062, %v6062
    %v6075 = vmul.f32 %v6063, %v6063
    %v6076 = vmul.f32 %v6064, %v6064
    %v6077 = vmul.f32 %v6065, %v6065
    %v6078 = vmul.f32 %v6066, %v6066
    %v6079 = vmul.f32 %v6067, %v6067
    %v6080 = vmul.f32 %v6068, %v6068
    %v6081 = vmul.f32 %v6069, %v6069
    %v6082 = vmul.f32 %v6070, %v6070
    %v6083 = vmul.f32 %v6071, %v6071
    %v6084 = vmul.f32 %v6072, %v6072
    %v6085 = vsel %vm305, %v6073, 0.0
    %6086 = vadd.xlane.f32.xlu0 %v6085
    %v6087 = vpop.xlane.xlu0 %6086
    %v6088 = vsel %vm305, %v6074, 0.0
    %6089 = vadd.xlane.f32.xlu0 %v6088
    %v6090 = vpop.xlane.xlu0 %6089
    %v6091 = vsel %vm305, %v6075, 0.0
    %6092 = vadd.xlane.f32.xlu0 %v6091
    %v6093 = vpop.xlane.xlu0 %6092
    %v6094 = vsel %vm305, %v6076, 0.0
    %6095 = vadd.xlane.f32.xlu0 %v6094
    %v6096 = vpop.xlane.xlu0 %6095
    %v6097 = vsel %vm305, %v6077, 0.0
    %6098 = vadd.xlane.f32.xlu0 %v6097
    %v6099 = vpop.xlane.xlu0 %6098
    %v6100 = vsel %vm305, %v6078, 0.0
    %6101 = vadd.xlane.f32.xlu0 %v6100
    %v6102 = vpop.xlane.xlu0 %6101
    %v6103 = vsel %vm305, %v6079, 0.0
    %6104 = vadd.xlane.f32.xlu0 %v6103
    %v6105 = vpop.xlane.xlu0 %6104
    %v6106 = vsel %vm305, %v6080, 0.0
    %6107 = vadd.xlane.f32.xlu0 %v6106
    %v6108 = vpop.xlane.xlu0 %6107
    %v6109 = vsel %vm305, %v6081, 0.0
    %6110 = vadd.xlane.f32.xlu0 %v6109
    %v6111 = vpop.xlane.xlu0 %6110
    %v6112 = vsel %vm305, %v6082, 0.0
    %6113 = vadd.xlane.f32.xlu0 %v6112
    %v6114 = vpop.xlane.xlu0 %6113
    %v6115 = vsel %vm305, %v6083, 0.0
    %6116 = vadd.xlane.f32.xlu0 %v6115
    %v6117 = vpop.xlane.xlu0 %6116
    %v6118 = vsel %vm305, %v6084, 0.0
    %6119 = vadd.xlane.f32.xlu0 %v6118
    %v6120 = vpop.xlane.xlu0 %6119
    %v6121 = vmul.f32 %v6087, %v342
    %v6122 = vmul.f32 %v6090, %v342
    %v6123 = vmul.f32 %v6093, %v342
    %v6124 = vmul.f32 %v6096, %v342
    %v6125 = vmul.f32 %v6099, %v342
    %v6126 = vmul.f32 %v6102, %v342
    %v6127 = vmul.f32 %v6105, %v342
    %v6128 = vmul.f32 %v6108, %v342
    %v6129 = vmul.f32 %v6111, %v342
    %v6130 = vmul.f32 %v6114, %v342
    %v6131 = vmul.f32 %v6117, %v342
    %v6132 = vmul.f32 %v6120, %v342
    %v6133 = vadd.f32 %v6121, 1e-06
    %v6134 = vadd.f32 %v6122, 1e-06
    %v6135 = vadd.f32 %v6123, 1e-06
    %v6136 = vadd.f32 %v6124, 1e-06
    %v6137 = vadd.f32 %v6125, 1e-06
    %v6138 = vadd.f32 %v6126, 1e-06
    %v6139 = vadd.f32 %v6127, 1e-06
    %v6140 = vadd.f32 %v6128, 1e-06
    %v6141 = vadd.f32 %v6129, 1e-06
    %v6142 = vadd.f32 %v6130, 1e-06
    %v6143 = vadd.f32 %v6131, 1e-06
    %v6144 = vadd.f32 %v6132, 1e-06
    %v6145 = vrsqrt.pop %v6133
    %v6146 = vrsqrt.pop %v6134
    %v6147 = vrsqrt.pop %v6135
    %v6148 = vrsqrt.pop %v6136
    %v6149 = vrsqrt.pop %v6137
    %v6150 = vrsqrt.pop %v6138
    %v6151 = vrsqrt.pop %v6139
    %v6152 = vrsqrt.pop %v6140
    %v6153 = vrsqrt.pop %v6141
    %v6154 = vrsqrt.pop %v6142
    %v6155 = vrsqrt.pop %v6143
    %v6156 = vrsqrt.pop %v6144
    %v6157 = vmul.f32 %v6061, %v6145
    %v6158 = vmul.f32 %v6062, %v6146
    %v6159 = vmul.f32 %v6063, %v6147
    %v6160 = vmul.f32 %v6064, %v6148
    %v6161 = vmul.f32 %v6065, %v6149
    %v6162 = vmul.f32 %v6066, %v6150
    %v6163 = vmul.f32 %v6067, %v6151
    %v6164 = vmul.f32 %v6068, %v6152
    %v6165 = vmul.f32 %v6069, %v6153
    %v6166 = vmul.f32 %v6070, %v6154
    %v6167 = vmul.f32 %v6071, %v6155
    %v6168 = vmul.f32 %v6072, %v6156
    %v6169 = vld [vmem:[#allocation2 + $0x3] sm:$0x1]
    %v6170 = vlaneseq
    %v6171 = vshrl.u32 %v6170, 7
    %v6172 = vsub.s32 0, %v6171
    %v6173 = vrot.slane %v6169, %v6172
    %v6174 = vmul.f32 %v6157, %v6173
    %v6175 = vmul.f32 %v6158, %v6173
    %v6176 = vmul.f32 %v6159, %v6173
    %v6177 = vmul.f32 %v6160, %v6173
    %v6178 = vmul.f32 %v6161, %v6173
    %v6179 = vmul.f32 %v6162, %v6173
    %v6180 = vmul.f32 %v6163, %v6173
    %v6181 = vmul.f32 %v6164, %v6173
    %v6182 = vmul.f32 %v6165, %v6173
    %v6183 = vmul.f32 %v6166, %v6173
    %v6184 = vmul.f32 %v6167, %v6173
    %v6185 = vmul.f32 %v6168, %v6173
    %v6186 = vpack.c.bf16 %v6175, %v6174
    %v6187 = vpack.c.bf16 %v6177, %v6176
    %v6188 = vpack.c.bf16 %v6179, %v6178
    %v6189 = vpack.c.bf16 %v6181, %v6180
    %v6190 = vpack.c.bf16 %v6183, %v6182
    %v6191 = vpack.c.bf16 %v6185, %v6184
    %s6192 = scalar_lea.vmem [#allocation6], 16
    %v6193 = vld [vmem:[%s6192] sm:$0xf]
    %v6194 = vld [vmem:[%s6192 + $0x4] sm:$0xf]
    %v6195 = vld [vmem:[%s6192 + $0x8] sm:$0xf]
    %v6196 = vld [vmem:[%s6192 + $0xc] sm:$0xf]
    %v6201 = vunpack.c.l.b16 %v6193
    %v6202 = vunpack.c.l.b16 %v6194
    %v6203 = vunpack.c.l.b16 %v6195
    %v6204 = vunpack.c.l.b16 %v6196
    %v6205 = vpack.c.b16 %v6202, %v6201
    %v6206 = vpack.c.b16 %v6204, %v6203
    %v6210 = vsel %vm305, %v6186, 0
    %v6213 = vsel %vm305, %v6187, 0
    %v6216 = vsel %vm305, %v6188, 0
    %v6219 = vsel %vm305, %v6189, 0
    %v6222 = vsel %vm305, %v6190, 0
    %v6225 = vsel %vm305, %v6191, 0
    %6227 = vmatprep.subr.bf16.mxu0 0
    %6228 = vmatpush1.bf16.msra.mxu0 %v6205
    %6229 = vmatprep.subr.bf16.mxu0 0
    %6230 = vmatpush1.bf16.msra.mxu0 %v6206
    %6231 = vmatprep.subr.bf16.mxu0 0
    %6232 = vmatpush1.bf16.msra.mxu0 0
    %6233 = vmatprep.subr.bf16.mxu0 0
    %6234 = vmatpush1.bf16.msra.mxu0 0
    %6235 = vmatprep.subr.bf16.mxu0 0
    %6236 = vmatpush1.bf16.msra.mxu0 0
    %6237 = vmatprep.subr.bf16.mxu0 0
    %6238 = vmatpush1.bf16.msra.mxu0 0
    %6239 = vmatprep.subr.bf16.mxu0 0
    %6240 = vmatpush1.bf16.msra.mxu0 0
    %6241 = vmatprep.subr.bf16.mxu0 0
    %6242 = vmatpush1.bf16.msra.mxu0 0
    %6243 = vmatprep.subr.bf16.mxu0 0
    %6244 = vmatpush1.bf16.msra.mxu0 0
    %6245 = vmatprep.subr.bf16.mxu0 0
    %6246 = vmatpush1.bf16.msra.mxu0 0
    %6247 = vmatprep.subr.bf16.mxu0 0
    %6248 = vmatpush1.bf16.msra.mxu0 0
    %6249 = vmatprep.subr.bf16.mxu0 0
    %6250 = vmatpush1.bf16.msra.mxu0 0
    %6251 = vmatprep.subr.bf16.mxu0 0
    %6252 = vmatpush1.bf16.msra.mxu0 0
    %6253 = vmatprep.subr.bf16.mxu0 0
    %6254 = vmatpush1.bf16.msra.mxu0 0
    %6255 = vmatprep.subr.bf16.mxu0 0
    %6256 = vmatpush1.bf16.msra.mxu0 0
    %6257 = vmatprep.subr.bf16.mxu0 0
    %6258 = vmatpush1.bf16.msra.mxu0 0
    %6259 = vmatprep.mubr.bf16.mxu0 0
    %6260 = vmatmul.mubr.bf16.gmra.mrb[0].mxu0 %v6210
    %v6261 = vpop.f32.mrb[0].mxu0
    %v6262 = vadd.f32 0.0, %v6261
    %v6263 = vpop.f32.mrb[0].mxu0
    %v6264 = vpop.f32.mrb[0].mxu0
    %v6265 = vadd.f32 0.0, %v6264
    %v6266 = vpop.f32.mrb[0].mxu0
    %6267 = vmatprep.mubr.bf16.mxu0 0
    %6268 = vmatmul.mubr.bf16.gmra.mrb[0].mxu0 %v6213
    %v6269 = vpop.f32.mrb[0].mxu0
    %v6270 = vadd.f32 0.0, %v6269
    %v6271 = vpop.f32.mrb[0].mxu0
    %v6272 = vpop.f32.mrb[0].mxu0
    %v6273 = vadd.f32 0.0, %v6272
    %v6274 = vpop.f32.mrb[0].mxu0
    %6275 = vmatprep.mubr.bf16.mxu0 0
    %6276 = vmatmul.mubr.bf16.gmra.mrb[0].mxu0 %v6216
    %v6277 = vpop.f32.mrb[0].mxu0
    %v6278 = vadd.f32 0.0, %v6277
    %v6279 = vpop.f32.mrb[0].mxu0
    %v6280 = vpop.f32.mrb[0].mxu0
    %v6281 = vadd.f32 0.0, %v6280
    %v6282 = vpop.f32.mrb[0].mxu0
    %6283 = vmatprep.mubr.bf16.mxu0 0
    %6284 = vmatmul.mubr.bf16.gmra.mrb[0].mxu0 %v6219
    %v6285 = vpop.f32.mrb[0].mxu0
    %v6286 = vadd.f32 0.0, %v6285
    %v6287 = vpop.f32.mrb[0].mxu0
    %v6288 = vpop.f32.mrb[0].mxu0
    %v6289 = vadd.f32 0.0, %v6288
    %v6290 = vpop.f32.mrb[0].mxu0
    %6291 = vmatprep.mubr.bf16.mxu0 0
    %6292 = vmatmul.mubr.bf16.gmra.mrb[0].mxu0 %v6222
    %v6293 = vpop.f32.mrb[0].mxu0
    %v6294 = vadd.f32 0.0, %v6293
    %v6295 = vpop.f32.mrb[0].mxu0
    %v6296 = vpop.f32.mrb[0].mxu0
    %v6297 = vadd.f32 0.0, %v6296
    %v6298 = vpop.f32.mrb[0].mxu0
    %6299 = vmatprep.mubr.bf16.mxu0 0
    %6300 = vmatmul.mubr.bf16.gmra.mrb[0].mxu0 %v6225
    %v6301 = vpop.f32.mrb[0].mxu0
    %v6302 = vadd.f32 0.0, %v6301
    %v6303 = vpop.f32.mrb[0].mxu0
    %v6304 = vpop.f32.mrb[0].mxu0
    %v6305 = vadd.f32 0.0, %v6304
    %v6306 = vpop.f32.mrb[0].mxu0
    %6307 = vdwg.mxu0
    %v6308 = vmax.f32 %v6262, 0.0
    %v6309 = vmax.f32 %v6265, 0.0
    %v6310 = vmax.f32 %v6270, 0.0
    %v6311 = vmax.f32 %v6273, 0.0
    %v6312 = vmax.f32 %v6278, 0.0
    %v6313 = vmax.f32 %v6281, 0.0
    %v6314 = vmax.f32 %v6286, 0.0
    %v6315 = vmax.f32 %v6289, 0.0
    %v6316 = vmax.f32 %v6294, 0.0
    %v6317 = vmax.f32 %v6297, 0.0
    %v6318 = vmax.f32 %v6302, 0.0
    %v6319 = vmax.f32 %v6305, 0.0
    %v6320 = vpack.c.bf16 %v6309, %v6308
    %v6321 = vpack.c.bf16 %v6311, %v6310
    %v6322 = vpack.c.bf16 %v6313, %v6312
    %v6323 = vpack.c.bf16 %v6315, %v6314
    %v6324 = vpack.c.bf16 %v6317, %v6316
    %v6325 = vpack.c.bf16 %v6319, %v6318
    %s6326 = scalar_lea.vmem %s7, 32
    %v6327 = vld [vmem:[%s6326] sm:$0xf]
    %v6328 = vld [vmem:[%s6326 + $0x4] sm:$0xf]
    %v6329 = vld [vmem:[%s6326 + $0x8] sm:$0xf]
    %v6330 = vld [vmem:[%s6326 + $0xc] sm:$0xf]
    %v6331 = vld [vmem:[%s6326 + $0x10] sm:$0xf]
    %v6332 = vld [vmem:[%s6326 + $0x14] sm:$0xf]
    %v6333 = vld [vmem:[%s6326 + $0x18] sm:$0xf]
    %v6334 = vld [vmem:[%s6326 + $0x1c] sm:$0xf]
    %v6343 = vunpack.c.l.b16 %v6327
    %v6344 = vunpack.c.l.b16 %v6328
    %v6345 = vunpack.c.l.b16 %v6329
    %v6346 = vunpack.c.l.b16 %v6330
    %v6347 = vunpack.c.l.b16 %v6331
    %v6348 = vunpack.c.l.b16 %v6332
    %v6349 = vunpack.c.l.b16 %v6333
    %v6350 = vunpack.c.l.b16 %v6334
    %v6351 = vpack.c.b16 %v6344, %v6343
    %v6352 = vpack.c.b16 %v6346, %v6345
    %v6353 = vpack.c.b16 %v6348, %v6347
    %v6354 = vpack.c.b16 %v6350, %v6349
    %v6360 = vsel %vm193, %v6320, 0
    %v6363 = vsel %vm193, %v6321, 0
    %v6366 = vsel %vm193, %v6322, 0
    %v6369 = vsel %vm193, %v6323, 0
    %v6372 = vsel %vm193, %v6324, 0
    %v6375 = vsel %vm193, %v6325, 0
    %6377 = vmatprep.subr.bf16.mxu0 0
    %6378 = vmatpush1.bf16.msra.mxu0 %v6351
    %6379 = vmatprep.subr.bf16.mxu0 0
    %6380 = vmatpush1.bf16.msra.mxu0 %v6352
    %6381 = vmatprep.subr.bf16.mxu0 0
    %6382 = vmatpush1.bf16.msra.mxu0 %v6353
    %6383 = vmatprep.subr.bf16.mxu0 0
    %6384 = vmatpush1.bf16.msra.mxu0 %v6354
    %6385 = vmatprep.subr.bf16.mxu0 0
    %6386 = vmatpush1.bf16.msra.mxu0 0
    %6387 = vmatprep.subr.bf16.mxu0 0
    %6388 = vmatpush1.bf16.msra.mxu0 0
    %6389 = vmatprep.subr.bf16.mxu0 0
    %6390 = vmatpush1.bf16.msra.mxu0 0
    %6391 = vmatprep.subr.bf16.mxu0 0
    %6392 = vmatpush1.bf16.msra.mxu0 0
    %6393 = vmatprep.subr.bf16.mxu0 0
    %6394 = vmatpush1.bf16.msra.mxu0 0
    %6395 = vmatprep.subr.bf16.mxu0 0
    %6396 = vmatpush1.bf16.msra.mxu0 0
    %6397 = vmatprep.subr.bf16.mxu0 0
    %6398 = vmatpush1.bf16.msra.mxu0 0
    %6399 = vmatprep.subr.bf16.mxu0 0
    %6400 = vmatpush1.bf16.msra.mxu0 0
    %6401 = vmatprep.subr.bf16.mxu0 0
    %6402 = vmatpush1.bf16.msra.mxu0 0
    %6403 = vmatprep.subr.bf16.mxu0 0
    %6404 = vmatpush1.bf16.msra.mxu0 0
    %6405 = vmatprep.subr.bf16.mxu0 0
    %6406 = vmatpush1.bf16.msra.mxu0 0
    %6407 = vmatprep.subr.bf16.mxu0 0
    %6408 = vmatpush1.bf16.msra.mxu0 0
    %6409 = vmatprep.mubr.bf16.mxu0 0
    %6410 = vmatmul.mubr.bf16.gmra.mrb[0].mxu0 %v6360
    %v6411 = vpop.f32.mrb[0].mxu0
    %v6412 = vadd.f32 0.0, %v6411
    %v6413 = vpop.f32.mrb[0].mxu0
    %v6414 = vpop.f32.mrb[0].mxu0
    %v6415 = vadd.f32 0.0, %v6414
    %v6416 = vpop.f32.mrb[0].mxu0
    %6417 = vmatprep.mubr.bf16.mxu0 0
    %6418 = vmatmul.mubr.bf16.gmra.mrb[0].mxu0 %v6363
    %v6419 = vpop.f32.mrb[0].mxu0
    %v6420 = vadd.f32 0.0, %v6419
    %v6421 = vpop.f32.mrb[0].mxu0
    %v6422 = vpop.f32.mrb[0].mxu0
    %v6423 = vadd.f32 0.0, %v6422
    %v6424 = vpop.f32.mrb[0].mxu0
    %6425 = vmatprep.mubr.bf16.mxu0 0
    %6426 = vmatmul.mubr.bf16.gmra.mrb[0].mxu0 %v6366
    %v6427 = vpop.f32.mrb[0].mxu0
    %v6428 = vadd.f32 0.0, %v6427
    %v6429 = vpop.f32.mrb[0].mxu0
    %v6430 = vpop.f32.mrb[0].mxu0
    %v6431 = vadd.f32 0.0, %v6430
    %v6432 = vpop.f32.mrb[0].mxu0
    %6433 = vmatprep.mubr.bf16.mxu0 0
    %6434 = vmatmul.mubr.bf16.gmra.mrb[0].mxu0 %v6369
    %v6435 = vpop.f32.mrb[0].mxu0
    %v6436 = vadd.f32 0.0, %v6435
    %v6437 = vpop.f32.mrb[0].mxu0
    %v6438 = vpop.f32.mrb[0].mxu0
    %v6439 = vadd.f32 0.0, %v6438
    %v6440 = vpop.f32.mrb[0].mxu0
    %6441 = vmatprep.mubr.bf16.mxu0 0
    %6442 = vmatmul.mubr.bf16.gmra.mrb[0].mxu0 %v6372
    %v6443 = vpop.f32.mrb[0].mxu0
    %v6444 = vadd.f32 0.0, %v6443
    %v6445 = vpop.f32.mrb[0].mxu0
    %v6446 = vpop.f32.mrb[0].mxu0
    %v6447 = vadd.f32 0.0, %v6446
    %v6448 = vpop.f32.mrb[0].mxu0
    %6449 = vmatprep.mubr.bf16.mxu0 0
    %6450 = vmatmul.mubr.bf16.gmra.mrb[0].mxu0 %v6375
    %v6451 = vpop.f32.mrb[0].mxu0
    %v6452 = vadd.f32 0.0, %v6451
    %v6453 = vpop.f32.mrb[0].mxu0
    %v6454 = vpop.f32.mrb[0].mxu0
    %v6455 = vadd.f32 0.0, %v6454
    %v6456 = vpop.f32.mrb[0].mxu0
    %6457 = vdwg.mxu0
    %v6458 = vadd.f32 %v6061, %v6412
    %v6459 = vadd.f32 %v6062, %v6415
    %v6460 = vadd.f32 %v6063, %v6420
    %v6461 = vadd.f32 %v6064, %v6423
    %v6462 = vadd.f32 %v6065, %v6428
    %v6463 = vadd.f32 %v6066, %v6431
    %v6464 = vadd.f32 %v6067, %v6436
    %v6465 = vadd.f32 %v6068, %v6439
    %v6466 = vadd.f32 %v6069, %v6444
    %v6467 = vadd.f32 %v6070, %v6447
    %v6468 = vadd.f32 %v6071, %v6452
    %v6469 = vadd.f32 %v6072, %v6455
    %v6470 = vmul.f32 %v6458, %v6458
    %v6471 = vmul.f32 %v6459, %v6459
    %v6472 = vmul.f32 %v6460, %v6460
    %v6473 = vmul.f32 %v6461, %v6461
    %v6474 = vmul.f32 %v6462, %v6462
    %v6475 = vmul.f32 %v6463, %v6463
    %v6476 = vmul.f32 %v6464, %v6464
    %v6477 = vmul.f32 %v6465, %v6465
    %v6478 = vmul.f32 %v6466, %v6466
    %v6479 = vmul.f32 %v6467, %v6467
    %v6480 = vmul.f32 %v6468, %v6468
    %v6481 = vmul.f32 %v6469, %v6469
    %v6494 = vrot.slane %v6471, 7
    %v6495 = vrot.slane %v6472, 6
    %vm6496 = vcmask 1041409
    %v6497 = vsel %vm6496, %v6495, %v6494
    %v6498 = vrot.slane %v6473, 5
    %vm6499 = vcmask 1042434
    %v6500 = vsel %vm6499, %v6498, %v6497
    %v6501 = vrot.slane %v6474, 4
    %vm6502 = vcmask 1043459
    %v6503 = vsel %vm6502, %v6501, %v6500
    %v6504 = vrot.slane %v6475, 3
    %vm6505 = vcmask 1044484
    %v6506 = vsel %vm6505, %v6504, %v6503
    %v6507 = vrot.slane %v6476, 2
    %vm6508 = vcmask 1045509
    %v6509 = vsel %vm6508, %v6507, %v6506
    %v6510 = vrot.slane %v6477, 1
    %vm6511 = vcmask 1046534
    %v6512 = vsel %vm6511, %v6510, %v6509
    %vm6513 = vcmask 1047559
    %v6514 = vsel %vm6513, %v6478, %v6512
    %v6515 = vrot.slane %v6479, 7
    %v6516 = vrot.slane %v6480, 6
    %v6517 = vsel %vm6496, %v6516, %v6515
    %v6518 = vrot.slane %v6481, 5
    %v6519 = vsel %vm6499, %v6518, %v6517
    %vm6523 = vcmask 261127
    %v6524 = vsel %vm6523, %v6470, 0.0
    %6525 = vadd.xlane.f32.xlu0 %v6524
    %v6526 = vpop.xlane.xlu0 %6525
    %v6527 = vsel %vm305, %v6514, 0.0
    %6528 = vadd.xlane.f32.xlu0 %v6527
    %v6529 = vpop.xlane.xlu0 %6528
    %vm6530 = vcmask 256000
    %v6531 = vsel %vm6530, %v6519, 0.0
    %6532 = vadd.xlane.f32.xlu0 %v6531
    %v6533 = vpop.xlane.xlu0 %6532
    %v6534 = vmul.f32 %v6526, %v342
    %v6535 = vmul.f32 %v6529, %v342
    %v6536 = vmul.f32 %v6533, %v342
    %v6537 = vadd.f32 %v6534, 1e-06
    %v6538 = vadd.f32 %v6535, 1e-06
    %v6539 = vadd.f32 %v6536, 1e-06
    %v6540 = vrsqrt.pop %v6537
    %v6541 = vrsqrt.pop %v6538
    %v6542 = vrsqrt.pop %v6539
    %v6546 = vrot.slane %v6541, 1
    %v6547 = vrot.slane %v6541, 2
    %v6548 = vrot.slane %v6541, 3
    %v6549 = vrot.slane %v6541, 4
    %v6550 = vrot.slane %v6541, 5
    %v6551 = vrot.slane %v6541, 6
    %v6552 = vrot.slane %v6541, 7
    %v6553 = vrot.slane %v6542, 1
    %v6554 = vrot.slane %v6542, 2
    %v6555 = vrot.slane %v6542, 3
    %v6568 = vmul.f32 %v6458, %v6540
    %v6569 = vmul.f32 %v6459, %v6546
    %v6570 = vmul.f32 %v6460, %v6547
    %v6571 = vmul.f32 %v6461, %v6548
    %v6572 = vmul.f32 %v6462, %v6549
    %v6573 = vmul.f32 %v6463, %v6550
    %v6574 = vmul.f32 %v6464, %v6551
    %v6575 = vmul.f32 %v6465, %v6552
    %v6576 = vmul.f32 %v6466, %v6541
    %v6577 = vmul.f32 %v6467, %v6553
    %v6578 = vmul.f32 %v6468, %v6554
    %v6579 = vmul.f32 %v6469, %v6555
    %v6580 = vld [vmem:[#allocation2 + $0x4] sm:$0x1]
    %v6581 = vlaneseq
    %v6582 = vshrl.u32 %v6581, 7
    %v6583 = vsub.s32 0, %v6582
    %v6584 = vrot.slane %v6580, %v6583
    %v6585 = vmul.f32 %v6568, %v6584
    %v6586 = vmul.f32 %v6569, %v6584
    %v6587 = vmul.f32 %v6570, %v6584
    %v6588 = vmul.f32 %v6571, %v6584
    %v6589 = vmul.f32 %v6572, %v6584
    %v6590 = vmul.f32 %v6573, %v6584
    %v6591 = vmul.f32 %v6574, %v6584
    %v6592 = vmul.f32 %v6575, %v6584
    %v6593 = vmul.f32 %v6576, %v6584
    %v6594 = vmul.f32 %v6577, %v6584
    %v6595 = vmul.f32 %v6578, %v6584
    %v6596 = vmul.f32 %v6579, %v6584
    %v6609 = vrot.slane %v6586, 7
    %v6610 = vrot.slane %v6587, 6
    %v6611 = vsel %vm6496, %v6610, %v6609
    %v6612 = vrot.slane %v6588, 5
    %v6613 = vsel %vm6499, %v6612, %v6611
    %v6614 = vrot.slane %v6589, 4
    %v6615 = vsel %vm6502, %v6614, %v6613
    %v6616 = vrot.slane %v6590, 3
    %v6617 = vsel %vm6505, %v6616, %v6615
    %v6618 = vrot.slane %v6591, 2
    %v6619 = vsel %vm6508, %v6618, %v6617
    %v6620 = vrot.slane %v6592, 1
    %v6621 = vsel %vm6511, %v6620, %v6619
    %v6622 = vsel %vm6513, %v6593, %v6621
    %v6623 = vrot.slane %v6594, 7
    %v6624 = vrot.slane %v6595, 6
    %v6625 = vsel %vm6496, %v6624, %v6623
    %v6626 = vrot.slane %v6596, 5
    %v6627 = vsel %vm6499, %v6626, %v6625
    %6631 = vst.msk [vmem:[%s8 - $0x7] sm:$0x80] %vm6523, %v6585
    %6632 = vst.msk [vmem:[%s8 + $0x1] sm:$0xff] %vm305, %v6622
    %6633 = vst.msk [vmem:[%s8 + $0x9] sm:$0x7] %vm6530, %v6627
    // Predicated region
    $region46: #{t5_encoder_text_only_forward.1} parent=1 // pred_check
      _
    $region47: #{t5_encoder_text_only_forward.1} parent=1 // pred_check_branch
      %6635 = sbr.rel (0) target = $region49
    $region48: #{t5_encoder_text_only_forward.1} parent=1 // pred_region
      _
    $region49: #{t5_encoder_text_only_forward.1} parent=1 // pred_fallthru
      _
    // Predicated region
    $region50: #{t5_encoder_text_only_forward.1} parent=1 // pred_check
      _
    $region51: #{t5_encoder_text_only_forward.1} parent=1 // pred_check_branch
      %6637 = sbr.rel (0) target = $region53
    $region52: #{t5_encoder_text_only_forward.1} parent=1 // pred_region
      _
    $region53: #{t5_encoder_text_only_forward.1} parent=1 // pred_fallthru
      _
    %6638 = vsyncpa [#allocation3], 1
    %6639 = vsyncpa [#allocation5], 1

</llo_original>
